<compile_context>
chip_gen: v7x
topology: tpu7x:2x2x1
jax: 0.10.0
libtpu: 0.0.40
codegen_flags: <defaults>
</compile_context>

<pallas_src>
import functools
import math

import jax
import jax.numpy as jnp
from jax.experimental import pallas as pl
from jax.experimental.pallas import tpu as pltpu


# ----------------------------------------------------------------------------
# Tiling helpers
# ----------------------------------------------------------------------------

def _round_up(x, m):
    return ((x + m - 1) // m) * m


def _tile_m(dim, cap=256):
    """Row tile: full (padded to 8) when small, otherwise cap (multiple of 16)."""
    if dim <= cap:
        p = _round_up(dim, 8)
        return p, p
    return cap, _round_up(dim, cap)


def _tile_divisor(dim, cap, align):
    """Largest tile <= cap that is a multiple of `align` and divides the padded dim."""
    p = _round_up(dim, align)
    t = min(cap, p)
    while p % t:
        t -= align
    return t, p


def _pad2d(a, rows, cols):
    r, c = a.shape
    if r == rows and c == cols:
        return a
    return jnp.pad(a, ((0, rows - r), (0, cols - c)))


# ----------------------------------------------------------------------------
# Pallas kernels
# ----------------------------------------------------------------------------

def _mm_bias_kernel(a_ref, b_ref, bias_ref, o_ref, acc_ref, *, relu):
    """Tiled matmul: o = maybe_relu(A @ B + bias). K is grid axis 2 (arbitrary)."""
    @pl.when(pl.program_id(2) == 0)
    def _():
        acc_ref[...] = jnp.zeros_like(acc_ref)

    acc_ref[...] += jnp.dot(a_ref[...], b_ref[...],
                            preferred_element_type=jnp.float32)

    @pl.when(pl.program_id(2) == pl.num_programs(2) - 1)
    def _():
        out = acc_ref[...] + bias_ref[...]
        if relu:
            out = jnp.maximum(out, 0.0)
        o_ref[...] = out.astype(o_ref.dtype)


def _mm_bias_res_kernel(a_ref, b_ref, bias_ref, r_ref, o_ref, acc_ref, *, relu):
    """Tiled matmul with fused residual: o = maybe_relu(A @ B + bias + residual)."""
    @pl.when(pl.program_id(2) == 0)
    def _():
        acc_ref[...] = jnp.zeros_like(acc_ref)

    acc_ref[...] += jnp.dot(a_ref[...], b_ref[...],
                            preferred_element_type=jnp.float32)

    @pl.when(pl.program_id(2) == pl.num_programs(2) - 1)
    def _():
        out = acc_ref[...] + bias_ref[...] + r_ref[...].astype(jnp.float32)
        if relu:
            out = jnp.maximum(out, 0.0)
        o_ref[...] = out.astype(o_ref.dtype)


def _affine_kernel(x_ref, s_ref, b_ref, o_ref):
    """o = x * scale + bias   (per-channel input normalization), bf16 output."""
    o_ref[...] = (x_ref[...] * s_ref[...] + b_ref[...]).astype(o_ref.dtype)


def _maxpool_kernel(x_ref, o_ref):
    """x: (KK, mb, C) stacked shifted windows -> o: (mb, C) = max over windows."""
    o_ref[...] = jnp.max(x_ref[...].astype(jnp.float32), axis=0).astype(o_ref.dtype)


# ----------------------------------------------------------------------------
# Pallas wrappers
# ----------------------------------------------------------------------------

_TM_CAP = 256   # output-row tile cap
_TN_CAP = 256   # output-col tile cap (multiple of 128, matches 2x256^2 MXU)
_TK_CAP = 512   # reduction tile cap


def matmul_bias_act(a, b, bias, residual=None, relu=True):
    """Tiled fused matmul: maybe_relu(a @ b + bias (+ residual)).

    a: (M, K) bf16 im2col patches, b: (K, N) bf16 BN-folded weights,
    bias: (N,) f32, residual: optional (M, N) bf16.  Returns (M, N) bf16.
    """
    M, K = a.shape
    K2, N = b.shape
    assert K2 == K

    tm, Mp = _tile_m(M, _TM_CAP)
    tn, Np = _tile_divisor(N, _TN_CAP, 128)
    tk, Kp = _tile_divisor(K, _TK_CAP, 128)

    a_p = _pad2d(a.astype(jnp.bfloat16), Mp, Kp)
    b_p = _pad2d(b.astype(jnp.bfloat16), Kp, Np)
    bias_p = jnp.pad(bias.astype(jnp.float32), (0, Np - N)).reshape(1, Np)

    in_specs = [
        pl.BlockSpec((tm, tk), lambda i, j, k: (i, k)),
        pl.BlockSpec((tk, tn), lambda i, j, k: (k, j)),
        pl.BlockSpec((1, tn), lambda i, j, k: (0, j)),
    ]
    args = [a_p, b_p, bias_p]
    bytes_accessed = Mp * Kp * 2 + Kp * Np * 2 + Mp * Np * 2 + Np * 4
    if residual is not None:
        r_p = _pad2d(residual.astype(jnp.bfloat16), Mp, Np)
        in_specs.append(pl.BlockSpec((tm, tn), lambda i, j, k: (i, j)))
        args.append(r_p)
        bytes_accessed += Mp * Np * 2
        kernel = functools.partial(_mm_bias_res_kernel, relu=relu)
    else:
        kernel = functools.partial(_mm_bias_kernel, relu=relu)

    out = pl.pallas_call(
        kernel,
        out_shape=jax.ShapeDtypeStruct((Mp, Np), jnp.bfloat16),
        grid_spec=pltpu.PrefetchScalarGridSpec(
            num_scalar_prefetch=0,
            grid=(Mp // tm, Np // tn, Kp // tk),
            in_specs=in_specs,
            out_specs=pl.BlockSpec((tm, tn), lambda i, j, k: (i, j)),
            scratch_shapes=[pltpu.VMEM((tm, tn), jnp.float32)],
        ),
        compiler_params=pltpu.CompilerParams(
            dimension_semantics=("parallel", "parallel", "arbitrary"),
            vmem_limit_bytes=32 * 1024 * 1024,
        ),
        cost_estimate=pl.CostEstimate(
            flops=2 * Mp * Np * Kp,
            transcendentals=0,
            bytes_accessed=bytes_accessed,
        ),
    )(*args)
    return out[:M, :N]


def normalize_input(x_nhwc, mean, std):
    """(x - mean) / std per channel; f32 in, bf16 out."""
    N, H, W, C = x_nhwc.shape
    rows = N * H * W
    x2 = x_nhwc.reshape(rows, C).astype(jnp.float32)
    rb, Rp = _tile_m(rows, 4096)
    if Rp != rows:
        x2 = jnp.pad(x2, ((0, Rp - rows), (0, 0)))
    s = (1.0 / std).reshape(1, C).astype(jnp.float32)
    b = (-mean / std).reshape(1, C).astype(jnp.float32)
    out = pl.pallas_call(
        _affine_kernel,
        out_shape=jax.ShapeDtypeStruct((Rp, C), jnp.bfloat16),
        grid_spec=pltpu.PrefetchScalarGridSpec(
            num_scalar_prefetch=0,
            grid=(Rp // rb,),
            in_specs=[
                pl.BlockSpec((rb, C), lambda i: (i, 0)),
                pl.BlockSpec((1, C), lambda i: (0, 0)),
                pl.BlockSpec((1, C), lambda i: (0, 0)),
            ],
            out_specs=pl.BlockSpec((rb, C), lambda i: (i, 0)),
        ),
        compiler_params=pltpu.CompilerParams(
            dimension_semantics=("parallel",)),
    )(x2, s, b)
    return out[:rows].reshape(N, H, W, C)


def maxpool_3x3_s2_p1(x):
    """PyTorch nn.MaxPool2d(kernel_size=3, stride=2, padding=1) on NHWC (bf16)."""
    # TODO(synk): fuse the shifted-window extraction into the kernel (read padded
    # c1 once) instead of materializing 9 shifted slabs in HBM.
    N, H, W, C = x.shape
    k, s, pad = 3, 2, 1
    OH = (H + 2 * pad - k) // s + 1
    OW = (W + 2 * pad - k) // s + 1
    xp = jnp.pad(x, ((0, 0), (pad, pad), (pad, pad), (0, 0)),
                 constant_values=-jnp.inf)
    cols = [xp[:, i:i + s * OH:s, j:j + s * OW:s, :]
            for i in range(k) for j in range(k)]
    M = N * OH * OW
    stacked = jnp.stack(cols, axis=0).reshape(k * k, M, C)
    mb, Mp = _tile_m(M, 1024)
    if Mp != M:
        stacked = jnp.pad(stacked, ((0, 0), (0, Mp - M), (0, 0)))
    out = pl.pallas_call(
        _maxpool_kernel,
        out_shape=jax.ShapeDtypeStruct((Mp, C), jnp.bfloat16),
        grid_spec=pltpu.PrefetchScalarGridSpec(
            num_scalar_prefetch=0,
            grid=(Mp // mb,),
            in_specs=[pl.BlockSpec((k * k, mb, C), lambda i: (0, i, 0))],
            out_specs=pl.BlockSpec((mb, C), lambda i: (i, 0)),
        ),
        compiler_params=pltpu.CompilerParams(
            dimension_semantics=("parallel",)),
    )(stacked)
    return out[:M].reshape(N, OH, OW, C)


# ----------------------------------------------------------------------------
# Convolution = im2col (JAX glue) + tiled fused Pallas matmul
# ----------------------------------------------------------------------------

def _im2col(x, kh, kw, stride, pad):
    # TODO(synk): fold the KH*KW taps into the matmul's K grid axis (shifted-window
    # index_map) so the activation is not replicated KH*KW times in HBM.
    N, H, W, C = x.shape
    OH = (H + 2 * pad - kh) // stride + 1
    OW = (W + 2 * pad - kw) // stride + 1
    xp = jnp.pad(x, ((0, 0), (pad, pad), (pad, pad), (0, 0)))
    cols = []
    for i in range(kh):
        for j in range(kw):
            cols.append(xp[:, i:i + stride * OH:stride, j:j + stride * OW:stride, :])
    patches = jnp.stack(cols, axis=3)                  # (N, OH, OW, KH*KW, C)
    patches = patches.reshape(N * OH * OW, kh * kw * C)
    return patches, OH, OW


def conv2d_bn(x, p, relu=True, residual=None):
    """x: NHWC bf16.  p: dict with BN-scale-folded bf16 weight (K, OC), f32 bias."""
    N, H, W, C = x.shape
    kh, kw, stride, pad = p["kh"], p["kw"], p["stride"], p["pad"]
    if kh == 1 and kw == 1 and pad == 0:
        xs = x[:, ::stride, ::stride, :]
        _, OH, OW, _ = xs.shape
        patches = xs.reshape(N * OH * OW, C)
    else:
        patches, OH, OW = _im2col(x, kh, kw, stride, pad)
    res2d = residual.reshape(N * OH * OW, -1) if residual is not None else None
    out = matmul_bias_act(patches, p["w"], p["bias"], residual=res2d, relu=relu)
    return out.reshape(N, OH, OW, -1)


# ----------------------------------------------------------------------------
# Deterministic synthetic parameters (ResNet-50 conv1 + layer1..layer3)
# ----------------------------------------------------------------------------

def _make_conv(key, kh, kw, ic, oc, stride, pad):
    kw_key, g_key = jax.random.split(key)
    fan_in = kh * kw * ic
    w = jax.random.normal(kw_key, (kh, kw, ic, oc), jnp.float32) * (1.0 / math.sqrt(fan_in))
    # inference-mode BatchNorm folded into scale/bias; scale folded into weights
    gamma = 1.0 + 0.05 * jax.random.normal(g_key, (oc,), jnp.float32)
    beta = jnp.zeros((oc,), jnp.float32)
    running_mean = jnp.zeros((oc,), jnp.float32)
    running_var = jnp.ones((oc,), jnp.float32)
    eps = 1e-5
    scale = gamma / jnp.sqrt(running_var + eps)
    bias = beta - running_mean * scale
    w_folded = (w.reshape(fan_in, oc) * scale[None, :]).astype(jnp.bfloat16)
    return dict(w=w_folded, bias=bias.astype(jnp.float32),
                kh=kh, kw=kw, stride=stride, pad=pad)


def _make_bottleneck(key, inplanes, planes, stride, has_downsample):
    k = jax.random.split(key, 4)
    return dict(
        conv1=_make_conv(k[0], 1, 1, inplanes, planes, 1, 0),
        conv2=_make_conv(k[1], 3, 3, planes, planes, stride, 1),   # torchvision V1.5: stride on 3x3
        conv3=_make_conv(k[2], 1, 1, planes, planes * 4, 1, 0),
        downsample=_make_conv(k[3], 1, 1, inplanes, planes * 4, stride, 0)
        if has_downsample else None,
    )


def _make_layer(key, inplanes, planes, blocks, stride):
    keys = jax.random.split(key, blocks)
    params = [_make_bottleneck(keys[0], inplanes, planes, stride, True)]
    for i in range(1, blocks):
        params.append(_make_bottleneck(keys[i], planes * 4, planes, 1, False))
    return params


def make_encoder_params(key):
    k = jax.random.split(key, 4)
    return dict(
        mean=jnp.array([0.485, 0.456, 0.406], jnp.float32),
        std=jnp.array([0.229, 0.224, 0.225], jnp.float32),
        conv1=_make_conv(k[0], 7, 7, 3, 64, 2, 3),
        res2=_make_layer(k[1], 64, 64, 3, 1),     # layer1
        res3=_make_layer(k[2], 256, 128, 4, 2),   # layer2
        res4=_make_layer(k[3], 512, 256, 6, 2),   # layer3
    )


# ----------------------------------------------------------------------------
# Forward pass (matches Encoder_Q.forward)
# ----------------------------------------------------------------------------

def _bottleneck_fwd(x, p):
    # TODO(synk): fuse the whole 1x1->3x3->1x1(+downsample,+res,+ReLU) chain into
    # one pallas_call keeping intermediates in VMEM (amortizes per-call overhead
    # at small spatial sizes).
    identity = x
    out = conv2d_bn(x, p["conv1"], relu=True)
    out = conv2d_bn(out, p["conv2"], relu=True)
    if p["downsample"] is not None:
        identity = conv2d_bn(x, p["downsample"], relu=False)
    # out = relu(bn3(conv3(out)) + identity), fused in the matmul kernel epilogue
    out = conv2d_bn(out, p["conv3"], relu=True, residual=identity)
    return out


def encoder_q_forward(in_f_nchw, params):
    x = jnp.transpose(in_f_nchw.astype(jnp.float32), (0, 2, 3, 1))  # NCHW -> NHWC
    f = normalize_input(x, params["mean"], params["std"])
    c1 = conv2d_bn(f, params["conv1"], relu=True)
    x = maxpool_3x3_s2_p1(c1)
    r2 = x
    for bp in params["res2"]:
        r2 = _bottleneck_fwd(r2, bp)
    r3 = r2
    for bp in params["res3"]:
        r3 = _bottleneck_fwd(r3, bp)
    r4 = r3
    for bp in params["res4"]:
        r4 = _bottleneck_fwd(r4, bp)
    to_nchw = lambda t: jnp.transpose(t, (0, 3, 1, 2)).astype(jnp.float32)
    return to_nchw(r4), to_nchw(r3), to_nchw(r2), to_nchw(c1)


# ----------------------------------------------------------------------------

if __name__ == "__main__":
    key = jax.random.PRNGKey(0)
    pkey, xkey = jax.random.split(key)

    # TODO(synk): pretrained ImageNet weights cannot be loaded in-script;
    # parameters are deterministic synthetic initializations.
    params = make_encoder_params(pkey)

    in_f = jax.random.uniform(xkey, (2, 3, 16, 16), jnp.float32)

    fwd = jax.jit(lambda x: encoder_q_forward(x, params))
    r4, r3, r2, c1 = fwd(in_f)
    jax.block_until_ready((r4, r3, r2, c1))

    assert r4.shape == (2, 1024, 1, 1), r4.shape
    assert r3.shape == (2, 512, 2, 2), r3.shape
    assert r2.shape == (2, 256, 4, 4), r2.shape
    assert c1.shape == (2, 64, 8, 8), c1.shape
    assert all(bool(jnp.all(jnp.isfinite(t))) for t in (r4, r3, r2, c1))

    print("KERNEL_OK")
</pallas_src>

<mosaic_0001>
module attributes {stable_mosaic.version = 11 : i64} {
  func.func @_affine_kernel(%arg0: i32, %arg1: memref<512x3xf32, #tpu.memory_space<vmem>>, %arg2: memref<1x3xf32, #tpu.memory_space<vmem>>, %arg3: memref<1x3xf32, #tpu.memory_space<vmem>>, %arg4: memref<512x3xbf16, #tpu.memory_space<vmem>>) attributes {dimension_semantics = [#tpu.dimension_semantics<parallel>], iteration_bounds = array<i64: 1>, scalar_prefetch = 0 : i64, scratch_operands = 0 : i64, tpu.core_type = #tpu.core_type<tc>, window_params = [{transform_indices = @transform_0, window_bounds = array<i64: 512, 3>}, {pipeline_mode = #tpu.pipeline_mode<synchronous>, transform_indices = @transform_1, window_bounds = array<i64: 1, 3>}, {pipeline_mode = #tpu.pipeline_mode<synchronous>, transform_indices = @transform_2, window_bounds = array<i64: 1, 3>}, {transform_indices = @transform_3, window_bounds = array<i64: 512, 3>}]} {
    %c0 = arith.constant 0 : index
    %c0_0 = arith.constant 0 : index
    %0 = vector.load %arg1[%c0, %c0_0] : memref<512x3xf32, #tpu.memory_space<vmem>>, vector<512x3xf32>
    %c0_1 = arith.constant 0 : index
    %c0_2 = arith.constant 0 : index
    %1 = vector.load %arg2[%c0_1, %c0_2] : memref<1x3xf32, #tpu.memory_space<vmem>>, vector<1x3xf32>
    %2 = vector.broadcast %1 : vector<1x3xf32> to vector<512x3xf32>
    %3 = arith.mulf %0, %2 : vector<512x3xf32>
    %c0_3 = arith.constant 0 : index
    %c0_4 = arith.constant 0 : index
    %4 = vector.load %arg3[%c0_3, %c0_4] : memref<1x3xf32, #tpu.memory_space<vmem>>, vector<1x3xf32>
    %5 = vector.broadcast %4 : vector<1x3xf32> to vector<512x3xf32>
    %6 = arith.addf %3, %5 : vector<512x3xf32>
    %7 = arith.truncf %6 : vector<512x3xf32> to vector<512x3xbf16>
    %c0_5 = arith.constant 0 : index
    %c0_6 = arith.constant 0 : index
    %8 = vector.load %arg4[%c0_5, %c0_6] : memref<512x3xbf16, #tpu.memory_space<vmem>>, vector<512x3xbf16>
    tpu.vector_store %arg4[%c0_5, %c0_6], %7 {strides = array<i32>} : memref<512x3xbf16, #tpu.memory_space<vmem>>, vector<512x3xbf16>,
    return
  }
  func.func @transform_0(%arg0: i32) -> (i32, i32) {
    %c0_i32 = arith.constant 0 : i32
    %c0_i32_0 = arith.constant 0 : i32
    return %arg0, %c0_i32 : i32, i32
  }
  func.func @transform_1(%arg0: i32) -> (i32, i32) {
    %c0_i32 = arith.constant 0 : i32
    %c0_i32_0 = arith.constant 0 : i32
    %c0_i32_1 = arith.constant 0 : i32
    return %c0_i32, %c0_i32_0 : i32, i32
  }
  func.func @transform_2(%arg0: i32) -> (i32, i32) {
    %c0_i32 = arith.constant 0 : i32
    %c0_i32_0 = arith.constant 0 : i32
    %c0_i32_1 = arith.constant 0 : i32
    return %c0_i32, %c0_i32_0 : i32, i32
  }
  func.func @transform_3(%arg0: i32) -> (i32, i32) {
    %c0_i32 = arith.constant 0 : i32
    %c0_i32_0 = arith.constant 0 : i32
    return %arg0, %c0_i32 : i32, i32
  }
}

module attributes {stable_mosaic.version = 11 : i64} {
  func.func @_mm_bias_kernel(%arg0: i32, %arg1: i32, %arg2: i32, %arg3: memref<128x256xbf16, #tpu.memory_space<vmem>>, %arg4: memref<256x128xbf16, #tpu.memory_space<vmem>>, %arg5: memref<1x128xf32, #tpu.memory_space<vmem>>, %arg6: memref<128x128xbf16, #tpu.memory_space<vmem>>, %arg7: memref<128x128xf32, #tpu.memory_space<vmem>>) attributes {dimension_semantics = [#tpu.dimension_semantics<parallel>, #tpu.dimension_semantics<parallel>, #tpu.dimension_semantics<arbitrary>], iteration_bounds = array<i64: 1, 1, 1>, scalar_prefetch = 0 : i64, scratch_operands = 1 : i64, tpu.core_type = #tpu.core_type<tc>, window_params = [{transform_indices = @transform_0, window_bounds = array<i64: 128, 256>}, {transform_indices = @transform_1, window_bounds = array<i64: 256, 128>}, {transform_indices = @transform_2, window_bounds = array<i64: 1, 128>}, {transform_indices = @transform_3, window_bounds = array<i64: 128, 128>}]} {
    %c0_i32 = arith.constant 0 : i32
    %0 = arith.cmpi eq, %arg2, %c0_i32 : i32
    %1 = arith.extui %0 : i1 to i32
    %c0_i32_0 = arith.constant 0 : i32
    %2 = arith.cmpi ne, %1, %c0_i32_0 : i32
    scf.if %2 {
      %cst_10 = arith.constant 0.000000e+00 : f32
      %12 = vector.broadcast %cst_10 : f32 to vector<128x128xf32>
      %c0_11 = arith.constant 0 : index
      %c0_12 = arith.constant 0 : index
      %13 = vector.load %arg7[%c0_11, %c0_12] : memref<128x128xf32, #tpu.memory_space<vmem>>, vector<128x128xf32>
      tpu.vector_store %arg7[%c0_11, %c0_12], %12 {strides = array<i32>} : memref<128x128xf32, #tpu.memory_space<vmem>>, vector<128x128xf32>,
    } else {
    }
    %c0 = arith.constant 0 : index
    %c0_1 = arith.constant 0 : index
    %3 = vector.load %arg7[%c0, %c0_1] : memref<128x128xf32, #tpu.memory_space<vmem>>, vector<128x128xf32>
    %c0_2 = arith.constant 0 : index
    %c0_3 = arith.constant 0 : index
    %4 = vector.load %arg3[%c0_2, %c0_3] : memref<128x256xbf16, #tpu.memory_space<vmem>>, vector<128x256xbf16>
    %c0_4 = arith.constant 0 : index
    %c0_5 = arith.constant 0 : index
    %5 = vector.load %arg4[%c0_4, %c0_5] : memref<256x128xbf16, #tpu.memory_space<vmem>>, vector<256x128xbf16>
    %cst = arith.constant dense<0.000000e+00> : vector<128x128xf32>
    %6 = tpu.matmul %4, %5, %cst {dimension_numbers = #tpu.dot_dimension_numbers<[1], [0], [0], [1], [0, 0, 1, 1], [], []>} : vector<128x256xbf16>, vector<256x128xbf16>, vector<128x128xf32> -> vector<128x128xf32>
    %7 = arith.addf %3, %6 : vector<128x128xf32>
    %c0_6 = arith.constant 0 : index
    %c0_7 = arith.constant 0 : index
    %8 = vector.load %arg7[%c0_6, %c0_7] : memref<128x128xf32, #tpu.memory_space<vmem>>, vector<128x128xf32>
    tpu.vector_store %arg7[%c0_6, %c0_7], %7 {strides = array<i32>} : memref<128x128xf32, #tpu.memory_space<vmem>>, vector<128x128xf32>,
    %c0_i32_8 = arith.constant 0 : i32
    %9 = arith.cmpi eq, %arg2, %c0_i32_8 : i32
    %10 = arith.extui %9 : i1 to i32
    %c0_i32_9 = arith.constant 0 : i32
    %11 = arith.cmpi ne, %10, %c0_i32_9 : i32
    scf.if %11 {
      %c0_10 = arith.constant 0 : index
      %c0_11 = arith.constant 0 : index
      %12 = vector.load %arg7[%c0_10, %c0_11] : memref<128x128xf32, #tpu.memory_space<vmem>>, vector<128x128xf32>
      %c0_12 = arith.constant 0 : index
      %c0_13 = arith.constant 0 : index
      %13 = vector.load %arg5[%c0_12, %c0_13] : memref<1x128xf32, #tpu.memory_space<vmem>>, vector<1x128xf32>
      %14 = vector.broadcast %13 : vector<1x128xf32> to vector<128x128xf32>
      %15 = arith.addf %12, %14 : vector<128x128xf32>
      %cst_14 = arith.constant 0.000000e+00 : f32
      %16 = vector.broadcast %cst_14 : f32 to vector<128x128xf32>
      %17 = arith.maximumf %15, %16 : vector<128x128xf32>
      %18 = arith.truncf %17 : vector<128x128xf32> to vector<128x128xbf16>
      %c0_15 = arith.constant 0 : index
      %c0_16 = arith.constant 0 : index
      %19 = vector.load %arg6[%c0_15, %c0_16] : memref<128x128xbf16, #tpu.memory_space<vmem>>, vector<128x128xbf16>
      tpu.vector_store %arg6[%c0_15, %c0_16], %18 {strides = array<i32>} : memref<128x128xbf16, #tpu.memory_space<vmem>>, vector<128x128xbf16>,
    } else {
    }
    return
  }
  func.func @transform_0(%arg0: i32, %arg1: i32, %arg2: i32) -> (i32, i32) {
    %c0_i32 = arith.constant 0 : i32
    return %arg0, %arg2 : i32, i32
  }
  func.func @transform_1(%arg0: i32, %arg1: i32, %arg2: i32) -> (i32, i32) {
    %c0_i32 = arith.constant 0 : i32
    return %arg2, %arg1 : i32, i32
  }
  func.func @transform_2(%arg0: i32, %arg1: i32, %arg2: i32) -> (i32, i32) {
    %c0_i32 = arith.constant 0 : i32
    %c0_i32_0 = arith.constant 0 : i32
    return %c0_i32, %arg1 : i32, i32
  }
  func.func @transform_3(%arg0: i32, %arg1: i32, %arg2: i32) -> (i32, i32) {
    %c0_i32 = arith.constant 0 : i32
    return %arg0, %arg1 : i32, i32
  }
}

module attributes {stable_mosaic.version = 11 : i64} {
  func.func @_maxpool_kernel(%arg0: i32, %arg1: memref<9x32x64xbf16, #tpu.memory_space<vmem>>, %arg2: memref<32x64xbf16, #tpu.memory_space<vmem>>) attributes {dimension_semantics = [#tpu.dimension_semantics<parallel>], iteration_bounds = array<i64: 1>, scalar_prefetch = 0 : i64, scratch_operands = 0 : i64, tpu.core_type = #tpu.core_type<tc>, window_params = [{transform_indices = @transform_0, window_bounds = array<i64: 9, 32, 64>}, {transform_indices = @transform_1, window_bounds = array<i64: 32, 64>}]} {
    %c0 = arith.constant 0 : index
    %c0_0 = arith.constant 0 : index
    %c0_1 = arith.constant 0 : index
    %0 = vector.load %arg1[%c0, %c0_0, %c0_1] : memref<9x32x64xbf16, #tpu.memory_space<vmem>>, vector<9x32x64xbf16>
    %1 = arith.extf %0 : vector<9x32x64xbf16> to vector<9x32x64xf32>
    %cst = arith.constant dense<0xFF800000> : vector<32x64xf32>
    %2 = vector.multi_reduction <maximumf>, %1, %cst [0] : vector<9x32x64xf32> to vector<32x64xf32>
    %3 = arith.truncf %2 : vector<32x64xf32> to vector<32x64xbf16>
    %c0_2 = arith.constant 0 : index
    %c0_3 = arith.constant 0 : index
    %4 = vector.load %arg2[%c0_2, %c0_3] : memref<32x64xbf16, #tpu.memory_space<vmem>>, vector<32x64xbf16>
    tpu.vector_store %arg2[%c0_2, %c0_3], %3 {strides = array<i32>} : memref<32x64xbf16, #tpu.memory_space<vmem>>, vector<32x64xbf16>,
    return
  }
  func.func @transform_0(%arg0: i32) -> (i32, i32, i32) {
    %c0_i32 = arith.constant 0 : i32
    %c0_i32_0 = arith.constant 0 : i32
    %c0_i32_1 = arith.constant 0 : i32
    return %c0_i32, %arg0, %c0_i32_0 : i32, i32, i32
  }
  func.func @transform_1(%arg0: i32) -> (i32, i32) {
    %c0_i32 = arith.constant 0 : i32
    %c0_i32_0 = arith.constant 0 : i32
    return %arg0, %c0_i32 : i32, i32
  }
}

module attributes {stable_mosaic.version = 11 : i64} {
  func.func @_mm_bias_kernel(%arg0: i32, %arg1: i32, %arg2: i32, %arg3: memref<32x128xbf16, #tpu.memory_space<vmem>>, %arg4: memref<128x128xbf16, #tpu.memory_space<vmem>>, %arg5: memref<1x128xf32, #tpu.memory_space<vmem>>, %arg6: memref<32x128xbf16, #tpu.memory_space<vmem>>, %arg7: memref<32x128xf32, #tpu.memory_space<vmem>>) attributes {dimension_semantics = [#tpu.dimension_semantics<parallel>, #tpu.dimension_semantics<parallel>, #tpu.dimension_semantics<arbitrary>], iteration_bounds = array<i64: 1, 1, 1>, scalar_prefetch = 0 : i64, scratch_operands = 1 : i64, tpu.core_type = #tpu.core_type<tc>, window_params = [{transform_indices = @transform_0, window_bounds = array<i64: 32, 128>}, {transform_indices = @transform_1, window_bounds = array<i64: 128, 128>}, {transform_indices = @transform_2, window_bounds = array<i64: 1, 128>}, {transform_indices = @transform_3, window_bounds = array<i64: 32, 128>}]} {
    %c0_i32 = arith.constant 0 : i32
    %0 = arith.cmpi eq, %arg2, %c0_i32 : i32
    %1 = arith.extui %0 : i1 to i32
    %c0_i32_0 = arith.constant 0 : i32
    %2 = arith.cmpi ne, %1, %c0_i32_0 : i32
    scf.if %2 {
      %cst_10 = arith.constant 0.000000e+00 : f32
      %12 = vector.broadcast %cst_10 : f32 to vector<32x128xf32>
      %c0_11 = arith.constant 0 : index
      %c0_12 = arith.constant 0 : index
      %13 = vector.load %arg7[%c0_11, %c0_12] : memref<32x128xf32, #tpu.memory_space<vmem>>, vector<32x128xf32>
      tpu.vector_store %arg7[%c0_11, %c0_12], %12 {strides = array<i32>} : memref<32x128xf32, #tpu.memory_space<vmem>>, vector<32x128xf32>,
    } else {
    }
    %c0 = arith.constant 0 : index
    %c0_1 = arith.constant 0 : index
    %3 = vector.load %arg7[%c0, %c0_1] : memref<32x128xf32, #tpu.memory_space<vmem>>, vector<32x128xf32>
    %c0_2 = arith.constant 0 : index
    %c0_3 = arith.constant 0 : index
    %4 = vector.load %arg3[%c0_2, %c0_3] : memref<32x128xbf16, #tpu.memory_space<vmem>>, vector<32x128xbf16>
    %c0_4 = arith.constant 0 : index
    %c0_5 = arith.constant 0 : index
    %5 = vector.load %arg4[%c0_4, %c0_5] : memref<128x128xbf16, #tpu.memory_space<vmem>>, vector<128x128xbf16>
    %cst = arith.constant dense<0.000000e+00> : vector<32x128xf32>
    %6 = tpu.matmul %4, %5, %cst {dimension_numbers = #tpu.dot_dimension_numbers<[1], [0], [0], [1], [0, 0, 1, 1], [], []>} : vector<32x128xbf16>, vector<128x128xbf16>, vector<32x128xf32> -> vector<32x128xf32>
    %7 = arith.addf %3, %6 : vector<32x128xf32>
    %c0_6 = arith.constant 0 : index
    %c0_7 = arith.constant 0 : index
    %8 = vector.load %arg7[%c0_6, %c0_7] : memref<32x128xf32, #tpu.memory_space<vmem>>, vector<32x128xf32>
    tpu.vector_store %arg7[%c0_6, %c0_7], %7 {strides = array<i32>} : memref<32x128xf32, #tpu.memory_space<vmem>>, vector<32x128xf32>,
    %c0_i32_8 = arith.constant 0 : i32
    %9 = arith.cmpi eq, %arg2, %c0_i32_8 : i32
    %10 = arith.extui %9 : i1 to i32
    %c0_i32_9 = arith.constant 0 : i32
    %11 = arith.cmpi ne, %10, %c0_i32_9 : i32
    scf.if %11 {
      %c0_10 = arith.constant 0 : index
      %c0_11 = arith.constant 0 : index
      %12 = vector.load %arg7[%c0_10, %c0_11] : memref<32x128xf32, #tpu.memory_space<vmem>>, vector<32x128xf32>
      %c0_12 = arith.constant 0 : index
      %c0_13 = arith.constant 0 : index
      %13 = vector.load %arg5[%c0_12, %c0_13] : memref<1x128xf32, #tpu.memory_space<vmem>>, vector<1x128xf32>
      %14 = vector.broadcast %13 : vector<1x128xf32> to vector<32x128xf32>
      %15 = arith.addf %12, %14 : vector<32x128xf32>
      %cst_14 = arith.constant 0.000000e+00 : f32
      %16 = vector.broadcast %cst_14 : f32 to vector<32x128xf32>
      %17 = arith.maximumf %15, %16 : vector<32x128xf32>
      %18 = arith.truncf %17 : vector<32x128xf32> to vector<32x128xbf16>
      %c0_15 = arith.constant 0 : index
      %c0_16 = arith.constant 0 : index
      %19 = vector.load %arg6[%c0_15, %c0_16] : memref<32x128xbf16, #tpu.memory_space<vmem>>, vector<32x128xbf16>
      tpu.vector_store %arg6[%c0_15, %c0_16], %18 {strides = array<i32>} : memref<32x128xbf16, #tpu.memory_space<vmem>>, vector<32x128xbf16>,
    } else {
    }
    return
  }
  func.func @transform_0(%arg0: i32, %arg1: i32, %arg2: i32) -> (i32, i32) {
    %c0_i32 = arith.constant 0 : i32
    return %arg0, %arg2 : i32, i32
  }
  func.func @transform_1(%arg0: i32, %arg1: i32, %arg2: i32) -> (i32, i32) {
    %c0_i32 = arith.constant 0 : i32
    return %arg2, %arg1 : i32, i32
  }
  func.func @transform_2(%arg0: i32, %arg1: i32, %arg2: i32) -> (i32, i32) {
    %c0_i32 = arith.constant 0 : i32
    %c0_i32_0 = arith.constant 0 : i32
    return %c0_i32, %arg1 : i32, i32
  }
  func.func @transform_3(%arg0: i32, %arg1: i32, %arg2: i32) -> (i32, i32) {
    %c0_i32 = arith.constant 0 : i32
    return %arg0, %arg1 : i32, i32
  }
}

module attributes {stable_mosaic.version = 11 : i64} {
  func.func @_mm_bias_kernel(%arg0: i32, %arg1: i32, %arg2: i32, %arg3: memref<32x128xbf16, #tpu.memory_space<vmem>>, %arg4: memref<128x128xbf16, #tpu.memory_space<vmem>>, %arg5: memref<1x128xf32, #tpu.memory_space<vmem>>, %arg6: memref<32x128xbf16, #tpu.memory_space<vmem>>, %arg7: memref<32x128xf32, #tpu.memory_space<vmem>>) attributes {dimension_semantics = [#tpu.dimension_semantics<parallel>, #tpu.dimension_semantics<parallel>, #tpu.dimension_semantics<arbitrary>], iteration_bounds = array<i64: 1, 1, 5>, scalar_prefetch = 0 : i64, scratch_operands = 1 : i64, tpu.core_type = #tpu.core_type<tc>, window_params = [{transform_indices = @transform_0, window_bounds = array<i64: 32, 128>}, {transform_indices = @transform_1, window_bounds = array<i64: 128, 128>}, {transform_indices = @transform_2, window_bounds = array<i64: 1, 128>}, {transform_indices = @transform_3, window_bounds = array<i64: 32, 128>}]} {
    %c0_i32 = arith.constant 0 : i32
    %0 = arith.cmpi eq, %arg2, %c0_i32 : i32
    %1 = arith.extui %0 : i1 to i32
    %c0_i32_0 = arith.constant 0 : i32
    %2 = arith.cmpi ne, %1, %c0_i32_0 : i32
    scf.if %2 {
      %cst_9 = arith.constant 0.000000e+00 : f32
      %12 = vector.broadcast %cst_9 : f32 to vector<32x128xf32>
      %c0_10 = arith.constant 0 : index
      %c0_11 = arith.constant 0 : index
      %13 = vector.load %arg7[%c0_10, %c0_11] : memref<32x128xf32, #tpu.memory_space<vmem>>, vector<32x128xf32>
      tpu.vector_store %arg7[%c0_10, %c0_11], %12 {strides = array<i32>} : memref<32x128xf32, #tpu.memory_space<vmem>>, vector<32x128xf32>,
    } else {
    }
    %c0 = arith.constant 0 : index
    %c0_1 = arith.constant 0 : index
    %3 = vector.load %arg7[%c0, %c0_1] : memref<32x128xf32, #tpu.memory_space<vmem>>, vector<32x128xf32>
    %c0_2 = arith.constant 0 : index
    %c0_3 = arith.constant 0 : index
    %4 = vector.load %arg3[%c0_2, %c0_3] : memref<32x128xbf16, #tpu.memory_space<vmem>>, vector<32x128xbf16>
    %c0_4 = arith.constant 0 : index
    %c0_5 = arith.constant 0 : index
    %5 = vector.load %arg4[%c0_4, %c0_5] : memref<128x128xbf16, #tpu.memory_space<vmem>>, vector<128x128xbf16>
    %cst = arith.constant dense<0.000000e+00> : vector<32x128xf32>
    %6 = tpu.matmul %4, %5, %cst {dimension_numbers = #tpu.dot_dimension_numbers<[1], [0], [0], [1], [0, 0, 1, 1], [], []>} : vector<32x128xbf16>, vector<128x128xbf16>, vector<32x128xf32> -> vector<32x128xf32>
    %7 = arith.addf %3, %6 : vector<32x128xf32>
    %c0_6 = arith.constant 0 : index
    %c0_7 = arith.constant 0 : index
    %8 = vector.load %arg7[%c0_6, %c0_7] : memref<32x128xf32, #tpu.memory_space<vmem>>, vector<32x128xf32>
    tpu.vector_store %arg7[%c0_6, %c0_7], %7 {strides = array<i32>} : memref<32x128xf32, #tpu.memory_space<vmem>>, vector<32x128xf32>,
    %c4_i32 = arith.constant 4 : i32
    %9 = arith.cmpi eq, %arg2, %c4_i32 : i32
    %10 = arith.extui %9 : i1 to i32
    %c0_i32_8 = arith.constant 0 : i32
    %11 = arith.cmpi ne, %10, %c0_i32_8 : i32
    scf.if %11 {
      %c0_9 = arith.constant 0 : index
      %c0_10 = arith.constant 0 : index
      %12 = vector.load %arg7[%c0_9, %c0_10] : memref<32x128xf32, #tpu.memory_space<vmem>>, vector<32x128xf32>
      %c0_11 = arith.constant 0 : index
      %c0_12 = arith.constant 0 : index
      %13 = vector.load %arg5[%c0_11, %c0_12] : memref<1x128xf32, #tpu.memory_space<vmem>>, vector<1x128xf32>
      %14 = vector.broadcast %13 : vector<1x128xf32> to vector<32x128xf32>
      %15 = arith.addf %12, %14 : vector<32x128xf32>
      %cst_13 = arith.constant 0.000000e+00 : f32
      %16 = vector.broadcast %cst_13 : f32 to vector<32x128xf32>
      %17 = arith.maximumf %15, %16 : vector<32x128xf32>
      %18 = arith.truncf %17 : vector<32x128xf32> to vector<32x128xbf16>
      %c0_14 = arith.constant 0 : index
      %c0_15 = arith.constant 0 : index
      %19 = vector.load %arg6[%c0_14, %c0_15] : memref<32x128xbf16, #tpu.memory_space<vmem>>, vector<32x128xbf16>
      tpu.vector_store %arg6[%c0_14, %c0_15], %18 {strides = array<i32>} : memref<32x128xbf16, #tpu.memory_space<vmem>>, vector<32x128xbf16>,
    } else {
    }
    return
  }
  func.func @transform_0(%arg0: i32, %arg1: i32, %arg2: i32) -> (i32, i32) {
    %c0_i32 = arith.constant 0 : i32
    return %arg0, %arg2 : i32, i32
  }
  func.func @transform_1(%arg0: i32, %arg1: i32, %arg2: i32) -> (i32, i32) {
    %c0_i32 = arith.constant 0 : i32
    return %arg2, %arg1 : i32, i32
  }
  func.func @transform_2(%arg0: i32, %arg1: i32, %arg2: i32) -> (i32, i32) {
    %c0_i32 = arith.constant 0 : i32
    %c0_i32_0 = arith.constant 0 : i32
    return %c0_i32, %arg1 : i32, i32
  }
  func.func @transform_3(%arg0: i32, %arg1: i32, %arg2: i32) -> (i32, i32) {
    %c0_i32 = arith.constant 0 : i32
    return %arg0, %arg1 : i32, i32
  }
}

module attributes {stable_mosaic.version = 11 : i64} {
  func.func @_mm_bias_kernel(%arg0: i32, %arg1: i32, %arg2: i32, %arg3: memref<32x128xbf16, #tpu.memory_space<vmem>>, %arg4: memref<128x256xbf16, #tpu.memory_space<vmem>>, %arg5: memref<1x256xf32, #tpu.memory_space<vmem>>, %arg6: memref<32x256xbf16, #tpu.memory_space<vmem>>, %arg7: memref<32x256xf32, #tpu.memory_space<vmem>>) attributes {dimension_semantics = [#tpu.dimension_semantics<parallel>, #tpu.dimension_semantics<parallel>, #tpu.dimension_semantics<arbitrary>], iteration_bounds = array<i64: 1, 1, 1>, scalar_prefetch = 0 : i64, scratch_operands = 1 : i64, tpu.core_type = #tpu.core_type<tc>, window_params = [{transform_indices = @transform_0, window_bounds = array<i64: 32, 128>}, {transform_indices = @transform_1, window_bounds = array<i64: 128, 256>}, {transform_indices = @transform_2, window_bounds = array<i64: 1, 256>}, {transform_indices = @transform_3, window_bounds = array<i64: 32, 256>}]} {
    %c0_i32 = arith.constant 0 : i32
    %0 = arith.cmpi eq, %arg2, %c0_i32 : i32
    %1 = arith.extui %0 : i1 to i32
    %c0_i32_0 = arith.constant 0 : i32
    %2 = arith.cmpi ne, %1, %c0_i32_0 : i32
    scf.if %2 {
      %cst_10 = arith.constant 0.000000e+00 : f32
      %12 = vector.broadcast %cst_10 : f32 to vector<32x256xf32>
      %c0_11 = arith.constant 0 : index
      %c0_12 = arith.constant 0 : index
      %13 = vector.load %arg7[%c0_11, %c0_12] : memref<32x256xf32, #tpu.memory_space<vmem>>, vector<32x256xf32>
      tpu.vector_store %arg7[%c0_11, %c0_12], %12 {strides = array<i32>} : memref<32x256xf32, #tpu.memory_space<vmem>>, vector<32x256xf32>,
    } else {
    }
    %c0 = arith.constant 0 : index
    %c0_1 = arith.constant 0 : index
    %3 = vector.load %arg7[%c0, %c0_1] : memref<32x256xf32, #tpu.memory_space<vmem>>, vector<32x256xf32>
    %c0_2 = arith.constant 0 : index
    %c0_3 = arith.constant 0 : index
    %4 = vector.load %arg3[%c0_2, %c0_3] : memref<32x128xbf16, #tpu.memory_space<vmem>>, vector<32x128xbf16>
    %c0_4 = arith.constant 0 : index
    %c0_5 = arith.constant 0 : index
    %5 = vector.load %arg4[%c0_4, %c0_5] : memref<128x256xbf16, #tpu.memory_space<vmem>>, vector<128x256xbf16>
    %cst = arith.constant dense<0.000000e+00> : vector<32x256xf32>
    %6 = tpu.matmul %4, %5, %cst {dimension_numbers = #tpu.dot_dimension_numbers<[1], [0], [0], [1], [0, 0, 1, 1], [], []>} : vector<32x128xbf16>, vector<128x256xbf16>, vector<32x256xf32> -> vector<32x256xf32>
    %7 = arith.addf %3, %6 : vector<32x256xf32>
    %c0_6 = arith.constant 0 : index
    %c0_7 = arith.constant 0 : index
    %8 = vector.load %arg7[%c0_6, %c0_7] : memref<32x256xf32, #tpu.memory_space<vmem>>, vector<32x256xf32>
    tpu.vector_store %arg7[%c0_6, %c0_7], %7 {strides = array<i32>} : memref<32x256xf32, #tpu.memory_space<vmem>>, vector<32x256xf32>,
    %c0_i32_8 = arith.constant 0 : i32
    %9 = arith.cmpi eq, %arg2, %c0_i32_8 : i32
    %10 = arith.extui %9 : i1 to i32
    %c0_i32_9 = arith.constant 0 : i32
    %11 = arith.cmpi ne, %10, %c0_i32_9 : i32
    scf.if %11 {
      %c0_10 = arith.constant 0 : index
      %c0_11 = arith.constant 0 : index
      %12 = vector.load %arg7[%c0_10, %c0_11] : memref<32x256xf32, #tpu.memory_space<vmem>>, vector<32x256xf32>
      %c0_12 = arith.constant 0 : index
      %c0_13 = arith.constant 0 : index
      %13 = vector.load %arg5[%c0_12, %c0_13] : memref<1x256xf32, #tpu.memory_space<vmem>>, vector<1x256xf32>
      %14 = vector.broadcast %13 : vector<1x256xf32> to vector<32x256xf32>
      %15 = arith.addf %12, %14 : vector<32x256xf32>
      %16 = arith.truncf %15 : vector<32x256xf32> to vector<32x256xbf16>
      %c0_14 = arith.constant 0 : index
      %c0_15 = arith.constant 0 : index
      %17 = vector.load %arg6[%c0_14, %c0_15] : memref<32x256xbf16, #tpu.memory_space<vmem>>, vector<32x256xbf16>
      tpu.vector_store %arg6[%c0_14, %c0_15], %16 {strides = array<i32>} : memref<32x256xbf16, #tpu.memory_space<vmem>>, vector<32x256xbf16>,
    } else {
    }
    return
  }
  func.func @transform_0(%arg0: i32, %arg1: i32, %arg2: i32) -> (i32, i32) {
    %c0_i32 = arith.constant 0 : i32
    return %arg0, %arg2 : i32, i32
  }
  func.func @transform_1(%arg0: i32, %arg1: i32, %arg2: i32) -> (i32, i32) {
    %c0_i32 = arith.constant 0 : i32
    return %arg2, %arg1 : i32, i32
  }
  func.func @transform_2(%arg0: i32, %arg1: i32, %arg2: i32) -> (i32, i32) {
    %c0_i32 = arith.constant 0 : i32
    %c0_i32_0 = arith.constant 0 : i32
    return %c0_i32, %arg1 : i32, i32
  }
  func.func @transform_3(%arg0: i32, %arg1: i32, %arg2: i32) -> (i32, i32) {
    %c0_i32 = arith.constant 0 : i32
    return %arg0, %arg1 : i32, i32
  }
}

module attributes {stable_mosaic.version = 11 : i64} {
  func.func @_mm_bias_res_kernel(%arg0: i32, %arg1: i32, %arg2: i32, %arg3: memref<32x128xbf16, #tpu.memory_space<vmem>>, %arg4: memref<128x256xbf16, #tpu.memory_space<vmem>>, %arg5: memref<1x256xf32, #tpu.memory_space<vmem>>, %arg6: memref<32x256xbf16, #tpu.memory_space<vmem>>, %arg7: memref<32x256xbf16, #tpu.memory_space<vmem>>, %arg8: memref<32x256xf32, #tpu.memory_space<vmem>>) attributes {dimension_semantics = [#tpu.dimension_semantics<parallel>, #tpu.dimension_semantics<parallel>, #tpu.dimension_semantics<arbitrary>], iteration_bounds = array<i64: 1, 1, 1>, scalar_prefetch = 0 : i64, scratch_operands = 1 : i64, tpu.core_type = #tpu.core_type<tc>, window_params = [{transform_indices = @transform_0, window_bounds = array<i64: 32, 128>}, {transform_indices = @transform_1, window_bounds = array<i64: 128, 256>}, {transform_indices = @transform_2, window_bounds = array<i64: 1, 256>}, {transform_indices = @transform_3, window_bounds = array<i64: 32, 256>}, {transform_indices = @transform_4, window_bounds = array<i64: 32, 256>}]} {
    %c0_i32 = arith.constant 0 : i32
    %0 = arith.cmpi eq, %arg2, %c0_i32 : i32
    %1 = arith.extui %0 : i1 to i32
    %c0_i32_0 = arith.constant 0 : i32
    %2 = arith.cmpi ne, %1, %c0_i32_0 : i32
    scf.if %2 {
      %cst_10 = arith.constant 0.000000e+00 : f32
      %12 = vector.broadcast %cst_10 : f32 to vector<32x256xf32>
      %c0_11 = arith.constant 0 : index
      %c0_12 = arith.constant 0 : index
      %13 = vector.load %arg8[%c0_11, %c0_12] : memref<32x256xf32, #tpu.memory_space<vmem>>, vector<32x256xf32>
      tpu.vector_store %arg8[%c0_11, %c0_12], %12 {strides = array<i32>} : memref<32x256xf32, #tpu.memory_space<vmem>>, vector<32x256xf32>,
    } else {
    }
    %c0 = arith.constant 0 : index
    %c0_1 = arith.constant 0 : index
    %3 = vector.load %arg8[%c0, %c0_1] : memref<32x256xf32, #tpu.memory_space<vmem>>, vector<32x256xf32>
    %c0_2 = arith.constant 0 : index
    %c0_3 = arith.constant 0 : index
    %4 = vector.load %arg3[%c0_2, %c0_3] : memref<32x128xbf16, #tpu.memory_space<vmem>>, vector<32x128xbf16>
    %c0_4 = arith.constant 0 : index
    %c0_5 = arith.constant 0 : index
    %5 = vector.load %arg4[%c0_4, %c0_5] : memref<128x256xbf16, #tpu.memory_space<vmem>>, vector<128x256xbf16>
    %cst = arith.constant dense<0.000000e+00> : vector<32x256xf32>
    %6 = tpu.matmul %4, %5, %cst {dimension_numbers = #tpu.dot_dimension_numbers<[1], [0], [0], [1], [0, 0, 1, 1], [], []>} : vector<32x128xbf16>, vector<128x256xbf16>, vector<32x256xf32> -> vector<32x256xf32>
    %7 = arith.addf %3, %6 : vector<32x256xf32>
    %c0_6 = arith.constant 0 : index
    %c0_7 = arith.constant 0 : index
    %8 = vector.load %arg8[%c0_6, %c0_7] : memref<32x256xf32, #tpu.memory_space<vmem>>, vector<32x256xf32>
    tpu.vector_store %arg8[%c0_6, %c0_7], %7 {strides = array<i32>} : memref<32x256xf32, #tpu.memory_space<vmem>>, vector<32x256xf32>,
    %c0_i32_8 = arith.constant 0 : i32
    %9 = arith.cmpi eq, %arg2, %c0_i32_8 : i32
    %10 = arith.extui %9 : i1 to i32
    %c0_i32_9 = arith.constant 0 : i32
    %11 = arith.cmpi ne, %10, %c0_i32_9 : i32
    scf.if %11 {
      %c0_10 = arith.constant 0 : index
      %c0_11 = arith.constant 0 : index
      %12 = vector.load %arg8[%c0_10, %c0_11] : memref<32x256xf32, #tpu.memory_space<vmem>>, vector<32x256xf32>
      %c0_12 = arith.constant 0 : index
      %c0_13 = arith.constant 0 : index
      %13 = vector.load %arg5[%c0_12, %c0_13] : memref<1x256xf32, #tpu.memory_space<vmem>>, vector<1x256xf32>
      %14 = vector.broadcast %13 : vector<1x256xf32> to vector<32x256xf32>
      %15 = arith.addf %12, %14 : vector<32x256xf32>
      %c0_14 = arith.constant 0 : index
      %c0_15 = arith.constant 0 : index
      %16 = vector.load %arg6[%c0_14, %c0_15] : memref<32x256xbf16, #tpu.memory_space<vmem>>, vector<32x256xbf16>
      %17 = arith.extf %16 : vector<32x256xbf16> to vector<32x256xf32>
      %18 = arith.addf %15, %17 : vector<32x256xf32>
      %cst_16 = arith.constant 0.000000e+00 : f32
      %19 = vector.broadcast %cst_16 : f32 to vector<32x256xf32>
      %20 = arith.maximumf %18, %19 : vector<32x256xf32>
      %21 = arith.truncf %20 : vector<32x256xf32> to vector<32x256xbf16>
      %c0_17 = arith.constant 0 : index
      %c0_18 = arith.constant 0 : index
      %22 = vector.load %arg7[%c0_17, %c0_18] : memref<32x256xbf16, #tpu.memory_space<vmem>>, vector<32x256xbf16>
      tpu.vector_store %arg7[%c0_17, %c0_18], %21 {strides = array<i32>} : memref<32x256xbf16, #tpu.memory_space<vmem>>, vector<32x256xbf16>,
    } else {
    }
    return
  }
  func.func @transform_0(%arg0: i32, %arg1: i32, %arg2: i32) -> (i32, i32) {
    %c0_i32 = arith.constant 0 : i32
    return %arg0, %arg2 : i32, i32
  }
  func.func @transform_1(%arg0: i32, %arg1: i32, %arg2: i32) -> (i32, i32) {
    %c0_i32 = arith.constant 0 : i32
    return %arg2, %arg1 : i32, i32
  }
  func.func @transform_2(%arg0: i32, %arg1: i32, %arg2: i32) -> (i32, i32) {
    %c0_i32 = arith.constant 0 : i32
    %c0_i32_0 = arith.constant 0 : i32
    return %c0_i32, %arg1 : i32, i32
  }
  func.func @transform_3(%arg0: i32, %arg1: i32, %arg2: i32) -> (i32, i32) {
    %c0_i32 = arith.constant 0 : i32
    return %arg0, %arg1 : i32, i32
  }
  func.func @transform_4(%arg0: i32, %arg1: i32, %arg2: i32) -> (i32, i32) {
    %c0_i32 = arith.constant 0 : i32
    return %arg0, %arg1 : i32, i32
  }
}

module attributes {stable_mosaic.version = 11 : i64} {
  func.func @_mm_bias_kernel(%arg0: i32, %arg1: i32, %arg2: i32, %arg3: memref<32x256xbf16, #tpu.memory_space<vmem>>, %arg4: memref<256x128xbf16, #tpu.memory_space<vmem>>, %arg5: memref<1x128xf32, #tpu.memory_space<vmem>>, %arg6: memref<32x128xbf16, #tpu.memory_space<vmem>>, %arg7: memref<32x128xf32, #tpu.memory_space<vmem>>) attributes {dimension_semantics = [#tpu.dimension_semantics<parallel>, #tpu.dimension_semantics<parallel>, #tpu.dimension_semantics<arbitrary>], iteration_bounds = array<i64: 1, 1, 1>, scalar_prefetch = 0 : i64, scratch_operands = 1 : i64, tpu.core_type = #tpu.core_type<tc>, window_params = [{transform_indices = @transform_0, window_bounds = array<i64: 32, 256>}, {transform_indices = @transform_1, window_bounds = array<i64: 256, 128>}, {transform_indices = @transform_2, window_bounds = array<i64: 1, 128>}, {transform_indices = @transform_3, window_bounds = array<i64: 32, 128>}]} {
    %c0_i32 = arith.constant 0 : i32
    %0 = arith.cmpi eq, %arg2, %c0_i32 : i32
    %1 = arith.extui %0 : i1 to i32
    %c0_i32_0 = arith.constant 0 : i32
    %2 = arith.cmpi ne, %1, %c0_i32_0 : i32
    scf.if %2 {
      %cst_10 = arith.constant 0.000000e+00 : f32
      %12 = vector.broadcast %cst_10 : f32 to vector<32x128xf32>
      %c0_11 = arith.constant 0 : index
      %c0_12 = arith.constant 0 : index
      %13 = vector.load %arg7[%c0_11, %c0_12] : memref<32x128xf32, #tpu.memory_space<vmem>>, vector<32x128xf32>
      tpu.vector_store %arg7[%c0_11, %c0_12], %12 {strides = array<i32>} : memref<32x128xf32, #tpu.memory_space<vmem>>, vector<32x128xf32>,
    } else {
    }
    %c0 = arith.constant 0 : index
    %c0_1 = arith.constant 0 : index
    %3 = vector.load %arg7[%c0, %c0_1] : memref<32x128xf32, #tpu.memory_space<vmem>>, vector<32x128xf32>
    %c0_2 = arith.constant 0 : index
    %c0_3 = arith.constant 0 : index
    %4 = vector.load %arg3[%c0_2, %c0_3] : memref<32x256xbf16, #tpu.memory_space<vmem>>, vector<32x256xbf16>
    %c0_4 = arith.constant 0 : index
    %c0_5 = arith.constant 0 : index
    %5 = vector.load %arg4[%c0_4, %c0_5] : memref<256x128xbf16, #tpu.memory_space<vmem>>, vector<256x128xbf16>
    %cst = arith.constant dense<0.000000e+00> : vector<32x128xf32>
    %6 = tpu.matmul %4, %5, %cst {dimension_numbers = #tpu.dot_dimension_numbers<[1], [0], [0], [1], [0, 0, 1, 1], [], []>} : vector<32x256xbf16>, vector<256x128xbf16>, vector<32x128xf32> -> vector<32x128xf32>
    %7 = arith.addf %3, %6 : vector<32x128xf32>
    %c0_6 = arith.constant 0 : index
    %c0_7 = arith.constant 0 : index
    %8 = vector.load %arg7[%c0_6, %c0_7] : memref<32x128xf32, #tpu.memory_space<vmem>>, vector<32x128xf32>
    tpu.vector_store %arg7[%c0_6, %c0_7], %7 {strides = array<i32>} : memref<32x128xf32, #tpu.memory_space<vmem>>, vector<32x128xf32>,
    %c0_i32_8 = arith.constant 0 : i32
    %9 = arith.cmpi eq, %arg2, %c0_i32_8 : i32
    %10 = arith.extui %9 : i1 to i32
    %c0_i32_9 = arith.constant 0 : i32
    %11 = arith.cmpi ne, %10, %c0_i32_9 : i32
    scf.if %11 {
      %c0_10 = arith.constant 0 : index
      %c0_11 = arith.constant 0 : index
      %12 = vector.load %arg7[%c0_10, %c0_11] : memref<32x128xf32, #tpu.memory_space<vmem>>, vector<32x128xf32>
      %c0_12 = arith.constant 0 : index
      %c0_13 = arith.constant 0 : index
      %13 = vector.load %arg5[%c0_12, %c0_13] : memref<1x128xf32, #tpu.memory_space<vmem>>, vector<1x128xf32>
      %14 = vector.broadcast %13 : vector<1x128xf32> to vector<32x128xf32>
      %15 = arith.addf %12, %14 : vector<32x128xf32>
      %cst_14 = arith.constant 0.000000e+00 : f32
      %16 = vector.broadcast %cst_14 : f32 to vector<32x128xf32>
      %17 = arith.maximumf %15, %16 : vector<32x128xf32>
      %18 = arith.truncf %17 : vector<32x128xf32> to vector<32x128xbf16>
      %c0_15 = arith.constant 0 : index
      %c0_16 = arith.constant 0 : index
      %19 = vector.load %arg6[%c0_15, %c0_16] : memref<32x128xbf16, #tpu.memory_space<vmem>>, vector<32x128xbf16>
      tpu.vector_store %arg6[%c0_15, %c0_16], %18 {strides = array<i32>} : memref<32x128xbf16, #tpu.memory_space<vmem>>, vector<32x128xbf16>,
    } else {
    }
    return
  }
  func.func @transform_0(%arg0: i32, %arg1: i32, %arg2: i32) -> (i32, i32) {
    %c0_i32 = arith.constant 0 : i32
    return %arg0, %arg2 : i32, i32
  }
  func.func @transform_1(%arg0: i32, %arg1: i32, %arg2: i32) -> (i32, i32) {
    %c0_i32 = arith.constant 0 : i32
    return %arg2, %arg1 : i32, i32
  }
  func.func @transform_2(%arg0: i32, %arg1: i32, %arg2: i32) -> (i32, i32) {
    %c0_i32 = arith.constant 0 : i32
    %c0_i32_0 = arith.constant 0 : i32
    return %c0_i32, %arg1 : i32, i32
  }
  func.func @transform_3(%arg0: i32, %arg1: i32, %arg2: i32) -> (i32, i32) {
    %c0_i32 = arith.constant 0 : i32
    return %arg0, %arg1 : i32, i32
  }
}

module attributes {stable_mosaic.version = 11 : i64} {
  func.func @_mm_bias_kernel(%arg0: i32, %arg1: i32, %arg2: i32, %arg3: memref<8x256xbf16, #tpu.memory_space<vmem>>, %arg4: memref<256x256xbf16, #tpu.memory_space<vmem>>, %arg5: memref<1x256xf32, #tpu.memory_space<vmem>>, %arg6: memref<8x256xbf16, #tpu.memory_space<vmem>>, %arg7: memref<8x256xf32, #tpu.memory_space<vmem>>) attributes {dimension_semantics = [#tpu.dimension_semantics<parallel>, #tpu.dimension_semantics<parallel>, #tpu.dimension_semantics<arbitrary>], iteration_bounds = array<i64: 1, 2, 1>, scalar_prefetch = 0 : i64, scratch_operands = 1 : i64, tpu.core_type = #tpu.core_type<tc>, window_params = [{transform_indices = @transform_0, window_bounds = array<i64: 8, 256>}, {transform_indices = @transform_1, window_bounds = array<i64: 256, 256>}, {transform_indices = @transform_2, window_bounds = array<i64: 1, 256>}, {transform_indices = @transform_3, window_bounds = array<i64: 8, 256>}]} {
    %c0_i32 = arith.constant 0 : i32
    %0 = arith.cmpi eq, %arg2, %c0_i32 : i32
    %1 = arith.extui %0 : i1 to i32
    %c0_i32_0 = arith.constant 0 : i32
    %2 = arith.cmpi ne, %1, %c0_i32_0 : i32
    scf.if %2 {
      %cst_10 = arith.constant 0.000000e+00 : f32
      %12 = vector.broadcast %cst_10 : f32 to vector<8x256xf32>
      %c0_11 = arith.constant 0 : index
      %c0_12 = arith.constant 0 : index
      %13 = vector.load %arg7[%c0_11, %c0_12] : memref<8x256xf32, #tpu.memory_space<vmem>>, vector<8x256xf32>
      tpu.vector_store %arg7[%c0_11, %c0_12], %12 {strides = array<i32>} : memref<8x256xf32, #tpu.memory_space<vmem>>, vector<8x256xf32>,
    } else {
    }
    %c0 = arith.constant 0 : index
    %c0_1 = arith.constant 0 : index
    %3 = vector.load %arg7[%c0, %c0_1] : memref<8x256xf32, #tpu.memory_space<vmem>>, vector<8x256xf32>
    %c0_2 = arith.constant 0 : index
    %c0_3 = arith.constant 0 : index
    %4 = vector.load %arg3[%c0_2, %c0_3] : memref<8x256xbf16, #tpu.memory_space<vmem>>, vector<8x256xbf16>
    %c0_4 = arith.constant 0 : index
    %c0_5 = arith.constant 0 : index
    %5 = vector.load %arg4[%c0_4, %c0_5] : memref<256x256xbf16, #tpu.memory_space<vmem>>, vector<256x256xbf16>
    %cst = arith.constant dense<0.000000e+00> : vector<8x256xf32>
    %6 = tpu.matmul %4, %5, %cst {dimension_numbers = #tpu.dot_dimension_numbers<[1], [0], [0], [1], [0, 0, 1, 1], [], []>} : vector<8x256xbf16>, vector<256x256xbf16>, vector<8x256xf32> -> vector<8x256xf32>
    %7 = arith.addf %3, %6 : vector<8x256xf32>
    %c0_6 = arith.constant 0 : index
    %c0_7 = arith.constant 0 : index
    %8 = vector.load %arg7[%c0_6, %c0_7] : memref<8x256xf32, #tpu.memory_space<vmem>>, vector<8x256xf32>
    tpu.vector_store %arg7[%c0_6, %c0_7], %7 {strides = array<i32>} : memref<8x256xf32, #tpu.memory_space<vmem>>, vector<8x256xf32>,
    %c0_i32_8 = arith.constant 0 : i32
    %9 = arith.cmpi eq, %arg2, %c0_i32_8 : i32
    %10 = arith.extui %9 : i1 to i32
    %c0_i32_9 = arith.constant 0 : i32
    %11 = arith.cmpi ne, %10, %c0_i32_9 : i32
    scf.if %11 {
      %c0_10 = arith.constant 0 : index
      %c0_11 = arith.constant 0 : index
      %12 = vector.load %arg7[%c0_10, %c0_11] : memref<8x256xf32, #tpu.memory_space<vmem>>, vector<8x256xf32>
      %c0_12 = arith.constant 0 : index
      %c0_13 = arith.constant 0 : index
      %13 = vector.load %arg5[%c0_12, %c0_13] : memref<1x256xf32, #tpu.memory_space<vmem>>, vector<1x256xf32>
      %14 = vector.broadcast %13 : vector<1x256xf32> to vector<8x256xf32>
      %15 = arith.addf %12, %14 : vector<8x256xf32>
      %16 = arith.truncf %15 : vector<8x256xf32> to vector<8x256xbf16>
      %c0_14 = arith.constant 0 : index
      %c0_15 = arith.constant 0 : index
      %17 = vector.load %arg6[%c0_14, %c0_15] : memref<8x256xbf16, #tpu.memory_space<vmem>>, vector<8x256xbf16>
      tpu.vector_store %arg6[%c0_14, %c0_15], %16 {strides = array<i32>} : memref<8x256xbf16, #tpu.memory_space<vmem>>, vector<8x256xbf16>,
    } else {
    }
    return
  }
  func.func @transform_0(%arg0: i32, %arg1: i32, %arg2: i32) -> (i32, i32) {
    %c0_i32 = arith.constant 0 : i32
    return %arg0, %arg2 : i32, i32
  }
  func.func @transform_1(%arg0: i32, %arg1: i32, %arg2: i32) -> (i32, i32) {
    %c0_i32 = arith.constant 0 : i32
    return %arg2, %arg1 : i32, i32
  }
  func.func @transform_2(%arg0: i32, %arg1: i32, %arg2: i32) -> (i32, i32) {
    %c0_i32 = arith.constant 0 : i32
    %c0_i32_0 = arith.constant 0 : i32
    return %c0_i32, %arg1 : i32, i32
  }
  func.func @transform_3(%arg0: i32, %arg1: i32, %arg2: i32) -> (i32, i32) {
    %c0_i32 = arith.constant 0 : i32
    return %arg0, %arg1 : i32, i32
  }
}

module attributes {stable_mosaic.version = 11 : i64} {
  func.func @_mm_bias_kernel(%arg0: i32, %arg1: i32, %arg2: i32, %arg3: memref<8x384xbf16, #tpu.memory_space<vmem>>, %arg4: memref<384x128xbf16, #tpu.memory_space<vmem>>, %arg5: memref<1x128xf32, #tpu.memory_space<vmem>>, %arg6: memref<8x128xbf16, #tpu.memory_space<vmem>>, %arg7: memref<8x128xf32, #tpu.memory_space<vmem>>) attributes {dimension_semantics = [#tpu.dimension_semantics<parallel>, #tpu.dimension_semantics<parallel>, #tpu.dimension_semantics<arbitrary>], iteration_bounds = array<i64: 1, 1, 3>, scalar_prefetch = 0 : i64, scratch_operands = 1 : i64, tpu.core_type = #tpu.core_type<tc>, window_params = [{transform_indices = @transform_0, window_bounds = array<i64: 8, 384>}, {transform_indices = @transform_1, window_bounds = array<i64: 384, 128>}, {transform_indices = @transform_2, window_bounds = array<i64: 1, 128>}, {transform_indices = @transform_3, window_bounds = array<i64: 8, 128>}]} {
    %c0_i32 = arith.constant 0 : i32
    %0 = arith.cmpi eq, %arg2, %c0_i32 : i32
    %1 = arith.extui %0 : i1 to i32
    %c0_i32_0 = arith.constant 0 : i32
    %2 = arith.cmpi ne, %1, %c0_i32_0 : i32
    scf.if %2 {
      %cst_9 = arith.constant 0.000000e+00 : f32
      %12 = vector.broadcast %cst_9 : f32 to vector<8x128xf32>
      %c0_10 = arith.constant 0 : index
      %c0_11 = arith.constant 0 : index
      %13 = vector.load %arg7[%c0_10, %c0_11] : memref<8x128xf32, #tpu.memory_space<vmem>>, vector<8x128xf32>
      tpu.vector_store %arg7[%c0_10, %c0_11], %12 {strides = array<i32>} : memref<8x128xf32, #tpu.memory_space<vmem>>, vector<8x128xf32>,
    } else {
    }
    %c0 = arith.constant 0 : index
    %c0_1 = arith.constant 0 : index
    %3 = vector.load %arg7[%c0, %c0_1] : memref<8x128xf32, #tpu.memory_space<vmem>>, vector<8x128xf32>
    %c0_2 = arith.constant 0 : index
    %c0_3 = arith.constant 0 : index
    %4 = vector.load %arg3[%c0_2, %c0_3] : memref<8x384xbf16, #tpu.memory_space<vmem>>, vector<8x384xbf16>
    %c0_4 = arith.constant 0 : index
    %c0_5 = arith.constant 0 : index
    %5 = vector.load %arg4[%c0_4, %c0_5] : memref<384x128xbf16, #tpu.memory_space<vmem>>, vector<384x128xbf16>
    %cst = arith.constant dense<0.000000e+00> : vector<8x128xf32>
    %6 = tpu.matmul %4, %5, %cst {dimension_numbers = #tpu.dot_dimension_numbers<[1], [0], [0], [1], [0, 0, 1, 1], [], []>} : vector<8x384xbf16>, vector<384x128xbf16>, vector<8x128xf32> -> vector<8x128xf32>
    %7 = arith.addf %3, %6 : vector<8x128xf32>
    %c0_6 = arith.constant 0 : index
    %c0_7 = arith.constant 0 : index
    %8 = vector.load %arg7[%c0_6, %c0_7] : memref<8x128xf32, #tpu.memory_space<vmem>>, vector<8x128xf32>
    tpu.vector_store %arg7[%c0_6, %c0_7], %7 {strides = array<i32>} : memref<8x128xf32, #tpu.memory_space<vmem>>, vector<8x128xf32>,
    %c2_i32 = arith.constant 2 : i32
    %9 = arith.cmpi eq, %arg2, %c2_i32 : i32
    %10 = arith.extui %9 : i1 to i32
    %c0_i32_8 = arith.constant 0 : i32
    %11 = arith.cmpi ne, %10, %c0_i32_8 : i32
    scf.if %11 {
      %c0_9 = arith.constant 0 : index
      %c0_10 = arith.constant 0 : index
      %12 = vector.load %arg7[%c0_9, %c0_10] : memref<8x128xf32, #tpu.memory_space<vmem>>, vector<8x128xf32>
      %c0_11 = arith.constant 0 : index
      %c0_12 = arith.constant 0 : index
      %13 = vector.load %arg5[%c0_11, %c0_12] : memref<1x128xf32, #tpu.memory_space<vmem>>, vector<1x128xf32>
      %14 = vector.broadcast %13 : vector<1x128xf32> to vector<8x128xf32>
      %15 = arith.addf %12, %14 : vector<8x128xf32>
      %cst_13 = arith.constant 0.000000e+00 : f32
      %16 = vector.broadcast %cst_13 : f32 to vector<8x128xf32>
      %17 = arith.maximumf %15, %16 : vector<8x128xf32>
      %18 = arith.truncf %17 : vector<8x128xf32> to vector<8x128xbf16>
      %c0_14 = arith.constant 0 : index
      %c0_15 = arith.constant 0 : index
      %19 = vector.load %arg6[%c0_14, %c0_15] : memref<8x128xbf16, #tpu.memory_space<vmem>>, vector<8x128xbf16>
      tpu.vector_store %arg6[%c0_14, %c0_15], %18 {strides = array<i32>} : memref<8x128xbf16, #tpu.memory_space<vmem>>, vector<8x128xbf16>,
    } else {
    }
    return
  }
  func.func @transform_0(%arg0: i32, %arg1: i32, %arg2: i32) -> (i32, i32) {
    %c0_i32 = arith.constant 0 : i32
    return %arg0, %arg2 : i32, i32
  }
  func.func @transform_1(%arg0: i32, %arg1: i32, %arg2: i32) -> (i32, i32) {
    %c0_i32 = arith.constant 0 : i32
    return %arg2, %arg1 : i32, i32
  }
  func.func @transform_2(%arg0: i32, %arg1: i32, %arg2: i32) -> (i32, i32) {
    %c0_i32 = arith.constant 0 : i32
    %c0_i32_0 = arith.constant 0 : i32
    return %c0_i32, %arg1 : i32, i32
  }
  func.func @transform_3(%arg0: i32, %arg1: i32, %arg2: i32) -> (i32, i32) {
    %c0_i32 = arith.constant 0 : i32
    return %arg0, %arg1 : i32, i32
  }
}

module attributes {stable_mosaic.version = 11 : i64} {
  func.func @_mm_bias_res_kernel(%arg0: i32, %arg1: i32, %arg2: i32, %arg3: memref<8x128xbf16, #tpu.memory_space<vmem>>, %arg4: memref<128x256xbf16, #tpu.memory_space<vmem>>, %arg5: memref<1x256xf32, #tpu.memory_space<vmem>>, %arg6: memref<8x256xbf16, #tpu.memory_space<vmem>>, %arg7: memref<8x256xbf16, #tpu.memory_space<vmem>>, %arg8: memref<8x256xf32, #tpu.memory_space<vmem>>) attributes {dimension_semantics = [#tpu.dimension_semantics<parallel>, #tpu.dimension_semantics<parallel>, #tpu.dimension_semantics<arbitrary>], iteration_bounds = array<i64: 1, 2, 1>, scalar_prefetch = 0 : i64, scratch_operands = 1 : i64, tpu.core_type = #tpu.core_type<tc>, window_params = [{transform_indices = @transform_0, window_bounds = array<i64: 8, 128>}, {transform_indices = @transform_1, window_bounds = array<i64: 128, 256>}, {transform_indices = @transform_2, window_bounds = array<i64: 1, 256>}, {transform_indices = @transform_3, window_bounds = array<i64: 8, 256>}, {transform_indices = @transform_4, window_bounds = array<i64: 8, 256>}]} {
    %c0_i32 = arith.constant 0 : i32
    %0 = arith.cmpi eq, %arg2, %c0_i32 : i32
    %1 = arith.extui %0 : i1 to i32
    %c0_i32_0 = arith.constant 0 : i32
    %2 = arith.cmpi ne, %1, %c0_i32_0 : i32
    scf.if %2 {
      %cst_10 = arith.constant 0.000000e+00 : f32
      %12 = vector.broadcast %cst_10 : f32 to vector<8x256xf32>
      %c0_11 = arith.constant 0 : index
      %c0_12 = arith.constant 0 : index
      %13 = vector.load %arg8[%c0_11, %c0_12] : memref<8x256xf32, #tpu.memory_space<vmem>>, vector<8x256xf32>
      tpu.vector_store %arg8[%c0_11, %c0_12], %12 {strides = array<i32>} : memref<8x256xf32, #tpu.memory_space<vmem>>, vector<8x256xf32>,
    } else {
    }
    %c0 = arith.constant 0 : index
    %c0_1 = arith.constant 0 : index
    %3 = vector.load %arg8[%c0, %c0_1] : memref<8x256xf32, #tpu.memory_space<vmem>>, vector<8x256xf32>
    %c0_2 = arith.constant 0 : index
    %c0_3 = arith.constant 0 : index
    %4 = vector.load %arg3[%c0_2, %c0_3] : memref<8x128xbf16, #tpu.memory_space<vmem>>, vector<8x128xbf16>
    %c0_4 = arith.constant 0 : index
    %c0_5 = arith.constant 0 : index
    %5 = vector.load %arg4[%c0_4, %c0_5] : memref<128x256xbf16, #tpu.memory_space<vmem>>, vector<128x256xbf16>
    %cst = arith.constant dense<0.000000e+00> : vector<8x256xf32>
    %6 = tpu.matmul %4, %5, %cst {dimension_numbers = #tpu.dot_dimension_numbers<[1], [0], [0], [1], [0, 0, 1, 1], [], []>} : vector<8x128xbf16>, vector<128x256xbf16>, vector<8x256xf32> -> vector<8x256xf32>
    %7 = arith.addf %3, %6 : vector<8x256xf32>
    %c0_6 = arith.constant 0 : index
    %c0_7 = arith.constant 0 : index
    %8 = vector.load %arg8[%c0_6, %c0_7] : memref<8x256xf32, #tpu.memory_space<vmem>>, vector<8x256xf32>
    tpu.vector_store %arg8[%c0_6, %c0_7], %7 {strides = array<i32>} : memref<8x256xf32, #tpu.memory_space<vmem>>, vector<8x256xf32>,
    %c0_i32_8 = arith.constant 0 : i32
    %9 = arith.cmpi eq, %arg2, %c0_i32_8 : i32
    %10 = arith.extui %9 : i1 to i32
    %c0_i32_9 = arith.constant 0 : i32
    %11 = arith.cmpi ne, %10, %c0_i32_9 : i32
    scf.if %11 {
      %c0_10 = arith.constant 0 : index
      %c0_11 = arith.constant 0 : index
      %12 = vector.load %arg8[%c0_10, %c0_11] : memref<8x256xf32, #tpu.memory_space<vmem>>, vector<8x256xf32>
      %c0_12 = arith.constant 0 : index
      %c0_13 = arith.constant 0 : index
      %13 = vector.load %arg5[%c0_12, %c0_13] : memref<1x256xf32, #tpu.memory_space<vmem>>, vector<1x256xf32>
      %14 = vector.broadcast %13 : vector<1x256xf32> to vector<8x256xf32>
      %15 = arith.addf %12, %14 : vector<8x256xf32>
      %c0_14 = arith.constant 0 : index
      %c0_15 = arith.constant 0 : index
      %16 = vector.load %arg6[%c0_14, %c0_15] : memref<8x256xbf16, #tpu.memory_space<vmem>>, vector<8x256xbf16>
      %17 = arith.extf %16 : vector<8x256xbf16> to vector<8x256xf32>
      %18 = arith.addf %15, %17 : vector<8x256xf32>
      %cst_16 = arith.constant 0.000000e+00 : f32
      %19 = vector.broadcast %cst_16 : f32 to vector<8x256xf32>
      %20 = arith.maximumf %18, %19 : vector<8x256xf32>
      %21 = arith.truncf %20 : vector<8x256xf32> to vector<8x256xbf16>
      %c0_17 = arith.constant 0 : index
      %c0_18 = arith.constant 0 : index
      %22 = vector.load %arg7[%c0_17, %c0_18] : memref<8x256xbf16, #tpu.memory_space<vmem>>, vector<8x256xbf16>
      tpu.vector_store %arg7[%c0_17, %c0_18], %21 {strides = array<i32>} : memref<8x256xbf16, #tpu.memory_space<vmem>>, vector<8x256xbf16>,
    } else {
    }
    return
  }
  func.func @transform_0(%arg0: i32, %arg1: i32, %arg2: i32) -> (i32, i32) {
    %c0_i32 = arith.constant 0 : i32
    return %arg0, %arg2 : i32, i32
  }
  func.func @transform_1(%arg0: i32, %arg1: i32, %arg2: i32) -> (i32, i32) {
    %c0_i32 = arith.constant 0 : i32
    return %arg2, %arg1 : i32, i32
  }
  func.func @transform_2(%arg0: i32, %arg1: i32, %arg2: i32) -> (i32, i32) {
    %c0_i32 = arith.constant 0 : i32
    %c0_i32_0 = arith.constant 0 : i32
    return %c0_i32, %arg1 : i32, i32
  }
  func.func @transform_3(%arg0: i32, %arg1: i32, %arg2: i32) -> (i32, i32) {
    %c0_i32 = arith.constant 0 : i32
    return %arg0, %arg1 : i32, i32
  }
  func.func @transform_4(%arg0: i32, %arg1: i32, %arg2: i32) -> (i32, i32) {
    %c0_i32 = arith.constant 0 : i32
    return %arg0, %arg1 : i32, i32
  }
}

module attributes {stable_mosaic.version = 11 : i64} {
  func.func @_mm_bias_kernel(%arg0: i32, %arg1: i32, %arg2: i32, %arg3: memref<8x512xbf16, #tpu.memory_space<vmem>>, %arg4: memref<512x128xbf16, #tpu.memory_space<vmem>>, %arg5: memref<1x128xf32, #tpu.memory_space<vmem>>, %arg6: memref<8x128xbf16, #tpu.memory_space<vmem>>, %arg7: memref<8x128xf32, #tpu.memory_space<vmem>>) attributes {dimension_semantics = [#tpu.dimension_semantics<parallel>, #tpu.dimension_semantics<parallel>, #tpu.dimension_semantics<arbitrary>], iteration_bounds = array<i64: 1, 1, 1>, scalar_prefetch = 0 : i64, scratch_operands = 1 : i64, tpu.core_type = #tpu.core_type<tc>, window_params = [{transform_indices = @transform_0, window_bounds = array<i64: 8, 512>}, {transform_indices = @transform_1, window_bounds = array<i64: 512, 128>}, {transform_indices = @transform_2, window_bounds = array<i64: 1, 128>}, {transform_indices = @transform_3, window_bounds = array<i64: 8, 128>}]} {
    %c0_i32 = arith.constant 0 : i32
    %0 = arith.cmpi eq, %arg2, %c0_i32 : i32
    %1 = arith.extui %0 : i1 to i32
    %c0_i32_0 = arith.constant 0 : i32
    %2 = arith.cmpi ne, %1, %c0_i32_0 : i32
    scf.if %2 {
      %cst_10 = arith.constant 0.000000e+00 : f32
      %12 = vector.broadcast %cst_10 : f32 to vector<8x128xf32>
      %c0_11 = arith.constant 0 : index
      %c0_12 = arith.constant 0 : index
      %13 = vector.load %arg7[%c0_11, %c0_12] : memref<8x128xf32, #tpu.memory_space<vmem>>, vector<8x128xf32>
      tpu.vector_store %arg7[%c0_11, %c0_12], %12 {strides = array<i32>} : memref<8x128xf32, #tpu.memory_space<vmem>>, vector<8x128xf32>,
    } else {
    }
    %c0 = arith.constant 0 : index
    %c0_1 = arith.constant 0 : index
    %3 = vector.load %arg7[%c0, %c0_1] : memref<8x128xf32, #tpu.memory_space<vmem>>, vector<8x128xf32>
    %c0_2 = arith.constant 0 : index
    %c0_3 = arith.constant 0 : index
    %4 = vector.load %arg3[%c0_2, %c0_3] : memref<8x512xbf16, #tpu.memory_space<vmem>>, vector<8x512xbf16>
    %c0_4 = arith.constant 0 : index
    %c0_5 = arith.constant 0 : index
    %5 = vector.load %arg4[%c0_4, %c0_5] : memref<512x128xbf16, #tpu.memory_space<vmem>>, vector<512x128xbf16>
    %cst = arith.constant dense<0.000000e+00> : vector<8x128xf32>
    %6 = tpu.matmul %4, %5, %cst {dimension_numbers = #tpu.dot_dimension_numbers<[1], [0], [0], [1], [0, 0, 1, 1], [], []>} : vector<8x512xbf16>, vector<512x128xbf16>, vector<8x128xf32> -> vector<8x128xf32>
    %7 = arith.addf %3, %6 : vector<8x128xf32>
    %c0_6 = arith.constant 0 : index
    %c0_7 = arith.constant 0 : index
    %8 = vector.load %arg7[%c0_6, %c0_7] : memref<8x128xf32, #tpu.memory_space<vmem>>, vector<8x128xf32>
    tpu.vector_store %arg7[%c0_6, %c0_7], %7 {strides = array<i32>} : memref<8x128xf32, #tpu.memory_space<vmem>>, vector<8x128xf32>,
    %c0_i32_8 = arith.constant 0 : i32
    %9 = arith.cmpi eq, %arg2, %c0_i32_8 : i32
    %10 = arith.extui %9 : i1 to i32
    %c0_i32_9 = arith.constant 0 : i32
    %11 = arith.cmpi ne, %10, %c0_i32_9 : i32
    scf.if %11 {
      %c0_10 = arith.constant 0 : index
      %c0_11 = arith.constant 0 : index
      %12 = vector.load %arg7[%c0_10, %c0_11] : memref<8x128xf32, #tpu.memory_space<vmem>>, vector<8x128xf32>
      %c0_12 = arith.constant 0 : index
      %c0_13 = arith.constant 0 : index
      %13 = vector.load %arg5[%c0_12, %c0_13] : memref<1x128xf32, #tpu.memory_space<vmem>>, vector<1x128xf32>
      %14 = vector.broadcast %13 : vector<1x128xf32> to vector<8x128xf32>
      %15 = arith.addf %12, %14 : vector<8x128xf32>
      %cst_14 = arith.constant 0.000000e+00 : f32
      %16 = vector.broadcast %cst_14 : f32 to vector<8x128xf32>
      %17 = arith.maximumf %15, %16 : vector<8x128xf32>
      %18 = arith.truncf %17 : vector<8x128xf32> to vector<8x128xbf16>
      %c0_15 = arith.constant 0 : index
      %c0_16 = arith.constant 0 : index
      %19 = vector.load %arg6[%c0_15, %c0_16] : memref<8x128xbf16, #tpu.memory_space<vmem>>, vector<8x128xbf16>
      tpu.vector_store %arg6[%c0_15, %c0_16], %18 {strides = array<i32>} : memref<8x128xbf16, #tpu.memory_space<vmem>>, vector<8x128xbf16>,
    } else {
    }
    return
  }
  func.func @transform_0(%arg0: i32, %arg1: i32, %arg2: i32) -> (i32, i32) {
    %c0_i32 = arith.constant 0 : i32
    return %arg0, %arg2 : i32, i32
  }
  func.func @transform_1(%arg0: i32, %arg1: i32, %arg2: i32) -> (i32, i32) {
    %c0_i32 = arith.constant 0 : i32
    return %arg2, %arg1 : i32, i32
  }
  func.func @transform_2(%arg0: i32, %arg1: i32, %arg2: i32) -> (i32, i32) {
    %c0_i32 = arith.constant 0 : i32
    %c0_i32_0 = arith.constant 0 : i32
    return %c0_i32, %arg1 : i32, i32
  }
  func.func @transform_3(%arg0: i32, %arg1: i32, %arg2: i32) -> (i32, i32) {
    %c0_i32 = arith.constant 0 : i32
    return %arg0, %arg1 : i32, i32
  }
}

module attributes {stable_mosaic.version = 11 : i64} {
  func.func @_mm_bias_kernel(%arg0: i32, %arg1: i32, %arg2: i32, %arg3: memref<8x512xbf16, #tpu.memory_space<vmem>>, %arg4: memref<512x256xbf16, #tpu.memory_space<vmem>>, %arg5: memref<1x256xf32, #tpu.memory_space<vmem>>, %arg6: memref<8x256xbf16, #tpu.memory_space<vmem>>, %arg7: memref<8x256xf32, #tpu.memory_space<vmem>>) attributes {dimension_semantics = [#tpu.dimension_semantics<parallel>, #tpu.dimension_semantics<parallel>, #tpu.dimension_semantics<arbitrary>], iteration_bounds = array<i64: 1, 1, 1>, scalar_prefetch = 0 : i64, scratch_operands = 1 : i64, tpu.core_type = #tpu.core_type<tc>, window_params = [{transform_indices = @transform_0, window_bounds = array<i64: 8, 512>}, {transform_indices = @transform_1, window_bounds = array<i64: 512, 256>}, {transform_indices = @transform_2, window_bounds = array<i64: 1, 256>}, {transform_indices = @transform_3, window_bounds = array<i64: 8, 256>}]} {
    %c0_i32 = arith.constant 0 : i32
    %0 = arith.cmpi eq, %arg2, %c0_i32 : i32
    %1 = arith.extui %0 : i1 to i32
    %c0_i32_0 = arith.constant 0 : i32
    %2 = arith.cmpi ne, %1, %c0_i32_0 : i32
    scf.if %2 {
      %cst_10 = arith.constant 0.000000e+00 : f32
      %12 = vector.broadcast %cst_10 : f32 to vector<8x256xf32>
      %c0_11 = arith.constant 0 : index
      %c0_12 = arith.constant 0 : index
      %13 = vector.load %arg7[%c0_11, %c0_12] : memref<8x256xf32, #tpu.memory_space<vmem>>, vector<8x256xf32>
      tpu.vector_store %arg7[%c0_11, %c0_12], %12 {strides = array<i32>} : memref<8x256xf32, #tpu.memory_space<vmem>>, vector<8x256xf32>,
    } else {
    }
    %c0 = arith.constant 0 : index
    %c0_1 = arith.constant 0 : index
    %3 = vector.load %arg7[%c0, %c0_1] : memref<8x256xf32, #tpu.memory_space<vmem>>, vector<8x256xf32>
    %c0_2 = arith.constant 0 : index
    %c0_3 = arith.constant 0 : index
    %4 = vector.load %arg3[%c0_2, %c0_3] : memref<8x512xbf16, #tpu.memory_space<vmem>>, vector<8x512xbf16>
    %c0_4 = arith.constant 0 : index
    %c0_5 = arith.constant 0 : index
    %5 = vector.load %arg4[%c0_4, %c0_5] : memref<512x256xbf16, #tpu.memory_space<vmem>>, vector<512x256xbf16>
    %cst = arith.constant dense<0.000000e+00> : vector<8x256xf32>
    %6 = tpu.matmul %4, %5, %cst {dimension_numbers = #tpu.dot_dimension_numbers<[1], [0], [0], [1], [0, 0, 1, 1], [], []>} : vector<8x512xbf16>, vector<512x256xbf16>, vector<8x256xf32> -> vector<8x256xf32>
    %7 = arith.addf %3, %6 : vector<8x256xf32>
    %c0_6 = arith.constant 0 : index
    %c0_7 = arith.constant 0 : index
    %8 = vector.load %arg7[%c0_6, %c0_7] : memref<8x256xf32, #tpu.memory_space<vmem>>, vector<8x256xf32>
    tpu.vector_store %arg7[%c0_6, %c0_7], %7 {strides = array<i32>} : memref<8x256xf32, #tpu.memory_space<vmem>>, vector<8x256xf32>,
    %c0_i32_8 = arith.constant 0 : i32
    %9 = arith.cmpi eq, %arg2, %c0_i32_8 : i32
    %10 = arith.extui %9 : i1 to i32
    %c0_i32_9 = arith.constant 0 : i32
    %11 = arith.cmpi ne, %10, %c0_i32_9 : i32
    scf.if %11 {
      %c0_10 = arith.constant 0 : index
      %c0_11 = arith.constant 0 : index
      %12 = vector.load %arg7[%c0_10, %c0_11] : memref<8x256xf32, #tpu.memory_space<vmem>>, vector<8x256xf32>
      %c0_12 = arith.constant 0 : index
      %c0_13 = arith.constant 0 : index
      %13 = vector.load %arg5[%c0_12, %c0_13] : memref<1x256xf32, #tpu.memory_space<vmem>>, vector<1x256xf32>
      %14 = vector.broadcast %13 : vector<1x256xf32> to vector<8x256xf32>
      %15 = arith.addf %12, %14 : vector<8x256xf32>
      %cst_14 = arith.constant 0.000000e+00 : f32
      %16 = vector.broadcast %cst_14 : f32 to vector<8x256xf32>
      %17 = arith.maximumf %15, %16 : vector<8x256xf32>
      %18 = arith.truncf %17 : vector<8x256xf32> to vector<8x256xbf16>
      %c0_15 = arith.constant 0 : index
      %c0_16 = arith.constant 0 : index
      %19 = vector.load %arg6[%c0_15, %c0_16] : memref<8x256xbf16, #tpu.memory_space<vmem>>, vector<8x256xbf16>
      tpu.vector_store %arg6[%c0_15, %c0_16], %18 {strides = array<i32>} : memref<8x256xbf16, #tpu.memory_space<vmem>>, vector<8x256xbf16>,
    } else {
    }
    return
  }
  func.func @transform_0(%arg0: i32, %arg1: i32, %arg2: i32) -> (i32, i32) {
    %c0_i32 = arith.constant 0 : i32
    return %arg0, %arg2 : i32, i32
  }
  func.func @transform_1(%arg0: i32, %arg1: i32, %arg2: i32) -> (i32, i32) {
    %c0_i32 = arith.constant 0 : i32
    return %arg2, %arg1 : i32, i32
  }
  func.func @transform_2(%arg0: i32, %arg1: i32, %arg2: i32) -> (i32, i32) {
    %c0_i32 = arith.constant 0 : i32
    %c0_i32_0 = arith.constant 0 : i32
    return %c0_i32, %arg1 : i32, i32
  }
  func.func @transform_3(%arg0: i32, %arg1: i32, %arg2: i32) -> (i32, i32) {
    %c0_i32 = arith.constant 0 : i32
    return %arg0, %arg1 : i32, i32
  }
}

module attributes {stable_mosaic.version = 11 : i64} {
  func.func @_mm_bias_kernel(%arg0: i32, %arg1: i32, %arg2: i32, %arg3: memref<8x384xbf16, #tpu.memory_space<vmem>>, %arg4: memref<384x256xbf16, #tpu.memory_space<vmem>>, %arg5: memref<1x256xf32, #tpu.memory_space<vmem>>, %arg6: memref<8x256xbf16, #tpu.memory_space<vmem>>, %arg7: memref<8x256xf32, #tpu.memory_space<vmem>>) attributes {dimension_semantics = [#tpu.dimension_semantics<parallel>, #tpu.dimension_semantics<parallel>, #tpu.dimension_semantics<arbitrary>], iteration_bounds = array<i64: 1, 1, 6>, scalar_prefetch = 0 : i64, scratch_operands = 1 : i64, tpu.core_type = #tpu.core_type<tc>, window_params = [{transform_indices = @transform_0, window_bounds = array<i64: 8, 384>}, {transform_indices = @transform_1, window_bounds = array<i64: 384, 256>}, {transform_indices = @transform_2, window_bounds = array<i64: 1, 256>}, {transform_indices = @transform_3, window_bounds = array<i64: 8, 256>}]} {
    %c0_i32 = arith.constant 0 : i32
    %0 = arith.cmpi eq, %arg2, %c0_i32 : i32
    %1 = arith.extui %0 : i1 to i32
    %c0_i32_0 = arith.constant 0 : i32
    %2 = arith.cmpi ne, %1, %c0_i32_0 : i32
    scf.if %2 {
      %cst_9 = arith.constant 0.000000e+00 : f32
      %12 = vector.broadcast %cst_9 : f32 to vector<8x256xf32>
      %c0_10 = arith.constant 0 : index
      %c0_11 = arith.constant 0 : index
      %13 = vector.load %arg7[%c0_10, %c0_11] : memref<8x256xf32, #tpu.memory_space<vmem>>, vector<8x256xf32>
      tpu.vector_store %arg7[%c0_10, %c0_11], %12 {strides = array<i32>} : memref<8x256xf32, #tpu.memory_space<vmem>>, vector<8x256xf32>,
    } else {
    }
    %c0 = arith.constant 0 : index
    %c0_1 = arith.constant 0 : index
    %3 = vector.load %arg7[%c0, %c0_1] : memref<8x256xf32, #tpu.memory_space<vmem>>, vector<8x256xf32>
    %c0_2 = arith.constant 0 : index
    %c0_3 = arith.constant 0 : index
    %4 = vector.load %arg3[%c0_2, %c0_3] : memref<8x384xbf16, #tpu.memory_space<vmem>>, vector<8x384xbf16>
    %c0_4 = arith.constant 0 : index
    %c0_5 = arith.constant 0 : index
    %5 = vector.load %arg4[%c0_4, %c0_5] : memref<384x256xbf16, #tpu.memory_space<vmem>>, vector<384x256xbf16>
    %cst = arith.constant dense<0.000000e+00> : vector<8x256xf32>
    %6 = tpu.matmul %4, %5, %cst {dimension_numbers = #tpu.dot_dimension_numbers<[1], [0], [0], [1], [0, 0, 1, 1], [], []>} : vector<8x384xbf16>, vector<384x256xbf16>, vector<8x256xf32> -> vector<8x256xf32>
    %7 = arith.addf %3, %6 : vector<8x256xf32>
    %c0_6 = arith.constant 0 : index
    %c0_7 = arith.constant 0 : index
    %8 = vector.load %arg7[%c0_6, %c0_7] : memref<8x256xf32, #tpu.memory_space<vmem>>, vector<8x256xf32>
    tpu.vector_store %arg7[%c0_6, %c0_7], %7 {strides = array<i32>} : memref<8x256xf32, #tpu.memory_space<vmem>>, vector<8x256xf32>,
    %c5_i32 = arith.constant 5 : i32
    %9 = arith.cmpi eq, %arg2, %c5_i32 : i32
    %10 = arith.extui %9 : i1 to i32
    %c0_i32_8 = arith.constant 0 : i32
    %11 = arith.cmpi ne, %10, %c0_i32_8 : i32
    scf.if %11 {
      %c0_9 = arith.constant 0 : index
      %c0_10 = arith.constant 0 : index
      %12 = vector.load %arg7[%c0_9, %c0_10] : memref<8x256xf32, #tpu.memory_space<vmem>>, vector<8x256xf32>
      %c0_11 = arith.constant 0 : index
      %c0_12 = arith.constant 0 : index
      %13 = vector.load %arg5[%c0_11, %c0_12] : memref<1x256xf32, #tpu.memory_space<vmem>>, vector<1x256xf32>
      %14 = vector.broadcast %13 : vector<1x256xf32> to vector<8x256xf32>
      %15 = arith.addf %12, %14 : vector<8x256xf32>
      %cst_13 = arith.constant 0.000000e+00 : f32
      %16 = vector.broadcast %cst_13 : f32 to vector<8x256xf32>
      %17 = arith.maximumf %15, %16 : vector<8x256xf32>
      %18 = arith.truncf %17 : vector<8x256xf32> to vector<8x256xbf16>
      %c0_14 = arith.constant 0 : index
      %c0_15 = arith.constant 0 : index
      %19 = vector.load %arg6[%c0_14, %c0_15] : memref<8x256xbf16, #tpu.memory_space<vmem>>, vector<8x256xbf16>
      tpu.vector_store %arg6[%c0_14, %c0_15], %18 {strides = array<i32>} : memref<8x256xbf16, #tpu.memory_space<vmem>>, vector<8x256xbf16>,
    } else {
    }
    return
  }
  func.func @transform_0(%arg0: i32, %arg1: i32, %arg2: i32) -> (i32, i32) {
    %c0_i32 = arith.constant 0 : i32
    return %arg0, %arg2 : i32, i32
  }
  func.func @transform_1(%arg0: i32, %arg1: i32, %arg2: i32) -> (i32, i32) {
    %c0_i32 = arith.constant 0 : i32
    return %arg2, %arg1 : i32, i32
  }
  func.func @transform_2(%arg0: i32, %arg1: i32, %arg2: i32) -> (i32, i32) {
    %c0_i32 = arith.constant 0 : i32
    %c0_i32_0 = arith.constant 0 : i32
    return %c0_i32, %arg1 : i32, i32
  }
  func.func @transform_3(%arg0: i32, %arg1: i32, %arg2: i32) -> (i32, i32) {
    %c0_i32 = arith.constant 0 : i32
    return %arg0, %arg1 : i32, i32
  }
}

module attributes {stable_mosaic.version = 11 : i64} {
  func.func @_mm_bias_kernel(%arg0: i32, %arg1: i32, %arg2: i32, %arg3: memref<8x512xbf16, #tpu.memory_space<vmem>>, %arg4: memref<512x256xbf16, #tpu.memory_space<vmem>>, %arg5: memref<1x256xf32, #tpu.memory_space<vmem>>, %arg6: memref<8x256xbf16, #tpu.memory_space<vmem>>, %arg7: memref<8x256xf32, #tpu.memory_space<vmem>>) attributes {dimension_semantics = [#tpu.dimension_semantics<parallel>, #tpu.dimension_semantics<parallel>, #tpu.dimension_semantics<arbitrary>], iteration_bounds = array<i64: 1, 4, 1>, scalar_prefetch = 0 : i64, scratch_operands = 1 : i64, tpu.core_type = #tpu.core_type<tc>, window_params = [{transform_indices = @transform_0, window_bounds = array<i64: 8, 512>}, {transform_indices = @transform_1, window_bounds = array<i64: 512, 256>}, {transform_indices = @transform_2, window_bounds = array<i64: 1, 256>}, {transform_indices = @transform_3, window_bounds = array<i64: 8, 256>}]} {
    %c0_i32 = arith.constant 0 : i32
    %0 = arith.cmpi eq, %arg2, %c0_i32 : i32
    %1 = arith.extui %0 : i1 to i32
    %c0_i32_0 = arith.constant 0 : i32
    %2 = arith.cmpi ne, %1, %c0_i32_0 : i32
    scf.if %2 {
      %cst_10 = arith.constant 0.000000e+00 : f32
      %12 = vector.broadcast %cst_10 : f32 to vector<8x256xf32>
      %c0_11 = arith.constant 0 : index
      %c0_12 = arith.constant 0 : index
      %13 = vector.load %arg7[%c0_11, %c0_12] : memref<8x256xf32, #tpu.memory_space<vmem>>, vector<8x256xf32>
      tpu.vector_store %arg7[%c0_11, %c0_12], %12 {strides = array<i32>} : memref<8x256xf32, #tpu.memory_space<vmem>>, vector<8x256xf32>,
    } else {
    }
    %c0 = arith.constant 0 : index
    %c0_1 = arith.constant 0 : index
    %3 = vector.load %arg7[%c0, %c0_1] : memref<8x256xf32, #tpu.memory_space<vmem>>, vector<8x256xf32>
    %c0_2 = arith.constant 0 : index
    %c0_3 = arith.constant 0 : index
    %4 = vector.load %arg3[%c0_2, %c0_3] : memref<8x512xbf16, #tpu.memory_space<vmem>>, vector<8x512xbf16>
    %c0_4 = arith.constant 0 : index
    %c0_5 = arith.constant 0 : index
    %5 = vector.load %arg4[%c0_4, %c0_5] : memref<512x256xbf16, #tpu.memory_space<vmem>>, vector<512x256xbf16>
    %cst = arith.constant dense<0.000000e+00> : vector<8x256xf32>
    %6 = tpu.matmul %4, %5, %cst {dimension_numbers = #tpu.dot_dimension_numbers<[1], [0], [0], [1], [0, 0, 1, 1], [], []>} : vector<8x512xbf16>, vector<512x256xbf16>, vector<8x256xf32> -> vector<8x256xf32>
    %7 = arith.addf %3, %6 : vector<8x256xf32>
    %c0_6 = arith.constant 0 : index
    %c0_7 = arith.constant 0 : index
    %8 = vector.load %arg7[%c0_6, %c0_7] : memref<8x256xf32, #tpu.memory_space<vmem>>, vector<8x256xf32>
    tpu.vector_store %arg7[%c0_6, %c0_7], %7 {strides = array<i32>} : memref<8x256xf32, #tpu.memory_space<vmem>>, vector<8x256xf32>,
    %c0_i32_8 = arith.constant 0 : i32
    %9 = arith.cmpi eq, %arg2, %c0_i32_8 : i32
    %10 = arith.extui %9 : i1 to i32
    %c0_i32_9 = arith.constant 0 : i32
    %11 = arith.cmpi ne, %10, %c0_i32_9 : i32
    scf.if %11 {
      %c0_10 = arith.constant 0 : index
      %c0_11 = arith.constant 0 : index
      %12 = vector.load %arg7[%c0_10, %c0_11] : memref<8x256xf32, #tpu.memory_space<vmem>>, vector<8x256xf32>
      %c0_12 = arith.constant 0 : index
      %c0_13 = arith.constant 0 : index
      %13 = vector.load %arg5[%c0_12, %c0_13] : memref<1x256xf32, #tpu.memory_space<vmem>>, vector<1x256xf32>
      %14 = vector.broadcast %13 : vector<1x256xf32> to vector<8x256xf32>
      %15 = arith.addf %12, %14 : vector<8x256xf32>
      %16 = arith.truncf %15 : vector<8x256xf32> to vector<8x256xbf16>
      %c0_14 = arith.constant 0 : index
      %c0_15 = arith.constant 0 : index
      %17 = vector.load %arg6[%c0_14, %c0_15] : memref<8x256xbf16, #tpu.memory_space<vmem>>, vector<8x256xbf16>
      tpu.vector_store %arg6[%c0_14, %c0_15], %16 {strides = array<i32>} : memref<8x256xbf16, #tpu.memory_space<vmem>>, vector<8x256xbf16>,
    } else {
    }
    return
  }
  func.func @transform_0(%arg0: i32, %arg1: i32, %arg2: i32) -> (i32, i32) {
    %c0_i32 = arith.constant 0 : i32
    return %arg0, %arg2 : i32, i32
  }
  func.func @transform_1(%arg0: i32, %arg1: i32, %arg2: i32) -> (i32, i32) {
    %c0_i32 = arith.constant 0 : i32
    return %arg2, %arg1 : i32, i32
  }
  func.func @transform_2(%arg0: i32, %arg1: i32, %arg2: i32) -> (i32, i32) {
    %c0_i32 = arith.constant 0 : i32
    %c0_i32_0 = arith.constant 0 : i32
    return %c0_i32, %arg1 : i32, i32
  }
  func.func @transform_3(%arg0: i32, %arg1: i32, %arg2: i32) -> (i32, i32) {
    %c0_i32 = arith.constant 0 : i32
    return %arg0, %arg1 : i32, i32
  }
}

module attributes {stable_mosaic.version = 11 : i64} {
  func.func @_mm_bias_res_kernel(%arg0: i32, %arg1: i32, %arg2: i32, %arg3: memref<8x256xbf16, #tpu.memory_space<vmem>>, %arg4: memref<256x256xbf16, #tpu.memory_space<vmem>>, %arg5: memref<1x256xf32, #tpu.memory_space<vmem>>, %arg6: memref<8x256xbf16, #tpu.memory_space<vmem>>, %arg7: memref<8x256xbf16, #tpu.memory_space<vmem>>, %arg8: memref<8x256xf32, #tpu.memory_space<vmem>>) attributes {dimension_semantics = [#tpu.dimension_semantics<parallel>, #tpu.dimension_semantics<parallel>, #tpu.dimension_semantics<arbitrary>], iteration_bounds = array<i64: 1, 4, 1>, scalar_prefetch = 0 : i64, scratch_operands = 1 : i64, tpu.core_type = #tpu.core_type<tc>, window_params = [{transform_indices = @transform_0, window_bounds = array<i64: 8, 256>}, {transform_indices = @transform_1, window_bounds = array<i64: 256, 256>}, {transform_indices = @transform_2, window_bounds = array<i64: 1, 256>}, {transform_indices = @transform_3, window_bounds = array<i64: 8, 256>}, {transform_indices = @transform_4, window_bounds = array<i64: 8, 256>}]} {
    %c0_i32 = arith.constant 0 : i32
    %0 = arith.cmpi eq, %arg2, %c0_i32 : i32
    %1 = arith.extui %0 : i1 to i32
    %c0_i32_0 = arith.constant 0 : i32
    %2 = arith.cmpi ne, %1, %c0_i32_0 : i32
    scf.if %2 {
      %cst_10 = arith.constant 0.000000e+00 : f32
      %12 = vector.broadcast %cst_10 : f32 to vector<8x256xf32>
      %c0_11 = arith.constant 0 : index
      %c0_12 = arith.constant 0 : index
      %13 = vector.load %arg8[%c0_11, %c0_12] : memref<8x256xf32, #tpu.memory_space<vmem>>, vector<8x256xf32>
      tpu.vector_store %arg8[%c0_11, %c0_12], %12 {strides = array<i32>} : memref<8x256xf32, #tpu.memory_space<vmem>>, vector<8x256xf32>,
    } else {
    }
    %c0 = arith.constant 0 : index
    %c0_1 = arith.constant 0 : index
    %3 = vector.load %arg8[%c0, %c0_1] : memref<8x256xf32, #tpu.memory_space<vmem>>, vector<8x256xf32>
    %c0_2 = arith.constant 0 : index
    %c0_3 = arith.constant 0 : index
    %4 = vector.load %arg3[%c0_2, %c0_3] : memref<8x256xbf16, #tpu.memory_space<vmem>>, vector<8x256xbf16>
    %c0_4 = arith.constant 0 : index
    %c0_5 = arith.constant 0 : index
    %5 = vector.load %arg4[%c0_4, %c0_5] : memref<256x256xbf16, #tpu.memory_space<vmem>>, vector<256x256xbf16>
    %cst = arith.constant dense<0.000000e+00> : vector<8x256xf32>
    %6 = tpu.matmul %4, %5, %cst {dimension_numbers = #tpu.dot_dimension_numbers<[1], [0], [0], [1], [0, 0, 1, 1], [], []>} : vector<8x256xbf16>, vector<256x256xbf16>, vector<8x256xf32> -> vector<8x256xf32>
    %7 = arith.addf %3, %6 : vector<8x256xf32>
    %c0_6 = arith.constant 0 : index
    %c0_7 = arith.constant 0 : index
    %8 = vector.load %arg8[%c0_6, %c0_7] : memref<8x256xf32, #tpu.memory_space<vmem>>, vector<8x256xf32>
    tpu.vector_store %arg8[%c0_6, %c0_7], %7 {strides = array<i32>} : memref<8x256xf32, #tpu.memory_space<vmem>>, vector<8x256xf32>,
    %c0_i32_8 = arith.constant 0 : i32
    %9 = arith.cmpi eq, %arg2, %c0_i32_8 : i32
    %10 = arith.extui %9 : i1 to i32
    %c0_i32_9 = arith.constant 0 : i32
    %11 = arith.cmpi ne, %10, %c0_i32_9 : i32
    scf.if %11 {
      %c0_10 = arith.constant 0 : index
      %c0_11 = arith.constant 0 : index
      %12 = vector.load %arg8[%c0_10, %c0_11] : memref<8x256xf32, #tpu.memory_space<vmem>>, vector<8x256xf32>
      %c0_12 = arith.constant 0 : index
      %c0_13 = arith.constant 0 : index
      %13 = vector.load %arg5[%c0_12, %c0_13] : memref<1x256xf32, #tpu.memory_space<vmem>>, vector<1x256xf32>
      %14 = vector.broadcast %13 : vector<1x256xf32> to vector<8x256xf32>
      %15 = arith.addf %12, %14 : vector<8x256xf32>
      %c0_14 = arith.constant 0 : index
      %c0_15 = arith.constant 0 : index
      %16 = vector.load %arg6[%c0_14, %c0_15] : memref<8x256xbf16, #tpu.memory_space<vmem>>, vector<8x256xbf16>
      %17 = arith.extf %16 : vector<8x256xbf16> to vector<8x256xf32>
      %18 = arith.addf %15, %17 : vector<8x256xf32>
      %cst_16 = arith.constant 0.000000e+00 : f32
      %19 = vector.broadcast %cst_16 : f32 to vector<8x256xf32>
      %20 = arith.maximumf %18, %19 : vector<8x256xf32>
      %21 = arith.truncf %20 : vector<8x256xf32> to vector<8x256xbf16>
      %c0_17 = arith.constant 0 : index
      %c0_18 = arith.constant 0 : index
      %22 = vector.load %arg7[%c0_17, %c0_18] : memref<8x256xbf16, #tpu.memory_space<vmem>>, vector<8x256xbf16>
      tpu.vector_store %arg7[%c0_17, %c0_18], %21 {strides = array<i32>} : memref<8x256xbf16, #tpu.memory_space<vmem>>, vector<8x256xbf16>,
    } else {
    }
    return
  }
  func.func @transform_0(%arg0: i32, %arg1: i32, %arg2: i32) -> (i32, i32) {
    %c0_i32 = arith.constant 0 : i32
    return %arg0, %arg2 : i32, i32
  }
  func.func @transform_1(%arg0: i32, %arg1: i32, %arg2: i32) -> (i32, i32) {
    %c0_i32 = arith.constant 0 : i32
    return %arg2, %arg1 : i32, i32
  }
  func.func @transform_2(%arg0: i32, %arg1: i32, %arg2: i32) -> (i32, i32) {
    %c0_i32 = arith.constant 0 : i32
    %c0_i32_0 = arith.constant 0 : i32
    return %c0_i32, %arg1 : i32, i32
  }
  func.func @transform_3(%arg0: i32, %arg1: i32, %arg2: i32) -> (i32, i32) {
    %c0_i32 = arith.constant 0 : i32
    return %arg0, %arg1 : i32, i32
  }
  func.func @transform_4(%arg0: i32, %arg1: i32, %arg2: i32) -> (i32, i32) {
    %c0_i32 = arith.constant 0 : i32
    return %arg0, %arg1 : i32, i32
  }
}

module attributes {stable_mosaic.version = 11 : i64} {
  func.func @_mm_bias_kernel(%arg0: i32, %arg1: i32, %arg2: i32, %arg3: memref<8x512xbf16, #tpu.memory_space<vmem>>, %arg4: memref<512x256xbf16, #tpu.memory_space<vmem>>, %arg5: memref<1x256xf32, #tpu.memory_space<vmem>>, %arg6: memref<8x256xbf16, #tpu.memory_space<vmem>>, %arg7: memref<8x256xf32, #tpu.memory_space<vmem>>) attributes {dimension_semantics = [#tpu.dimension_semantics<parallel>, #tpu.dimension_semantics<parallel>, #tpu.dimension_semantics<arbitrary>], iteration_bounds = array<i64: 1, 1, 2>, scalar_prefetch = 0 : i64, scratch_operands = 1 : i64, tpu.core_type = #tpu.core_type<tc>, window_params = [{transform_indices = @transform_0, window_bounds = array<i64: 8, 512>}, {transform_indices = @transform_1, window_bounds = array<i64: 512, 256>}, {transform_indices = @transform_2, window_bounds = array<i64: 1, 256>}, {transform_indices = @transform_3, window_bounds = array<i64: 8, 256>}]} {
    %c0_i32 = arith.constant 0 : i32
    %0 = arith.cmpi eq, %arg2, %c0_i32 : i32
    %1 = arith.extui %0 : i1 to i32
    %c0_i32_0 = arith.constant 0 : i32
    %2 = arith.cmpi ne, %1, %c0_i32_0 : i32
    scf.if %2 {
      %cst_9 = arith.constant 0.000000e+00 : f32
      %12 = vector.broadcast %cst_9 : f32 to vector<8x256xf32>
      %c0_10 = arith.constant 0 : index
      %c0_11 = arith.constant 0 : index
      %13 = vector.load %arg7[%c0_10, %c0_11] : memref<8x256xf32, #tpu.memory_space<vmem>>, vector<8x256xf32>
      tpu.vector_store %arg7[%c0_10, %c0_11], %12 {strides = array<i32>} : memref<8x256xf32, #tpu.memory_space<vmem>>, vector<8x256xf32>,
    } else {
    }
    %c0 = arith.constant 0 : index
    %c0_1 = arith.constant 0 : index
    %3 = vector.load %arg7[%c0, %c0_1] : memref<8x256xf32, #tpu.memory_space<vmem>>, vector<8x256xf32>
    %c0_2 = arith.constant 0 : index
    %c0_3 = arith.constant 0 : index
    %4 = vector.load %arg3[%c0_2, %c0_3] : memref<8x512xbf16, #tpu.memory_space<vmem>>, vector<8x512xbf16>
    %c0_4 = arith.constant 0 : index
    %c0_5 = arith.constant 0 : index
    %5 = vector.load %arg4[%c0_4, %c0_5] : memref<512x256xbf16, #tpu.memory_space<vmem>>, vector<512x256xbf16>
    %cst = arith.constant dense<0.000000e+00> : vector<8x256xf32>
    %6 = tpu.matmul %4, %5, %cst {dimension_numbers = #tpu.dot_dimension_numbers<[1], [0], [0], [1], [0, 0, 1, 1], [], []>} : vector<8x512xbf16>, vector<512x256xbf16>, vector<8x256xf32> -> vector<8x256xf32>
    %7 = arith.addf %3, %6 : vector<8x256xf32>
    %c0_6 = arith.constant 0 : index
    %c0_7 = arith.constant 0 : index
    %8 = vector.load %arg7[%c0_6, %c0_7] : memref<8x256xf32, #tpu.memory_space<vmem>>, vector<8x256xf32>
    tpu.vector_store %arg7[%c0_6, %c0_7], %7 {strides = array<i32>} : memref<8x256xf32, #tpu.memory_space<vmem>>, vector<8x256xf32>,
    %c1_i32 = arith.constant 1 : i32
    %9 = arith.cmpi eq, %arg2, %c1_i32 : i32
    %10 = arith.extui %9 : i1 to i32
    %c0_i32_8 = arith.constant 0 : i32
    %11 = arith.cmpi ne, %10, %c0_i32_8 : i32
    scf.if %11 {
      %c0_9 = arith.constant 0 : index
      %c0_10 = arith.constant 0 : index
      %12 = vector.load %arg7[%c0_9, %c0_10] : memref<8x256xf32, #tpu.memory_space<vmem>>, vector<8x256xf32>
      %c0_11 = arith.constant 0 : index
      %c0_12 = arith.constant 0 : index
      %13 = vector.load %arg5[%c0_11, %c0_12] : memref<1x256xf32, #tpu.memory_space<vmem>>, vector<1x256xf32>
      %14 = vector.broadcast %13 : vector<1x256xf32> to vector<8x256xf32>
      %15 = arith.addf %12, %14 : vector<8x256xf32>
      %cst_13 = arith.constant 0.000000e+00 : f32
      %16 = vector.broadcast %cst_13 : f32 to vector<8x256xf32>
      %17 = arith.maximumf %15, %16 : vector<8x256xf32>
      %18 = arith.truncf %17 : vector<8x256xf32> to vector<8x256xbf16>
      %c0_14 = arith.constant 0 : index
      %c0_15 = arith.constant 0 : index
      %19 = vector.load %arg6[%c0_14, %c0_15] : memref<8x256xbf16, #tpu.memory_space<vmem>>, vector<8x256xbf16>
      tpu.vector_store %arg6[%c0_14, %c0_15], %18 {strides = array<i32>} : memref<8x256xbf16, #tpu.memory_space<vmem>>, vector<8x256xbf16>,
    } else {
    }
    return
  }
  func.func @transform_0(%arg0: i32, %arg1: i32, %arg2: i32) -> (i32, i32) {
    %c0_i32 = arith.constant 0 : i32
    return %arg0, %arg2 : i32, i32
  }
  func.func @transform_1(%arg0: i32, %arg1: i32, %arg2: i32) -> (i32, i32) {
    %c0_i32 = arith.constant 0 : i32
    return %arg2, %arg1 : i32, i32
  }
  func.func @transform_2(%arg0: i32, %arg1: i32, %arg2: i32) -> (i32, i32) {
    %c0_i32 = arith.constant 0 : i32
    %c0_i32_0 = arith.constant 0 : i32
    return %c0_i32, %arg1 : i32, i32
  }
  func.func @transform_3(%arg0: i32, %arg1: i32, %arg2: i32) -> (i32, i32) {
    %c0_i32 = arith.constant 0 : i32
    return %arg0, %arg1 : i32, i32
  }
}

</mosaic_0001>

<llo_original>
// kernel: _lambda_.45
$region0: #{_lambda_.45}
  #allocation0 [shape = 'u32[]', space=smem, size = 0x4, offset = 0x4, fixed_abs, tag = 'smem constant byte address 0x4 - core index']
  #allocation1 [shape = 'u32[144,128]{1,0:T(1,128)}', space=vmem, size = 0x12000, scoped, tag = 'internal scratch']
  %s0 = inlined_call_operand.vmem [shape: f32[512,3], index: 0, kind: input, shape index: {}]
  %s1 = inlined_call_operand.hbm [shape: f32[1,3], index: 1, kind: input, shape index: {}]
  %s2 = inlined_call_operand.hbm [shape: f32[1,3], index: 2, kind: input, shape index: {}]
  %s3 = inlined_call_operand.vmem [shape: bf16[512,3], index: 3, kind: output, shape index: {}]
  %s4 = sld [smem:[#allocation0]]
  $region30: #{_lambda_.45} parent=0
    _
  %s6 = ssub.s32 1, %s4
  %s7 = scalar_select 0, %s6, %s4
  $region1: #{_lambda_.45} parent=0
    #allocation2 [shape = 'u8[512]{0}', space=vmem, size = 0x400, scoped, tag = 'input window, operand 1, single buffered']
    #allocation3 [shape = 's32[1]{0}', space=sflag, size = 0x4, scoped, tag = 'scoped memory for _lambda_.45']
    #allocation4 [shape = 'u8[512]{0}', space=vmem, size = 0x400, scoped, tag = 'input window, operand 2, single buffered']
    #allocation5 [shape = 's32[1]{0}', space=sflag, size = 0x4, scoped, tag = 'scoped memory for _lambda_.45']
    %8 = vsyncpa [#allocation3], 0
    %9 = vsyncpa [#allocation5], 0
    // Predicated region
    $region2: #{_lambda_.45} parent=1 // pred_check
      _
    $region3: #{_lambda_.45} parent=1 // pred_check_branch
      %11 = sbr.rel (0) target = $region5
    $region4: #{_lambda_.45} parent=1 // pred_region
      _
    $region5: #{_lambda_.45} parent=1 // pred_fallthru
      _
    // Predicated region
    $region6: #{_lambda_.45} parent=1 // pred_check
      _
    $region7: #{_lambda_.45} parent=1 // pred_check_branch
      %13 = sbr.rel (0) target = $region9
    $region8: #{_lambda_.45} parent=1 // pred_region
      %s15 = ssub.s32 16, 16
      %16 = vsyncadd [#allocation3], %s15
      %s18 = sshll.u32 [#allocation2], 4
      %s19 = int_to_ptr.vmem [resolvable:$true] %s18
      %21 = dma.hbm_to_vmem [thread:$0]  %s1, 16, %s19, [#allocation3]
    $region9: #{_lambda_.45} parent=1 // pred_fallthru
      _
    // Predicated region
    $region10: #{_lambda_.45} parent=1 // pred_check
      _
    $region11: #{_lambda_.45} parent=1 // pred_check_branch
      %23 = sbr.rel (0) target = $region13
    $region12: #{_lambda_.45} parent=1 // pred_region
      %s25 = ssub.s32 16, 16
      %26 = vsyncadd [#allocation5], %s25
      %s28 = sshll.u32 [#allocation4], 4
      %s29 = int_to_ptr.vmem [resolvable:$true] %s28
      %31 = dma.hbm_to_vmem [thread:$0]  %s2, 16, %s29, [#allocation5]
    $region13: #{_lambda_.45} parent=1 // pred_fallthru
      _
    // Predicated region
    $region14: #{_lambda_.45} parent=1 // pred_check
      _
    $region15: #{_lambda_.45} parent=1 // pred_check_branch
      %33 = sbr.rel (0) target = $region17
    $region16: #{_lambda_.45} parent=1 // pred_region
      %34 = dma.done [#allocation3], 16
    $region17: #{_lambda_.45} parent=1 // pred_fallthru
      _
    // Predicated region
    $region18: #{_lambda_.45} parent=1 // pred_check
      _
    $region19: #{_lambda_.45} parent=1 // pred_check_branch
      %36 = sbr.rel (0) target = $region21
    $region20: #{_lambda_.45} parent=1 // pred_region
      %37 = dma.done [#allocation5], 16
    $region21: #{_lambda_.45} parent=1 // pred_fallthru
      _
    %v38 = vld [vmem:[%s0] sm:$0xff]
    %v39 = vld [vmem:[%s0 + $0x8] sm:$0xff]
    %v40 = vld [vmem:[%s0 + $0x10] sm:$0xff]
    %v41 = vld [vmem:[%s0 + $0x18] sm:$0xff]
    %v42 = vld [vmem:[%s0 + $0x20] sm:$0xff]
    %v43 = vld [vmem:[%s0 + $0x28] sm:$0xff]
    %v44 = vld [vmem:[%s0 + $0x30] sm:$0xff]
    %v45 = vld [vmem:[%s0 + $0x38] sm:$0xff]
    %v46 = vld [vmem:[%s0 + $0x40] sm:$0xff]
    %v47 = vld [vmem:[%s0 + $0x48] sm:$0xff]
    %v48 = vld [vmem:[%s0 + $0x50] sm:$0xff]
    %v49 = vld [vmem:[%s0 + $0x58] sm:$0xff]
    %v50 = vld [vmem:[%s0 + $0x60] sm:$0xff]
    %v51 = vld [vmem:[%s0 + $0x68] sm:$0xff]
    %v52 = vld [vmem:[%s0 + $0x70] sm:$0xff]
    %v53 = vld [vmem:[%s0 + $0x78] sm:$0xff]
    %v54 = vld [vmem:[%s0 + $0x80] sm:$0xff]
    %v55 = vld [vmem:[%s0 + $0x88] sm:$0xff]
    %v56 = vld [vmem:[%s0 + $0x90] sm:$0xff]
    %v57 = vld [vmem:[%s0 + $0x98] sm:$0xff]
    %v58 = vld [vmem:[%s0 + $0xa0] sm:$0xff]
    %v59 = vld [vmem:[%s0 + $0xa8] sm:$0xff]
    %v60 = vld [vmem:[%s0 + $0xb0] sm:$0xff]
    %v61 = vld [vmem:[%s0 + $0xb8] sm:$0xff]
    %v62 = vld [vmem:[%s0 + $0xc0] sm:$0xff]
    %v63 = vld [vmem:[%s0 + $0xc8] sm:$0xff]
    %v64 = vld [vmem:[%s0 + $0xd0] sm:$0xff]
    %v65 = vld [vmem:[%s0 + $0xd8] sm:$0xff]
    %v66 = vld [vmem:[%s0 + $0xe0] sm:$0xff]
    %v67 = vld [vmem:[%s0 + $0xe8] sm:$0xff]
    %v68 = vld [vmem:[%s0 + $0xf0] sm:$0xff]
    %v69 = vld [vmem:[%s0 + $0xf8] sm:$0xff]
    %v70 = vld [vmem:[%s0 + $0x100] sm:$0xff]
    %v71 = vld [vmem:[%s0 + $0x108] sm:$0xff]
    %v72 = vld [vmem:[%s0 + $0x110] sm:$0xff]
    %v73 = vld [vmem:[%s0 + $0x118] sm:$0xff]
    %v74 = vld [vmem:[%s0 + $0x120] sm:$0xff]
    %v75 = vld [vmem:[%s0 + $0x128] sm:$0xff]
    %v76 = vld [vmem:[%s0 + $0x130] sm:$0xff]
    %v77 = vld [vmem:[%s0 + $0x138] sm:$0xff]
    %v78 = vld [vmem:[%s0 + $0x140] sm:$0xff]
    %v79 = vld [vmem:[%s0 + $0x148] sm:$0xff]
    %v80 = vld [vmem:[%s0 + $0x150] sm:$0xff]
    %v81 = vld [vmem:[%s0 + $0x158] sm:$0xff]
    %v82 = vld [vmem:[%s0 + $0x160] sm:$0xff]
    %v83 = vld [vmem:[%s0 + $0x168] sm:$0xff]
    %v84 = vld [vmem:[%s0 + $0x170] sm:$0xff]
    %v85 = vld [vmem:[%s0 + $0x178] sm:$0xff]
    %v86 = vld [vmem:[%s0 + $0x180] sm:$0xff]
    %v87 = vld [vmem:[%s0 + $0x188] sm:$0xff]
    %v88 = vld [vmem:[%s0 + $0x190] sm:$0xff]
    %v89 = vld [vmem:[%s0 + $0x198] sm:$0xff]
    %v90 = vld [vmem:[%s0 + $0x1a0] sm:$0xff]
    %v91 = vld [vmem:[%s0 + $0x1a8] sm:$0xff]
    %v92 = vld [vmem:[%s0 + $0x1b0] sm:$0xff]
    %v93 = vld [vmem:[%s0 + $0x1b8] sm:$0xff]
    %v94 = vld [vmem:[%s0 + $0x1c0] sm:$0xff]
    %v95 = vld [vmem:[%s0 + $0x1c8] sm:$0xff]
    %v96 = vld [vmem:[%s0 + $0x1d0] sm:$0xff]
    %v97 = vld [vmem:[%s0 + $0x1d8] sm:$0xff]
    %v98 = vld [vmem:[%s0 + $0x1e0] sm:$0xff]
    %v99 = vld [vmem:[%s0 + $0x1e8] sm:$0xff]
    %v100 = vld [vmem:[%s0 + $0x1f0] sm:$0xff]
    %v101 = vld [vmem:[%s0 + $0x1f8] sm:$0xff]
    %v102 = vld [vmem:[#allocation2] sm:$0x1]
    %v104 = vlaneseq
    %v105 = vshrl.u32 %v104, 7
    %v106 = vsub.s32 0, %v105
    %v107 = vrot.slane %v102, %v106
    %v109 = vmul.f32 %v38, %v107
    %v110 = vmul.f32 %v39, %v107
    %v111 = vmul.f32 %v40, %v107
    %v112 = vmul.f32 %v41, %v107
    %v113 = vmul.f32 %v42, %v107
    %v114 = vmul.f32 %v43, %v107
    %v115 = vmul.f32 %v44, %v107
    %v116 = vmul.f32 %v45, %v107
    %v117 = vmul.f32 %v46, %v107
    %v118 = vmul.f32 %v47, %v107
    %v119 = vmul.f32 %v48, %v107
    %v120 = vmul.f32 %v49, %v107
    %v121 = vmul.f32 %v50, %v107
    %v122 = vmul.f32 %v51, %v107
    %v123 = vmul.f32 %v52, %v107
    %v124 = vmul.f32 %v53, %v107
    %v125 = vmul.f32 %v54, %v107
    %v126 = vmul.f32 %v55, %v107
    %v127 = vmul.f32 %v56, %v107
    %v128 = vmul.f32 %v57, %v107
    %v129 = vmul.f32 %v58, %v107
    %v130 = vmul.f32 %v59, %v107
    %v131 = vmul.f32 %v60, %v107
    %v132 = vmul.f32 %v61, %v107
    %v133 = vmul.f32 %v62, %v107
    %v134 = vmul.f32 %v63, %v107
    %v135 = vmul.f32 %v64, %v107
    %v136 = vmul.f32 %v65, %v107
    %v137 = vmul.f32 %v66, %v107
    %v138 = vmul.f32 %v67, %v107
    %v139 = vmul.f32 %v68, %v107
    %v140 = vmul.f32 %v69, %v107
    %v141 = vmul.f32 %v70, %v107
    %v142 = vmul.f32 %v71, %v107
    %v143 = vmul.f32 %v72, %v107
    %v144 = vmul.f32 %v73, %v107
    %v145 = vmul.f32 %v74, %v107
    %v146 = vmul.f32 %v75, %v107
    %v147 = vmul.f32 %v76, %v107
    %v148 = vmul.f32 %v77, %v107
    %v149 = vmul.f32 %v78, %v107
    %v150 = vmul.f32 %v79, %v107
    %v151 = vmul.f32 %v80, %v107
    %v152 = vmul.f32 %v81, %v107
    %v153 = vmul.f32 %v82, %v107
    %v154 = vmul.f32 %v83, %v107
    %v155 = vmul.f32 %v84, %v107
    %v156 = vmul.f32 %v85, %v107
    %v157 = vmul.f32 %v86, %v107
    %v158 = vmul.f32 %v87, %v107
    %v159 = vmul.f32 %v88, %v107
    %v160 = vmul.f32 %v89, %v107
    %v161 = vmul.f32 %v90, %v107
    %v162 = vmul.f32 %v91, %v107
    %v163 = vmul.f32 %v92, %v107
    %v164 = vmul.f32 %v93, %v107
    %v165 = vmul.f32 %v94, %v107
    %v166 = vmul.f32 %v95, %v107
    %v167 = vmul.f32 %v96, %v107
    %v168 = vmul.f32 %v97, %v107
    %v169 = vmul.f32 %v98, %v107
    %v170 = vmul.f32 %v99, %v107
    %v171 = vmul.f32 %v100, %v107
    %v172 = vmul.f32 %v101, %v107
    %v173 = vld [vmem:[#allocation4] sm:$0x1]
    %v175 = vlaneseq
    %v176 = vshrl.u32 %v175, 7
    %v177 = vsub.s32 0, %v176
    %v178 = vrot.slane %v173, %v177
    %v180 = vadd.f32 %v109, %v178
    %v181 = vadd.f32 %v110, %v178
    %v182 = vadd.f32 %v111, %v178
    %v183 = vadd.f32 %v112, %v178
    %v184 = vadd.f32 %v113, %v178
    %v185 = vadd.f32 %v114, %v178
    %v186 = vadd.f32 %v115, %v178
    %v187 = vadd.f32 %v116, %v178
    %v188 = vadd.f32 %v117, %v178
    %v189 = vadd.f32 %v118, %v178
    %v190 = vadd.f32 %v119, %v178
    %v191 = vadd.f32 %v120, %v178
    %v192 = vadd.f32 %v121, %v178
    %v193 = vadd.f32 %v122, %v178
    %v194 = vadd.f32 %v123, %v178
    %v195 = vadd.f32 %v124, %v178
    %v196 = vadd.f32 %v125, %v178
    %v197 = vadd.f32 %v126, %v178
    %v198 = vadd.f32 %v127, %v178
    %v199 = vadd.f32 %v128, %v178
    %v200 = vadd.f32 %v129, %v178
    %v201 = vadd.f32 %v130, %v178
    %v202 = vadd.f32 %v131, %v178
    %v203 = vadd.f32 %v132, %v178
    %v204 = vadd.f32 %v133, %v178
    %v205 = vadd.f32 %v134, %v178
    %v206 = vadd.f32 %v135, %v178
    %v207 = vadd.f32 %v136, %v178
    %v208 = vadd.f32 %v137, %v178
    %v209 = vadd.f32 %v138, %v178
    %v210 = vadd.f32 %v139, %v178
    %v211 = vadd.f32 %v140, %v178
    %v212 = vadd.f32 %v141, %v178
    %v213 = vadd.f32 %v142, %v178
    %v214 = vadd.f32 %v143, %v178
    %v215 = vadd.f32 %v144, %v178
    %v216 = vadd.f32 %v145, %v178
    %v217 = vadd.f32 %v146, %v178
    %v218 = vadd.f32 %v147, %v178
    %v219 = vadd.f32 %v148, %v178
    %v220 = vadd.f32 %v149, %v178
    %v221 = vadd.f32 %v150, %v178
    %v222 = vadd.f32 %v151, %v178
    %v223 = vadd.f32 %v152, %v178
    %v224 = vadd.f32 %v153, %v178
    %v225 = vadd.f32 %v154, %v178
    %v226 = vadd.f32 %v155, %v178
    %v227 = vadd.f32 %v156, %v178
    %v228 = vadd.f32 %v157, %v178
    %v229 = vadd.f32 %v158, %v178
    %v230 = vadd.f32 %v159, %v178
    %v231 = vadd.f32 %v160, %v178
    %v232 = vadd.f32 %v161, %v178
    %v233 = vadd.f32 %v162, %v178
    %v234 = vadd.f32 %v163, %v178
    %v235 = vadd.f32 %v164, %v178
    %v236 = vadd.f32 %v165, %v178
    %v237 = vadd.f32 %v166, %v178
    %v238 = vadd.f32 %v167, %v178
    %v239 = vadd.f32 %v168, %v178
    %v240 = vadd.f32 %v169, %v178
    %v241 = vadd.f32 %v170, %v178
    %v242 = vadd.f32 %v171, %v178
    %v243 = vadd.f32 %v172, %v178
    %v244 = vpack.c.bf16 %v181, %v180
    %v245 = vpack.c.bf16 %v183, %v182
    %v246 = vpack.c.bf16 %v185, %v184
    %v247 = vpack.c.bf16 %v187, %v186
    %v248 = vpack.c.bf16 %v189, %v188
    %v249 = vpack.c.bf16 %v191, %v190
    %v250 = vpack.c.bf16 %v193, %v192
    %v251 = vpack.c.bf16 %v195, %v194
    %v252 = vpack.c.bf16 %v197, %v196
    %v253 = vpack.c.bf16 %v199, %v198
    %v254 = vpack.c.bf16 %v201, %v200
    %v255 = vpack.c.bf16 %v203, %v202
    %v256 = vpack.c.bf16 %v205, %v204
    %v257 = vpack.c.bf16 %v207, %v206
    %v258 = vpack.c.bf16 %v209, %v208
    %v259 = vpack.c.bf16 %v211, %v210
    %v260 = vpack.c.bf16 %v213, %v212
    %v261 = vpack.c.bf16 %v215, %v214
    %v262 = vpack.c.bf16 %v217, %v216
    %v263 = vpack.c.bf16 %v219, %v218
    %v264 = vpack.c.bf16 %v221, %v220
    %v265 = vpack.c.bf16 %v223, %v222
    %v266 = vpack.c.bf16 %v225, %v224
    %v267 = vpack.c.bf16 %v227, %v226
    %v268 = vpack.c.bf16 %v229, %v228
    %v269 = vpack.c.bf16 %v231, %v230
    %v270 = vpack.c.bf16 %v233, %v232
    %v271 = vpack.c.bf16 %v235, %v234
    %v272 = vpack.c.bf16 %v237, %v236
    %v273 = vpack.c.bf16 %v239, %v238
    %v274 = vpack.c.bf16 %v241, %v240
    %v275 = vpack.c.bf16 %v243, %v242
    %v308 = vunpack.c.l.b16 %v244
    %v309 = vunpack.c.h.b16 %v244
    %v310 = vunpack.c.l.b16 %v245
    %v311 = vunpack.c.h.b16 %v245
    %v312 = vunpack.c.l.b16 %v246
    %v313 = vunpack.c.h.b16 %v246
    %v314 = vunpack.c.l.b16 %v247
    %v315 = vunpack.c.h.b16 %v247
    %v316 = vunpack.c.l.b16 %v248
    %v317 = vunpack.c.h.b16 %v248
    %v318 = vunpack.c.l.b16 %v249
    %v319 = vunpack.c.h.b16 %v249
    %v320 = vunpack.c.l.b16 %v250
    %v321 = vunpack.c.h.b16 %v250
    %v322 = vunpack.c.l.b16 %v251
    %v323 = vunpack.c.h.b16 %v251
    %v324 = vunpack.c.l.b16 %v252
    %v325 = vunpack.c.h.b16 %v252
    %v326 = vunpack.c.l.b16 %v253
    %v327 = vunpack.c.h.b16 %v253
    %v328 = vunpack.c.l.b16 %v254
    %v329 = vunpack.c.h.b16 %v254
    %v330 = vunpack.c.l.b16 %v255
    %v331 = vunpack.c.h.b16 %v255
    %v332 = vunpack.c.l.b16 %v256
    %v333 = vunpack.c.h.b16 %v256
    %v334 = vunpack.c.l.b16 %v257
    %v335 = vunpack.c.h.b16 %v257
    %v336 = vunpack.c.l.b16 %v258
    %v337 = vunpack.c.h.b16 %v258
    %v338 = vunpack.c.l.b16 %v259
    %v339 = vunpack.c.h.b16 %v259
    %v340 = vunpack.c.l.b16 %v260
    %v341 = vunpack.c.h.b16 %v260
    %v342 = vunpack.c.l.b16 %v261
    %v343 = vunpack.c.h.b16 %v261
    %v344 = vunpack.c.l.b16 %v262
    %v345 = vunpack.c.h.b16 %v262
    %v346 = vunpack.c.l.b16 %v263
    %v347 = vunpack.c.h.b16 %v263
    %v348 = vunpack.c.l.b16 %v264
    %v349 = vunpack.c.h.b16 %v264
    %v350 = vunpack.c.l.b16 %v265
    %v351 = vunpack.c.h.b16 %v265
    %v352 = vunpack.c.l.b16 %v266
    %v353 = vunpack.c.h.b16 %v266
    %v354 = vunpack.c.l.b16 %v267
    %v355 = vunpack.c.h.b16 %v267
    %v356 = vunpack.c.l.b16 %v268
    %v357 = vunpack.c.h.b16 %v268
    %v358 = vunpack.c.l.b16 %v269
    %v359 = vunpack.c.h.b16 %v269
    %v360 = vunpack.c.l.b16 %v270
    %v361 = vunpack.c.h.b16 %v270
    %v362 = vunpack.c.l.b16 %v271
    %v363 = vunpack.c.h.b16 %v271
    %v364 = vunpack.c.l.b16 %v272
    %v365 = vunpack.c.h.b16 %v272
    %v366 = vunpack.c.l.b16 %v273
    %v367 = vunpack.c.h.b16 %v273
    %v368 = vunpack.c.l.b16 %v274
    %v369 = vunpack.c.h.b16 %v274
    %v370 = vunpack.c.l.b16 %v275
    %v371 = vunpack.c.h.b16 %v275
    %v372 = vpack.c.b16 %v308, %v308
    %v373 = vpack.c.b16 %v309, %v309
    %v374 = vpack.c.b16 %v310, %v310
    %v375 = vpack.c.b16 %v311, %v311
    %v376 = vpack.c.b16 %v312, %v312
    %v377 = vpack.c.b16 %v313, %v313
    %v378 = vpack.c.b16 %v314, %v314
    %v379 = vpack.c.b16 %v315, %v315
    %v380 = vpack.c.b16 %v316, %v316
    %v381 = vpack.c.b16 %v317, %v317
    %v382 = vpack.c.b16 %v318, %v318
    %v383 = vpack.c.b16 %v319, %v319
    %v384 = vpack.c.b16 %v320, %v320
    %v385 = vpack.c.b16 %v321, %v321
    %v386 = vpack.c.b16 %v322, %v322
    %v387 = vpack.c.b16 %v323, %v323
    %v388 = vpack.c.b16 %v324, %v324
    %v389 = vpack.c.b16 %v325, %v325
    %v390 = vpack.c.b16 %v326, %v326
    %v391 = vpack.c.b16 %v327, %v327
    %v392 = vpack.c.b16 %v328, %v328
    %v393 = vpack.c.b16 %v329, %v329
    %v394 = vpack.c.b16 %v330, %v330
    %v395 = vpack.c.b16 %v331, %v331
    %v396 = vpack.c.b16 %v332, %v332
    %v397 = vpack.c.b16 %v333, %v333
    %v398 = vpack.c.b16 %v334, %v334
    %v399 = vpack.c.b16 %v335, %v335
    %v400 = vpack.c.b16 %v336, %v336
    %v401 = vpack.c.b16 %v337, %v337
    %v402 = vpack.c.b16 %v338, %v338
    %v403 = vpack.c.b16 %v339, %v339
    %v404 = vpack.c.b16 %v340, %v340
    %v405 = vpack.c.b16 %v341, %v341
    %v406 = vpack.c.b16 %v342, %v342
    %v407 = vpack.c.b16 %v343, %v343
    %v408 = vpack.c.b16 %v344, %v344
    %v409 = vpack.c.b16 %v345, %v345
    %v410 = vpack.c.b16 %v346, %v346
    %v411 = vpack.c.b16 %v347, %v347
    %v412 = vpack.c.b16 %v348, %v348
    %v413 = vpack.c.b16 %v349, %v349
    %v414 = vpack.c.b16 %v350, %v350
    %v415 = vpack.c.b16 %v351, %v351
    %v416 = vpack.c.b16 %v352, %v352
    %v417 = vpack.c.b16 %v353, %v353
    %v418 = vpack.c.b16 %v354, %v354
    %v419 = vpack.c.b16 %v355, %v355
    %v420 = vpack.c.b16 %v356, %v356
    %v421 = vpack.c.b16 %v357, %v357
    %v422 = vpack.c.b16 %v358, %v358
    %v423 = vpack.c.b16 %v359, %v359
    %v424 = vpack.c.b16 %v360, %v360
    %v425 = vpack.c.b16 %v361, %v361
    %v426 = vpack.c.b16 %v362, %v362
    %v427 = vpack.c.b16 %v363, %v363
    %v428 = vpack.c.b16 %v364, %v364
    %v429 = vpack.c.b16 %v365, %v365
    %v430 = vpack.c.b16 %v366, %v366
    %v431 = vpack.c.b16 %v367, %v367
    %v432 = vpack.c.b16 %v368, %v368
    %v433 = vpack.c.b16 %v369, %v369
    %v434 = vpack.c.b16 %v370, %v370
    %v435 = vpack.c.b16 %v371, %v371
    %vm500 = vcmask 19456
    %501 = vst.msk [vmem:[%s3] sm:$0xf] %vm500, %v372
    %502 = vst.msk [vmem:[%s3 + $0x4] sm:$0xf] %vm500, %v373
    %503 = vst.msk [vmem:[%s3 + $0x8] sm:$0xf] %vm500, %v374
    %504 = vst.msk [vmem:[%s3 + $0xc] sm:$0xf] %vm500, %v375
    %505 = vst.msk [vmem:[%s3 + $0x10] sm:$0xf] %vm500, %v376
    %506 = vst.msk [vmem:[%s3 + $0x14] sm:$0xf] %vm500, %v377
    %507 = vst.msk [vmem:[%s3 + $0x18] sm:$0xf] %vm500, %v378
    %508 = vst.msk [vmem:[%s3 + $0x1c] sm:$0xf] %vm500, %v379
    %509 = vst.msk [vmem:[%s3 + $0x20] sm:$0xf] %vm500, %v380
    %510 = vst.msk [vmem:[%s3 + $0x24] sm:$0xf] %vm500, %v381
    %511 = vst.msk [vmem:[%s3 + $0x28] sm:$0xf] %vm500, %v382
    %512 = vst.msk [vmem:[%s3 + $0x2c] sm:$0xf] %vm500, %v383
    %513 = vst.msk [vmem:[%s3 + $0x30] sm:$0xf] %vm500, %v384
    %514 = vst.msk [vmem:[%s3 + $0x34] sm:$0xf] %vm500, %v385
    %515 = vst.msk [vmem:[%s3 + $0x38] sm:$0xf] %vm500, %v386
    %516 = vst.msk [vmem:[%s3 + $0x3c] sm:$0xf] %vm500, %v387
    %517 = vst.msk [vmem:[%s3 + $0x40] sm:$0xf] %vm500, %v388
    %518 = vst.msk [vmem:[%s3 + $0x44] sm:$0xf] %vm500, %v389
    %519 = vst.msk [vmem:[%s3 + $0x48] sm:$0xf] %vm500, %v390
    %520 = vst.msk [vmem:[%s3 + $0x4c] sm:$0xf] %vm500, %v391
    %521 = vst.msk [vmem:[%s3 + $0x50] sm:$0xf] %vm500, %v392
    %522 = vst.msk [vmem:[%s3 + $0x54] sm:$0xf] %vm500, %v393
    %523 = vst.msk [vmem:[%s3 + $0x58] sm:$0xf] %vm500, %v394
    %524 = vst.msk [vmem:[%s3 + $0x5c] sm:$0xf] %vm500, %v395
    %525 = vst.msk [vmem:[%s3 + $0x60] sm:$0xf] %vm500, %v396
    %526 = vst.msk [vmem:[%s3 + $0x64] sm:$0xf] %vm500, %v397
    %527 = vst.msk [vmem:[%s3 + $0x68] sm:$0xf] %vm500, %v398
    %528 = vst.msk [vmem:[%s3 + $0x6c] sm:$0xf] %vm500, %v399
    %529 = vst.msk [vmem:[%s3 + $0x70] sm:$0xf] %vm500, %v400
    %530 = vst.msk [vmem:[%s3 + $0x74] sm:$0xf] %vm500, %v401
    %531 = vst.msk [vmem:[%s3 + $0x78] sm:$0xf] %vm500, %v402
    %532 = vst.msk [vmem:[%s3 + $0x7c] sm:$0xf] %vm500, %v403
    %533 = vst.msk [vmem:[%s3 + $0x80] sm:$0xf] %vm500, %v404
    %534 = vst.msk [vmem:[%s3 + $0x84] sm:$0xf] %vm500, %v405
    %535 = vst.msk [vmem:[%s3 + $0x88] sm:$0xf] %vm500, %v406
    %536 = vst.msk [vmem:[%s3 + $0x8c] sm:$0xf] %vm500, %v407
    %537 = vst.msk [vmem:[%s3 + $0x90] sm:$0xf] %vm500, %v408
    %538 = vst.msk [vmem:[%s3 + $0x94] sm:$0xf] %vm500, %v409
    %539 = vst.msk [vmem:[%s3 + $0x98] sm:$0xf] %vm500, %v410
    %540 = vst.msk [vmem:[%s3 + $0x9c] sm:$0xf] %vm500, %v411
    %541 = vst.msk [vmem:[%s3 + $0xa0] sm:$0xf] %vm500, %v412
    %542 = vst.msk [vmem:[%s3 + $0xa4] sm:$0xf] %vm500, %v413
    %543 = vst.msk [vmem:[%s3 + $0xa8] sm:$0xf] %vm500, %v414
    %544 = vst.msk [vmem:[%s3 + $0xac] sm:$0xf] %vm500, %v415
    %545 = vst.msk [vmem:[%s3 + $0xb0] sm:$0xf] %vm500, %v416
    %546 = vst.msk [vmem:[%s3 + $0xb4] sm:$0xf] %vm500, %v417
    %547 = vst.msk [vmem:[%s3 + $0xb8] sm:$0xf] %vm500, %v418
    %548 = vst.msk [vmem:[%s3 + $0xbc] sm:$0xf] %vm500, %v419
    %549 = vst.msk [vmem:[%s3 + $0xc0] sm:$0xf] %vm500, %v420
    %550 = vst.msk [vmem:[%s3 + $0xc4] sm:$0xf] %vm500, %v421
    %551 = vst.msk [vmem:[%s3 + $0xc8] sm:$0xf] %vm500, %v422
    %552 = vst.msk [vmem:[%s3 + $0xcc] sm:$0xf] %vm500, %v423
    %553 = vst.msk [vmem:[%s3 + $0xd0] sm:$0xf] %vm500, %v424
    %554 = vst.msk [vmem:[%s3 + $0xd4] sm:$0xf] %vm500, %v425
    %555 = vst.msk [vmem:[%s3 + $0xd8] sm:$0xf] %vm500, %v426
    %556 = vst.msk [vmem:[%s3 + $0xdc] sm:$0xf] %vm500, %v427
    %557 = vst.msk [vmem:[%s3 + $0xe0] sm:$0xf] %vm500, %v428
    %558 = vst.msk [vmem:[%s3 + $0xe4] sm:$0xf] %vm500, %v429
    %559 = vst.msk [vmem:[%s3 + $0xe8] sm:$0xf] %vm500, %v430
    %560 = vst.msk [vmem:[%s3 + $0xec] sm:$0xf] %vm500, %v431
    %561 = vst.msk [vmem:[%s3 + $0xf0] sm:$0xf] %vm500, %v432
    %562 = vst.msk [vmem:[%s3 + $0xf4] sm:$0xf] %vm500, %v433
    %563 = vst.msk [vmem:[%s3 + $0xf8] sm:$0xf] %vm500, %v434
    %564 = vst.msk [vmem:[%s3 + $0xfc] sm:$0xf] %vm500, %v435
    // Predicated region
    $region22: #{_lambda_.45} parent=1 // pred_check
      _
    $region23: #{_lambda_.45} parent=1 // pred_check_branch
      %566 = sbr.rel (0) target = $region25
    $region24: #{_lambda_.45} parent=1 // pred_region
      _
    $region25: #{_lambda_.45} parent=1 // pred_fallthru
      _
    // Predicated region
    $region26: #{_lambda_.45} parent=1 // pred_check
      _
    $region27: #{_lambda_.45} parent=1 // pred_check_branch
      %568 = sbr.rel (0) target = $region29
    $region28: #{_lambda_.45} parent=1 // pred_region
      _
    $region29: #{_lambda_.45} parent=1 // pred_fallthru
      _
    %569 = vsyncpa [#allocation3], 1
    %570 = vsyncpa [#allocation5], 1

// kernel: _lambda_.48
$region0: #{_lambda_.48}
  #allocation0 [shape = 'u32[]', space=smem, size = 0x4, offset = 0x4, fixed_abs, tag = 'smem constant byte address 0x4 - core index']
  #allocation1 [shape = 'u32[144,128]{1,0:T(1,128)}', space=vmem, size = 0x12000, scoped, tag = 'internal scratch']
  #allocation2 [shape = 'f32[32,128]{1,0:T(8,128)}', space=vmem, size = 0x4000, scoped, tag = 'scratch operand']
  %s0 = inlined_call_operand.vmem [shape: bf16[32,128], index: 0, kind: input, shape index: {}]
  %s1 = inlined_call_operand.vmem [shape: bf16[128,128], index: 1, kind: input, shape index: {}]
  %s2 = inlined_call_operand.vmem [shape: f32[1,128], index: 2, kind: input, shape index: {}]
  %s3 = inlined_call_operand.vmem [shape: bf16[32,128], index: 3, kind: output, shape index: {}]
  %s4 = sld [smem:[#allocation0]]
  $region30: #{_lambda_.48} parent=0
    _
  %s6 = ssub.s32 1, %s4
  %s7 = scalar_select 0, %s6, %s4
  // Predicated region
  $region2: #{_lambda_.48} parent=0 // pred_check
    _
  $region3: #{_lambda_.48} parent=0 // pred_check_branch
    %9 = sbr.rel (0) target = $region5
  $region4: #{_lambda_.48} parent=0 // pred_region
    _
  $region5: #{_lambda_.48} parent=0 // pred_fallthru
    _
  // Predicated region
  $region6: #{_lambda_.48} parent=0 // pred_check
    _
  $region7: #{_lambda_.48} parent=0 // pred_check_branch
    %11 = sbr.rel (0) target = $region9
  $region8: #{_lambda_.48} parent=0 // pred_region
    _
  $region9: #{_lambda_.48} parent=0 // pred_fallthru
    _
  // Predicated region
  $region10: #{_lambda_.48} parent=0 // pred_check
    _
  $region11: #{_lambda_.48} parent=0 // pred_check_branch
    %13 = sbr.rel (0) target = $region13
  $region12: #{_lambda_.48} parent=0 // pred_region
    _
  $region13: #{_lambda_.48} parent=0 // pred_fallthru
    _
  %p15 = scmp.eq.s32.totalorder 0, 0
  // Predicated region
  $region14: #{_lambda_.48} parent=0 // pred_check
    %p16 = pneg %p15
  $region15: #{_lambda_.48} parent=0 // pred_check_branch
    %18 = sbr.rel (%p16) target = $region17
  $region16: #{_lambda_.48} parent=0 // pred_region
    %19 = vst [vmem:[#allocation2] sm:$0xff] 0.0
    %20 = vst [vmem:[#allocation2 + $0x8] sm:$0xff] 0.0
    %21 = vst [vmem:[#allocation2 + $0x10] sm:$0xff] 0.0
    %22 = vst [vmem:[#allocation2 + $0x18] sm:$0xff] 0.0
  $region17: #{_lambda_.48} parent=0 // pred_fallthru
    _
  %v23 = vld [vmem:[#allocation2] sm:$0xff]
  %v24 = vld [vmem:[#allocation2 + $0x8] sm:$0xff]
  %v25 = vld [vmem:[#allocation2 + $0x10] sm:$0xff]
  %v26 = vld [vmem:[#allocation2 + $0x18] sm:$0xff]
  %v27 = vld [vmem:[%s0] sm:$0xf]
  %v28 = vld [vmem:[%s0 + $0x4] sm:$0xf]
  %v29 = vld [vmem:[%s0 + $0x8] sm:$0xf]
  %v30 = vld [vmem:[%s0 + $0xc] sm:$0xf]
  %v31 = vld [vmem:[%s1] sm:$0xf]
  %v32 = vld [vmem:[%s1 + $0x4] sm:$0xf]
  %v33 = vld [vmem:[%s1 + $0x8] sm:$0xf]
  %v34 = vld [vmem:[%s1 + $0xc] sm:$0xf]
  %v35 = vld [vmem:[%s1 + $0x10] sm:$0xf]
  %v36 = vld [vmem:[%s1 + $0x14] sm:$0xf]
  %v37 = vld [vmem:[%s1 + $0x18] sm:$0xf]
  %v38 = vld [vmem:[%s1 + $0x1c] sm:$0xf]
  %v39 = vld [vmem:[%s1 + $0x20] sm:$0xf]
  %v40 = vld [vmem:[%s1 + $0x24] sm:$0xf]
  %v41 = vld [vmem:[%s1 + $0x28] sm:$0xf]
  %v42 = vld [vmem:[%s1 + $0x2c] sm:$0xf]
  %v43 = vld [vmem:[%s1 + $0x30] sm:$0xf]
  %v44 = vld [vmem:[%s1 + $0x34] sm:$0xf]
  %v45 = vld [vmem:[%s1 + $0x38] sm:$0xf]
  %v46 = vld [vmem:[%s1 + $0x3c] sm:$0xf]
  %v51 = vunpack.c.l.b16 %v27
  %v52 = vunpack.c.l.b16 %v28
  %v53 = vunpack.c.l.b16 %v29
  %v54 = vunpack.c.l.b16 %v30
  %v55 = vpack.c.b16 %v52, %v51
  %v56 = vpack.c.b16 %v54, %v53
  %v75 = vunpack.c.l.b16 %v31
  %v76 = vunpack.c.l.b16 %v32
  %v77 = vunpack.c.l.b16 %v33
  %v78 = vunpack.c.l.b16 %v34
  %v79 = vunpack.c.l.b16 %v35
  %v80 = vunpack.c.l.b16 %v36
  %v81 = vunpack.c.l.b16 %v37
  %v82 = vunpack.c.l.b16 %v38
  %v83 = vunpack.c.l.b16 %v39
  %v84 = vunpack.c.l.b16 %v40
  %v85 = vunpack.c.l.b16 %v41
  %v86 = vunpack.c.l.b16 %v42
  %v87 = vunpack.c.l.b16 %v43
  %v88 = vunpack.c.l.b16 %v44
  %v89 = vunpack.c.l.b16 %v45
  %v90 = vunpack.c.l.b16 %v46
  %v91 = vpack.c.b16 %v76, %v75
  %v92 = vpack.c.b16 %v78, %v77
  %v93 = vpack.c.b16 %v80, %v79
  %v94 = vpack.c.b16 %v82, %v81
  %v95 = vpack.c.b16 %v84, %v83
  %v96 = vpack.c.b16 %v86, %v85
  %v97 = vpack.c.b16 %v88, %v87
  %v98 = vpack.c.b16 %v90, %v89
  %107 = vmatprep.subr.bf16.mxu0 0
  %108 = vmatpush1.bf16.msra.mxu0 %v91
  %109 = vmatprep.subr.bf16.mxu0 0
  %110 = vmatpush1.bf16.msra.mxu0 %v92
  %111 = vmatprep.subr.bf16.mxu0 0
  %112 = vmatpush1.bf16.msra.mxu0 %v93
  %113 = vmatprep.subr.bf16.mxu0 0
  %114 = vmatpush1.bf16.msra.mxu0 %v94
  %115 = vmatprep.subr.bf16.mxu0 0
  %116 = vmatpush1.bf16.msra.mxu0 %v95
  %117 = vmatprep.subr.bf16.mxu0 0
  %118 = vmatpush1.bf16.msra.mxu0 %v96
  %119 = vmatprep.subr.bf16.mxu0 0
  %120 = vmatpush1.bf16.msra.mxu0 %v97
  %121 = vmatprep.subr.bf16.mxu0 0
  %122 = vmatpush1.bf16.msra.mxu0 %v98
  %123 = vmatprep.subr.bf16.mxu0 0
  %124 = vmatpush1.bf16.msra.mxu0 0
  %125 = vmatprep.subr.bf16.mxu0 0
  %126 = vmatpush1.bf16.msra.mxu0 0
  %127 = vmatprep.subr.bf16.mxu0 0
  %128 = vmatpush1.bf16.msra.mxu0 0
  %129 = vmatprep.subr.bf16.mxu0 0
  %130 = vmatpush1.bf16.msra.mxu0 0
  %131 = vmatprep.subr.bf16.mxu0 0
  %132 = vmatpush1.bf16.msra.mxu0 0
  %133 = vmatprep.subr.bf16.mxu0 0
  %134 = vmatpush1.bf16.msra.mxu0 0
  %135 = vmatprep.subr.bf16.mxu0 0
  %136 = vmatpush1.bf16.msra.mxu0 0
  %137 = vmatprep.subr.bf16.mxu0 0
  %138 = vmatpush1.bf16.msra.mxu0 0
  %139 = vmatprep.mubr.bf16.mxu0 0
  %140 = vmatmul.mubr.bf16.gmra.mrb[0].mxu0 %v55
  %v141 = vpop.f32.mrb[0].mxu0
  %v142 = vadd.f32 0.0, %v141
  %v143 = vpop.f32.mrb[0].mxu0
  %v144 = vpop.f32.mrb[0].mxu0
  %v145 = vadd.f32 0.0, %v144
  %v146 = vpop.f32.mrb[0].mxu0
  %147 = vmatprep.mubr.bf16.mxu0 0
  %148 = vmatmul.mubr.bf16.gmra.mrb[0].mxu0 %v56
  %v149 = vpop.f32.mrb[0].mxu0
  %v150 = vadd.f32 0.0, %v149
  %v151 = vpop.f32.mrb[0].mxu0
  %v152 = vpop.f32.mrb[0].mxu0
  %v153 = vadd.f32 0.0, %v152
  %v154 = vpop.f32.mrb[0].mxu0
  %155 = vdwg.mxu0
  %v156 = vadd.f32 %v23, %v142
  %v157 = vadd.f32 %v24, %v145
  %v158 = vadd.f32 %v25, %v150
  %v159 = vadd.f32 %v26, %v153
  %160 = vst [vmem:[#allocation2] sm:$0xff] %v156
  %161 = vst [vmem:[#allocation2 + $0x8] sm:$0xff] %v157
  %162 = vst [vmem:[#allocation2 + $0x10] sm:$0xff] %v158
  %163 = vst [vmem:[#allocation2 + $0x18] sm:$0xff] %v159
  // Predicated region
  $region18: #{_lambda_.48} parent=0 // pred_check
    %p164 = pneg %p15
  $region19: #{_lambda_.48} parent=0 // pred_check_branch
    %166 = sbr.rel (%p164) target = $region21
  $region20: #{_lambda_.48} parent=0 // pred_region
    %v167 = vld [vmem:[#allocation2] sm:$0xff]
    %v168 = vld [vmem:[#allocation2 + $0x8] sm:$0xff]
    %v169 = vld [vmem:[#allocation2 + $0x10] sm:$0xff]
    %v170 = vld [vmem:[#allocation2 + $0x18] sm:$0xff]
    %v171 = vld [vmem:[%s2] sm:$0x1]
    %v173 = vlaneseq
    %v174 = vshrl.u32 %v173, 7
    %v175 = vsub.s32 0, %v174
    %v176 = vrot.slane %v171, %v175
    %v178 = vadd.f32 %v167, %v176
    %v179 = vadd.f32 %v168, %v176
    %v180 = vadd.f32 %v169, %v176
    %v181 = vadd.f32 %v170, %v176
    %v182 = vmax.f32 %v178, 0.0
    %v183 = vmax.f32 %v179, 0.0
    %v184 = vmax.f32 %v180, 0.0
    %v185 = vmax.f32 %v181, 0.0
    %v186 = vpack.c.bf16 %v183, %v182
    %v187 = vpack.c.bf16 %v185, %v184
    %v190 = vunpack.c.l.b16 %v186
    %v191 = vunpack.c.h.b16 %v186
    %v192 = vunpack.c.l.b16 %v187
    %v193 = vunpack.c.h.b16 %v187
    %v194 = vpack.c.b16 %v190, %v190
    %v195 = vpack.c.b16 %v191, %v191
    %v196 = vpack.c.b16 %v192, %v192
    %v197 = vpack.c.b16 %v193, %v193
    %202 = vst [vmem:[%s3] sm:$0xf] %v194
    %203 = vst [vmem:[%s3 + $0x4] sm:$0xf] %v195
    %204 = vst [vmem:[%s3 + $0x8] sm:$0xf] %v196
    %205 = vst [vmem:[%s3 + $0xc] sm:$0xf] %v197
  $region21: #{_lambda_.48} parent=0 // pred_fallthru
    _
  // Predicated region
  $region22: #{_lambda_.48} parent=0 // pred_check
    _
  $region23: #{_lambda_.48} parent=0 // pred_check_branch
    %207 = sbr.rel (0) target = $region25
  $region24: #{_lambda_.48} parent=0 // pred_region
    _
  $region25: #{_lambda_.48} parent=0 // pred_fallthru
    _
  // Predicated region
  $region26: #{_lambda_.48} parent=0 // pred_check
    _
  $region27: #{_lambda_.48} parent=0 // pred_check_branch
    %209 = sbr.rel (0) target = $region29
  $region28: #{_lambda_.48} parent=0 // pred_region
    _
  $region29: #{_lambda_.48} parent=0 // pred_fallthru
    _

// kernel: _lambda_.47
$region0: #{_lambda_.47}
  #allocation0 [shape = 'u32[]', space=smem, size = 0x4, offset = 0x4, fixed_abs, tag = 'smem constant byte address 0x4 - core index']
  #allocation1 [shape = 'u32[144,128]{1,0:T(1,128)}', space=vmem, size = 0x12000, scoped, tag = 'internal scratch']
  %s0 = inlined_call_operand.vmem [shape: bf16[9,32,64], index: 0, kind: input, shape index: {}]
  %s1 = inlined_call_operand.vmem [shape: bf16[32,64], index: 1, kind: output, shape index: {}]
  %s2 = sld [smem:[#allocation0]]
  $region14: #{_lambda_.47} parent=0
    _
  %s4 = ssub.s32 1, %s2
  %s5 = scalar_select 0, %s4, %s2
  // Predicated region
  $region2: #{_lambda_.47} parent=0 // pred_check
    _
  $region3: #{_lambda_.47} parent=0 // pred_check_branch
    %7 = sbr.rel (0) target = $region5
  $region4: #{_lambda_.47} parent=0 // pred_region
    _
  $region5: #{_lambda_.47} parent=0 // pred_fallthru
    _
  %v8 = vld [vmem:[%s0] sm:$0xf]
  %v9 = vld [vmem:[%s0 + $0x4] sm:$0xf]
  %v10 = vld [vmem:[%s0 + $0x8] sm:$0xf]
  %v11 = vld [vmem:[%s0 + $0xc] sm:$0xf]
  %v12 = vld [vmem:[%s0 + $0x10] sm:$0xf]
  %v13 = vld [vmem:[%s0 + $0x14] sm:$0xf]
  %v14 = vld [vmem:[%s0 + $0x18] sm:$0xf]
  %v15 = vld [vmem:[%s0 + $0x1c] sm:$0xf]
  %v16 = vld [vmem:[%s0 + $0x20] sm:$0xf]
  %v17 = vld [vmem:[%s0 + $0x24] sm:$0xf]
  %v18 = vld [vmem:[%s0 + $0x28] sm:$0xf]
  %v19 = vld [vmem:[%s0 + $0x2c] sm:$0xf]
  %v20 = vld [vmem:[%s0 + $0x30] sm:$0xf]
  %v21 = vld [vmem:[%s0 + $0x34] sm:$0xf]
  %v22 = vld [vmem:[%s0 + $0x38] sm:$0xf]
  %v23 = vld [vmem:[%s0 + $0x3c] sm:$0xf]
  %v24 = vld [vmem:[%s0 + $0x40] sm:$0xf]
  %v25 = vld [vmem:[%s0 + $0x44] sm:$0xf]
  %v26 = vld [vmem:[%s0 + $0x48] sm:$0xf]
  %v27 = vld [vmem:[%s0 + $0x4c] sm:$0xf]
  %v28 = vld [vmem:[%s0 + $0x50] sm:$0xf]
  %v29 = vld [vmem:[%s0 + $0x54] sm:$0xf]
  %v30 = vld [vmem:[%s0 + $0x58] sm:$0xf]
  %v31 = vld [vmem:[%s0 + $0x5c] sm:$0xf]
  %v32 = vld [vmem:[%s0 + $0x60] sm:$0xf]
  %v33 = vld [vmem:[%s0 + $0x64] sm:$0xf]
  %v34 = vld [vmem:[%s0 + $0x68] sm:$0xf]
  %v35 = vld [vmem:[%s0 + $0x6c] sm:$0xf]
  %v36 = vld [vmem:[%s0 + $0x70] sm:$0xf]
  %v37 = vld [vmem:[%s0 + $0x74] sm:$0xf]
  %v38 = vld [vmem:[%s0 + $0x78] sm:$0xf]
  %v39 = vld [vmem:[%s0 + $0x7c] sm:$0xf]
  %v40 = vld [vmem:[%s0 + $0x80] sm:$0xf]
  %v41 = vld [vmem:[%s0 + $0x84] sm:$0xf]
  %v42 = vld [vmem:[%s0 + $0x88] sm:$0xf]
  %v43 = vld [vmem:[%s0 + $0x8c] sm:$0xf]
  %v44 = vunpack.c.l.bf16 %v8
  %v45 = vunpack.c.l.bf16 %v9
  %v46 = vunpack.c.l.bf16 %v10
  %v47 = vunpack.c.l.bf16 %v11
  %v48 = vunpack.c.l.bf16 %v12
  %v49 = vunpack.c.l.bf16 %v13
  %v50 = vunpack.c.l.bf16 %v14
  %v51 = vunpack.c.l.bf16 %v15
  %v52 = vunpack.c.l.bf16 %v16
  %v53 = vunpack.c.l.bf16 %v17
  %v54 = vunpack.c.l.bf16 %v18
  %v55 = vunpack.c.l.bf16 %v19
  %v56 = vunpack.c.l.bf16 %v20
  %v57 = vunpack.c.l.bf16 %v21
  %v58 = vunpack.c.l.bf16 %v22
  %v59 = vunpack.c.l.bf16 %v23
  %v60 = vunpack.c.l.bf16 %v24
  %v61 = vunpack.c.l.bf16 %v25
  %v62 = vunpack.c.l.bf16 %v26
  %v63 = vunpack.c.l.bf16 %v27
  %v64 = vunpack.c.l.bf16 %v28
  %v65 = vunpack.c.l.bf16 %v29
  %v66 = vunpack.c.l.bf16 %v30
  %v67 = vunpack.c.l.bf16 %v31
  %v68 = vunpack.c.l.bf16 %v32
  %v69 = vunpack.c.l.bf16 %v33
  %v70 = vunpack.c.l.bf16 %v34
  %v71 = vunpack.c.l.bf16 %v35
  %v72 = vunpack.c.l.bf16 %v36
  %v73 = vunpack.c.l.bf16 %v37
  %v74 = vunpack.c.l.bf16 %v38
  %v75 = vunpack.c.l.bf16 %v39
  %v76 = vunpack.c.l.bf16 %v40
  %v77 = vunpack.c.l.bf16 %v41
  %v78 = vunpack.c.l.bf16 %v42
  %v79 = vunpack.c.l.bf16 %v43
  %vm80 = vcmask 523264
  %v81 = vsel %vm80, %v44, -inf
  %v82 = vsel %vm80, %v48, -inf
  %v83 = vmax.f32 %v81, %v82
  %v84 = vsel %vm80, %v52, -inf
  %v85 = vmax.f32 %v83, %v84
  %v86 = vsel %vm80, %v56, -inf
  %v87 = vmax.f32 %v85, %v86
  %v88 = vsel %vm80, %v60, -inf
  %v89 = vmax.f32 %v87, %v88
  %v90 = vsel %vm80, %v64, -inf
  %v91 = vmax.f32 %v89, %v90
  %v92 = vsel %vm80, %v68, -inf
  %v93 = vmax.f32 %v91, %v92
  %v94 = vsel %vm80, %v72, -inf
  %v95 = vmax.f32 %v93, %v94
  %v96 = vsel %vm80, %v76, -inf
  %v97 = vmax.f32 %v95, %v96
  %v98 = vsel %vm80, %v45, -inf
  %v99 = vsel %vm80, %v49, -inf
  %v100 = vmax.f32 %v98, %v99
  %v101 = vsel %vm80, %v53, -inf
  %v102 = vmax.f32 %v100, %v101
  %v103 = vsel %vm80, %v57, -inf
  %v104 = vmax.f32 %v102, %v103
  %v105 = vsel %vm80, %v61, -inf
  %v106 = vmax.f32 %v104, %v105
  %v107 = vsel %vm80, %v65, -inf
  %v108 = vmax.f32 %v106, %v107
  %v109 = vsel %vm80, %v69, -inf
  %v110 = vmax.f32 %v108, %v109
  %v111 = vsel %vm80, %v73, -inf
  %v112 = vmax.f32 %v110, %v111
  %v113 = vsel %vm80, %v77, -inf
  %v114 = vmax.f32 %v112, %v113
  %v115 = vsel %vm80, %v46, -inf
  %v116 = vsel %vm80, %v50, -inf
  %v117 = vmax.f32 %v115, %v116
  %v118 = vsel %vm80, %v54, -inf
  %v119 = vmax.f32 %v117, %v118
  %v120 = vsel %vm80, %v58, -inf
  %v121 = vmax.f32 %v119, %v120
  %v122 = vsel %vm80, %v62, -inf
  %v123 = vmax.f32 %v121, %v122
  %v124 = vsel %vm80, %v66, -inf
  %v125 = vmax.f32 %v123, %v124
  %v126 = vsel %vm80, %v70, -inf
  %v127 = vmax.f32 %v125, %v126
  %v128 = vsel %vm80, %v74, -inf
  %v129 = vmax.f32 %v127, %v128
  %v130 = vsel %vm80, %v78, -inf
  %v131 = vmax.f32 %v129, %v130
  %v132 = vsel %vm80, %v47, -inf
  %v133 = vsel %vm80, %v51, -inf
  %v134 = vmax.f32 %v132, %v133
  %v135 = vsel %vm80, %v55, -inf
  %v136 = vmax.f32 %v134, %v135
  %v137 = vsel %vm80, %v59, -inf
  %v138 = vmax.f32 %v136, %v137
  %v139 = vsel %vm80, %v63, -inf
  %v140 = vmax.f32 %v138, %v139
  %v141 = vsel %vm80, %v67, -inf
  %v142 = vmax.f32 %v140, %v141
  %v143 = vsel %vm80, %v71, -inf
  %v144 = vmax.f32 %v142, %v143
  %v145 = vsel %vm80, %v75, -inf
  %v146 = vmax.f32 %v144, %v145
  %v147 = vsel %vm80, %v79, -inf
  %v148 = vmax.f32 %v146, %v147
  %v149 = vpack.c.bf16 %v114, %v97
  %v150 = vpack.c.bf16 %v148, %v131
  %v153 = vunpack.c.l.b16 %v149
  %v154 = vunpack.c.h.b16 %v149
  %v155 = vunpack.c.l.b16 %v150
  %v156 = vunpack.c.h.b16 %v150
  %v157 = vpack.c.b16 %v153, %v153
  %v158 = vpack.c.b16 %v154, %v154
  %v159 = vpack.c.b16 %v155, %v155
  %v160 = vpack.c.b16 %v156, %v156
  %vm165 = vcmask 519168
  %166 = vst.msk [vmem:[%s1] sm:$0xf] %vm165, %v157
  %167 = vst.msk [vmem:[%s1 + $0x4] sm:$0xf] %vm165, %v158
  %168 = vst.msk [vmem:[%s1 + $0x8] sm:$0xf] %vm165, %v159
  %169 = vst.msk [vmem:[%s1 + $0xc] sm:$0xf] %vm165, %v160
  // Predicated region
  $region6: #{_lambda_.47} parent=0 // pred_check
    _
  $region7: #{_lambda_.47} parent=0 // pred_check_branch
    %171 = sbr.rel (0) target = $region9
  $region8: #{_lambda_.47} parent=0 // pred_region
    _
  $region9: #{_lambda_.47} parent=0 // pred_fallthru
    _
  // Predicated region
  $region10: #{_lambda_.47} parent=0 // pred_check
    _
  $region11: #{_lambda_.47} parent=0 // pred_check_branch
    %173 = sbr.rel (0) target = $region13
  $region12: #{_lambda_.47} parent=0 // pred_region
    _
  $region13: #{_lambda_.47} parent=0 // pred_fallthru
    _

// kernel: _lambda_.46
$region0: #{_lambda_.46}
  #allocation0 [shape = 'u32[]', space=smem, size = 0x4, offset = 0x4, fixed_abs, tag = 'smem constant byte address 0x4 - core index']
  #allocation1 [shape = 'u32[144,128]{1,0:T(1,128)}', space=vmem, size = 0x12000, scoped, tag = 'internal scratch']
  #allocation2 [shape = 'f32[128,128]{1,0:T(8,128)}', space=vmem, size = 0x10000, scoped, tag = 'scratch operand']
  %s0 = inlined_call_operand.vmem [shape: bf16[128,256], index: 0, kind: input, shape index: {}]
  %s1 = inlined_call_operand.vmem [shape: bf16[256,128], index: 1, kind: input, shape index: {}]
  %s2 = inlined_call_operand.vmem [shape: f32[1,128], index: 2, kind: input, shape index: {}]
  %s3 = inlined_call_operand.vmem [shape: bf16[128,128], index: 3, kind: output, shape index: {}]
  %s4 = sld [smem:[#allocation0]]
  $region30: #{_lambda_.46} parent=0
    _
  %s6 = ssub.s32 1, %s4
  %s7 = scalar_select 0, %s6, %s4
  // Predicated region
  $region2: #{_lambda_.46} parent=0 // pred_check
    _
  $region3: #{_lambda_.46} parent=0 // pred_check_branch
    %9 = sbr.rel (0) target = $region5
  $region4: #{_lambda_.46} parent=0 // pred_region
    _
  $region5: #{_lambda_.46} parent=0 // pred_fallthru
    _
  // Predicated region
  $region6: #{_lambda_.46} parent=0 // pred_check
    _
  $region7: #{_lambda_.46} parent=0 // pred_check_branch
    %11 = sbr.rel (0) target = $region9
  $region8: #{_lambda_.46} parent=0 // pred_region
    _
  $region9: #{_lambda_.46} parent=0 // pred_fallthru
    _
  // Predicated region
  $region10: #{_lambda_.46} parent=0 // pred_check
    _
  $region11: #{_lambda_.46} parent=0 // pred_check_branch
    %13 = sbr.rel (0) target = $region13
  $region12: #{_lambda_.46} parent=0 // pred_region
    _
  $region13: #{_lambda_.46} parent=0 // pred_fallthru
    _
  %p15 = scmp.eq.s32.totalorder 0, 0
  // Predicated region
  $region14: #{_lambda_.46} parent=0 // pred_check
    %p16 = pneg %p15
  $region15: #{_lambda_.46} parent=0 // pred_check_branch
    %18 = sbr.rel (%p16) target = $region17
  $region16: #{_lambda_.46} parent=0 // pred_region
    %19 = vst [vmem:[#allocation2] sm:$0xff] 0.0
    %20 = vst [vmem:[#allocation2 + $0x8] sm:$0xff] 0.0
    %21 = vst [vmem:[#allocation2 + $0x10] sm:$0xff] 0.0
    %22 = vst [vmem:[#allocation2 + $0x18] sm:$0xff] 0.0
    %23 = vst [vmem:[#allocation2 + $0x20] sm:$0xff] 0.0
    %24 = vst [vmem:[#allocation2 + $0x28] sm:$0xff] 0.0
    %25 = vst [vmem:[#allocation2 + $0x30] sm:$0xff] 0.0
    %26 = vst [vmem:[#allocation2 + $0x38] sm:$0xff] 0.0
    %27 = vst [vmem:[#allocation2 + $0x40] sm:$0xff] 0.0
    %28 = vst [vmem:[#allocation2 + $0x48] sm:$0xff] 0.0
    %29 = vst [vmem:[#allocation2 + $0x50] sm:$0xff] 0.0
    %30 = vst [vmem:[#allocation2 + $0x58] sm:$0xff] 0.0
    %31 = vst [vmem:[#allocation2 + $0x60] sm:$0xff] 0.0
    %32 = vst [vmem:[#allocation2 + $0x68] sm:$0xff] 0.0
    %33 = vst [vmem:[#allocation2 + $0x70] sm:$0xff] 0.0
    %34 = vst [vmem:[#allocation2 + $0x78] sm:$0xff] 0.0
  $region17: #{_lambda_.46} parent=0 // pred_fallthru
    _
  %v35 = vld [vmem:[#allocation2] sm:$0xff]
  %v36 = vld [vmem:[#allocation2 + $0x8] sm:$0xff]
  %v37 = vld [vmem:[#allocation2 + $0x10] sm:$0xff]
  %v38 = vld [vmem:[#allocation2 + $0x18] sm:$0xff]
  %v39 = vld [vmem:[#allocation2 + $0x20] sm:$0xff]
  %v40 = vld [vmem:[#allocation2 + $0x28] sm:$0xff]
  %v41 = vld [vmem:[#allocation2 + $0x30] sm:$0xff]
  %v42 = vld [vmem:[#allocation2 + $0x38] sm:$0xff]
  %v43 = vld [vmem:[#allocation2 + $0x40] sm:$0xff]
  %v44 = vld [vmem:[#allocation2 + $0x48] sm:$0xff]
  %v45 = vld [vmem:[#allocation2 + $0x50] sm:$0xff]
  %v46 = vld [vmem:[#allocation2 + $0x58] sm:$0xff]
  %v47 = vld [vmem:[#allocation2 + $0x60] sm:$0xff]
  %v48 = vld [vmem:[#allocation2 + $0x68] sm:$0xff]
  %v49 = vld [vmem:[#allocation2 + $0x70] sm:$0xff]
  %v50 = vld [vmem:[#allocation2 + $0x78] sm:$0xff]
  %v51 = vld [vmem:[%s0] sm:$0xff]
  %v52 = vld [vmem:[%s0 + $0x8] sm:$0xff]
  %v53 = vld [vmem:[%s0 + $0x10] sm:$0xff]
  %v54 = vld [vmem:[%s0 + $0x18] sm:$0xff]
  %v55 = vld [vmem:[%s0 + $0x20] sm:$0xff]
  %v56 = vld [vmem:[%s0 + $0x28] sm:$0xff]
  %v57 = vld [vmem:[%s0 + $0x30] sm:$0xff]
  %v58 = vld [vmem:[%s0 + $0x38] sm:$0xff]
  %v59 = vld [vmem:[%s0 + $0x40] sm:$0xff]
  %v60 = vld [vmem:[%s0 + $0x48] sm:$0xff]
  %v61 = vld [vmem:[%s0 + $0x50] sm:$0xff]
  %v62 = vld [vmem:[%s0 + $0x58] sm:$0xff]
  %v63 = vld [vmem:[%s0 + $0x60] sm:$0xff]
  %v64 = vld [vmem:[%s0 + $0x68] sm:$0xff]
  %v65 = vld [vmem:[%s0 + $0x70] sm:$0xff]
  %v66 = vld [vmem:[%s0 + $0x78] sm:$0xff]
  %v67 = vld [vmem:[%s1] sm:$0xf]
  %v68 = vld [vmem:[%s1 + $0x4] sm:$0xf]
  %v69 = vld [vmem:[%s1 + $0x8] sm:$0xf]
  %v70 = vld [vmem:[%s1 + $0xc] sm:$0xf]
  %v71 = vld [vmem:[%s1 + $0x10] sm:$0xf]
  %v72 = vld [vmem:[%s1 + $0x14] sm:$0xf]
  %v73 = vld [vmem:[%s1 + $0x18] sm:$0xf]
  %v74 = vld [vmem:[%s1 + $0x1c] sm:$0xf]
  %v75 = vld [vmem:[%s1 + $0x20] sm:$0xf]
  %v76 = vld [vmem:[%s1 + $0x24] sm:$0xf]
  %v77 = vld [vmem:[%s1 + $0x28] sm:$0xf]
  %v78 = vld [vmem:[%s1 + $0x2c] sm:$0xf]
  %v79 = vld [vmem:[%s1 + $0x30] sm:$0xf]
  %v80 = vld [vmem:[%s1 + $0x34] sm:$0xf]
  %v81 = vld [vmem:[%s1 + $0x38] sm:$0xf]
  %v82 = vld [vmem:[%s1 + $0x3c] sm:$0xf]
  %v83 = vld [vmem:[%s1 + $0x40] sm:$0xf]
  %v84 = vld [vmem:[%s1 + $0x44] sm:$0xf]
  %v85 = vld [vmem:[%s1 + $0x48] sm:$0xf]
  %v86 = vld [vmem:[%s1 + $0x4c] sm:$0xf]
  %v87 = vld [vmem:[%s1 + $0x50] sm:$0xf]
  %v88 = vld [vmem:[%s1 + $0x54] sm:$0xf]
  %v89 = vld [vmem:[%s1 + $0x58] sm:$0xf]
  %v90 = vld [vmem:[%s1 + $0x5c] sm:$0xf]
  %v91 = vld [vmem:[%s1 + $0x60] sm:$0xf]
  %v92 = vld [vmem:[%s1 + $0x64] sm:$0xf]
  %v93 = vld [vmem:[%s1 + $0x68] sm:$0xf]
  %v94 = vld [vmem:[%s1 + $0x6c] sm:$0xf]
  %v95 = vld [vmem:[%s1 + $0x70] sm:$0xf]
  %v96 = vld [vmem:[%s1 + $0x74] sm:$0xf]
  %v97 = vld [vmem:[%s1 + $0x78] sm:$0xf]
  %v98 = vld [vmem:[%s1 + $0x7c] sm:$0xf]
  %v115 = vunpack.c.l.b16 %v51
  %v116 = vunpack.c.h.b16 %v51
  %v117 = vunpack.c.l.b16 %v52
  %v118 = vunpack.c.h.b16 %v52
  %v119 = vunpack.c.l.b16 %v53
  %v120 = vunpack.c.h.b16 %v53
  %v121 = vunpack.c.l.b16 %v54
  %v122 = vunpack.c.h.b16 %v54
  %v123 = vunpack.c.l.b16 %v55
  %v124 = vunpack.c.h.b16 %v55
  %v125 = vunpack.c.l.b16 %v56
  %v126 = vunpack.c.h.b16 %v56
  %v127 = vunpack.c.l.b16 %v57
  %v128 = vunpack.c.h.b16 %v57
  %v129 = vunpack.c.l.b16 %v58
  %v130 = vunpack.c.h.b16 %v58
  %v131 = vunpack.c.l.b16 %v59
  %v132 = vunpack.c.h.b16 %v59
  %v133 = vunpack.c.l.b16 %v60
  %v134 = vunpack.c.h.b16 %v60
  %v135 = vunpack.c.l.b16 %v61
  %v136 = vunpack.c.h.b16 %v61
  %v137 = vunpack.c.l.b16 %v62
  %v138 = vunpack.c.h.b16 %v62
  %v139 = vunpack.c.l.b16 %v63
  %v140 = vunpack.c.h.b16 %v63
  %v141 = vunpack.c.l.b16 %v64
  %v142 = vunpack.c.h.b16 %v64
  %v143 = vunpack.c.l.b16 %v65
  %v144 = vunpack.c.h.b16 %v65
  %v145 = vunpack.c.l.b16 %v66
  %v146 = vunpack.c.h.b16 %v66
  %v147 = vpack.c.b16 %v117, %v115
  %v148 = vpack.c.b16 %v118, %v116
  %v149 = vpack.c.b16 %v121, %v119
  %v150 = vpack.c.b16 %v122, %v120
  %v151 = vpack.c.b16 %v125, %v123
  %v152 = vpack.c.b16 %v126, %v124
  %v153 = vpack.c.b16 %v129, %v127
  %v154 = vpack.c.b16 %v130, %v128
  %v155 = vpack.c.b16 %v133, %v131
  %v156 = vpack.c.b16 %v134, %v132
  %v157 = vpack.c.b16 %v137, %v135
  %v158 = vpack.c.b16 %v138, %v136
  %v159 = vpack.c.b16 %v141, %v139
  %v160 = vpack.c.b16 %v142, %v140
  %v161 = vpack.c.b16 %v145, %v143
  %v162 = vpack.c.b16 %v146, %v144
  %v211 = vunpack.c.l.b16 %v67
  %v212 = vunpack.c.l.b16 %v68
  %v213 = vunpack.c.l.b16 %v69
  %v214 = vunpack.c.l.b16 %v70
  %v215 = vunpack.c.l.b16 %v71
  %v216 = vunpack.c.l.b16 %v72
  %v217 = vunpack.c.l.b16 %v73
  %v218 = vunpack.c.l.b16 %v74
  %v219 = vunpack.c.l.b16 %v75
  %v220 = vunpack.c.l.b16 %v76
  %v221 = vunpack.c.l.b16 %v77
  %v222 = vunpack.c.l.b16 %v78
  %v223 = vunpack.c.l.b16 %v79
  %v224 = vunpack.c.l.b16 %v80
  %v225 = vunpack.c.l.b16 %v81
  %v226 = vunpack.c.l.b16 %v82
  %v227 = vunpack.c.l.b16 %v83
  %v228 = vunpack.c.l.b16 %v84
  %v229 = vunpack.c.l.b16 %v85
  %v230 = vunpack.c.l.b16 %v86
  %v231 = vunpack.c.l.b16 %v87
  %v232 = vunpack.c.l.b16 %v88
  %v233 = vunpack.c.l.b16 %v89
  %v234 = vunpack.c.l.b16 %v90
  %v235 = vunpack.c.l.b16 %v91
  %v236 = vunpack.c.l.b16 %v92
  %v237 = vunpack.c.l.b16 %v93
  %v238 = vunpack.c.l.b16 %v94
  %v239 = vunpack.c.l.b16 %v95
  %v240 = vunpack.c.l.b16 %v96
  %v241 = vunpack.c.l.b16 %v97
  %v242 = vunpack.c.l.b16 %v98
  %v243 = vpack.c.b16 %v212, %v211
  %v244 = vpack.c.b16 %v214, %v213
  %v245 = vpack.c.b16 %v216, %v215
  %v246 = vpack.c.b16 %v218, %v217
  %v247 = vpack.c.b16 %v220, %v219
  %v248 = vpack.c.b16 %v222, %v221
  %v249 = vpack.c.b16 %v224, %v223
  %v250 = vpack.c.b16 %v226, %v225
  %v251 = vpack.c.b16 %v228, %v227
  %v252 = vpack.c.b16 %v230, %v229
  %v253 = vpack.c.b16 %v232, %v231
  %v254 = vpack.c.b16 %v234, %v233
  %v255 = vpack.c.b16 %v236, %v235
  %v256 = vpack.c.b16 %v238, %v237
  %v257 = vpack.c.b16 %v240, %v239
  %v258 = vpack.c.b16 %v242, %v241
  %275 = vmatprep.subr.bf16.mxu0 0
  %276 = vmatpush1.bf16.msra.mxu0 %v243
  %277 = vmatprep.subr.bf16.mxu0 0
  %278 = vmatpush1.bf16.msra.mxu0 %v244
  %279 = vmatprep.subr.bf16.mxu0 0
  %280 = vmatpush1.bf16.msra.mxu0 %v245
  %281 = vmatprep.subr.bf16.mxu0 0
  %282 = vmatpush1.bf16.msra.mxu0 %v246
  %283 = vmatprep.subr.bf16.mxu0 0
  %284 = vmatpush1.bf16.msra.mxu0 %v247
  %285 = vmatprep.subr.bf16.mxu0 0
  %286 = vmatpush1.bf16.msra.mxu0 %v248
  %287 = vmatprep.subr.bf16.mxu0 0
  %288 = vmatpush1.bf16.msra.mxu0 %v249
  %289 = vmatprep.subr.bf16.mxu0 0
  %290 = vmatpush1.bf16.msra.mxu0 %v250
  %291 = vmatprep.subr.bf16.mxu0 0
  %292 = vmatpush1.bf16.msra.mxu0 %v251
  %293 = vmatprep.subr.bf16.mxu0 0
  %294 = vmatpush1.bf16.msra.mxu0 %v252
  %295 = vmatprep.subr.bf16.mxu0 0
  %296 = vmatpush1.bf16.msra.mxu0 %v253
  %297 = vmatprep.subr.bf16.mxu0 0
  %298 = vmatpush1.bf16.msra.mxu0 %v254
  %299 = vmatprep.subr.bf16.mxu0 0
  %300 = vmatpush1.bf16.msra.mxu0 %v255
  %301 = vmatprep.subr.bf16.mxu0 0
  %302 = vmatpush1.bf16.msra.mxu0 %v256
  %303 = vmatprep.subr.bf16.mxu0 0
  %304 = vmatpush1.bf16.msra.mxu0 %v257
  %305 = vmatprep.subr.bf16.mxu0 0
  %306 = vmatpush1.bf16.msra.mxu0 %v258
  %307 = vmatprep.mubr.bf16.mxu0 %v148
  %308 = vmatmul.mubr.bf16.gmra.mrb[0].mxu0 %v147
  %v309 = vpop.f32.mrb[0].mxu0
  %v310 = vadd.f32 0.0, %v309
  %v311 = vpop.f32.mrb[0].mxu0
  %v312 = vpop.f32.mrb[0].mxu0
  %v313 = vadd.f32 0.0, %v312
  %v314 = vpop.f32.mrb[0].mxu0
  %315 = vmatprep.mubr.bf16.mxu0 %v150
  %316 = vmatmul.mubr.bf16.gmra.mrb[0].mxu0 %v149
  %v317 = vpop.f32.mrb[0].mxu0
  %v318 = vadd.f32 0.0, %v317
  %v319 = vpop.f32.mrb[0].mxu0
  %v320 = vpop.f32.mrb[0].mxu0
  %v321 = vadd.f32 0.0, %v320
  %v322 = vpop.f32.mrb[0].mxu0
  %323 = vmatprep.mubr.bf16.mxu0 %v152
  %324 = vmatmul.mubr.bf16.gmra.mrb[0].mxu0 %v151
  %v325 = vpop.f32.mrb[0].mxu0
  %v326 = vadd.f32 0.0, %v325
  %v327 = vpop.f32.mrb[0].mxu0
  %v328 = vpop.f32.mrb[0].mxu0
  %v329 = vadd.f32 0.0, %v328
  %v330 = vpop.f32.mrb[0].mxu0
  %331 = vmatprep.mubr.bf16.mxu0 %v154
  %332 = vmatmul.mubr.bf16.gmra.mrb[0].mxu0 %v153
  %v333 = vpop.f32.mrb[0].mxu0
  %v334 = vadd.f32 0.0, %v333
  %v335 = vpop.f32.mrb[0].mxu0
  %v336 = vpop.f32.mrb[0].mxu0
  %v337 = vadd.f32 0.0, %v336
  %v338 = vpop.f32.mrb[0].mxu0
  %339 = vmatprep.mubr.bf16.mxu0 %v156
  %340 = vmatmul.mubr.bf16.gmra.mrb[0].mxu0 %v155
  %v341 = vpop.f32.mrb[0].mxu0
  %v342 = vadd.f32 0.0, %v341
  %v343 = vpop.f32.mrb[0].mxu0
  %v344 = vpop.f32.mrb[0].mxu0
  %v345 = vadd.f32 0.0, %v344
  %v346 = vpop.f32.mrb[0].mxu0
  %347 = vmatprep.mubr.bf16.mxu0 %v158
  %348 = vmatmul.mubr.bf16.gmra.mrb[0].mxu0 %v157
  %v349 = vpop.f32.mrb[0].mxu0
  %v350 = vadd.f32 0.0, %v349
  %v351 = vpop.f32.mrb[0].mxu0
  %v352 = vpop.f32.mrb[0].mxu0
  %v353 = vadd.f32 0.0, %v352
  %v354 = vpop.f32.mrb[0].mxu0
  %355 = vmatprep.mubr.bf16.mxu0 %v160
  %356 = vmatmul.mubr.bf16.gmra.mrb[0].mxu0 %v159
  %v357 = vpop.f32.mrb[0].mxu0
  %v358 = vadd.f32 0.0, %v357
  %v359 = vpop.f32.mrb[0].mxu0
  %v360 = vpop.f32.mrb[0].mxu0
  %v361 = vadd.f32 0.0, %v360
  %v362 = vpop.f32.mrb[0].mxu0
  %363 = vmatprep.mubr.bf16.mxu0 %v162
  %364 = vmatmul.mubr.bf16.gmra.mrb[0].mxu0 %v161
  %v365 = vpop.f32.mrb[0].mxu0
  %v366 = vadd.f32 0.0, %v365
  %v367 = vpop.f32.mrb[0].mxu0
  %v368 = vpop.f32.mrb[0].mxu0
  %v369 = vadd.f32 0.0, %v368
  %v370 = vpop.f32.mrb[0].mxu0
  %371 = vdwg.mxu0
  %v372 = vadd.f32 %v35, %v310
  %v373 = vadd.f32 %v36, %v313
  %v374 = vadd.f32 %v37, %v318
  %v375 = vadd.f32 %v38, %v321
  %v376 = vadd.f32 %v39, %v326
  %v377 = vadd.f32 %v40, %v329
  %v378 = vadd.f32 %v41, %v334
  %v379 = vadd.f32 %v42, %v337
  %v380 = vadd.f32 %v43, %v342
  %v381 = vadd.f32 %v44, %v345
  %v382 = vadd.f32 %v45, %v350
  %v383 = vadd.f32 %v46, %v353
  %v384 = vadd.f32 %v47, %v358
  %v385 = vadd.f32 %v48, %v361
  %v386 = vadd.f32 %v49, %v366
  %v387 = vadd.f32 %v50, %v369
  %388 = vst [vmem:[#allocation2] sm:$0xff] %v372
  %389 = vst [vmem:[#allocation2 + $0x8] sm:$0xff] %v373
  %390 = vst [vmem:[#allocation2 + $0x10] sm:$0xff] %v374
  %391 = vst [vmem:[#allocation2 + $0x18] sm:$0xff] %v375
  %392 = vst [vmem:[#allocation2 + $0x20] sm:$0xff] %v376
  %393 = vst [vmem:[#allocation2 + $0x28] sm:$0xff] %v377
  %394 = vst [vmem:[#allocation2 + $0x30] sm:$0xff] %v378
  %395 = vst [vmem:[#allocation2 + $0x38] sm:$0xff] %v379
  %396 = vst [vmem:[#allocation2 + $0x40] sm:$0xff] %v380
  %397 = vst [vmem:[#allocation2 + $0x48] sm:$0xff] %v381
  %398 = vst [vmem:[#allocation2 + $0x50] sm:$0xff] %v382
  %399 = vst [vmem:[#allocation2 + $0x58] sm:$0xff] %v383
  %400 = vst [vmem:[#allocation2 + $0x60] sm:$0xff] %v384
  %401 = vst [vmem:[#allocation2 + $0x68] sm:$0xff] %v385
  %402 = vst [vmem:[#allocation2 + $0x70] sm:$0xff] %v386
  %403 = vst [vmem:[#allocation2 + $0x78] sm:$0xff] %v387
  // Predicated region
  $region18: #{_lambda_.46} parent=0 // pred_check
    %p404 = pneg %p15
  $region19: #{_lambda_.46} parent=0 // pred_check_branch
    %406 = sbr.rel (%p404) target = $region21
  $region20: #{_lambda_.46} parent=0 // pred_region
    %v407 = vld [vmem:[#allocation2] sm:$0xff]
    %v408 = vld [vmem:[#allocation2 + $0x8] sm:$0xff]
    %v409 = vld [vmem:[#allocation2 + $0x10] sm:$0xff]
    %v410 = vld [vmem:[#allocation2 + $0x18] sm:$0xff]
    %v411 = vld [vmem:[#allocation2 + $0x20] sm:$0xff]
    %v412 = vld [vmem:[#allocation2 + $0x28] sm:$0xff]
    %v413 = vld [vmem:[#allocation2 + $0x30] sm:$0xff]
    %v414 = vld [vmem:[#allocation2 + $0x38] sm:$0xff]
    %v415 = vld [vmem:[#allocation2 + $0x40] sm:$0xff]
    %v416 = vld [vmem:[#allocation2 + $0x48] sm:$0xff]
    %v417 = vld [vmem:[#allocation2 + $0x50] sm:$0xff]
    %v418 = vld [vmem:[#allocation2 + $0x58] sm:$0xff]
    %v419 = vld [vmem:[#allocation2 + $0x60] sm:$0xff]
    %v420 = vld [vmem:[#allocation2 + $0x68] sm:$0xff]
    %v421 = vld [vmem:[#allocation2 + $0x70] sm:$0xff]
    %v422 = vld [vmem:[#allocation2 + $0x78] sm:$0xff]
    %v423 = vld [vmem:[%s2] sm:$0x1]
    %v425 = vlaneseq
    %v426 = vshrl.u32 %v425, 7
    %v427 = vsub.s32 0, %v426
    %v428 = vrot.slane %v423, %v427
    %v430 = vadd.f32 %v407, %v428
    %v431 = vadd.f32 %v408, %v428
    %v432 = vadd.f32 %v409, %v428
    %v433 = vadd.f32 %v410, %v428
    %v434 = vadd.f32 %v411, %v428
    %v435 = vadd.f32 %v412, %v428
    %v436 = vadd.f32 %v413, %v428
    %v437 = vadd.f32 %v414, %v428
    %v438 = vadd.f32 %v415, %v428
    %v439 = vadd.f32 %v416, %v428
    %v440 = vadd.f32 %v417, %v428
    %v441 = vadd.f32 %v418, %v428
    %v442 = vadd.f32 %v419, %v428
    %v443 = vadd.f32 %v420, %v428
    %v444 = vadd.f32 %v421, %v428
    %v445 = vadd.f32 %v422, %v428
    %v446 = vmax.f32 %v430, 0.0
    %v447 = vmax.f32 %v431, 0.0
    %v448 = vmax.f32 %v432, 0.0
    %v449 = vmax.f32 %v433, 0.0
    %v450 = vmax.f32 %v434, 0.0
    %v451 = vmax.f32 %v435, 0.0
    %v452 = vmax.f32 %v436, 0.0
    %v453 = vmax.f32 %v437, 0.0
    %v454 = vmax.f32 %v438, 0.0
    %v455 = vmax.f32 %v439, 0.0
    %v456 = vmax.f32 %v440, 0.0
    %v457 = vmax.f32 %v441, 0.0
    %v458 = vmax.f32 %v442, 0.0
    %v459 = vmax.f32 %v443, 0.0
    %v460 = vmax.f32 %v444, 0.0
    %v461 = vmax.f32 %v445, 0.0
    %v462 = vpack.c.bf16 %v447, %v446
    %v463 = vpack.c.bf16 %v449, %v448
    %v464 = vpack.c.bf16 %v451, %v450
    %v465 = vpack.c.bf16 %v453, %v452
    %v466 = vpack.c.bf16 %v455, %v454
    %v467 = vpack.c.bf16 %v457, %v456
    %v468 = vpack.c.bf16 %v459, %v458
    %v469 = vpack.c.bf16 %v461, %v460
    %v478 = vunpack.c.l.b16 %v462
    %v479 = vunpack.c.h.b16 %v462
    %v480 = vunpack.c.l.b16 %v463
    %v481 = vunpack.c.h.b16 %v463
    %v482 = vunpack.c.l.b16 %v464
    %v483 = vunpack.c.h.b16 %v464
    %v484 = vunpack.c.l.b16 %v465
    %v485 = vunpack.c.h.b16 %v465
    %v486 = vunpack.c.l.b16 %v466
    %v487 = vunpack.c.h.b16 %v466
    %v488 = vunpack.c.l.b16 %v467
    %v489 = vunpack.c.h.b16 %v467
    %v490 = vunpack.c.l.b16 %v468
    %v491 = vunpack.c.h.b16 %v468
    %v492 = vunpack.c.l.b16 %v469
    %v493 = vunpack.c.h.b16 %v469
    %v494 = vpack.c.b16 %v478, %v478
    %v495 = vpack.c.b16 %v479, %v479
    %v496 = vpack.c.b16 %v480, %v480
    %v497 = vpack.c.b16 %v481, %v481
    %v498 = vpack.c.b16 %v482, %v482
    %v499 = vpack.c.b16 %v483, %v483
    %v500 = vpack.c.b16 %v484, %v484
    %v501 = vpack.c.b16 %v485, %v485
    %v502 = vpack.c.b16 %v486, %v486
    %v503 = vpack.c.b16 %v487, %v487
    %v504 = vpack.c.b16 %v488, %v488
    %v505 = vpack.c.b16 %v489, %v489
    %v506 = vpack.c.b16 %v490, %v490
    %v507 = vpack.c.b16 %v491, %v491
    %v508 = vpack.c.b16 %v492, %v492
    %v509 = vpack.c.b16 %v493, %v493
    %526 = vst [vmem:[%s3] sm:$0xf] %v494
    %527 = vst [vmem:[%s3 + $0x4] sm:$0xf] %v495
    %528 = vst [vmem:[%s3 + $0x8] sm:$0xf] %v496
    %529 = vst [vmem:[%s3 + $0xc] sm:$0xf] %v497
    %530 = vst [vmem:[%s3 + $0x10] sm:$0xf] %v498
    %531 = vst [vmem:[%s3 + $0x14] sm:$0xf] %v499
    %532 = vst [vmem:[%s3 + $0x18] sm:$0xf] %v500
    %533 = vst [vmem:[%s3 + $0x1c] sm:$0xf] %v501
    %534 = vst [vmem:[%s3 + $0x20] sm:$0xf] %v502
    %535 = vst [vmem:[%s3 + $0x24] sm:$0xf] %v503
    %536 = vst [vmem:[%s3 + $0x28] sm:$0xf] %v504
    %537 = vst [vmem:[%s3 + $0x2c] sm:$0xf] %v505
    %538 = vst [vmem:[%s3 + $0x30] sm:$0xf] %v506
    %539 = vst [vmem:[%s3 + $0x34] sm:$0xf] %v507
    %540 = vst [vmem:[%s3 + $0x38] sm:$0xf] %v508
    %541 = vst [vmem:[%s3 + $0x3c] sm:$0xf] %v509
  $region21: #{_lambda_.46} parent=0 // pred_fallthru
    _
  // Predicated region
  $region22: #{_lambda_.46} parent=0 // pred_check
    _
  $region23: #{_lambda_.46} parent=0 // pred_check_branch
    %543 = sbr.rel (0) target = $region25
  $region24: #{_lambda_.46} parent=0 // pred_region
    _
  $region25: #{_lambda_.46} parent=0 // pred_fallthru
    _
  // Predicated region
  $region26: #{_lambda_.46} parent=0 // pred_check
    _
  $region27: #{_lambda_.46} parent=0 // pred_check_branch
    %545 = sbr.rel (0) target = $region29
  $region28: #{_lambda_.46} parent=0 // pred_region
    _
  $region29: #{_lambda_.46} parent=0 // pred_fallthru
    _

// kernel: _lambda_.49
$region0: #{_lambda_.49}
  #allocation0 [shape = 'u32[]', space=smem, size = 0x4, offset = 0x4, fixed_abs, tag = 'smem constant byte address 0x4 - core index']
  #allocation1 [shape = 'u32[144,128]{1,0:T(1,128)}', space=vmem, size = 0x12000, scoped, tag = 'internal scratch']
  #allocation2 [shape = 'f32[32,128]{1,0:T(8,128)}', space=vmem, size = 0x4000, scoped, tag = 'scratch operand']
  %s0 = inlined_call_operand.vmem [shape: bf16[32,640], index: 0, kind: input, shape index: {}]
  %s1 = inlined_call_operand.vmem [shape: bf16[640,128], index: 1, kind: input, shape index: {}]
  %s2 = inlined_call_operand.vmem [shape: f32[1,128], index: 2, kind: input, shape index: {}]
  %s3 = inlined_call_operand.vmem [shape: bf16[32,128], index: 3, kind: output, shape index: {}]
  %s4 = sld [smem:[#allocation0]]
  $region94: #{_lambda_.49} parent=0
    _
  %s6 = ssub.s32 1, %s4
  %s7 = scalar_select 0, %s6, %s4
  $region1: #{_lambda_.49} parent=0
    #allocation3 [shape = 'u8[16384]{0}', space=vmem, size = 0x4000, scoped, tag = 'input window, operand 0']
    loop: start=0, step=1, limit=7
    $region2: #{_lambda_.49} parent=1 // loop_pre_header
      _
    $region3: #{_lambda_.49} parent=1 // loop_header
      %s9 = sphi 0, %s13
      %p10 = scmp.ge.s32.totalorder %s9, 7
      %s16 = sphi 0, %s35
      %s17 = sphi 0, %s31
      %s18 = sphi 0, %s27
      %s19 = sphi 0, %s16
      %s20 = sphi 0, %s17
      %s21 = sphi 0, %s18
      %s22 = sphi 0, %s19
      %s23 = sphi 0, %s20
      %s24 = sphi 0, %s21
      %s40 = sphi 0, %s42
      %s43 = sphi 0, %s40
      %s44 = sphi 0, %s43
      %s60 = sphi 0, %s44
      %s68 = sphi 0, %s70
      %s71 = sphi 0, %s68
      %s72 = sphi 0, %s71
      %s88 = sphi 0, %s72
      %s94 = sphi 0, %s96
      %s97 = sphi 0, %s94
      %s98 = sphi 0, %s97
      %s114 = sphi 0, %s98
      %s122 = sphi 0, %s124
      %s125 = sphi 0, %s122
      %s126 = sphi 0, %s125
      %s142 = sphi 0, %s126
    $region4: #{_lambda_.49} parent=1 // loop_header_branch
      %12 = sbr.rel (%p10) target = $region8
    $region5: #{_lambda_.49} parent=1 // loop_body
      %s14 = ssub.s32 %s9, 1
      %s15 = ssub.s32 %s9, 2
      %s25 = sadd.s32 1, %s18
      %p26 = scmp.ge.s32.totalorder %s25, 5
      %s27 = scalar_select %p26, 0, %s25
      %s28 = sadd.s32 1, %s17
      %s29 = scalar_select %p26, %s28, %s17
      %p30 = scmp.ge.s32.totalorder %s29, 1
      %s31 = scalar_select %p30, 0, %s29
      %s32 = sadd.s32 1, %s16
      %s33 = scalar_select %p30, %s32, %s16
      %p34 = scmp.ge.s32.totalorder %s33, 1
      %s35 = scalar_select %p34, 0, %s33
      %s36 = ssub.s32 %s16, %s35
      %s37 = ssub.s32 %s18, %s27
      %s38 = sor.u32 %s36, %s37
      %p39 = scmp.eq.s32.totalorder %s38, 0
      %s41 = sadd.s32 %s40, 1
      %s42 = scalar_select %p39, %s40, %s41
      %p45 = pneg %p39
      %p46 = scmp.eq.s32.totalorder %s9, 4
      %p47 = por %p45, %p46
      %p48 = scmp.ne.s32.totalorder %s40, %s43
      %p49 = scmp.eq.s32.totalorder %s9, 0
      %p50 = por %p48, %p49
      %p51 = scmp.ne.s32.totalorder %s40, %s43
      %p52 = scmp.eq.s32.totalorder %s14, 4
      %p53 = por %p51, %p52
      %p54 = scmp.ne.s32.totalorder %s43, %s44
      %p55 = scmp.eq.s32.totalorder %s14, 0
      %p56 = por %p54, %p55
      %p57 = scmp.ne.s32.totalorder %s43, %s44
      %p58 = scmp.eq.s32.totalorder %s15, 4
      %p59 = por %p57, %p58
      %p61 = scmp.ne.s32.totalorder %s44, %s60
      %p62 = scmp.eq.s32.totalorder %s15, 0
      %p63 = por %p61, %p62
      %s64 = ssub.s32 %s18, %s27
      %s65 = ssub.s32 %s17, %s31
      %s66 = sor.u32 %s64, %s65
      %p67 = scmp.eq.s32.totalorder %s66, 0
      %s69 = sadd.s32 %s68, 1
      %s70 = scalar_select %p67, %s68, %s69
      %p73 = pneg %p67
      %p74 = scmp.eq.s32.totalorder %s9, 4
      %p75 = por %p73, %p74
      %p76 = scmp.ne.s32.totalorder %s68, %s71
      %p77 = scmp.eq.s32.totalorder %s9, 0
      %p78 = por %p76, %p77
      %p79 = scmp.ne.s32.totalorder %s68, %s71
      %p80 = scmp.eq.s32.totalorder %s14, 4
      %p81 = por %p79, %p80
      %p82 = scmp.ne.s32.totalorder %s71, %s72
      %p83 = scmp.eq.s32.totalorder %s14, 0
      %p84 = por %p82, %p83
      %p85 = scmp.ne.s32.totalorder %s71, %s72
      %p86 = scmp.eq.s32.totalorder %s15, 4
      %p87 = por %p85, %p86
      %p89 = scmp.ne.s32.totalorder %s72, %s88
      %p90 = scmp.eq.s32.totalorder %s15, 0
      %p91 = por %p89, %p90
      %s92 = ssub.s32 %s17, %s31
      %p93 = scmp.eq.s32.totalorder %s92, 0
      %s95 = sadd.s32 %s94, 1
      %s96 = scalar_select %p93, %s94, %s95
      %p99 = pneg %p93
      %p100 = scmp.eq.s32.totalorder %s9, 4
      %p101 = por %p99, %p100
      %p102 = scmp.ne.s32.totalorder %s94, %s97
      %p103 = scmp.eq.s32.totalorder %s9, 0
      %p104 = por %p102, %p103
      %p105 = scmp.ne.s32.totalorder %s94, %s97
      %p106 = scmp.eq.s32.totalorder %s14, 4
      %p107 = por %p105, %p106
      %p108 = scmp.ne.s32.totalorder %s97, %s98
      %p109 = scmp.eq.s32.totalorder %s14, 0
      %p110 = por %p108, %p109
      %p111 = scmp.ne.s32.totalorder %s97, %s98
      %p112 = scmp.eq.s32.totalorder %s15, 4
      %p113 = por %p111, %p112
      %p115 = scmp.ne.s32.totalorder %s98, %s114
      %p116 = scmp.eq.s32.totalorder %s15, 0
      %p117 = por %p115, %p116
      %s118 = ssub.s32 %s16, %s35
      %s119 = ssub.s32 %s17, %s31
      %s120 = sor.u32 %s118, %s119
      %p121 = scmp.eq.s32.totalorder %s120, 0
      %s123 = sadd.s32 %s122, 1
      %s124 = scalar_select %p121, %s122, %s123
      %p127 = pneg %p121
      %p128 = scmp.eq.s32.totalorder %s9, 4
      %p129 = por %p127, %p128
      %p130 = scmp.ne.s32.totalorder %s122, %s125
      %p131 = scmp.eq.s32.totalorder %s9, 0
      %p132 = por %p130, %p131
      %p133 = scmp.ne.s32.totalorder %s122, %s125
      %p134 = scmp.eq.s32.totalorder %s14, 4
      %p135 = por %p133, %p134
      %p136 = scmp.ne.s32.totalorder %s125, %s126
      %p137 = scmp.eq.s32.totalorder %s14, 0
      %p138 = por %p136, %p137
      %p139 = scmp.ne.s32.totalorder %s125, %s126
      %p140 = scmp.eq.s32.totalorder %s15, 4
      %p141 = por %p139, %p140
      %p143 = scmp.ne.s32.totalorder %s126, %s142
      %p144 = scmp.eq.s32.totalorder %s15, 0
      %p145 = por %p143, %p144
      %p146 = scmp.le.s32.totalorder 1, %s9
      %p147 = scmp.lt.s32.totalorder %s9, 6
      %p148 = pnand %p146, %p147
      %p149 = pneg %p148
      // Predicated region
      $region9: #{_lambda_.49} parent=5 // pred_check
        _
      $region10: #{_lambda_.49} parent=5 // pred_check_branch
        %151 = sbr.rel (%p148) target = $region12
      $region11: #{_lambda_.49} parent=5 // pred_region
        %s152 = ssub.s32 %s9, 1
        // Predicated region
        $region13: #{_lambda_.49} parent=11 // pred_check
          %p153 = pneg %p110
        $region14: #{_lambda_.49} parent=11 // pred_check_branch
          %155 = sbr.rel (%p153) target = $region16
        $region15: #{_lambda_.49} parent=11 // pred_region
          %p156 = scmp.lt.s32.totalorder %s20, 0
          %s157 = scalar_select %p156, %s20, 0
          %s158 = scalar_lea.vmem %s2, %s157
        $region16: #{_lambda_.49} parent=11 // pred_fallthru
          _
      $region12: #{_lambda_.49} parent=5 // pred_fallthru
        _
      %p159 = scmp.lt.s32.totalorder %s9, 5
      // Predicated region
      $region17: #{_lambda_.49} parent=5 // pred_check
        %p160 = pneg %p159
      $region18: #{_lambda_.49} parent=5 // pred_check_branch
        %162 = sbr.rel (%p160) target = $region20
      $region19: #{_lambda_.49} parent=5 // pred_region
        // Predicated region
        $region21: #{_lambda_.49} parent=19 // pred_check
          %p163 = pneg %p50
        $region22: #{_lambda_.49} parent=19 // pred_check_branch
          %165 = sbr.rel (%p163) target = $region24
        $region23: #{_lambda_.49} parent=19 // pred_region
          %s166 = sand.u32 %s40, 1
          %s167 = sand.u32 %s40, 1
          %s168 = smul.addr %s167, 16
          %s169 = scalar_lea.vmem [#allocation3], %s168
          %s170 = smul.u32 4, %s16
          %s171 = smul.addr %s170, 5
          %s172 = sadd.s32 %s18, %s171
          %s173 = smul.addr %s172, 4
          %s174 = scalar_lea.vmem %s0, %s173
          // Predicated region
          $region25: #{_lambda_.49} parent=23 // pred_check
            _
          $region26: #{_lambda_.49} parent=23 // pred_check_branch
            %176 = sbr.rel (0) target = $region28
          $region27: #{_lambda_.49} parent=23 // pred_region
            // Predicated region
            $region29: #{_lambda_.49} parent=27 // pred_check
              _
            $region30: #{_lambda_.49} parent=27 // pred_check_branch
              %178 = sbr.rel target = $region32
            $region31: #{_lambda_.49} parent=27 // pred_region
              // Predicated region
              $region44: #{_lambda_.49} parent=31 // pred_check
                _
              $region45: #{_lambda_.49} parent=31 // pred_check_branch
                %199 = sbr.rel (0) target = $region47
              $region46: #{_lambda_.49} parent=31 // pred_region
                loop: start=0, step=1, limit=1
                $region48: #{_lambda_.49} parent=46 // loop_pre_header
                  _
                $region49: #{_lambda_.49} parent=46 // loop_header
                  %s201 = sphi 0, %s205
                  %p202 = scmp.ge.s32.totalorder %s201, 1
                  %s206 = sphi %s174, %s174
                  %s207 = sphi %s169, %s169
                $region50: #{_lambda_.49} parent=46 // loop_header_branch
                  %204 = sbr.rel (%p202) target = $region54
                $region51: #{_lambda_.49} parent=46 // loop_body
                  _
                $region52: #{_lambda_.49} parent=46 // loop_footer
                  %s205 = sadd.s32 1, %s201
                $region53: #{_lambda_.49} parent=46 // loop_footer_branch
                  %200 = sbr.rel target = $region49
                $region54: #{_lambda_.49} parent=46 // loop_exit
                  _
                loop: start=0, step=1, limit=1
                $region55: #{_lambda_.49} parent=46 // loop_pre_header
                  _
                $region56: #{_lambda_.49} parent=46 // loop_header
                  %s210 = sphi 0, %s214
                  %p211 = scmp.ge.s32.totalorder %s210, 1
                  %s215 = sphi %s174, %s174
                  %s216 = sphi %s169, %s169
                $region57: #{_lambda_.49} parent=46 // loop_header_branch
                  %213 = sbr.rel (%p211) target = $region61
                $region58: #{_lambda_.49} parent=46 // loop_body
                  %v217 = vld [vmem:[%s215] sm:$0xf]
                  %218 = vst [vmem:[%s216] sm:$0xf] %v217
                  %v219 = vld [vmem:[%s215 + $0x14] sm:$0xf]
                  %220 = vst [vmem:[%s216 + $0x4] sm:$0xf] %v219
                  %v221 = vld [vmem:[%s215 + $0x28] sm:$0xf]
                  %222 = vst [vmem:[%s216 + $0x8] sm:$0xf] %v221
                  %v223 = vld [vmem:[%s215 + $0x3c] sm:$0xf]
                  %224 = vst [vmem:[%s216 + $0xc] sm:$0xf] %v223
                $region59: #{_lambda_.49} parent=46 // loop_footer
                  %s214 = sadd.s32 1, %s210
                $region60: #{_lambda_.49} parent=46 // loop_footer_branch
                  %209 = sbr.rel target = $region56
                $region61: #{_lambda_.49} parent=46 // loop_exit
                  _
              $region47: #{_lambda_.49} parent=31 // pred_fallthru
                _
            $region32: #{_lambda_.49} parent=27 // pred_fallthru
              _
            // Predicated region
            $region33: #{_lambda_.49} parent=27 // pred_check
              _
            $region34: #{_lambda_.49} parent=27 // pred_check_branch
              %180 = sbr.rel (0) target = $region36
            $region35: #{_lambda_.49} parent=27 // pred_region
              loop: start=0, step=1, limit=1
              $region37: #{_lambda_.49} parent=35 // loop_pre_header
                _
              $region38: #{_lambda_.49} parent=35 // loop_header
                %s183 = sphi 0, %s187
                %p184 = scmp.ge.s32.totalorder %s183, 1
                %s188 = sphi %s174, %s174
                %s189 = sphi %s169, %s169
              $region39: #{_lambda_.49} parent=35 // loop_header_branch
                %186 = sbr.rel (%p184) target = $region43
              $region40: #{_lambda_.49} parent=35 // loop_body
                %v190 = vld [vmem:[%s188] sm:$0xf]
                %191 = vst [vmem:[%s189] sm:$0xf] %v190
                %v192 = vld [vmem:[%s188 + $0x14] sm:$0xf]
                %193 = vst [vmem:[%s189 + $0x4] sm:$0xf] %v192
                %v194 = vld [vmem:[%s188 + $0x28] sm:$0xf]
                %195 = vst [vmem:[%s189 + $0x8] sm:$0xf] %v194
                %v196 = vld [vmem:[%s188 + $0x3c] sm:$0xf]
                %197 = vst [vmem:[%s189 + $0xc] sm:$0xf] %v196
              $region41: #{_lambda_.49} parent=35 // loop_footer
                %s187 = sadd.s32 1, %s183
              $region42: #{_lambda_.49} parent=35 // loop_footer_branch
                %182 = sbr.rel target = $region38
              $region43: #{_lambda_.49} parent=35 // loop_exit
                _
            $region36: #{_lambda_.49} parent=27 // pred_fallthru
              _
          $region28: #{_lambda_.49} parent=23 // pred_fallthru
            _
          %225 = vnop
        $region24: #{_lambda_.49} parent=19 // pred_fallthru
          _
        // Predicated region
        $region62: #{_lambda_.49} parent=19 // pred_check
          %p226 = pneg %p78
        $region63: #{_lambda_.49} parent=19 // pred_check_branch
          %228 = sbr.rel (%p226) target = $region65
        $region64: #{_lambda_.49} parent=19 // pred_region
          %s229 = smul.u32 16, %s18
          %p230 = scmp.lt.s32.totalorder %s229, 79
          %s231 = scalar_select %p230, %s229, 79
          %p232 = scmp.lt.s32.totalorder %s17, 0
          %s233 = scalar_select %p232, %s17, 0
          %s234 = sadd.s32 %s233, %s231
          %s235 = smul.addr %s234, 4
          %s236 = scalar_lea.vmem %s1, %s235
          %s237 = smul.u32 16, %s18
        $region65: #{_lambda_.49} parent=19 // pred_fallthru
          _
      $region20: #{_lambda_.49} parent=5 // pred_fallthru
        _
      %p238 = scmp.le.s32.totalorder 1, %s9
      %p239 = scmp.lt.s32.totalorder %s9, 6
      %p240 = pnand %p238, %p239
      %p241 = pneg %p240
      // Predicated region
      $region66: #{_lambda_.49} parent=5 // pred_check
        _
      $region67: #{_lambda_.49} parent=5 // pred_check_branch
        %243 = sbr.rel (%p240) target = $region69
      $region68: #{_lambda_.49} parent=5 // pred_region
        %s244 = ssub.s32 %s9, 1
        %s245 = sand.u32 %s43, 1
        %s246 = sand.u32 %s43, 1
        %s247 = smul.addr %s246, 16
        %s248 = scalar_lea.vmem [#allocation3], %s247
        // Predicated region
        $region70: #{_lambda_.49} parent=68 // pred_check
          %p249 = pneg %p56
        $region71: #{_lambda_.49} parent=68 // pred_check_branch
          %251 = sbr.rel (%p249) target = $region73
        $region72: #{_lambda_.49} parent=68 // pred_region
          _
        $region73: #{_lambda_.49} parent=68 // pred_fallthru
          _
        %s252 = sand.u32 %s43, 1
        %s253 = sand.u32 %s43, 1
        %s254 = smul.addr %s253, 16
        %s255 = scalar_lea.vmem [#allocation3], %s254
        %p256 = pneg %p56
        %p257 = pneg %p53
        %s258 = smul.u32 16, %s21
        %p259 = scmp.lt.s32.totalorder %s258, 79
        %s260 = scalar_select %p259, %s258, 79
        %p261 = scmp.lt.s32.totalorder %s20, 0
        %s262 = scalar_select %p261, %s20, 0
        %s263 = sadd.s32 %s262, %s260
        %s264 = smul.addr %s263, 4
        %s265 = scalar_lea.vmem %s1, %s264
        %p266 = pneg %p84
        %p267 = pneg %p81
        %p268 = scmp.lt.s32.totalorder %s20, 0
        %s269 = scalar_select %p268, %s20, 0
        %s270 = scalar_lea.vmem %s2, %s269
        %p271 = pneg %p110
        %p272 = pneg %p107
        %p273 = pneg %p138
        %p274 = pneg %p135
        %s275 = smul.u32 4, %s19
        %p276 = scmp.lt.s32.totalorder %s275, 3
        %s277 = scalar_select %p276, %s275, 3
        %p278 = scmp.lt.s32.totalorder %s20, 0
        %s279 = scalar_select %p278, %s20, 0
        %s280 = sadd.s32 %s279, %s277
        %s281 = smul.addr %s280, 4
        %s282 = scalar_lea.vmem %s3, %s281
        %s283 = smul.u32 4, %s19
        %s284 = smul.u32 16, %s21
        %p285 = scmp.lt.s32.totalorder %s284, 79
        %s286 = scalar_select %p285, %s284, 79
        %p287 = scmp.lt.s32.totalorder %s20, 0
        %s288 = scalar_select %p287, %s20, 0
        %s289 = sadd.s32 %s288, %s286
        %s290 = smul.addr %s289, 4
        %s291 = scalar_lea.vmem %s1, %s290
        %s292 = smul.u32 16, %s21
        %p293 = scmp.lt.s32.totalorder %s20, 0
        %s294 = scalar_select %p293, %s20, 0
        %s295 = scalar_lea.vmem %s2, %s294
        %s296 = smul.u32 4, %s19
        %p297 = scmp.lt.s32.totalorder %s296, 3
        %s298 = scalar_select %p297, %s296, 3
        %p299 = scmp.lt.s32.totalorder %s20, 0
        %s300 = scalar_select %p299, %s20, 0
        %s301 = sadd.s32 %s300, %s298
        %s302 = smul.addr %s301, 4
        %s303 = scalar_lea.vmem %s3, %s302
        %s304 = smul.u32 4, %s19
        %p306 = scmp.eq.s32.totalorder %s21, 0
        // Predicated region
        $region74: #{_lambda_.49} parent=68 // pred_check
          %p307 = pneg %p306
        $region75: #{_lambda_.49} parent=68 // pred_check_branch
          %309 = sbr.rel (%p307) target = $region77
        $region76: #{_lambda_.49} parent=68 // pred_region
          %310 = vst [vmem:[#allocation2] sm:$0xff] 0.0
          %311 = vst [vmem:[#allocation2 + $0x8] sm:$0xff] 0.0
          %312 = vst [vmem:[#allocation2 + $0x10] sm:$0xff] 0.0
          %313 = vst [vmem:[#allocation2 + $0x18] sm:$0xff] 0.0
        $region77: #{_lambda_.49} parent=68 // pred_fallthru
          _
        %v314 = vld [vmem:[#allocation2] sm:$0xff]
        %v315 = vld [vmem:[#allocation2 + $0x8] sm:$0xff]
        %v316 = vld [vmem:[#allocation2 + $0x10] sm:$0xff]
        %v317 = vld [vmem:[#allocation2 + $0x18] sm:$0xff]
        %v318 = vld [vmem:[%s248] sm:$0xf]
        %v319 = vld [vmem:[%s248 + $0x4] sm:$0xf]
        %v320 = vld [vmem:[%s248 + $0x8] sm:$0xf]
        %v321 = vld [vmem:[%s248 + $0xc] sm:$0xf]
        %v322 = vld [vmem:[%s291] sm:$0xf]
        %v323 = vld [vmem:[%s291 + $0x4] sm:$0xf]
        %v324 = vld [vmem:[%s291 + $0x8] sm:$0xf]
        %v325 = vld [vmem:[%s291 + $0xc] sm:$0xf]
        %v326 = vld [vmem:[%s291 + $0x10] sm:$0xf]
        %v327 = vld [vmem:[%s291 + $0x14] sm:$0xf]
        %v328 = vld [vmem:[%s291 + $0x18] sm:$0xf]
        %v329 = vld [vmem:[%s291 + $0x1c] sm:$0xf]
        %v330 = vld [vmem:[%s291 + $0x20] sm:$0xf]
        %v331 = vld [vmem:[%s291 + $0x24] sm:$0xf]
        %v332 = vld [vmem:[%s291 + $0x28] sm:$0xf]
        %v333 = vld [vmem:[%s291 + $0x2c] sm:$0xf]
        %v334 = vld [vmem:[%s291 + $0x30] sm:$0xf]
        %v335 = vld [vmem:[%s291 + $0x34] sm:$0xf]
        %v336 = vld [vmem:[%s291 + $0x38] sm:$0xf]
        %v337 = vld [vmem:[%s291 + $0x3c] sm:$0xf]
        %v342 = vunpack.c.l.b16 %v318
        %v343 = vunpack.c.l.b16 %v319
        %v344 = vunpack.c.l.b16 %v320
        %v345 = vunpack.c.l.b16 %v321
        %v346 = vpack.c.b16 %v343, %v342
        %v347 = vpack.c.b16 %v345, %v344
        %v366 = vunpack.c.l.b16 %v322
        %v367 = vunpack.c.l.b16 %v323
        %v368 = vunpack.c.l.b16 %v324
        %v369 = vunpack.c.l.b16 %v325
        %v370 = vunpack.c.l.b16 %v326
        %v371 = vunpack.c.l.b16 %v327
        %v372 = vunpack.c.l.b16 %v328
        %v373 = vunpack.c.l.b16 %v329
        %v374 = vunpack.c.l.b16 %v330
        %v375 = vunpack.c.l.b16 %v331
        %v376 = vunpack.c.l.b16 %v332
        %v377 = vunpack.c.l.b16 %v333
        %v378 = vunpack.c.l.b16 %v334
        %v379 = vunpack.c.l.b16 %v335
        %v380 = vunpack.c.l.b16 %v336
        %v381 = vunpack.c.l.b16 %v337
        %v382 = vpack.c.b16 %v367, %v366
        %v383 = vpack.c.b16 %v369, %v368
        %v384 = vpack.c.b16 %v371, %v370
        %v385 = vpack.c.b16 %v373, %v372
        %v386 = vpack.c.b16 %v375, %v374
        %v387 = vpack.c.b16 %v377, %v376
        %v388 = vpack.c.b16 %v379, %v378
        %v389 = vpack.c.b16 %v381, %v380
        %398 = vmatprep.subr.bf16.mxu0 0
        %399 = vmatpush1.bf16.msra.mxu0 %v382
        %400 = vmatprep.subr.bf16.mxu0 0
        %401 = vmatpush1.bf16.msra.mxu0 %v383
        %402 = vmatprep.subr.bf16.mxu0 0
        %403 = vmatpush1.bf16.msra.mxu0 %v384
        %404 = vmatprep.subr.bf16.mxu0 0
        %405 = vmatpush1.bf16.msra.mxu0 %v385
        %406 = vmatprep.subr.bf16.mxu0 0
        %407 = vmatpush1.bf16.msra.mxu0 %v386
        %408 = vmatprep.subr.bf16.mxu0 0
        %409 = vmatpush1.bf16.msra.mxu0 %v387
        %410 = vmatprep.subr.bf16.mxu0 0
        %411 = vmatpush1.bf16.msra.mxu0 %v388
        %412 = vmatprep.subr.bf16.mxu0 0
        %413 = vmatpush1.bf16.msra.mxu0 %v389
        %414 = vmatprep.subr.bf16.mxu0 0
        %415 = vmatpush1.bf16.msra.mxu0 0
        %416 = vmatprep.subr.bf16.mxu0 0
        %417 = vmatpush1.bf16.msra.mxu0 0
        %418 = vmatprep.subr.bf16.mxu0 0
        %419 = vmatpush1.bf16.msra.mxu0 0
        %420 = vmatprep.subr.bf16.mxu0 0
        %421 = vmatpush1.bf16.msra.mxu0 0
        %422 = vmatprep.subr.bf16.mxu0 0
        %423 = vmatpush1.bf16.msra.mxu0 0
        %424 = vmatprep.subr.bf16.mxu0 0
        %425 = vmatpush1.bf16.msra.mxu0 0
        %426 = vmatprep.subr.bf16.mxu0 0
        %427 = vmatpush1.bf16.msra.mxu0 0
        %428 = vmatprep.subr.bf16.mxu0 0
        %429 = vmatpush1.bf16.msra.mxu0 0
        %430 = vmatprep.mubr.bf16.mxu0 0
        %431 = vmatmul.mubr.bf16.gmra.mrb[0].mxu0 %v346
        %v432 = vpop.f32.mrb[0].mxu0
        %v433 = vadd.f32 0.0, %v432
        %v434 = vpop.f32.mrb[0].mxu0
        %v435 = vpop.f32.mrb[0].mxu0
        %v436 = vadd.f32 0.0, %v435
        %v437 = vpop.f32.mrb[0].mxu0
        %438 = vmatprep.mubr.bf16.mxu0 0
        %439 = vmatmul.mubr.bf16.gmra.mrb[0].mxu0 %v347
        %v440 = vpop.f32.mrb[0].mxu0
        %v441 = vadd.f32 0.0, %v440
        %v442 = vpop.f32.mrb[0].mxu0
        %v443 = vpop.f32.mrb[0].mxu0
        %v444 = vadd.f32 0.0, %v443
        %v445 = vpop.f32.mrb[0].mxu0
        %446 = vdwg.mxu0
        %v447 = vadd.f32 %v314, %v433
        %v448 = vadd.f32 %v315, %v436
        %v449 = vadd.f32 %v316, %v441
        %v450 = vadd.f32 %v317, %v444
        %451 = vst [vmem:[#allocation2] sm:$0xff] %v447
        %452 = vst [vmem:[#allocation2 + $0x8] sm:$0xff] %v448
        %453 = vst [vmem:[#allocation2 + $0x10] sm:$0xff] %v449
        %454 = vst [vmem:[#allocation2 + $0x18] sm:$0xff] %v450
        %p455 = scmp.eq.s32.totalorder %s21, 4
        // Predicated region
        $region78: #{_lambda_.49} parent=68 // pred_check
          %p456 = pneg %p455
        $region79: #{_lambda_.49} parent=68 // pred_check_branch
          %458 = sbr.rel (%p456) target = $region81
        $region80: #{_lambda_.49} parent=68 // pred_region
          %v459 = vld [vmem:[#allocation2] sm:$0xff]
          %v460 = vld [vmem:[#allocation2 + $0x8] sm:$0xff]
          %v461 = vld [vmem:[#allocation2 + $0x10] sm:$0xff]
          %v462 = vld [vmem:[#allocation2 + $0x18] sm:$0xff]
          %v463 = vld [vmem:[%s295] sm:$0x1]
          %v465 = vlaneseq
          %v466 = vshrl.u32 %v465, 7
          %v467 = vsub.s32 0, %v466
          %v468 = vrot.slane %v463, %v467
          %v470 = vadd.f32 %v459, %v468
          %v471 = vadd.f32 %v460, %v468
          %v472 = vadd.f32 %v461, %v468
          %v473 = vadd.f32 %v462, %v468
          %v474 = vmax.f32 %v470, 0.0
          %v475 = vmax.f32 %v471, 0.0
          %v476 = vmax.f32 %v472, 0.0
          %v477 = vmax.f32 %v473, 0.0
          %v478 = vpack.c.bf16 %v475, %v474
          %v479 = vpack.c.bf16 %v477, %v476
          %v482 = vunpack.c.l.b16 %v478
          %v483 = vunpack.c.h.b16 %v478
          %v484 = vunpack.c.l.b16 %v479
          %v485 = vunpack.c.h.b16 %v479
          %v486 = vpack.c.b16 %v482, %v482
          %v487 = vpack.c.b16 %v483, %v483
          %v488 = vpack.c.b16 %v484, %v484
          %v489 = vpack.c.b16 %v485, %v485
          %494 = vst [vmem:[%s303] sm:$0xf] %v486
          %495 = vst [vmem:[%s303 + $0x4] sm:$0xf] %v487
          %496 = vst [vmem:[%s303 + $0x8] sm:$0xf] %v488
          %497 = vst [vmem:[%s303 + $0xc] sm:$0xf] %v489
        $region81: #{_lambda_.49} parent=68 // pred_fallthru
          _
        %s498 = smul.u32 4, %s19
        %p499 = scmp.lt.s32.totalorder %s498, 3
        %s500 = scalar_select %p499, %s498, 3
        %p501 = scmp.lt.s32.totalorder %s20, 0
        %s502 = scalar_select %p501, %s20, 0
        %s503 = sadd.s32 %s502, %s500
        %s504 = smul.addr %s503, 4
        %s505 = scalar_lea.vmem %s3, %s504
        // Predicated region
        $region82: #{_lambda_.49} parent=68 // pred_check
          %p506 = pneg %p135
        $region83: #{_lambda_.49} parent=68 // pred_check_branch
          %508 = sbr.rel (%p506) target = $region85
        $region84: #{_lambda_.49} parent=68 // pred_region
          %s509 = smul.u32 4, %s19
        $region85: #{_lambda_.49} parent=68 // pred_fallthru
          _
        // Predicated region
        $region86: #{_lambda_.49} parent=68 // pred_check
          %p510 = pneg %p135
        $region87: #{_lambda_.49} parent=68 // pred_check_branch
          %512 = sbr.rel (%p510) target = $region89
        $region88: #{_lambda_.49} parent=68 // pred_region
          %s513 = smul.u32 4, %s19
          %p514 = scmp.lt.s32.totalorder %s513, 3
          %s515 = scalar_select %p514, %s513, 3
          %p516 = scmp.lt.s32.totalorder %s20, 0
          %s517 = scalar_select %p516, %s20, 0
          %s518 = sadd.s32 %s517, %s515
          %s519 = smul.addr %s518, 4
          %s520 = scalar_lea.vmem %s3, %s519
        $region89: #{_lambda_.49} parent=68 // pred_fallthru
          _
      $region69: #{_lambda_.49} parent=5 // pred_fallthru
        _
      %p521 = scmp.le.s32.totalorder 2, %s9
      // Predicated region
      $region90: #{_lambda_.49} parent=5 // pred_check
        %p522 = pneg %p521
      $region91: #{_lambda_.49} parent=5 // pred_check_branch
        %524 = sbr.rel (%p522) target = $region93
      $region92: #{_lambda_.49} parent=5 // pred_region
        %s525 = ssub.s32 %s9, 2
      $region93: #{_lambda_.49} parent=5 // pred_fallthru
        _
    $region6: #{_lambda_.49} parent=1 // loop_footer
      %s13 = sadd.s32 1, %s9
    $region7: #{_lambda_.49} parent=1 // loop_footer_branch
      %8 = sbr.rel target = $region3
    $region8: #{_lambda_.49} parent=1 // loop_exit
      _

// kernel: _lambda_.50
$region0: #{_lambda_.50}
  #allocation0 [shape = 'u32[]', space=smem, size = 0x4, offset = 0x4, fixed_abs, tag = 'smem constant byte address 0x4 - core index']
  #allocation1 [shape = 'u32[144,128]{1,0:T(1,128)}', space=vmem, size = 0x12000, scoped, tag = 'internal scratch']
  #allocation2 [shape = 'f32[32,256]{1,0:T(8,128)}', space=vmem, size = 0x8000, scoped, tag = 'scratch operand']
  %s0 = inlined_call_operand.vmem [shape: bf16[32,128], index: 0, kind: input, shape index: {}]
  %s1 = inlined_call_operand.vmem [shape: bf16[128,256], index: 1, kind: input, shape index: {}]
  %s2 = inlined_call_operand.vmem [shape: f32[1,256], index: 2, kind: input, shape index: {}]
  %s3 = inlined_call_operand.vmem [shape: bf16[32,256], index: 3, kind: output, shape index: {}]
  %s4 = sld [smem:[#allocation0]]
  $region30: #{_lambda_.50} parent=0
    _
  %s6 = ssub.s32 1, %s4
  %s7 = scalar_select 0, %s6, %s4
  // Predicated region
  $region2: #{_lambda_.50} parent=0 // pred_check
    _
  $region3: #{_lambda_.50} parent=0 // pred_check_branch
    %9 = sbr.rel (0) target = $region5
  $region4: #{_lambda_.50} parent=0 // pred_region
    _
  $region5: #{_lambda_.50} parent=0 // pred_fallthru
    _
  // Predicated region
  $region6: #{_lambda_.50} parent=0 // pred_check
    _
  $region7: #{_lambda_.50} parent=0 // pred_check_branch
    %11 = sbr.rel (0) target = $region9
  $region8: #{_lambda_.50} parent=0 // pred_region
    _
  $region9: #{_lambda_.50} parent=0 // pred_fallthru
    _
  // Predicated region
  $region10: #{_lambda_.50} parent=0 // pred_check
    _
  $region11: #{_lambda_.50} parent=0 // pred_check_branch
    %13 = sbr.rel (0) target = $region13
  $region12: #{_lambda_.50} parent=0 // pred_region
    _
  $region13: #{_lambda_.50} parent=0 // pred_fallthru
    _
  %p15 = scmp.eq.s32.totalorder 0, 0
  // Predicated region
  $region14: #{_lambda_.50} parent=0 // pred_check
    %p16 = pneg %p15
  $region15: #{_lambda_.50} parent=0 // pred_check_branch
    %18 = sbr.rel (%p16) target = $region17
  $region16: #{_lambda_.50} parent=0 // pred_region
    %19 = vst [vmem:[#allocation2] sm:$0xff] 0.0
    %20 = vst [vmem:[#allocation2 + $0x8] sm:$0xff] 0.0
    %21 = vst [vmem:[#allocation2 + $0x10] sm:$0xff] 0.0
    %22 = vst [vmem:[#allocation2 + $0x18] sm:$0xff] 0.0
    %23 = vst [vmem:[#allocation2 + $0x20] sm:$0xff] 0.0
    %24 = vst [vmem:[#allocation2 + $0x28] sm:$0xff] 0.0
    %25 = vst [vmem:[#allocation2 + $0x30] sm:$0xff] 0.0
    %26 = vst [vmem:[#allocation2 + $0x38] sm:$0xff] 0.0
  $region17: #{_lambda_.50} parent=0 // pred_fallthru
    _
  %v27 = vld [vmem:[#allocation2] sm:$0xff]
  %v28 = vld [vmem:[#allocation2 + $0x8] sm:$0xff]
  %v29 = vld [vmem:[#allocation2 + $0x10] sm:$0xff]
  %v30 = vld [vmem:[#allocation2 + $0x18] sm:$0xff]
  %v31 = vld [vmem:[#allocation2 + $0x20] sm:$0xff]
  %v32 = vld [vmem:[#allocation2 + $0x28] sm:$0xff]
  %v33 = vld [vmem:[#allocation2 + $0x30] sm:$0xff]
  %v34 = vld [vmem:[#allocation2 + $0x38] sm:$0xff]
  %v35 = vld [vmem:[%s0] sm:$0xf]
  %v36 = vld [vmem:[%s0 + $0x4] sm:$0xf]
  %v37 = vld [vmem:[%s0 + $0x8] sm:$0xf]
  %v38 = vld [vmem:[%s0 + $0xc] sm:$0xf]
  %v39 = vld [vmem:[%s1] sm:$0xff]
  %v40 = vld [vmem:[%s1 + $0x8] sm:$0xff]
  %v41 = vld [vmem:[%s1 + $0x10] sm:$0xff]
  %v42 = vld [vmem:[%s1 + $0x18] sm:$0xff]
  %v43 = vld [vmem:[%s1 + $0x20] sm:$0xff]
  %v44 = vld [vmem:[%s1 + $0x28] sm:$0xff]
  %v45 = vld [vmem:[%s1 + $0x30] sm:$0xff]
  %v46 = vld [vmem:[%s1 + $0x38] sm:$0xff]
  %v47 = vld [vmem:[%s1 + $0x40] sm:$0xff]
  %v48 = vld [vmem:[%s1 + $0x48] sm:$0xff]
  %v49 = vld [vmem:[%s1 + $0x50] sm:$0xff]
  %v50 = vld [vmem:[%s1 + $0x58] sm:$0xff]
  %v51 = vld [vmem:[%s1 + $0x60] sm:$0xff]
  %v52 = vld [vmem:[%s1 + $0x68] sm:$0xff]
  %v53 = vld [vmem:[%s1 + $0x70] sm:$0xff]
  %v54 = vld [vmem:[%s1 + $0x78] sm:$0xff]
  %v59 = vunpack.c.l.b16 %v35
  %v60 = vunpack.c.l.b16 %v36
  %v61 = vunpack.c.l.b16 %v37
  %v62 = vunpack.c.l.b16 %v38
  %v63 = vpack.c.b16 %v60, %v59
  %v64 = vpack.c.b16 %v62, %v61
  %v83 = vunpack.c.l.b16 %v39
  %v84 = vunpack.c.h.b16 %v39
  %v85 = vunpack.c.l.b16 %v40
  %v86 = vunpack.c.h.b16 %v40
  %v87 = vunpack.c.l.b16 %v41
  %v88 = vunpack.c.h.b16 %v41
  %v89 = vunpack.c.l.b16 %v42
  %v90 = vunpack.c.h.b16 %v42
  %v91 = vunpack.c.l.b16 %v43
  %v92 = vunpack.c.h.b16 %v43
  %v93 = vunpack.c.l.b16 %v44
  %v94 = vunpack.c.h.b16 %v44
  %v95 = vunpack.c.l.b16 %v45
  %v96 = vunpack.c.h.b16 %v45
  %v97 = vunpack.c.l.b16 %v46
  %v98 = vunpack.c.h.b16 %v46
  %v99 = vunpack.c.l.b16 %v47
  %v100 = vunpack.c.h.b16 %v47
  %v101 = vunpack.c.l.b16 %v48
  %v102 = vunpack.c.h.b16 %v48
  %v103 = vunpack.c.l.b16 %v49
  %v104 = vunpack.c.h.b16 %v49
  %v105 = vunpack.c.l.b16 %v50
  %v106 = vunpack.c.h.b16 %v50
  %v107 = vunpack.c.l.b16 %v51
  %v108 = vunpack.c.h.b16 %v51
  %v109 = vunpack.c.l.b16 %v52
  %v110 = vunpack.c.h.b16 %v52
  %v111 = vunpack.c.l.b16 %v53
  %v112 = vunpack.c.h.b16 %v53
  %v113 = vunpack.c.l.b16 %v54
  %v114 = vunpack.c.h.b16 %v54
  %v115 = vpack.c.b16 %v85, %v83
  %v116 = vpack.c.b16 %v86, %v84
  %v117 = vpack.c.b16 %v89, %v87
  %v118 = vpack.c.b16 %v90, %v88
  %v119 = vpack.c.b16 %v93, %v91
  %v120 = vpack.c.b16 %v94, %v92
  %v121 = vpack.c.b16 %v97, %v95
  %v122 = vpack.c.b16 %v98, %v96
  %v123 = vpack.c.b16 %v101, %v99
  %v124 = vpack.c.b16 %v102, %v100
  %v125 = vpack.c.b16 %v105, %v103
  %v126 = vpack.c.b16 %v106, %v104
  %v127 = vpack.c.b16 %v109, %v107
  %v128 = vpack.c.b16 %v110, %v108
  %v129 = vpack.c.b16 %v113, %v111
  %v130 = vpack.c.b16 %v114, %v112
  %147 = vmatprep.subr.bf16.mxu0 %v116
  %148 = vmatpush1.bf16.msra.mxu0 %v115
  %149 = vmatprep.subr.bf16.mxu0 %v118
  %150 = vmatpush1.bf16.msra.mxu0 %v117
  %151 = vmatprep.subr.bf16.mxu0 %v120
  %152 = vmatpush1.bf16.msra.mxu0 %v119
  %153 = vmatprep.subr.bf16.mxu0 %v122
  %154 = vmatpush1.bf16.msra.mxu0 %v121
  %155 = vmatprep.subr.bf16.mxu0 %v124
  %156 = vmatpush1.bf16.msra.mxu0 %v123
  %157 = vmatprep.subr.bf16.mxu0 %v126
  %158 = vmatpush1.bf16.msra.mxu0 %v125
  %159 = vmatprep.subr.bf16.mxu0 %v128
  %160 = vmatpush1.bf16.msra.mxu0 %v127
  %161 = vmatprep.subr.bf16.mxu0 %v130
  %162 = vmatpush1.bf16.msra.mxu0 %v129
  %163 = vmatprep.subr.bf16.mxu0 0
  %164 = vmatpush1.bf16.msra.mxu0 0
  %165 = vmatprep.subr.bf16.mxu0 0
  %166 = vmatpush1.bf16.msra.mxu0 0
  %167 = vmatprep.subr.bf16.mxu0 0
  %168 = vmatpush1.bf16.msra.mxu0 0
  %169 = vmatprep.subr.bf16.mxu0 0
  %170 = vmatpush1.bf16.msra.mxu0 0
  %171 = vmatprep.subr.bf16.mxu0 0
  %172 = vmatpush1.bf16.msra.mxu0 0
  %173 = vmatprep.subr.bf16.mxu0 0
  %174 = vmatpush1.bf16.msra.mxu0 0
  %175 = vmatprep.subr.bf16.mxu0 0
  %176 = vmatpush1.bf16.msra.mxu0 0
  %177 = vmatprep.subr.bf16.mxu0 0
  %178 = vmatpush1.bf16.msra.mxu0 0
  %179 = vmatprep.mubr.bf16.mxu0 0
  %180 = vmatmul.mubr.bf16.gmra.mrb[0].mxu0 %v63
  %v181 = vpop.f32.mrb[0].mxu0
  %v182 = vadd.f32 0.0, %v181
  %v183 = vpop.f32.mrb[0].mxu0
  %v184 = vadd.f32 0.0, %v183
  %v185 = vpop.f32.mrb[0].mxu0
  %v186 = vadd.f32 0.0, %v185
  %v187 = vpop.f32.mrb[0].mxu0
  %v188 = vadd.f32 0.0, %v187
  %189 = vmatprep.mubr.bf16.mxu0 0
  %190 = vmatmul.mubr.bf16.gmra.mrb[0].mxu0 %v64
  %v191 = vpop.f32.mrb[0].mxu0
  %v192 = vadd.f32 0.0, %v191
  %v193 = vpop.f32.mrb[0].mxu0
  %v194 = vadd.f32 0.0, %v193
  %v195 = vpop.f32.mrb[0].mxu0
  %v196 = vadd.f32 0.0, %v195
  %v197 = vpop.f32.mrb[0].mxu0
  %v198 = vadd.f32 0.0, %v197
  %199 = vdwg.mxu0
  %v200 = vadd.f32 %v27, %v182
  %v201 = vadd.f32 %v28, %v184
  %v202 = vadd.f32 %v29, %v186
  %v203 = vadd.f32 %v30, %v188
  %v204 = vadd.f32 %v31, %v192
  %v205 = vadd.f32 %v32, %v194
  %v206 = vadd.f32 %v33, %v196
  %v207 = vadd.f32 %v34, %v198
  %208 = vst [vmem:[#allocation2] sm:$0xff] %v200
  %209 = vst [vmem:[#allocation2 + $0x8] sm:$0xff] %v201
  %210 = vst [vmem:[#allocation2 + $0x10] sm:$0xff] %v202
  %211 = vst [vmem:[#allocation2 + $0x18] sm:$0xff] %v203
  %212 = vst [vmem:[#allocation2 + $0x20] sm:$0xff] %v204
  %213 = vst [vmem:[#allocation2 + $0x28] sm:$0xff] %v205
  %214 = vst [vmem:[#allocation2 + $0x30] sm:$0xff] %v206
  %215 = vst [vmem:[#allocation2 + $0x38] sm:$0xff] %v207
  // Predicated region
  $region18: #{_lambda_.50} parent=0 // pred_check
    %p216 = pneg %p15
  $region19: #{_lambda_.50} parent=0 // pred_check_branch
    %218 = sbr.rel (%p216) target = $region21
  $region20: #{_lambda_.50} parent=0 // pred_region
    %v219 = vld [vmem:[#allocation2] sm:$0xff]
    %v220 = vld [vmem:[#allocation2 + $0x8] sm:$0xff]
    %v221 = vld [vmem:[#allocation2 + $0x10] sm:$0xff]
    %v222 = vld [vmem:[#allocation2 + $0x18] sm:$0xff]
    %v223 = vld [vmem:[#allocation2 + $0x20] sm:$0xff]
    %v224 = vld [vmem:[#allocation2 + $0x28] sm:$0xff]
    %v225 = vld [vmem:[#allocation2 + $0x30] sm:$0xff]
    %v226 = vld [vmem:[#allocation2 + $0x38] sm:$0xff]
    %v227 = vld [vmem:[%s2] sm:$0x3]
    %v229 = vlaneseq
    %v230 = vshrl.u32 %v229, 7
    %v231 = vsub.s32 0, %v230
    %v232 = vrot.slane %v227, %v231
    %v233 = vlaneseq
    %v234 = vshrl.u32 %v233, 7
    %v235 = vsub.s32 1, %v234
    %v236 = vrot.slane %v227, %v235
    %v239 = vadd.f32 %v219, %v232
    %v240 = vadd.f32 %v220, %v236
    %v241 = vadd.f32 %v221, %v232
    %v242 = vadd.f32 %v222, %v236
    %v243 = vadd.f32 %v223, %v232
    %v244 = vadd.f32 %v224, %v236
    %v245 = vadd.f32 %v225, %v232
    %v246 = vadd.f32 %v226, %v236
    %v247 = vpack.c.bf16 %v241, %v239
    %v248 = vpack.c.bf16 %v242, %v240
    %v249 = vpack.c.bf16 %v245, %v243
    %v250 = vpack.c.bf16 %v246, %v244
    %v255 = vunpack.c.l.b16 %v247
    %v256 = vunpack.c.l.b16 %v248
    %v257 = vunpack.c.h.b16 %v247
    %v258 = vunpack.c.h.b16 %v248
    %v259 = vunpack.c.l.b16 %v249
    %v260 = vunpack.c.l.b16 %v250
    %v261 = vunpack.c.h.b16 %v249
    %v262 = vunpack.c.h.b16 %v250
    %v263 = vpack.c.b16 %v256, %v255
    %v264 = vpack.c.b16 %v258, %v257
    %v265 = vpack.c.b16 %v260, %v259
    %v266 = vpack.c.b16 %v262, %v261
    %271 = vst [vmem:[%s3] sm:$0xff] %v263
    %272 = vst [vmem:[%s3 + $0x8] sm:$0xff] %v264
    %273 = vst [vmem:[%s3 + $0x10] sm:$0xff] %v265
    %274 = vst [vmem:[%s3 + $0x18] sm:$0xff] %v266
  $region21: #{_lambda_.50} parent=0 // pred_fallthru
    _
  // Predicated region
  $region22: #{_lambda_.50} parent=0 // pred_check
    _
  $region23: #{_lambda_.50} parent=0 // pred_check_branch
    %276 = sbr.rel (0) target = $region25
  $region24: #{_lambda_.50} parent=0 // pred_region
    _
  $region25: #{_lambda_.50} parent=0 // pred_fallthru
    _
  // Predicated region
  $region26: #{_lambda_.50} parent=0 // pred_check
    _
  $region27: #{_lambda_.50} parent=0 // pred_check_branch
    %278 = sbr.rel (0) target = $region29
  $region28: #{_lambda_.50} parent=0 // pred_region
    _
  $region29: #{_lambda_.50} parent=0 // pred_fallthru
    _

// kernel: _lambda_.51
$region0: #{_lambda_.51}
  #allocation0 [shape = 'u32[]', space=smem, size = 0x4, offset = 0x4, fixed_abs, tag = 'smem constant byte address 0x4 - core index']
  #allocation1 [shape = 'u32[144,128]{1,0:T(1,128)}', space=vmem, size = 0x12000, scoped, tag = 'internal scratch']
  #allocation2 [shape = 'f32[32,256]{1,0:T(8,128)}', space=vmem, size = 0x8000, scoped, tag = 'scratch operand']
  %s0 = inlined_call_operand.vmem [shape: bf16[32,128], index: 0, kind: input, shape index: {}]
  %s1 = inlined_call_operand.vmem [shape: bf16[128,256], index: 1, kind: input, shape index: {}]
  %s2 = inlined_call_operand.vmem [shape: f32[1,256], index: 2, kind: input, shape index: {}]
  %s3 = inlined_call_operand.vmem [shape: bf16[32,256], index: 3, kind: input, shape index: {}]
  %s4 = inlined_call_operand.vmem [shape: bf16[32,256], index: 4, kind: output, shape index: {}]
  %s5 = sld [smem:[#allocation0]]
  $region34: #{_lambda_.51} parent=0
    _
  %s7 = ssub.s32 1, %s5
  %s8 = scalar_select 0, %s7, %s5
  // Predicated region
  $region2: #{_lambda_.51} parent=0 // pred_check
    _
  $region3: #{_lambda_.51} parent=0 // pred_check_branch
    %10 = sbr.rel (0) target = $region5
  $region4: #{_lambda_.51} parent=0 // pred_region
    _
  $region5: #{_lambda_.51} parent=0 // pred_fallthru
    _
  // Predicated region
  $region6: #{_lambda_.51} parent=0 // pred_check
    _
  $region7: #{_lambda_.51} parent=0 // pred_check_branch
    %12 = sbr.rel (0) target = $region9
  $region8: #{_lambda_.51} parent=0 // pred_region
    _
  $region9: #{_lambda_.51} parent=0 // pred_fallthru
    _
  // Predicated region
  $region10: #{_lambda_.51} parent=0 // pred_check
    _
  $region11: #{_lambda_.51} parent=0 // pred_check_branch
    %14 = sbr.rel (0) target = $region13
  $region12: #{_lambda_.51} parent=0 // pred_region
    _
  $region13: #{_lambda_.51} parent=0 // pred_fallthru
    _
  // Predicated region
  $region14: #{_lambda_.51} parent=0 // pred_check
    _
  $region15: #{_lambda_.51} parent=0 // pred_check_branch
    %16 = sbr.rel (0) target = $region17
  $region16: #{_lambda_.51} parent=0 // pred_region
    _
  $region17: #{_lambda_.51} parent=0 // pred_fallthru
    _
  %p18 = scmp.eq.s32.totalorder 0, 0
  // Predicated region
  $region18: #{_lambda_.51} parent=0 // pred_check
    %p19 = pneg %p18
  $region19: #{_lambda_.51} parent=0 // pred_check_branch
    %21 = sbr.rel (%p19) target = $region21
  $region20: #{_lambda_.51} parent=0 // pred_region
    %22 = vst [vmem:[#allocation2] sm:$0xff] 0.0
    %23 = vst [vmem:[#allocation2 + $0x8] sm:$0xff] 0.0
    %24 = vst [vmem:[#allocation2 + $0x10] sm:$0xff] 0.0
    %25 = vst [vmem:[#allocation2 + $0x18] sm:$0xff] 0.0
    %26 = vst [vmem:[#allocation2 + $0x20] sm:$0xff] 0.0
    %27 = vst [vmem:[#allocation2 + $0x28] sm:$0xff] 0.0
    %28 = vst [vmem:[#allocation2 + $0x30] sm:$0xff] 0.0
    %29 = vst [vmem:[#allocation2 + $0x38] sm:$0xff] 0.0
  $region21: #{_lambda_.51} parent=0 // pred_fallthru
    _
  %v30 = vld [vmem:[#allocation2] sm:$0xff]
  %v31 = vld [vmem:[#allocation2 + $0x8] sm:$0xff]
  %v32 = vld [vmem:[#allocation2 + $0x10] sm:$0xff]
  %v33 = vld [vmem:[#allocation2 + $0x18] sm:$0xff]
  %v34 = vld [vmem:[#allocation2 + $0x20] sm:$0xff]
  %v35 = vld [vmem:[#allocation2 + $0x28] sm:$0xff]
  %v36 = vld [vmem:[#allocation2 + $0x30] sm:$0xff]
  %v37 = vld [vmem:[#allocation2 + $0x38] sm:$0xff]
  %v38 = vld [vmem:[%s0] sm:$0xf]
  %v39 = vld [vmem:[%s0 + $0x4] sm:$0xf]
  %v40 = vld [vmem:[%s0 + $0x8] sm:$0xf]
  %v41 = vld [vmem:[%s0 + $0xc] sm:$0xf]
  %v42 = vld [vmem:[%s1] sm:$0xff]
  %v43 = vld [vmem:[%s1 + $0x8] sm:$0xff]
  %v44 = vld [vmem:[%s1 + $0x10] sm:$0xff]
  %v45 = vld [vmem:[%s1 + $0x18] sm:$0xff]
  %v46 = vld [vmem:[%s1 + $0x20] sm:$0xff]
  %v47 = vld [vmem:[%s1 + $0x28] sm:$0xff]
  %v48 = vld [vmem:[%s1 + $0x30] sm:$0xff]
  %v49 = vld [vmem:[%s1 + $0x38] sm:$0xff]
  %v50 = vld [vmem:[%s1 + $0x40] sm:$0xff]
  %v51 = vld [vmem:[%s1 + $0x48] sm:$0xff]
  %v52 = vld [vmem:[%s1 + $0x50] sm:$0xff]
  %v53 = vld [vmem:[%s1 + $0x58] sm:$0xff]
  %v54 = vld [vmem:[%s1 + $0x60] sm:$0xff]
  %v55 = vld [vmem:[%s1 + $0x68] sm:$0xff]
  %v56 = vld [vmem:[%s1 + $0x70] sm:$0xff]
  %v57 = vld [vmem:[%s1 + $0x78] sm:$0xff]
  %v62 = vunpack.c.l.b16 %v38
  %v63 = vunpack.c.l.b16 %v39
  %v64 = vunpack.c.l.b16 %v40
  %v65 = vunpack.c.l.b16 %v41
  %v66 = vpack.c.b16 %v63, %v62
  %v67 = vpack.c.b16 %v65, %v64
  %v86 = vunpack.c.l.b16 %v42
  %v87 = vunpack.c.h.b16 %v42
  %v88 = vunpack.c.l.b16 %v43
  %v89 = vunpack.c.h.b16 %v43
  %v90 = vunpack.c.l.b16 %v44
  %v91 = vunpack.c.h.b16 %v44
  %v92 = vunpack.c.l.b16 %v45
  %v93 = vunpack.c.h.b16 %v45
  %v94 = vunpack.c.l.b16 %v46
  %v95 = vunpack.c.h.b16 %v46
  %v96 = vunpack.c.l.b16 %v47
  %v97 = vunpack.c.h.b16 %v47
  %v98 = vunpack.c.l.b16 %v48
  %v99 = vunpack.c.h.b16 %v48
  %v100 = vunpack.c.l.b16 %v49
  %v101 = vunpack.c.h.b16 %v49
  %v102 = vunpack.c.l.b16 %v50
  %v103 = vunpack.c.h.b16 %v50
  %v104 = vunpack.c.l.b16 %v51
  %v105 = vunpack.c.h.b16 %v51
  %v106 = vunpack.c.l.b16 %v52
  %v107 = vunpack.c.h.b16 %v52
  %v108 = vunpack.c.l.b16 %v53
  %v109 = vunpack.c.h.b16 %v53
  %v110 = vunpack.c.l.b16 %v54
  %v111 = vunpack.c.h.b16 %v54
  %v112 = vunpack.c.l.b16 %v55
  %v113 = vunpack.c.h.b16 %v55
  %v114 = vunpack.c.l.b16 %v56
  %v115 = vunpack.c.h.b16 %v56
  %v116 = vunpack.c.l.b16 %v57
  %v117 = vunpack.c.h.b16 %v57
  %v118 = vpack.c.b16 %v88, %v86
  %v119 = vpack.c.b16 %v89, %v87
  %v120 = vpack.c.b16 %v92, %v90
  %v121 = vpack.c.b16 %v93, %v91
  %v122 = vpack.c.b16 %v96, %v94
  %v123 = vpack.c.b16 %v97, %v95
  %v124 = vpack.c.b16 %v100, %v98
  %v125 = vpack.c.b16 %v101, %v99
  %v126 = vpack.c.b16 %v104, %v102
  %v127 = vpack.c.b16 %v105, %v103
  %v128 = vpack.c.b16 %v108, %v106
  %v129 = vpack.c.b16 %v109, %v107
  %v130 = vpack.c.b16 %v112, %v110
  %v131 = vpack.c.b16 %v113, %v111
  %v132 = vpack.c.b16 %v116, %v114
  %v133 = vpack.c.b16 %v117, %v115
  %150 = vmatprep.subr.bf16.mxu0 %v119
  %151 = vmatpush1.bf16.msra.mxu0 %v118
  %152 = vmatprep.subr.bf16.mxu0 %v121
  %153 = vmatpush1.bf16.msra.mxu0 %v120
  %154 = vmatprep.subr.bf16.mxu0 %v123
  %155 = vmatpush1.bf16.msra.mxu0 %v122
  %156 = vmatprep.subr.bf16.mxu0 %v125
  %157 = vmatpush1.bf16.msra.mxu0 %v124
  %158 = vmatprep.subr.bf16.mxu0 %v127
  %159 = vmatpush1.bf16.msra.mxu0 %v126
  %160 = vmatprep.subr.bf16.mxu0 %v129
  %161 = vmatpush1.bf16.msra.mxu0 %v128
  %162 = vmatprep.subr.bf16.mxu0 %v131
  %163 = vmatpush1.bf16.msra.mxu0 %v130
  %164 = vmatprep.subr.bf16.mxu0 %v133
  %165 = vmatpush1.bf16.msra.mxu0 %v132
  %166 = vmatprep.subr.bf16.mxu0 0
  %167 = vmatpush1.bf16.msra.mxu0 0
  %168 = vmatprep.subr.bf16.mxu0 0
  %169 = vmatpush1.bf16.msra.mxu0 0
  %170 = vmatprep.subr.bf16.mxu0 0
  %171 = vmatpush1.bf16.msra.mxu0 0
  %172 = vmatprep.subr.bf16.mxu0 0
  %173 = vmatpush1.bf16.msra.mxu0 0
  %174 = vmatprep.subr.bf16.mxu0 0
  %175 = vmatpush1.bf16.msra.mxu0 0
  %176 = vmatprep.subr.bf16.mxu0 0
  %177 = vmatpush1.bf16.msra.mxu0 0
  %178 = vmatprep.subr.bf16.mxu0 0
  %179 = vmatpush1.bf16.msra.mxu0 0
  %180 = vmatprep.subr.bf16.mxu0 0
  %181 = vmatpush1.bf16.msra.mxu0 0
  %182 = vmatprep.mubr.bf16.mxu0 0
  %183 = vmatmul.mubr.bf16.gmra.mrb[0].mxu0 %v66
  %v184 = vpop.f32.mrb[0].mxu0
  %v185 = vadd.f32 0.0, %v184
  %v186 = vpop.f32.mrb[0].mxu0
  %v187 = vadd.f32 0.0, %v186
  %v188 = vpop.f32.mrb[0].mxu0
  %v189 = vadd.f32 0.0, %v188
  %v190 = vpop.f32.mrb[0].mxu0
  %v191 = vadd.f32 0.0, %v190
  %192 = vmatprep.mubr.bf16.mxu0 0
  %193 = vmatmul.mubr.bf16.gmra.mrb[0].mxu0 %v67
  %v194 = vpop.f32.mrb[0].mxu0
  %v195 = vadd.f32 0.0, %v194
  %v196 = vpop.f32.mrb[0].mxu0
  %v197 = vadd.f32 0.0, %v196
  %v198 = vpop.f32.mrb[0].mxu0
  %v199 = vadd.f32 0.0, %v198
  %v200 = vpop.f32.mrb[0].mxu0
  %v201 = vadd.f32 0.0, %v200
  %202 = vdwg.mxu0
  %v203 = vadd.f32 %v30, %v185
  %v204 = vadd.f32 %v31, %v187
  %v205 = vadd.f32 %v32, %v189
  %v206 = vadd.f32 %v33, %v191
  %v207 = vadd.f32 %v34, %v195
  %v208 = vadd.f32 %v35, %v197
  %v209 = vadd.f32 %v36, %v199
  %v210 = vadd.f32 %v37, %v201
  %211 = vst [vmem:[#allocation2] sm:$0xff] %v203
  %212 = vst [vmem:[#allocation2 + $0x8] sm:$0xff] %v204
  %213 = vst [vmem:[#allocation2 + $0x10] sm:$0xff] %v205
  %214 = vst [vmem:[#allocation2 + $0x18] sm:$0xff] %v206
  %215 = vst [vmem:[#allocation2 + $0x20] sm:$0xff] %v207
  %216 = vst [vmem:[#allocation2 + $0x28] sm:$0xff] %v208
  %217 = vst [vmem:[#allocation2 + $0x30] sm:$0xff] %v209
  %218 = vst [vmem:[#allocation2 + $0x38] sm:$0xff] %v210
  // Predicated region
  $region22: #{_lambda_.51} parent=0 // pred_check
    %p219 = pneg %p18
  $region23: #{_lambda_.51} parent=0 // pred_check_branch
    %221 = sbr.rel (%p219) target = $region25
  $region24: #{_lambda_.51} parent=0 // pred_region
    %v222 = vld [vmem:[#allocation2] sm:$0xff]
    %v223 = vld [vmem:[#allocation2 + $0x8] sm:$0xff]
    %v224 = vld [vmem:[#allocation2 + $0x10] sm:$0xff]
    %v225 = vld [vmem:[#allocation2 + $0x18] sm:$0xff]
    %v226 = vld [vmem:[#allocation2 + $0x20] sm:$0xff]
    %v227 = vld [vmem:[#allocation2 + $0x28] sm:$0xff]
    %v228 = vld [vmem:[#allocation2 + $0x30] sm:$0xff]
    %v229 = vld [vmem:[#allocation2 + $0x38] sm:$0xff]
    %v230 = vld [vmem:[%s2] sm:$0x3]
    %v232 = vlaneseq
    %v233 = vshrl.u32 %v232, 7
    %v234 = vsub.s32 0, %v233
    %v235 = vrot.slane %v230, %v234
    %v236 = vlaneseq
    %v237 = vshrl.u32 %v236, 7
    %v238 = vsub.s32 1, %v237
    %v239 = vrot.slane %v230, %v238
    %v242 = vadd.f32 %v222, %v235
    %v243 = vadd.f32 %v223, %v239
    %v244 = vadd.f32 %v224, %v235
    %v245 = vadd.f32 %v225, %v239
    %v246 = vadd.f32 %v226, %v235
    %v247 = vadd.f32 %v227, %v239
    %v248 = vadd.f32 %v228, %v235
    %v249 = vadd.f32 %v229, %v239
    %v250 = vld [vmem:[%s3] sm:$0xff]
    %v251 = vld [vmem:[%s3 + $0x8] sm:$0xff]
    %v252 = vld [vmem:[%s3 + $0x10] sm:$0xff]
    %v253 = vld [vmem:[%s3 + $0x18] sm:$0xff]
    %v254 = vunpack.c.l.bf16 %v250
    %v255 = vunpack.c.h.bf16 %v250
    %v256 = vunpack.c.l.bf16 %v251
    %v257 = vunpack.c.h.bf16 %v251
    %v258 = vunpack.c.l.bf16 %v252
    %v259 = vunpack.c.h.bf16 %v252
    %v260 = vunpack.c.l.bf16 %v253
    %v261 = vunpack.c.h.bf16 %v253
    %v262 = vadd.f32 %v242, %v254
    %v263 = vadd.f32 %v243, %v255
    %v264 = vadd.f32 %v244, %v256
    %v265 = vadd.f32 %v245, %v257
    %v266 = vadd.f32 %v246, %v258
    %v267 = vadd.f32 %v247, %v259
    %v268 = vadd.f32 %v248, %v260
    %v269 = vadd.f32 %v249, %v261
    %v270 = vmax.f32 %v262, 0.0
    %v271 = vmax.f32 %v263, 0.0
    %v272 = vmax.f32 %v264, 0.0
    %v273 = vmax.f32 %v265, 0.0
    %v274 = vmax.f32 %v266, 0.0
    %v275 = vmax.f32 %v267, 0.0
    %v276 = vmax.f32 %v268, 0.0
    %v277 = vmax.f32 %v269, 0.0
    %v278 = vpack.c.bf16 %v272, %v270
    %v279 = vpack.c.bf16 %v273, %v271
    %v280 = vpack.c.bf16 %v276, %v274
    %v281 = vpack.c.bf16 %v277, %v275
    %v286 = vunpack.c.l.b16 %v278
    %v287 = vunpack.c.l.b16 %v279
    %v288 = vunpack.c.h.b16 %v278
    %v289 = vunpack.c.h.b16 %v279
    %v290 = vunpack.c.l.b16 %v280
    %v291 = vunpack.c.l.b16 %v281
    %v292 = vunpack.c.h.b16 %v280
    %v293 = vunpack.c.h.b16 %v281
    %v294 = vpack.c.b16 %v287, %v286
    %v295 = vpack.c.b16 %v289, %v288
    %v296 = vpack.c.b16 %v291, %v290
    %v297 = vpack.c.b16 %v293, %v292
    %302 = vst [vmem:[%s4] sm:$0xff] %v294
    %303 = vst [vmem:[%s4 + $0x8] sm:$0xff] %v295
    %304 = vst [vmem:[%s4 + $0x10] sm:$0xff] %v296
    %305 = vst [vmem:[%s4 + $0x18] sm:$0xff] %v297
  $region25: #{_lambda_.51} parent=0 // pred_fallthru
    _
  // Predicated region
  $region26: #{_lambda_.51} parent=0 // pred_check
    _
  $region27: #{_lambda_.51} parent=0 // pred_check_branch
    %307 = sbr.rel (0) target = $region29
  $region28: #{_lambda_.51} parent=0 // pred_region
    _
  $region29: #{_lambda_.51} parent=0 // pred_fallthru
    _
  // Predicated region
  $region30: #{_lambda_.51} parent=0 // pred_check
    _
  $region31: #{_lambda_.51} parent=0 // pred_check_branch
    %309 = sbr.rel (0) target = $region33
  $region32: #{_lambda_.51} parent=0 // pred_region
    _
  $region33: #{_lambda_.51} parent=0 // pred_fallthru
    _

// kernel: _lambda_.52
$region0: #{_lambda_.52}
  #allocation0 [shape = 'u32[]', space=smem, size = 0x4, offset = 0x4, fixed_abs, tag = 'smem constant byte address 0x4 - core index']
  #allocation1 [shape = 'u32[144,128]{1,0:T(1,128)}', space=vmem, size = 0x12000, scoped, tag = 'internal scratch']
  #allocation2 [shape = 'f32[32,128]{1,0:T(8,128)}', space=vmem, size = 0x4000, scoped, tag = 'scratch operand']
  %s0 = inlined_call_operand.vmem [shape: bf16[32,256], index: 0, kind: input, shape index: {}]
  %s1 = inlined_call_operand.vmem [shape: bf16[256,128], index: 1, kind: input, shape index: {}]
  %s2 = inlined_call_operand.vmem [shape: f32[1,128], index: 2, kind: input, shape index: {}]
  %s3 = inlined_call_operand.vmem [shape: bf16[32,128], index: 3, kind: output, shape index: {}]
  %s4 = sld [smem:[#allocation0]]
  $region30: #{_lambda_.52} parent=0
    _
  %s6 = ssub.s32 1, %s4
  %s7 = scalar_select 0, %s6, %s4
  // Predicated region
  $region2: #{_lambda_.52} parent=0 // pred_check
    _
  $region3: #{_lambda_.52} parent=0 // pred_check_branch
    %9 = sbr.rel (0) target = $region5
  $region4: #{_lambda_.52} parent=0 // pred_region
    _
  $region5: #{_lambda_.52} parent=0 // pred_fallthru
    _
  // Predicated region
  $region6: #{_lambda_.52} parent=0 // pred_check
    _
  $region7: #{_lambda_.52} parent=0 // pred_check_branch
    %11 = sbr.rel (0) target = $region9
  $region8: #{_lambda_.52} parent=0 // pred_region
    _
  $region9: #{_lambda_.52} parent=0 // pred_fallthru
    _
  // Predicated region
  $region10: #{_lambda_.52} parent=0 // pred_check
    _
  $region11: #{_lambda_.52} parent=0 // pred_check_branch
    %13 = sbr.rel (0) target = $region13
  $region12: #{_lambda_.52} parent=0 // pred_region
    _
  $region13: #{_lambda_.52} parent=0 // pred_fallthru
    _
  %p15 = scmp.eq.s32.totalorder 0, 0
  // Predicated region
  $region14: #{_lambda_.52} parent=0 // pred_check
    %p16 = pneg %p15
  $region15: #{_lambda_.52} parent=0 // pred_check_branch
    %18 = sbr.rel (%p16) target = $region17
  $region16: #{_lambda_.52} parent=0 // pred_region
    %19 = vst [vmem:[#allocation2] sm:$0xff] 0.0
    %20 = vst [vmem:[#allocation2 + $0x8] sm:$0xff] 0.0
    %21 = vst [vmem:[#allocation2 + $0x10] sm:$0xff] 0.0
    %22 = vst [vmem:[#allocation2 + $0x18] sm:$0xff] 0.0
  $region17: #{_lambda_.52} parent=0 // pred_fallthru
    _
  %v23 = vld [vmem:[#allocation2] sm:$0xff]
  %v24 = vld [vmem:[#allocation2 + $0x8] sm:$0xff]
  %v25 = vld [vmem:[#allocation2 + $0x10] sm:$0xff]
  %v26 = vld [vmem:[#allocation2 + $0x18] sm:$0xff]
  %v27 = vld [vmem:[%s0] sm:$0xff]
  %v28 = vld [vmem:[%s0 + $0x8] sm:$0xff]
  %v29 = vld [vmem:[%s0 + $0x10] sm:$0xff]
  %v30 = vld [vmem:[%s0 + $0x18] sm:$0xff]
  %v31 = vld [vmem:[%s1] sm:$0xf]
  %v32 = vld [vmem:[%s1 + $0x4] sm:$0xf]
  %v33 = vld [vmem:[%s1 + $0x8] sm:$0xf]
  %v34 = vld [vmem:[%s1 + $0xc] sm:$0xf]
  %v35 = vld [vmem:[%s1 + $0x10] sm:$0xf]
  %v36 = vld [vmem:[%s1 + $0x14] sm:$0xf]
  %v37 = vld [vmem:[%s1 + $0x18] sm:$0xf]
  %v38 = vld [vmem:[%s1 + $0x1c] sm:$0xf]
  %v39 = vld [vmem:[%s1 + $0x20] sm:$0xf]
  %v40 = vld [vmem:[%s1 + $0x24] sm:$0xf]
  %v41 = vld [vmem:[%s1 + $0x28] sm:$0xf]
  %v42 = vld [vmem:[%s1 + $0x2c] sm:$0xf]
  %v43 = vld [vmem:[%s1 + $0x30] sm:$0xf]
  %v44 = vld [vmem:[%s1 + $0x34] sm:$0xf]
  %v45 = vld [vmem:[%s1 + $0x38] sm:$0xf]
  %v46 = vld [vmem:[%s1 + $0x3c] sm:$0xf]
  %v47 = vld [vmem:[%s1 + $0x40] sm:$0xf]
  %v48 = vld [vmem:[%s1 + $0x44] sm:$0xf]
  %v49 = vld [vmem:[%s1 + $0x48] sm:$0xf]
  %v50 = vld [vmem:[%s1 + $0x4c] sm:$0xf]
  %v51 = vld [vmem:[%s1 + $0x50] sm:$0xf]
  %v52 = vld [vmem:[%s1 + $0x54] sm:$0xf]
  %v53 = vld [vmem:[%s1 + $0x58] sm:$0xf]
  %v54 = vld [vmem:[%s1 + $0x5c] sm:$0xf]
  %v55 = vld [vmem:[%s1 + $0x60] sm:$0xf]
  %v56 = vld [vmem:[%s1 + $0x64] sm:$0xf]
  %v57 = vld [vmem:[%s1 + $0x68] sm:$0xf]
  %v58 = vld [vmem:[%s1 + $0x6c] sm:$0xf]
  %v59 = vld [vmem:[%s1 + $0x70] sm:$0xf]
  %v60 = vld [vmem:[%s1 + $0x74] sm:$0xf]
  %v61 = vld [vmem:[%s1 + $0x78] sm:$0xf]
  %v62 = vld [vmem:[%s1 + $0x7c] sm:$0xf]
  %v67 = vunpack.c.l.b16 %v27
  %v68 = vunpack.c.h.b16 %v27
  %v69 = vunpack.c.l.b16 %v28
  %v70 = vunpack.c.h.b16 %v28
  %v71 = vunpack.c.l.b16 %v29
  %v72 = vunpack.c.h.b16 %v29
  %v73 = vunpack.c.l.b16 %v30
  %v74 = vunpack.c.h.b16 %v30
  %v75 = vpack.c.b16 %v69, %v67
  %v76 = vpack.c.b16 %v70, %v68
  %v77 = vpack.c.b16 %v73, %v71
  %v78 = vpack.c.b16 %v74, %v72
  %v115 = vunpack.c.l.b16 %v31
  %v116 = vunpack.c.l.b16 %v32
  %v117 = vunpack.c.l.b16 %v33
  %v118 = vunpack.c.l.b16 %v34
  %v119 = vunpack.c.l.b16 %v35
  %v120 = vunpack.c.l.b16 %v36
  %v121 = vunpack.c.l.b16 %v37
  %v122 = vunpack.c.l.b16 %v38
  %v123 = vunpack.c.l.b16 %v39
  %v124 = vunpack.c.l.b16 %v40
  %v125 = vunpack.c.l.b16 %v41
  %v126 = vunpack.c.l.b16 %v42
  %v127 = vunpack.c.l.b16 %v43
  %v128 = vunpack.c.l.b16 %v44
  %v129 = vunpack.c.l.b16 %v45
  %v130 = vunpack.c.l.b16 %v46
  %v131 = vunpack.c.l.b16 %v47
  %v132 = vunpack.c.l.b16 %v48
  %v133 = vunpack.c.l.b16 %v49
  %v134 = vunpack.c.l.b16 %v50
  %v135 = vunpack.c.l.b16 %v51
  %v136 = vunpack.c.l.b16 %v52
  %v137 = vunpack.c.l.b16 %v53
  %v138 = vunpack.c.l.b16 %v54
  %v139 = vunpack.c.l.b16 %v55
  %v140 = vunpack.c.l.b16 %v56
  %v141 = vunpack.c.l.b16 %v57
  %v142 = vunpack.c.l.b16 %v58
  %v143 = vunpack.c.l.b16 %v59
  %v144 = vunpack.c.l.b16 %v60
  %v145 = vunpack.c.l.b16 %v61
  %v146 = vunpack.c.l.b16 %v62
  %v147 = vpack.c.b16 %v116, %v115
  %v148 = vpack.c.b16 %v118, %v117
  %v149 = vpack.c.b16 %v120, %v119
  %v150 = vpack.c.b16 %v122, %v121
  %v151 = vpack.c.b16 %v124, %v123
  %v152 = vpack.c.b16 %v126, %v125
  %v153 = vpack.c.b16 %v128, %v127
  %v154 = vpack.c.b16 %v130, %v129
  %v155 = vpack.c.b16 %v132, %v131
  %v156 = vpack.c.b16 %v134, %v133
  %v157 = vpack.c.b16 %v136, %v135
  %v158 = vpack.c.b16 %v138, %v137
  %v159 = vpack.c.b16 %v140, %v139
  %v160 = vpack.c.b16 %v142, %v141
  %v161 = vpack.c.b16 %v144, %v143
  %v162 = vpack.c.b16 %v146, %v145
  %179 = vmatprep.subr.bf16.mxu0 0
  %180 = vmatpush1.bf16.msra.mxu0 %v147
  %181 = vmatprep.subr.bf16.mxu0 0
  %182 = vmatpush1.bf16.msra.mxu0 %v148
  %183 = vmatprep.subr.bf16.mxu0 0
  %184 = vmatpush1.bf16.msra.mxu0 %v149
  %185 = vmatprep.subr.bf16.mxu0 0
  %186 = vmatpush1.bf16.msra.mxu0 %v150
  %187 = vmatprep.subr.bf16.mxu0 0
  %188 = vmatpush1.bf16.msra.mxu0 %v151
  %189 = vmatprep.subr.bf16.mxu0 0
  %190 = vmatpush1.bf16.msra.mxu0 %v152
  %191 = vmatprep.subr.bf16.mxu0 0
  %192 = vmatpush1.bf16.msra.mxu0 %v153
  %193 = vmatprep.subr.bf16.mxu0 0
  %194 = vmatpush1.bf16.msra.mxu0 %v154
  %195 = vmatprep.subr.bf16.mxu0 0
  %196 = vmatpush1.bf16.msra.mxu0 %v155
  %197 = vmatprep.subr.bf16.mxu0 0
  %198 = vmatpush1.bf16.msra.mxu0 %v156
  %199 = vmatprep.subr.bf16.mxu0 0
  %200 = vmatpush1.bf16.msra.mxu0 %v157
  %201 = vmatprep.subr.bf16.mxu0 0
  %202 = vmatpush1.bf16.msra.mxu0 %v158
  %203 = vmatprep.subr.bf16.mxu0 0
  %204 = vmatpush1.bf16.msra.mxu0 %v159
  %205 = vmatprep.subr.bf16.mxu0 0
  %206 = vmatpush1.bf16.msra.mxu0 %v160
  %207 = vmatprep.subr.bf16.mxu0 0
  %208 = vmatpush1.bf16.msra.mxu0 %v161
  %209 = vmatprep.subr.bf16.mxu0 0
  %210 = vmatpush1.bf16.msra.mxu0 %v162
  %211 = vmatprep.mubr.bf16.mxu0 %v76
  %212 = vmatmul.mubr.bf16.gmra.mrb[0].mxu0 %v75
  %v213 = vpop.f32.mrb[0].mxu0
  %v214 = vadd.f32 0.0, %v213
  %v215 = vpop.f32.mrb[0].mxu0
  %v216 = vpop.f32.mrb[0].mxu0
  %v217 = vadd.f32 0.0, %v216
  %v218 = vpop.f32.mrb[0].mxu0
  %219 = vmatprep.mubr.bf16.mxu0 %v78
  %220 = vmatmul.mubr.bf16.gmra.mrb[0].mxu0 %v77
  %v221 = vpop.f32.mrb[0].mxu0
  %v222 = vadd.f32 0.0, %v221
  %v223 = vpop.f32.mrb[0].mxu0
  %v224 = vpop.f32.mrb[0].mxu0
  %v225 = vadd.f32 0.0, %v224
  %v226 = vpop.f32.mrb[0].mxu0
  %227 = vdwg.mxu0
  %v228 = vadd.f32 %v23, %v214
  %v229 = vadd.f32 %v24, %v217
  %v230 = vadd.f32 %v25, %v222
  %v231 = vadd.f32 %v26, %v225
  %232 = vst [vmem:[#allocation2] sm:$0xff] %v228
  %233 = vst [vmem:[#allocation2 + $0x8] sm:$0xff] %v229
  %234 = vst [vmem:[#allocation2 + $0x10] sm:$0xff] %v230
  %235 = vst [vmem:[#allocation2 + $0x18] sm:$0xff] %v231
  // Predicated region
  $region18: #{_lambda_.52} parent=0 // pred_check
    %p236 = pneg %p15
  $region19: #{_lambda_.52} parent=0 // pred_check_branch
    %238 = sbr.rel (%p236) target = $region21
  $region20: #{_lambda_.52} parent=0 // pred_region
    %v239 = vld [vmem:[#allocation2] sm:$0xff]
    %v240 = vld [vmem:[#allocation2 + $0x8] sm:$0xff]
    %v241 = vld [vmem:[#allocation2 + $0x10] sm:$0xff]
    %v242 = vld [vmem:[#allocation2 + $0x18] sm:$0xff]
    %v243 = vld [vmem:[%s2] sm:$0x1]
    %v245 = vlaneseq
    %v246 = vshrl.u32 %v245, 7
    %v247 = vsub.s32 0, %v246
    %v248 = vrot.slane %v243, %v247
    %v250 = vadd.f32 %v239, %v248
    %v251 = vadd.f32 %v240, %v248
    %v252 = vadd.f32 %v241, %v248
    %v253 = vadd.f32 %v242, %v248
    %v254 = vmax.f32 %v250, 0.0
    %v255 = vmax.f32 %v251, 0.0
    %v256 = vmax.f32 %v252, 0.0
    %v257 = vmax.f32 %v253, 0.0
    %v258 = vpack.c.bf16 %v255, %v254
    %v259 = vpack.c.bf16 %v257, %v256
    %v262 = vunpack.c.l.b16 %v258
    %v263 = vunpack.c.h.b16 %v258
    %v264 = vunpack.c.l.b16 %v259
    %v265 = vunpack.c.h.b16 %v259
    %v266 = vpack.c.b16 %v262, %v262
    %v267 = vpack.c.b16 %v263, %v263
    %v268 = vpack.c.b16 %v264, %v264
    %v269 = vpack.c.b16 %v265, %v265
    %274 = vst [vmem:[%s3] sm:$0xf] %v266
    %275 = vst [vmem:[%s3 + $0x4] sm:$0xf] %v267
    %276 = vst [vmem:[%s3 + $0x8] sm:$0xf] %v268
    %277 = vst [vmem:[%s3 + $0xc] sm:$0xf] %v269
  $region21: #{_lambda_.52} parent=0 // pred_fallthru
    _
  // Predicated region
  $region22: #{_lambda_.52} parent=0 // pred_check
    _
  $region23: #{_lambda_.52} parent=0 // pred_check_branch
    %279 = sbr.rel (0) target = $region25
  $region24: #{_lambda_.52} parent=0 // pred_region
    _
  $region25: #{_lambda_.52} parent=0 // pred_fallthru
    _
  // Predicated region
  $region26: #{_lambda_.52} parent=0 // pred_check
    _
  $region27: #{_lambda_.52} parent=0 // pred_check_branch
    %281 = sbr.rel (0) target = $region29
  $region28: #{_lambda_.52} parent=0 // pred_region
    _
  $region29: #{_lambda_.52} parent=0 // pred_fallthru
    _

// kernel: _lambda_.60
$region0: #{_lambda_.60}
  #allocation0 [shape = 'u32[]', space=smem, size = 0x4, offset = 0x4, fixed_abs, tag = 'smem constant byte address 0x4 - core index']
  #allocation1 [shape = 'u32[144,128]{1,0:T(1,128)}', space=vmem, size = 0x12000, scoped, tag = 'internal scratch']
  #allocation2 [shape = 'f32[8,256]{1,0:T(8,128)}', space=vmem, size = 0x2000, scoped, tag = 'scratch operand']
  %s0 = inlined_call_operand.vmem [shape: bf16[8,256], index: 0, kind: input, shape index: {}]
  %s1 = inlined_call_operand.vmem [shape: bf16[256,512], index: 1, kind: input, shape index: {}]
  %s2 = inlined_call_operand.vmem [shape: f32[1,512], index: 2, kind: input, shape index: {}]
  %s3 = inlined_call_operand.vmem [shape: bf16[8,512], index: 3, kind: output, shape index: {}]
  %s4 = sld [smem:[#allocation0]]
  $region91: #{_lambda_.60} parent=0
    _
  %s6 = ssub.s32 1, %s4
  %s7 = scalar_select 0, %s6, %s4
  $region1: #{_lambda_.60} parent=0
    #allocation3 [shape = 'u8[262144]{0}', space=vmem, size = 0x40000, scoped, tag = 'input window, operand 1']
    loop: start=0, step=1, limit=4
    $region2: #{_lambda_.60} parent=1 // loop_pre_header
      _
    $region3: #{_lambda_.60} parent=1 // loop_header
      %s9 = sphi 0, %s13
      %p10 = scmp.ge.s32.totalorder %s9, 4
      %s16 = sphi 0, %s35
      %s17 = sphi 0, %s31
      %s18 = sphi 0, %s27
      %s19 = sphi 0, %s16
      %s20 = sphi 0, %s17
      %s21 = sphi 0, %s18
      %s22 = sphi 0, %s19
      %s23 = sphi 0, %s20
      %s24 = sphi 0, %s21
      %s40 = sphi 0, %s42
      %s43 = sphi 0, %s40
      %s44 = sphi 0, %s43
      %s60 = sphi 0, %s44
      %s68 = sphi 0, %s70
      %s71 = sphi 0, %s68
      %s72 = sphi 0, %s71
      %s88 = sphi 0, %s72
      %s94 = sphi 0, %s96
      %s97 = sphi 0, %s94
      %s98 = sphi 0, %s97
      %s114 = sphi 0, %s98
      %s122 = sphi 0, %s124
      %s125 = sphi 0, %s122
      %s126 = sphi 0, %s125
      %s142 = sphi 0, %s126
    $region4: #{_lambda_.60} parent=1 // loop_header_branch
      %12 = sbr.rel (%p10) target = $region8
    $region5: #{_lambda_.60} parent=1 // loop_body
      %s14 = ssub.s32 %s9, 1
      %s15 = ssub.s32 %s9, 2
      %s25 = sadd.s32 1, %s18
      %p26 = scmp.ge.s32.totalorder %s25, 1
      %s27 = scalar_select %p26, 0, %s25
      %s28 = sadd.s32 1, %s17
      %s29 = scalar_select %p26, %s28, %s17
      %p30 = scmp.ge.s32.totalorder %s29, 2
      %s31 = scalar_select %p30, 0, %s29
      %s32 = sadd.s32 1, %s16
      %s33 = scalar_select %p30, %s32, %s16
      %p34 = scmp.ge.s32.totalorder %s33, 1
      %s35 = scalar_select %p34, 0, %s33
      %s36 = ssub.s32 %s16, %s35
      %s37 = ssub.s32 %s18, %s27
      %s38 = sor.u32 %s36, %s37
      %p39 = scmp.eq.s32.totalorder %s38, 0
      %s41 = sadd.s32 %s40, 1
      %s42 = scalar_select %p39, %s40, %s41
      %p45 = pneg %p39
      %p46 = scmp.eq.s32.totalorder %s9, 1
      %p47 = por %p45, %p46
      %p48 = scmp.ne.s32.totalorder %s40, %s43
      %p49 = scmp.eq.s32.totalorder %s9, 0
      %p50 = por %p48, %p49
      %p51 = scmp.ne.s32.totalorder %s40, %s43
      %p52 = scmp.eq.s32.totalorder %s14, 1
      %p53 = por %p51, %p52
      %p54 = scmp.ne.s32.totalorder %s43, %s44
      %p55 = scmp.eq.s32.totalorder %s14, 0
      %p56 = por %p54, %p55
      %p57 = scmp.ne.s32.totalorder %s43, %s44
      %p58 = scmp.eq.s32.totalorder %s15, 1
      %p59 = por %p57, %p58
      %p61 = scmp.ne.s32.totalorder %s44, %s60
      %p62 = scmp.eq.s32.totalorder %s15, 0
      %p63 = por %p61, %p62
      %s64 = ssub.s32 %s18, %s27
      %s65 = ssub.s32 %s17, %s31
      %s66 = sor.u32 %s64, %s65
      %p67 = scmp.eq.s32.totalorder %s66, 0
      %s69 = sadd.s32 %s68, 1
      %s70 = scalar_select %p67, %s68, %s69
      %p73 = pneg %p67
      %p74 = scmp.eq.s32.totalorder %s9, 1
      %p75 = por %p73, %p74
      %p76 = scmp.ne.s32.totalorder %s68, %s71
      %p77 = scmp.eq.s32.totalorder %s9, 0
      %p78 = por %p76, %p77
      %p79 = scmp.ne.s32.totalorder %s68, %s71
      %p80 = scmp.eq.s32.totalorder %s14, 1
      %p81 = por %p79, %p80
      %p82 = scmp.ne.s32.totalorder %s71, %s72
      %p83 = scmp.eq.s32.totalorder %s14, 0
      %p84 = por %p82, %p83
      %p85 = scmp.ne.s32.totalorder %s71, %s72
      %p86 = scmp.eq.s32.totalorder %s15, 1
      %p87 = por %p85, %p86
      %p89 = scmp.ne.s32.totalorder %s72, %s88
      %p90 = scmp.eq.s32.totalorder %s15, 0
      %p91 = por %p89, %p90
      %s92 = ssub.s32 %s17, %s31
      %p93 = scmp.eq.s32.totalorder %s92, 0
      %s95 = sadd.s32 %s94, 1
      %s96 = scalar_select %p93, %s94, %s95
      %p99 = pneg %p93
      %p100 = scmp.eq.s32.totalorder %s9, 1
      %p101 = por %p99, %p100
      %p102 = scmp.ne.s32.totalorder %s94, %s97
      %p103 = scmp.eq.s32.totalorder %s9, 0
      %p104 = por %p102, %p103
      %p105 = scmp.ne.s32.totalorder %s94, %s97
      %p106 = scmp.eq.s32.totalorder %s14, 1
      %p107 = por %p105, %p106
      %p108 = scmp.ne.s32.totalorder %s97, %s98
      %p109 = scmp.eq.s32.totalorder %s14, 0
      %p110 = por %p108, %p109
      %p111 = scmp.ne.s32.totalorder %s97, %s98
      %p112 = scmp.eq.s32.totalorder %s15, 1
      %p113 = por %p111, %p112
      %p115 = scmp.ne.s32.totalorder %s98, %s114
      %p116 = scmp.eq.s32.totalorder %s15, 0
      %p117 = por %p115, %p116
      %s118 = ssub.s32 %s16, %s35
      %s119 = ssub.s32 %s17, %s31
      %s120 = sor.u32 %s118, %s119
      %p121 = scmp.eq.s32.totalorder %s120, 0
      %s123 = sadd.s32 %s122, 1
      %s124 = scalar_select %p121, %s122, %s123
      %p127 = pneg %p121
      %p128 = scmp.eq.s32.totalorder %s9, 1
      %p129 = por %p127, %p128
      %p130 = scmp.ne.s32.totalorder %s122, %s125
      %p131 = scmp.eq.s32.totalorder %s9, 0
      %p132 = por %p130, %p131
      %p133 = scmp.ne.s32.totalorder %s122, %s125
      %p134 = scmp.eq.s32.totalorder %s14, 1
      %p135 = por %p133, %p134
      %p136 = scmp.ne.s32.totalorder %s125, %s126
      %p137 = scmp.eq.s32.totalorder %s14, 0
      %p138 = por %p136, %p137
      %p139 = scmp.ne.s32.totalorder %s125, %s126
      %p140 = scmp.eq.s32.totalorder %s15, 1
      %p141 = por %p139, %p140
      %p143 = scmp.ne.s32.totalorder %s126, %s142
      %p144 = scmp.eq.s32.totalorder %s15, 0
      %p145 = por %p143, %p144
      %p146 = scmp.le.s32.totalorder 1, %s9
      %p147 = scmp.lt.s32.totalorder %s9, 3
      %p148 = pnand %p146, %p147
      %p149 = pneg %p148
      // Predicated region
      $region9: #{_lambda_.60} parent=5 // pred_check
        _
      $region10: #{_lambda_.60} parent=5 // pred_check_branch
        %151 = sbr.rel (%p148) target = $region12
      $region11: #{_lambda_.60} parent=5 // pred_region
        %s152 = ssub.s32 %s9, 1
        // Predicated region
        $region13: #{_lambda_.60} parent=11 // pred_check
          %p153 = pneg %p56
        $region14: #{_lambda_.60} parent=11 // pred_check_branch
          %155 = sbr.rel (%p153) target = $region16
        $region15: #{_lambda_.60} parent=11 // pred_region
          %s156 = smul.u32 2, %s21
          %p157 = scmp.lt.s32.totalorder %s19, 0
          %s158 = scalar_select %p157, %s19, 0
          %p159 = scmp.lt.s32.totalorder %s156, 1
          %s160 = scalar_select %p159, %s156, 1
          %s161 = smul.addr %s158, 2
          %s162 = sadd.s32 %s160, %s161
          %s163 = smul.addr %s162, 4
          %s164 = scalar_lea.vmem %s0, %s163
          %s165 = smul.u32 2, %s21
        $region16: #{_lambda_.60} parent=11 // pred_fallthru
          _
      $region12: #{_lambda_.60} parent=5 // pred_fallthru
        _
      %p166 = scmp.lt.s32.totalorder %s9, 2
      // Predicated region
      $region17: #{_lambda_.60} parent=5 // pred_check
        %p167 = pneg %p166
      $region18: #{_lambda_.60} parent=5 // pred_check_branch
        %169 = sbr.rel (%p167) target = $region20
      $region19: #{_lambda_.60} parent=5 // pred_region
        // Predicated region
        $region21: #{_lambda_.60} parent=19 // pred_check
          %p170 = pneg %p78
        $region22: #{_lambda_.60} parent=19 // pred_check_branch
          %172 = sbr.rel (%p170) target = $region24
        $region23: #{_lambda_.60} parent=19 // pred_region
          %s173 = sand.u32 %s68, 1
          %s174 = sand.u32 %s68, 1
          %s175 = smul.addr %s174, 256
          %s176 = scalar_lea.vmem [#allocation3], %s175
          %s177 = smul.u32 32, %s18
          %s178 = smul.u32 2, %s17
          %s179 = smul.addr %s177, 4
          %s180 = sadd.s32 %s178, %s179
          %s181 = smul.addr %s180, 4
          %s182 = scalar_lea.vmem %s1, %s181
          // Predicated region
          $region25: #{_lambda_.60} parent=23 // pred_check
            _
          $region26: #{_lambda_.60} parent=23 // pred_check_branch
            %184 = sbr.rel (0) target = $region28
          $region27: #{_lambda_.60} parent=23 // pred_region
            // Predicated region
            $region29: #{_lambda_.60} parent=27 // pred_check
              _
            $region30: #{_lambda_.60} parent=27 // pred_check_branch
              %186 = sbr.rel (0) target = $region32
            $region31: #{_lambda_.60} parent=27 // pred_region
              // Predicated region
              $region44: #{_lambda_.60} parent=31 // pred_check
                _
              $region45: #{_lambda_.60} parent=31 // pred_check_branch
                %263 = sbr.rel (0) target = $region47
              $region46: #{_lambda_.60} parent=31 // pred_region
                loop: start=0, step=1, limit=1
                $region48: #{_lambda_.60} parent=46 // loop_pre_header
                  _
                $region49: #{_lambda_.60} parent=46 // loop_header
                  %s265 = sphi 0, %s269
                  %p266 = scmp.ge.s32.totalorder %s265, 1
                  %s270 = sphi %s182, %s182
                  %s271 = sphi %s176, %s176
                $region50: #{_lambda_.60} parent=46 // loop_header_branch
                  %268 = sbr.rel (%p266) target = $region54
                $region51: #{_lambda_.60} parent=46 // loop_body
                  %v272 = vld [vmem:[%s270] sm:$0xff]
                  %273 = vst [vmem:[%s271] sm:$0xff] %v272
                  %v274 = vld [vmem:[%s270 + $0x10] sm:$0xff]
                  %275 = vst [vmem:[%s271 + $0x8] sm:$0xff] %v274
                  %v276 = vld [vmem:[%s270 + $0x20] sm:$0xff]
                  %277 = vst [vmem:[%s271 + $0x10] sm:$0xff] %v276
                  %v278 = vld [vmem:[%s270 + $0x30] sm:$0xff]
                  %279 = vst [vmem:[%s271 + $0x18] sm:$0xff] %v278
                  %v280 = vld [vmem:[%s270 + $0x40] sm:$0xff]
                  %281 = vst [vmem:[%s271 + $0x20] sm:$0xff] %v280
                  %v282 = vld [vmem:[%s270 + $0x50] sm:$0xff]
                  %283 = vst [vmem:[%s271 + $0x28] sm:$0xff] %v282
                  %v284 = vld [vmem:[%s270 + $0x60] sm:$0xff]
                  %285 = vst [vmem:[%s271 + $0x30] sm:$0xff] %v284
                  %v286 = vld [vmem:[%s270 + $0x70] sm:$0xff]
                  %287 = vst [vmem:[%s271 + $0x38] sm:$0xff] %v286
                  %v288 = vld [vmem:[%s270 + $0x80] sm:$0xff]
                  %289 = vst [vmem:[%s271 + $0x40] sm:$0xff] %v288
                  %v290 = vld [vmem:[%s270 + $0x90] sm:$0xff]
                  %291 = vst [vmem:[%s271 + $0x48] sm:$0xff] %v290
                  %v292 = vld [vmem:[%s270 + $0xa0] sm:$0xff]
                  %293 = vst [vmem:[%s271 + $0x50] sm:$0xff] %v292
                  %v294 = vld [vmem:[%s270 + $0xb0] sm:$0xff]
                  %295 = vst [vmem:[%s271 + $0x58] sm:$0xff] %v294
                  %v296 = vld [vmem:[%s270 + $0xc0] sm:$0xff]
                  %297 = vst [vmem:[%s271 + $0x60] sm:$0xff] %v296
                  %v298 = vld [vmem:[%s270 + $0xd0] sm:$0xff]
                  %299 = vst [vmem:[%s271 + $0x68] sm:$0xff] %v298
                  %v300 = vld [vmem:[%s270 + $0xe0] sm:$0xff]
                  %301 = vst [vmem:[%s271 + $0x70] sm:$0xff] %v300
                  %v302 = vld [vmem:[%s270 + $0xf0] sm:$0xff]
                  %303 = vst [vmem:[%s271 + $0x78] sm:$0xff] %v302
                  %v304 = vld [vmem:[%s270 + $0x100] sm:$0xff]
                  %305 = vst [vmem:[%s271 + $0x80] sm:$0xff] %v304
                  %v306 = vld [vmem:[%s270 + $0x110] sm:$0xff]
                  %307 = vst [vmem:[%s271 + $0x88] sm:$0xff] %v306
                  %v308 = vld [vmem:[%s270 + $0x120] sm:$0xff]
                  %309 = vst [vmem:[%s271 + $0x90] sm:$0xff] %v308
                  %v310 = vld [vmem:[%s270 + $0x130] sm:$0xff]
                  %311 = vst [vmem:[%s271 + $0x98] sm:$0xff] %v310
                  %v312 = vld [vmem:[%s270 + $0x140] sm:$0xff]
                  %313 = vst [vmem:[%s271 + $0xa0] sm:$0xff] %v312
                  %v314 = vld [vmem:[%s270 + $0x150] sm:$0xff]
                  %315 = vst [vmem:[%s271 + $0xa8] sm:$0xff] %v314
                  %v316 = vld [vmem:[%s270 + $0x160] sm:$0xff]
                  %317 = vst [vmem:[%s271 + $0xb0] sm:$0xff] %v316
                  %v318 = vld [vmem:[%s270 + $0x170] sm:$0xff]
                  %319 = vst [vmem:[%s271 + $0xb8] sm:$0xff] %v318
                  %v320 = vld [vmem:[%s270 + $0x180] sm:$0xff]
                  %321 = vst [vmem:[%s271 + $0xc0] sm:$0xff] %v320
                  %v322 = vld [vmem:[%s270 + $0x190] sm:$0xff]
                  %323 = vst [vmem:[%s271 + $0xc8] sm:$0xff] %v322
                  %v324 = vld [vmem:[%s270 + $0x1a0] sm:$0xff]
                  %325 = vst [vmem:[%s271 + $0xd0] sm:$0xff] %v324
                  %v326 = vld [vmem:[%s270 + $0x1b0] sm:$0xff]
                  %327 = vst [vmem:[%s271 + $0xd8] sm:$0xff] %v326
                  %v328 = vld [vmem:[%s270 + $0x1c0] sm:$0xff]
                  %329 = vst [vmem:[%s271 + $0xe0] sm:$0xff] %v328
                  %v330 = vld [vmem:[%s270 + $0x1d0] sm:$0xff]
                  %331 = vst [vmem:[%s271 + $0xe8] sm:$0xff] %v330
                  %v332 = vld [vmem:[%s270 + $0x1e0] sm:$0xff]
                  %333 = vst [vmem:[%s271 + $0xf0] sm:$0xff] %v332
                  %v334 = vld [vmem:[%s270 + $0x1f0] sm:$0xff]
                  %335 = vst [vmem:[%s271 + $0xf8] sm:$0xff] %v334
                $region52: #{_lambda_.60} parent=46 // loop_footer
                  %s269 = sadd.s32 1, %s265
                $region53: #{_lambda_.60} parent=46 // loop_footer_branch
                  %264 = sbr.rel target = $region49
                $region54: #{_lambda_.60} parent=46 // loop_exit
                  _
              $region47: #{_lambda_.60} parent=31 // pred_fallthru
                _
              // Predicated region
              $region55: #{_lambda_.60} parent=31 // pred_check
                _
              $region56: #{_lambda_.60} parent=31 // pred_check_branch
                %337 = sbr.rel target = $region58
              $region57: #{_lambda_.60} parent=31 // pred_region
                _
              $region58: #{_lambda_.60} parent=31 // pred_fallthru
                _
            $region32: #{_lambda_.60} parent=27 // pred_fallthru
              _
            // Predicated region
            $region33: #{_lambda_.60} parent=27 // pred_check
              _
            $region34: #{_lambda_.60} parent=27 // pred_check_branch
              %188 = sbr.rel target = $region36
            $region35: #{_lambda_.60} parent=27 // pred_region
              loop: start=0, step=1, limit=1
              $region37: #{_lambda_.60} parent=35 // loop_pre_header
                _
              $region38: #{_lambda_.60} parent=35 // loop_header
                %s191 = sphi 0, %s195
                %p192 = scmp.ge.s32.totalorder %s191, 1
                %s196 = sphi %s182, %s182
                %s197 = sphi %s176, %s176
              $region39: #{_lambda_.60} parent=35 // loop_header_branch
                %194 = sbr.rel (%p192) target = $region43
              $region40: #{_lambda_.60} parent=35 // loop_body
                %v198 = vld [vmem:[%s196] sm:$0xff]
                %199 = vst [vmem:[%s197] sm:$0xff] %v198
                %v200 = vld [vmem:[%s196 + $0x10] sm:$0xff]
                %201 = vst [vmem:[%s197 + $0x8] sm:$0xff] %v200
                %v202 = vld [vmem:[%s196 + $0x20] sm:$0xff]
                %203 = vst [vmem:[%s197 + $0x10] sm:$0xff] %v202
                %v204 = vld [vmem:[%s196 + $0x30] sm:$0xff]
                %205 = vst [vmem:[%s197 + $0x18] sm:$0xff] %v204
                %v206 = vld [vmem:[%s196 + $0x40] sm:$0xff]
                %207 = vst [vmem:[%s197 + $0x20] sm:$0xff] %v206
                %v208 = vld [vmem:[%s196 + $0x50] sm:$0xff]
                %209 = vst [vmem:[%s197 + $0x28] sm:$0xff] %v208
                %v210 = vld [vmem:[%s196 + $0x60] sm:$0xff]
                %211 = vst [vmem:[%s197 + $0x30] sm:$0xff] %v210
                %v212 = vld [vmem:[%s196 + $0x70] sm:$0xff]
                %213 = vst [vmem:[%s197 + $0x38] sm:$0xff] %v212
                %v214 = vld [vmem:[%s196 + $0x80] sm:$0xff]
                %215 = vst [vmem:[%s197 + $0x40] sm:$0xff] %v214
                %v216 = vld [vmem:[%s196 + $0x90] sm:$0xff]
                %217 = vst [vmem:[%s197 + $0x48] sm:$0xff] %v216
                %v218 = vld [vmem:[%s196 + $0xa0] sm:$0xff]
                %219 = vst [vmem:[%s197 + $0x50] sm:$0xff] %v218
                %v220 = vld [vmem:[%s196 + $0xb0] sm:$0xff]
                %221 = vst [vmem:[%s197 + $0x58] sm:$0xff] %v220
                %v222 = vld [vmem:[%s196 + $0xc0] sm:$0xff]
                %223 = vst [vmem:[%s197 + $0x60] sm:$0xff] %v222
                %v224 = vld [vmem:[%s196 + $0xd0] sm:$0xff]
                %225 = vst [vmem:[%s197 + $0x68] sm:$0xff] %v224
                %v226 = vld [vmem:[%s196 + $0xe0] sm:$0xff]
                %227 = vst [vmem:[%s197 + $0x70] sm:$0xff] %v226
                %v228 = vld [vmem:[%s196 + $0xf0] sm:$0xff]
                %229 = vst [vmem:[%s197 + $0x78] sm:$0xff] %v228
                %v230 = vld [vmem:[%s196 + $0x100] sm:$0xff]
                %231 = vst [vmem:[%s197 + $0x80] sm:$0xff] %v230
                %v232 = vld [vmem:[%s196 + $0x110] sm:$0xff]
                %233 = vst [vmem:[%s197 + $0x88] sm:$0xff] %v232
                %v234 = vld [vmem:[%s196 + $0x120] sm:$0xff]
                %235 = vst [vmem:[%s197 + $0x90] sm:$0xff] %v234
                %v236 = vld [vmem:[%s196 + $0x130] sm:$0xff]
                %237 = vst [vmem:[%s197 + $0x98] sm:$0xff] %v236
                %v238 = vld [vmem:[%s196 + $0x140] sm:$0xff]
                %239 = vst [vmem:[%s197 + $0xa0] sm:$0xff] %v238
                %v240 = vld [vmem:[%s196 + $0x150] sm:$0xff]
                %241 = vst [vmem:[%s197 + $0xa8] sm:$0xff] %v240
                %v242 = vld [vmem:[%s196 + $0x160] sm:$0xff]
                %243 = vst [vmem:[%s197 + $0xb0] sm:$0xff] %v242
                %v244 = vld [vmem:[%s196 + $0x170] sm:$0xff]
                %245 = vst [vmem:[%s197 + $0xb8] sm:$0xff] %v244
                %v246 = vld [vmem:[%s196 + $0x180] sm:$0xff]
                %247 = vst [vmem:[%s197 + $0xc0] sm:$0xff] %v246
                %v248 = vld [vmem:[%s196 + $0x190] sm:$0xff]
                %249 = vst [vmem:[%s197 + $0xc8] sm:$0xff] %v248
                %v250 = vld [vmem:[%s196 + $0x1a0] sm:$0xff]
                %251 = vst [vmem:[%s197 + $0xd0] sm:$0xff] %v250
                %v252 = vld [vmem:[%s196 + $0x1b0] sm:$0xff]
                %253 = vst [vmem:[%s197 + $0xd8] sm:$0xff] %v252
                %v254 = vld [vmem:[%s196 + $0x1c0] sm:$0xff]
                %255 = vst [vmem:[%s197 + $0xe0] sm:$0xff] %v254
                %v256 = vld [vmem:[%s196 + $0x1d0] sm:$0xff]
                %257 = vst [vmem:[%s197 + $0xe8] sm:$0xff] %v256
                %v258 = vld [vmem:[%s196 + $0x1e0] sm:$0xff]
                %259 = vst [vmem:[%s197 + $0xf0] sm:$0xff] %v258
                %v260 = vld [vmem:[%s196 + $0x1f0] sm:$0xff]
                %261 = vst [vmem:[%s197 + $0xf8] sm:$0xff] %v260
              $region41: #{_lambda_.60} parent=35 // loop_footer
                %s195 = sadd.s32 1, %s191
              $region42: #{_lambda_.60} parent=35 // loop_footer_branch
                %190 = sbr.rel target = $region38
              $region43: #{_lambda_.60} parent=35 // loop_exit
                _
            $region36: #{_lambda_.60} parent=27 // pred_fallthru
              _
          $region28: #{_lambda_.60} parent=23 // pred_fallthru
            _
          %338 = vnop
        $region24: #{_lambda_.60} parent=19 // pred_fallthru
          _
        // Predicated region
        $region59: #{_lambda_.60} parent=19 // pred_check
          %p339 = pneg %p104
        $region60: #{_lambda_.60} parent=19 // pred_check_branch
          %341 = sbr.rel (%p339) target = $region62
        $region61: #{_lambda_.60} parent=19 // pred_region
          %s342 = smul.u32 2, %s17
          %p343 = scmp.lt.s32.totalorder %s342, 3
          %s344 = scalar_select %p343, %s342, 3
          %s345 = scalar_lea.vmem %s2, %s344
          %s346 = smul.u32 2, %s17
        $region62: #{_lambda_.60} parent=19 // pred_fallthru
          _
      $region20: #{_lambda_.60} parent=5 // pred_fallthru
        _
      %p347 = scmp.le.s32.totalorder 1, %s9
      %p348 = scmp.lt.s32.totalorder %s9, 3
      %p349 = pnand %p347, %p348
      %p350 = pneg %p349
      // Predicated region
      $region63: #{_lambda_.60} parent=5 // pred_check
        _
      $region64: #{_lambda_.60} parent=5 // pred_check_branch
        %352 = sbr.rel (%p349) target = $region66
      $region65: #{_lambda_.60} parent=5 // pred_region
        %s353 = ssub.s32 %s9, 1
        %s354 = sand.u32 %s71, 1
        %s355 = sand.u32 %s71, 1
        %s356 = smul.addr %s355, 256
        %s357 = scalar_lea.vmem [#allocation3], %s356
        // Predicated region
        $region67: #{_lambda_.60} parent=65 // pred_check
          %p358 = pneg %p84
        $region68: #{_lambda_.60} parent=65 // pred_check_branch
          %360 = sbr.rel (%p358) target = $region70
        $region69: #{_lambda_.60} parent=65 // pred_region
          _
        $region70: #{_lambda_.60} parent=65 // pred_fallthru
          _
        %s361 = smul.u32 2, %s21
        %p362 = scmp.lt.s32.totalorder %s19, 0
        %s363 = scalar_select %p362, %s19, 0
        %p364 = scmp.lt.s32.totalorder %s361, 1
        %s365 = scalar_select %p364, %s361, 1
        %s366 = smul.addr %s363, 2
        %s367 = sadd.s32 %s365, %s366
        %s368 = smul.addr %s367, 4
        %s369 = scalar_lea.vmem %s0, %s368
        %p370 = pneg %p56
        %p371 = pneg %p53
        %s372 = sand.u32 %s71, 1
        %s373 = sand.u32 %s71, 1
        %s374 = smul.addr %s373, 256
        %s375 = scalar_lea.vmem [#allocation3], %s374
        %p376 = pneg %p84
        %p377 = pneg %p81
        %s378 = smul.u32 2, %s20
        %p379 = scmp.lt.s32.totalorder %s378, 3
        %s380 = scalar_select %p379, %s378, 3
        %s381 = scalar_lea.vmem %s2, %s380
        %p382 = pneg %p110
        %p383 = pneg %p107
        %p384 = pneg %p138
        %p385 = pneg %p135
        %s386 = smul.u32 2, %s20
        %p387 = scmp.lt.s32.totalorder %s19, 0
        %s388 = scalar_select %p387, %s19, 0
        %p389 = scmp.lt.s32.totalorder %s386, 3
        %s390 = scalar_select %p389, %s386, 3
        %s391 = smul.addr %s388, 4
        %s392 = sadd.s32 %s390, %s391
        %s393 = smul.addr %s392, 4
        %s394 = scalar_lea.vmem %s3, %s393
        %s395 = smul.u32 2, %s21
        %p396 = scmp.lt.s32.totalorder %s19, 0
        %s397 = scalar_select %p396, %s19, 0
        %p398 = scmp.lt.s32.totalorder %s395, 1
        %s399 = scalar_select %p398, %s395, 1
        %s400 = smul.addr %s397, 2
        %s401 = sadd.s32 %s399, %s400
        %s402 = smul.addr %s401, 4
        %s403 = scalar_lea.vmem %s0, %s402
        %s404 = smul.u32 2, %s21
        %s405 = smul.u32 32, %s21
        %s406 = smul.u32 2, %s20
        %s407 = smul.u32 2, %s20
        %p408 = scmp.lt.s32.totalorder %s407, 3
        %s409 = scalar_select %p408, %s407, 3
        %s410 = scalar_lea.vmem %s2, %s409
        %s411 = smul.u32 2, %s20
        %s412 = smul.u32 2, %s20
        %p413 = scmp.lt.s32.totalorder %s19, 0
        %s414 = scalar_select %p413, %s19, 0
        %p415 = scmp.lt.s32.totalorder %s412, 3
        %s416 = scalar_select %p415, %s412, 3
        %s417 = smul.addr %s414, 4
        %s418 = sadd.s32 %s416, %s417
        %s419 = smul.addr %s418, 4
        %s420 = scalar_lea.vmem %s3, %s419
        %s421 = smul.u32 2, %s20
        %p422 = scmp.eq.s32.totalorder %s21, 0
        // Predicated region
        $region71: #{_lambda_.60} parent=65 // pred_check
          %p423 = pneg %p422
        $region72: #{_lambda_.60} parent=65 // pred_check_branch
          %425 = sbr.rel (%p423) target = $region74
        $region73: #{_lambda_.60} parent=65 // pred_region
          %426 = vst [vmem:[#allocation2] sm:$0xff] 0.0
          %427 = vst [vmem:[#allocation2 + $0x8] sm:$0xff] 0.0
        $region74: #{_lambda_.60} parent=65 // pred_fallthru
          _
        %v428 = vld [vmem:[#allocation2] sm:$0xff]
        %v429 = vld [vmem:[#allocation2 + $0x8] sm:$0xff]
        %v430 = vld [vmem:[%s403] sm:$0xff]
        %v431 = vld [vmem:[%s357] sm:$0xff]
        %v432 = vld [vmem:[%s357 + $0x8] sm:$0xff]
        %v433 = vld [vmem:[%s357 + $0x10] sm:$0xff]
        %v434 = vld [vmem:[%s357 + $0x18] sm:$0xff]
        %v435 = vld [vmem:[%s357 + $0x20] sm:$0xff]
        %v436 = vld [vmem:[%s357 + $0x28] sm:$0xff]
        %v437 = vld [vmem:[%s357 + $0x30] sm:$0xff]
        %v438 = vld [vmem:[%s357 + $0x38] sm:$0xff]
        %v439 = vld [vmem:[%s357 + $0x40] sm:$0xff]
        %v440 = vld [vmem:[%s357 + $0x48] sm:$0xff]
        %v441 = vld [vmem:[%s357 + $0x50] sm:$0xff]
        %v442 = vld [vmem:[%s357 + $0x58] sm:$0xff]
        %v443 = vld [vmem:[%s357 + $0x60] sm:$0xff]
        %v444 = vld [vmem:[%s357 + $0x68] sm:$0xff]
        %v445 = vld [vmem:[%s357 + $0x70] sm:$0xff]
        %v446 = vld [vmem:[%s357 + $0x78] sm:$0xff]
        %v447 = vld [vmem:[%s357 + $0x80] sm:$0xff]
        %v448 = vld [vmem:[%s357 + $0x88] sm:$0xff]
        %v449 = vld [vmem:[%s357 + $0x90] sm:$0xff]
        %v450 = vld [vmem:[%s357 + $0x98] sm:$0xff]
        %v451 = vld [vmem:[%s357 + $0xa0] sm:$0xff]
        %v452 = vld [vmem:[%s357 + $0xa8] sm:$0xff]
        %v453 = vld [vmem:[%s357 + $0xb0] sm:$0xff]
        %v454 = vld [vmem:[%s357 + $0xb8] sm:$0xff]
        %v455 = vld [vmem:[%s357 + $0xc0] sm:$0xff]
        %v456 = vld [vmem:[%s357 + $0xc8] sm:$0xff]
        %v457 = vld [vmem:[%s357 + $0xd0] sm:$0xff]
        %v458 = vld [vmem:[%s357 + $0xd8] sm:$0xff]
        %v459 = vld [vmem:[%s357 + $0xe0] sm:$0xff]
        %v460 = vld [vmem:[%s357 + $0xe8] sm:$0xff]
        %v461 = vld [vmem:[%s357 + $0xf0] sm:$0xff]
        %v462 = vld [vmem:[%s357 + $0xf8] sm:$0xff]
        %v464 = vunpack.c.l.b16 %v430
        %v465 = vunpack.c.h.b16 %v430
        %v466 = vpack.c.b16 %v464, %v464
        %v467 = vpack.c.b16 %v465, %v465
        %v502 = vunpack.c.l.b16 %v431
        %v503 = vunpack.c.h.b16 %v431
        %v504 = vunpack.c.l.b16 %v432
        %v505 = vunpack.c.h.b16 %v432
        %v506 = vunpack.c.l.b16 %v433
        %v507 = vunpack.c.h.b16 %v433
        %v508 = vunpack.c.l.b16 %v434
        %v509 = vunpack.c.h.b16 %v434
        %v510 = vunpack.c.l.b16 %v435
        %v511 = vunpack.c.h.b16 %v435
        %v512 = vunpack.c.l.b16 %v436
        %v513 = vunpack.c.h.b16 %v436
        %v514 = vunpack.c.l.b16 %v437
        %v515 = vunpack.c.h.b16 %v437
        %v516 = vunpack.c.l.b16 %v438
        %v517 = vunpack.c.h.b16 %v438
        %v518 = vunpack.c.l.b16 %v439
        %v519 = vunpack.c.h.b16 %v439
        %v520 = vunpack.c.l.b16 %v440
        %v521 = vunpack.c.h.b16 %v440
        %v522 = vunpack.c.l.b16 %v441
        %v523 = vunpack.c.h.b16 %v441
        %v524 = vunpack.c.l.b16 %v442
        %v525 = vunpack.c.h.b16 %v442
        %v526 = vunpack.c.l.b16 %v443
        %v527 = vunpack.c.h.b16 %v443
        %v528 = vunpack.c.l.b16 %v444
        %v529 = vunpack.c.h.b16 %v444
        %v530 = vunpack.c.l.b16 %v445
        %v531 = vunpack.c.h.b16 %v445
        %v532 = vunpack.c.l.b16 %v446
        %v533 = vunpack.c.h.b16 %v446
        %v534 = vunpack.c.l.b16 %v447
        %v535 = vunpack.c.h.b16 %v447
        %v536 = vunpack.c.l.b16 %v448
        %v537 = vunpack.c.h.b16 %v448
        %v538 = vunpack.c.l.b16 %v449
        %v539 = vunpack.c.h.b16 %v449
        %v540 = vunpack.c.l.b16 %v450
        %v541 = vunpack.c.h.b16 %v450
        %v542 = vunpack.c.l.b16 %v451
        %v543 = vunpack.c.h.b16 %v451
        %v544 = vunpack.c.l.b16 %v452
        %v545 = vunpack.c.h.b16 %v452
        %v546 = vunpack.c.l.b16 %v453
        %v547 = vunpack.c.h.b16 %v453
        %v548 = vunpack.c.l.b16 %v454
        %v549 = vunpack.c.h.b16 %v454
        %v550 = vunpack.c.l.b16 %v455
        %v551 = vunpack.c.h.b16 %v455
        %v552 = vunpack.c.l.b16 %v456
        %v553 = vunpack.c.h.b16 %v456
        %v554 = vunpack.c.l.b16 %v457
        %v555 = vunpack.c.h.b16 %v457
        %v556 = vunpack.c.l.b16 %v458
        %v557 = vunpack.c.h.b16 %v458
        %v558 = vunpack.c.l.b16 %v459
        %v559 = vunpack.c.h.b16 %v459
        %v560 = vunpack.c.l.b16 %v460
        %v561 = vunpack.c.h.b16 %v460
        %v562 = vunpack.c.l.b16 %v461
        %v563 = vunpack.c.h.b16 %v461
        %v564 = vunpack.c.l.b16 %v462
        %v565 = vunpack.c.h.b16 %v462
        %v566 = vpack.c.b16 %v504, %v502
        %v567 = vpack.c.b16 %v505, %v503
        %v568 = vpack.c.b16 %v508, %v506
        %v569 = vpack.c.b16 %v509, %v507
        %v570 = vpack.c.b16 %v512, %v510
        %v571 = vpack.c.b16 %v513, %v511
        %v572 = vpack.c.b16 %v516, %v514
        %v573 = vpack.c.b16 %v517, %v515
        %v574 = vpack.c.b16 %v520, %v518
        %v575 = vpack.c.b16 %v521, %v519
        %v576 = vpack.c.b16 %v524, %v522
        %v577 = vpack.c.b16 %v525, %v523
        %v578 = vpack.c.b16 %v528, %v526
        %v579 = vpack.c.b16 %v529, %v527
        %v580 = vpack.c.b16 %v532, %v530
        %v581 = vpack.c.b16 %v533, %v531
        %v582 = vpack.c.b16 %v536, %v534
        %v583 = vpack.c.b16 %v537, %v535
        %v584 = vpack.c.b16 %v540, %v538
        %v585 = vpack.c.b16 %v541, %v539
        %v586 = vpack.c.b16 %v544, %v542
        %v587 = vpack.c.b16 %v545, %v543
        %v588 = vpack.c.b16 %v548, %v546
        %v589 = vpack.c.b16 %v549, %v547
        %v590 = vpack.c.b16 %v552, %v550
        %v591 = vpack.c.b16 %v553, %v551
        %v592 = vpack.c.b16 %v556, %v554
        %v593 = vpack.c.b16 %v557, %v555
        %v594 = vpack.c.b16 %v560, %v558
        %v595 = vpack.c.b16 %v561, %v559
        %v596 = vpack.c.b16 %v564, %v562
        %v597 = vpack.c.b16 %v565, %v563
        %630 = vmatprep.subr.bf16.mxu0 %v567
        %631 = vmatpush1.bf16.msra.mxu0 %v566
        %632 = vmatprep.subr.bf16.mxu0 %v569
        %633 = vmatpush1.bf16.msra.mxu0 %v568
        %634 = vmatprep.subr.bf16.mxu0 %v571
        %635 = vmatpush1.bf16.msra.mxu0 %v570
        %636 = vmatprep.subr.bf16.mxu0 %v573
        %637 = vmatpush1.bf16.msra.mxu0 %v572
        %638 = vmatprep.subr.bf16.mxu0 %v575
        %639 = vmatpush1.bf16.msra.mxu0 %v574
        %640 = vmatprep.subr.bf16.mxu0 %v577
        %641 = vmatpush1.bf16.msra.mxu0 %v576
        %642 = vmatprep.subr.bf16.mxu0 %v579
        %643 = vmatpush1.bf16.msra.mxu0 %v578
        %644 = vmatprep.subr.bf16.mxu0 %v581
        %645 = vmatpush1.bf16.msra.mxu0 %v580
        %646 = vmatprep.subr.bf16.mxu0 %v583
        %647 = vmatpush1.bf16.msra.mxu0 %v582
        %648 = vmatprep.subr.bf16.mxu0 %v585
        %649 = vmatpush1.bf16.msra.mxu0 %v584
        %650 = vmatprep.subr.bf16.mxu0 %v587
        %651 = vmatpush1.bf16.msra.mxu0 %v586
        %652 = vmatprep.subr.bf16.mxu0 %v589
        %653 = vmatpush1.bf16.msra.mxu0 %v588
        %654 = vmatprep.subr.bf16.mxu0 %v591
        %655 = vmatpush1.bf16.msra.mxu0 %v590
        %656 = vmatprep.subr.bf16.mxu0 %v593
        %657 = vmatpush1.bf16.msra.mxu0 %v592
        %658 = vmatprep.subr.bf16.mxu0 %v595
        %659 = vmatpush1.bf16.msra.mxu0 %v594
        %660 = vmatprep.subr.bf16.mxu0 %v597
        %661 = vmatpush1.bf16.msra.mxu0 %v596
        %662 = vmatprep.mubr.bf16.mxu0 %v467
        %663 = vmatmul.mubr.bf16.gmra.mrb[0].mxu0 %v466
        %v664 = vpop.f32.mrb[0].mxu0
        %v665 = vadd.f32 0.0, %v664
        %v666 = vpop.f32.mrb[0].mxu0
        %v667 = vadd.f32 0.0, %v666
        %v668 = vpop.f32.mrb[0].mxu0
        %v669 = vpop.f32.mrb[0].mxu0
        %670 = vdwg.mxu0
        %v671 = vadd.f32 %v428, %v665
        %v672 = vadd.f32 %v429, %v667
        %673 = vst [vmem:[#allocation2] sm:$0xff] %v671
        %674 = vst [vmem:[#allocation2 + $0x8] sm:$0xff] %v672
        // Predicated region
        $region75: #{_lambda_.60} parent=65 // pred_check
          %p675 = pneg %p422
        $region76: #{_lambda_.60} parent=65 // pred_check_branch
          %677 = sbr.rel (%p675) target = $region78
        $region77: #{_lambda_.60} parent=65 // pred_region
          %v678 = vld [vmem:[#allocation2] sm:$0xff]
          %v679 = vld [vmem:[#allocation2 + $0x8] sm:$0xff]
          %v680 = vld [vmem:[%s410] sm:$0x3]
          %v682 = vlaneseq
          %v683 = vshrl.u32 %v682, 7
          %v684 = vsub.s32 0, %v683
          %v685 = vrot.slane %v680, %v684
          %v686 = vlaneseq
          %v687 = vshrl.u32 %v686, 7
          %v688 = vsub.s32 1, %v687
          %v689 = vrot.slane %v680, %v688
          %v692 = vadd.f32 %v678, %v685
          %v693 = vadd.f32 %v679, %v689
          %v694 = vpack.c.bf16 %v692, %v692
          %v695 = vpack.c.bf16 %v693, %v693
          %v698 = vunpack.c.l.b16 %v694
          %v699 = vunpack.c.l.b16 %v695
          %v700 = vpack.c.b16 %v699, %v698
          %702 = vst [vmem:[%s420] sm:$0xff] %v700
        $region78: #{_lambda_.60} parent=65 // pred_fallthru
          _
        %s703 = smul.u32 2, %s20
        %p704 = scmp.lt.s32.totalorder %s19, 0
        %s705 = scalar_select %p704, %s19, 0
        %p706 = scmp.lt.s32.totalorder %s703, 3
        %s707 = scalar_select %p706, %s703, 3
        %s708 = smul.addr %s705, 4
        %s709 = sadd.s32 %s707, %s708
        %s710 = smul.addr %s709, 4
        %s711 = scalar_lea.vmem %s3, %s710
        // Predicated region
        $region79: #{_lambda_.60} parent=65 // pred_check
          %p712 = pneg %p135
        $region80: #{_lambda_.60} parent=65 // pred_check_branch
          %714 = sbr.rel (%p712) target = $region82
        $region81: #{_lambda_.60} parent=65 // pred_region
          %s715 = smul.u32 2, %s20
        $region82: #{_lambda_.60} parent=65 // pred_fallthru
          _
      $region66: #{_lambda_.60} parent=5 // pred_fallthru
        _
      %p716 = scmp.le.s32.totalorder 2, %s9
      // Predicated region
      $region83: #{_lambda_.60} parent=5 // pred_check
        %p717 = pneg %p716
      $region84: #{_lambda_.60} parent=5 // pred_check_branch
        %719 = sbr.rel (%p717) target = $region86
      $region85: #{_lambda_.60} parent=5 // pred_region
        %s720 = ssub.s32 %s9, 2
        // Predicated region
        $region87: #{_lambda_.60} parent=85 // pred_check
          %p721 = pneg %p141
        $region88: #{_lambda_.60} parent=85 // pred_check_branch
          %723 = sbr.rel (%p721) target = $region90
        $region89: #{_lambda_.60} parent=85 // pred_region
          %s724 = smul.u32 2, %s23
          %p725 = scmp.lt.s32.totalorder %s22, 0
          %s726 = scalar_select %p725, %s22, 0
          %p727 = scmp.lt.s32.totalorder %s724, 3
          %s728 = scalar_select %p727, %s724, 3
          %s729 = smul.addr %s726, 4
          %s730 = sadd.s32 %s728, %s729
          %s731 = smul.addr %s730, 4
          %s732 = scalar_lea.vmem %s3, %s731
        $region90: #{_lambda_.60} parent=85 // pred_fallthru
          _
      $region86: #{_lambda_.60} parent=5 // pred_fallthru
        _
    $region6: #{_lambda_.60} parent=1 // loop_footer
      %s13 = sadd.s32 1, %s9
    $region7: #{_lambda_.60} parent=1 // loop_footer_branch
      %8 = sbr.rel target = $region3
    $region8: #{_lambda_.60} parent=1 // loop_exit
      _

// kernel: _lambda_.59
$region0: #{_lambda_.59}
  #allocation0 [shape = 'u32[]', space=smem, size = 0x4, offset = 0x4, fixed_abs, tag = 'smem constant byte address 0x4 - core index']
  #allocation1 [shape = 'u32[144,128]{1,0:T(1,128)}', space=vmem, size = 0x12000, scoped, tag = 'internal scratch']
  #allocation2 [shape = 'f32[8,128]{1,0:T(8,128)}', space=vmem, size = 0x1000, scoped, tag = 'scratch operand']
  %s0 = inlined_call_operand.vmem [shape: bf16[8,1152], index: 0, kind: input, shape index: {}]
  %s1 = inlined_call_operand.vmem [shape: bf16[1152,128], index: 1, kind: input, shape index: {}]
  %s2 = inlined_call_operand.vmem [shape: f32[1,128], index: 2, kind: input, shape index: {}]
  %s3 = inlined_call_operand.vmem [shape: bf16[8,128], index: 3, kind: output, shape index: {}]
  %s4 = sld [smem:[#allocation0]]
  $region53: #{_lambda_.59} parent=0
    _
  %s6 = ssub.s32 1, %s4
  %s7 = scalar_select 0, %s6, %s4
  loop: start=0, step=1, limit=5
  $region2: #{_lambda_.59} parent=0 // loop_pre_header
    _
  $region3: #{_lambda_.59} parent=0 // loop_header
    %s9 = sphi 0, %s13
    %p10 = scmp.ge.s32.totalorder %s9, 5
    %s16 = sphi 0, %s35
    %s17 = sphi 0, %s31
    %s18 = sphi 0, %s27
    %s19 = sphi 0, %s16
    %s20 = sphi 0, %s17
    %s21 = sphi 0, %s18
    %s22 = sphi 0, %s19
    %s23 = sphi 0, %s20
    %s24 = sphi 0, %s21
    %s40 = sphi 0, %s42
    %s43 = sphi 0, %s40
    %s44 = sphi 0, %s43
    %s60 = sphi 0, %s44
    %s68 = sphi 0, %s70
    %s71 = sphi 0, %s68
    %s72 = sphi 0, %s71
    %s88 = sphi 0, %s72
    %s94 = sphi 0, %s96
    %s97 = sphi 0, %s94
    %s98 = sphi 0, %s97
    %s114 = sphi 0, %s98
    %s122 = sphi 0, %s124
    %s125 = sphi 0, %s122
    %s126 = sphi 0, %s125
    %s142 = sphi 0, %s126
  $region4: #{_lambda_.59} parent=0 // loop_header_branch
    %12 = sbr.rel (%p10) target = $region8
  $region5: #{_lambda_.59} parent=0 // loop_body
    %s14 = ssub.s32 %s9, 1
    %s15 = ssub.s32 %s9, 2
    %s25 = sadd.s32 1, %s18
    %p26 = scmp.ge.s32.totalorder %s25, 3
    %s27 = scalar_select %p26, 0, %s25
    %s28 = sadd.s32 1, %s17
    %s29 = scalar_select %p26, %s28, %s17
    %p30 = scmp.ge.s32.totalorder %s29, 1
    %s31 = scalar_select %p30, 0, %s29
    %s32 = sadd.s32 1, %s16
    %s33 = scalar_select %p30, %s32, %s16
    %p34 = scmp.ge.s32.totalorder %s33, 1
    %s35 = scalar_select %p34, 0, %s33
    %s36 = ssub.s32 %s16, %s35
    %s37 = ssub.s32 %s18, %s27
    %s38 = sor.u32 %s36, %s37
    %p39 = scmp.eq.s32.totalorder %s38, 0
    %s41 = sadd.s32 %s40, 1
    %s42 = scalar_select %p39, %s40, %s41
    %p45 = pneg %p39
    %p46 = scmp.eq.s32.totalorder %s9, 2
    %p47 = por %p45, %p46
    %p48 = scmp.ne.s32.totalorder %s40, %s43
    %p49 = scmp.eq.s32.totalorder %s9, 0
    %p50 = por %p48, %p49
    %p51 = scmp.ne.s32.totalorder %s40, %s43
    %p52 = scmp.eq.s32.totalorder %s14, 2
    %p53 = por %p51, %p52
    %p54 = scmp.ne.s32.totalorder %s43, %s44
    %p55 = scmp.eq.s32.totalorder %s14, 0
    %p56 = por %p54, %p55
    %p57 = scmp.ne.s32.totalorder %s43, %s44
    %p58 = scmp.eq.s32.totalorder %s15, 2
    %p59 = por %p57, %p58
    %p61 = scmp.ne.s32.totalorder %s44, %s60
    %p62 = scmp.eq.s32.totalorder %s15, 0
    %p63 = por %p61, %p62
    %s64 = ssub.s32 %s18, %s27
    %s65 = ssub.s32 %s17, %s31
    %s66 = sor.u32 %s64, %s65
    %p67 = scmp.eq.s32.totalorder %s66, 0
    %s69 = sadd.s32 %s68, 1
    %s70 = scalar_select %p67, %s68, %s69
    %p73 = pneg %p67
    %p74 = scmp.eq.s32.totalorder %s9, 2
    %p75 = por %p73, %p74
    %p76 = scmp.ne.s32.totalorder %s68, %s71
    %p77 = scmp.eq.s32.totalorder %s9, 0
    %p78 = por %p76, %p77
    %p79 = scmp.ne.s32.totalorder %s68, %s71
    %p80 = scmp.eq.s32.totalorder %s14, 2
    %p81 = por %p79, %p80
    %p82 = scmp.ne.s32.totalorder %s71, %s72
    %p83 = scmp.eq.s32.totalorder %s14, 0
    %p84 = por %p82, %p83
    %p85 = scmp.ne.s32.totalorder %s71, %s72
    %p86 = scmp.eq.s32.totalorder %s15, 2
    %p87 = por %p85, %p86
    %p89 = scmp.ne.s32.totalorder %s72, %s88
    %p90 = scmp.eq.s32.totalorder %s15, 0
    %p91 = por %p89, %p90
    %s92 = ssub.s32 %s17, %s31
    %p93 = scmp.eq.s32.totalorder %s92, 0
    %s95 = sadd.s32 %s94, 1
    %s96 = scalar_select %p93, %s94, %s95
    %p99 = pneg %p93
    %p100 = scmp.eq.s32.totalorder %s9, 2
    %p101 = por %p99, %p100
    %p102 = scmp.ne.s32.totalorder %s94, %s97
    %p103 = scmp.eq.s32.totalorder %s9, 0
    %p104 = por %p102, %p103
    %p105 = scmp.ne.s32.totalorder %s94, %s97
    %p106 = scmp.eq.s32.totalorder %s14, 2
    %p107 = por %p105, %p106
    %p108 = scmp.ne.s32.totalorder %s97, %s98
    %p109 = scmp.eq.s32.totalorder %s14, 0
    %p110 = por %p108, %p109
    %p111 = scmp.ne.s32.totalorder %s97, %s98
    %p112 = scmp.eq.s32.totalorder %s15, 2
    %p113 = por %p111, %p112
    %p115 = scmp.ne.s32.totalorder %s98, %s114
    %p116 = scmp.eq.s32.totalorder %s15, 0
    %p117 = por %p115, %p116
    %s118 = ssub.s32 %s16, %s35
    %s119 = ssub.s32 %s17, %s31
    %s120 = sor.u32 %s118, %s119
    %p121 = scmp.eq.s32.totalorder %s120, 0
    %s123 = sadd.s32 %s122, 1
    %s124 = scalar_select %p121, %s122, %s123
    %p127 = pneg %p121
    %p128 = scmp.eq.s32.totalorder %s9, 2
    %p129 = por %p127, %p128
    %p130 = scmp.ne.s32.totalorder %s122, %s125
    %p131 = scmp.eq.s32.totalorder %s9, 0
    %p132 = por %p130, %p131
    %p133 = scmp.ne.s32.totalorder %s122, %s125
    %p134 = scmp.eq.s32.totalorder %s14, 2
    %p135 = por %p133, %p134
    %p136 = scmp.ne.s32.totalorder %s125, %s126
    %p137 = scmp.eq.s32.totalorder %s14, 0
    %p138 = por %p136, %p137
    %p139 = scmp.ne.s32.totalorder %s125, %s126
    %p140 = scmp.eq.s32.totalorder %s15, 2
    %p141 = por %p139, %p140
    %p143 = scmp.ne.s32.totalorder %s126, %s142
    %p144 = scmp.eq.s32.totalorder %s15, 0
    %p145 = por %p143, %p144
    %p146 = scmp.le.s32.totalorder 1, %s9
    %p147 = scmp.lt.s32.totalorder %s9, 4
    %p148 = pnand %p146, %p147
    %p149 = pneg %p148
    // Predicated region
    $region9: #{_lambda_.59} parent=5 // pred_check
      _
    $region10: #{_lambda_.59} parent=5 // pred_check_branch
      %151 = sbr.rel (%p148) target = $region12
    $region11: #{_lambda_.59} parent=5 // pred_region
      %s152 = ssub.s32 %s9, 1
      // Predicated region
      $region13: #{_lambda_.59} parent=11 // pred_check
        %p153 = pneg %p110
      $region14: #{_lambda_.59} parent=11 // pred_check_branch
        %155 = sbr.rel (%p153) target = $region16
      $region15: #{_lambda_.59} parent=11 // pred_region
        %p156 = scmp.lt.s32.totalorder %s20, 0
        %s157 = scalar_select %p156, %s20, 0
        %s158 = scalar_lea.vmem %s2, %s157
      $region16: #{_lambda_.59} parent=11 // pred_fallthru
        _
    $region12: #{_lambda_.59} parent=5 // pred_fallthru
      _
    %p159 = scmp.lt.s32.totalorder %s9, 3
    // Predicated region
    $region17: #{_lambda_.59} parent=5 // pred_check
      %p160 = pneg %p159
    $region18: #{_lambda_.59} parent=5 // pred_check_branch
      %162 = sbr.rel (%p160) target = $region20
    $region19: #{_lambda_.59} parent=5 // pred_region
      // Predicated region
      $region21: #{_lambda_.59} parent=19 // pred_check
        %p163 = pneg %p50
      $region22: #{_lambda_.59} parent=19 // pred_check_branch
        %165 = sbr.rel (%p163) target = $region24
      $region23: #{_lambda_.59} parent=19 // pred_region
        %s166 = smul.u32 3, %s18
        %p167 = scmp.lt.s32.totalorder %s16, 0
        %s168 = scalar_select %p167, %s16, 0
        %p169 = scmp.lt.s32.totalorder %s166, 8
        %s170 = scalar_select %p169, %s166, 8
        %s171 = smul.addr %s168, 9
        %s172 = sadd.s32 %s170, %s171
        %s173 = smul.addr %s172, 4
        %s174 = scalar_lea.vmem %s0, %s173
        %s175 = smul.u32 3, %s18
      $region24: #{_lambda_.59} parent=19 // pred_fallthru
        _
      // Predicated region
      $region25: #{_lambda_.59} parent=19 // pred_check
        %p176 = pneg %p78
      $region26: #{_lambda_.59} parent=19 // pred_check_branch
        %178 = sbr.rel (%p176) target = $region28
      $region27: #{_lambda_.59} parent=19 // pred_region
        %s179 = smul.u32 48, %s18
        %p180 = scmp.lt.s32.totalorder %s179, 143
        %s181 = scalar_select %p180, %s179, 143
        %p182 = scmp.lt.s32.totalorder %s17, 0
        %s183 = scalar_select %p182, %s17, 0
        %s184 = sadd.s32 %s183, %s181
        %s185 = smul.addr %s184, 4
        %s186 = scalar_lea.vmem %s1, %s185
        %s187 = smul.u32 48, %s18
      $region28: #{_lambda_.59} parent=19 // pred_fallthru
        _
    $region20: #{_lambda_.59} parent=5 // pred_fallthru
      _
    %p188 = scmp.le.s32.totalorder 1, %s9
    %p189 = scmp.lt.s32.totalorder %s9, 4
    %p190 = pnand %p188, %p189
    %p191 = pneg %p190
    // Predicated region
    $region29: #{_lambda_.59} parent=5 // pred_check
      _
    $region30: #{_lambda_.59} parent=5 // pred_check_branch
      %193 = sbr.rel (%p190) target = $region32
    $region31: #{_lambda_.59} parent=5 // pred_region
      %s194 = ssub.s32 %s9, 1
      %s195 = smul.u32 3, %s21
      %p196 = scmp.lt.s32.totalorder %s19, 0
      %s197 = scalar_select %p196, %s19, 0
      %p198 = scmp.lt.s32.totalorder %s195, 8
      %s199 = scalar_select %p198, %s195, 8
      %s200 = smul.addr %s197, 9
      %s201 = sadd.s32 %s199, %s200
      %s202 = smul.addr %s201, 4
      %s203 = scalar_lea.vmem %s0, %s202
      %p204 = pneg %p56
      %p205 = pneg %p53
      %s206 = smul.u32 48, %s21
      %p207 = scmp.lt.s32.totalorder %s206, 143
      %s208 = scalar_select %p207, %s206, 143
      %p209 = scmp.lt.s32.totalorder %s20, 0
      %s210 = scalar_select %p209, %s20, 0
      %s211 = sadd.s32 %s210, %s208
      %s212 = smul.addr %s211, 4
      %s213 = scalar_lea.vmem %s1, %s212
      %p214 = pneg %p84
      %p215 = pneg %p81
      %p216 = scmp.lt.s32.totalorder %s20, 0
      %s217 = scalar_select %p216, %s20, 0
      %s218 = scalar_lea.vmem %s2, %s217
      %p219 = pneg %p110
      %p220 = pneg %p107
      %p221 = pneg %p138
      %p222 = pneg %p135
      %p223 = scmp.lt.s32.totalorder %s19, 0
      %s224 = scalar_select %p223, %s19, 0
      %p225 = scmp.lt.s32.totalorder %s20, 0
      %s226 = scalar_select %p225, %s20, 0
      %s227 = sadd.s32 %s226, %s224
      %s228 = smul.addr %s227, 4
      %s229 = scalar_lea.vmem %s3, %s228
      %s230 = smul.u32 3, %s21
      %p231 = scmp.lt.s32.totalorder %s19, 0
      %s232 = scalar_select %p231, %s19, 0
      %p233 = scmp.lt.s32.totalorder %s230, 8
      %s234 = scalar_select %p233, %s230, 8
      %s235 = smul.addr %s232, 9
      %s236 = sadd.s32 %s234, %s235
      %s237 = smul.addr %s236, 4
      %s238 = scalar_lea.vmem %s0, %s237
      %s239 = smul.u32 3, %s21
      %s240 = smul.u32 48, %s21
      %p241 = scmp.lt.s32.totalorder %s240, 143
      %s242 = scalar_select %p241, %s240, 143
      %p243 = scmp.lt.s32.totalorder %s20, 0
      %s244 = scalar_select %p243, %s20, 0
      %s245 = sadd.s32 %s244, %s242
      %s246 = smul.addr %s245, 4
      %s247 = scalar_lea.vmem %s1, %s246
      %s248 = smul.u32 48, %s21
      %p249 = scmp.lt.s32.totalorder %s20, 0
      %s250 = scalar_select %p249, %s20, 0
      %s251 = scalar_lea.vmem %s2, %s250
      %p252 = scmp.lt.s32.totalorder %s19, 0
      %s253 = scalar_select %p252, %s19, 0
      %p254 = scmp.lt.s32.totalorder %s20, 0
      %s255 = scalar_select %p254, %s20, 0
      %s256 = sadd.s32 %s255, %s253
      %s257 = smul.addr %s256, 4
      %s258 = scalar_lea.vmem %s3, %s257
      %p260 = scmp.eq.s32.totalorder %s21, 0
      // Predicated region
      $region33: #{_lambda_.59} parent=31 // pred_check
        %p261 = pneg %p260
      $region34: #{_lambda_.59} parent=31 // pred_check_branch
        %263 = sbr.rel (%p261) target = $region36
      $region35: #{_lambda_.59} parent=31 // pred_region
        %264 = vst [vmem:[#allocation2] sm:$0xff] 0.0
      $region36: #{_lambda_.59} parent=31 // pred_fallthru
        _
      %v265 = vld [vmem:[#allocation2] sm:$0xff]
      %v266 = vld [vmem:[%s238] sm:$0xff]
      %v267 = vld [vmem:[%s238 + $0x8] sm:$0xf]
      %v268 = vld [vmem:[%s247] sm:$0xf]
      %v269 = vld [vmem:[%s247 + $0x4] sm:$0xf]
      %v270 = vld [vmem:[%s247 + $0x8] sm:$0xf]
      %v271 = vld [vmem:[%s247 + $0xc] sm:$0xf]
      %v272 = vld [vmem:[%s247 + $0x10] sm:$0xf]
      %v273 = vld [vmem:[%s247 + $0x14] sm:$0xf]
      %v274 = vld [vmem:[%s247 + $0x18] sm:$0xf]
      %v275 = vld [vmem:[%s247 + $0x1c] sm:$0xf]
      %v276 = vld [vmem:[%s247 + $0x20] sm:$0xf]
      %v277 = vld [vmem:[%s247 + $0x24] sm:$0xf]
      %v278 = vld [vmem:[%s247 + $0x28] sm:$0xf]
      %v279 = vld [vmem:[%s247 + $0x2c] sm:$0xf]
      %v280 = vld [vmem:[%s247 + $0x30] sm:$0xf]
      %v281 = vld [vmem:[%s247 + $0x34] sm:$0xf]
      %v282 = vld [vmem:[%s247 + $0x38] sm:$0xf]
      %v283 = vld [vmem:[%s247 + $0x3c] sm:$0xf]
      %v284 = vld [vmem:[%s247 + $0x40] sm:$0xf]
      %v285 = vld [vmem:[%s247 + $0x44] sm:$0xf]
      %v286 = vld [vmem:[%s247 + $0x48] sm:$0xf]
      %v287 = vld [vmem:[%s247 + $0x4c] sm:$0xf]
      %v288 = vld [vmem:[%s247 + $0x50] sm:$0xf]
      %v289 = vld [vmem:[%s247 + $0x54] sm:$0xf]
      %v290 = vld [vmem:[%s247 + $0x58] sm:$0xf]
      %v291 = vld [vmem:[%s247 + $0x5c] sm:$0xf]
      %v292 = vld [vmem:[%s247 + $0x60] sm:$0xf]
      %v293 = vld [vmem:[%s247 + $0x64] sm:$0xf]
      %v294 = vld [vmem:[%s247 + $0x68] sm:$0xf]
      %v295 = vld [vmem:[%s247 + $0x6c] sm:$0xf]
      %v296 = vld [vmem:[%s247 + $0x70] sm:$0xf]
      %v297 = vld [vmem:[%s247 + $0x74] sm:$0xf]
      %v298 = vld [vmem:[%s247 + $0x78] sm:$0xf]
      %v299 = vld [vmem:[%s247 + $0x7c] sm:$0xf]
      %v300 = vld [vmem:[%s247 + $0x80] sm:$0xf]
      %v301 = vld [vmem:[%s247 + $0x84] sm:$0xf]
      %v302 = vld [vmem:[%s247 + $0x88] sm:$0xf]
      %v303 = vld [vmem:[%s247 + $0x8c] sm:$0xf]
      %v304 = vld [vmem:[%s247 + $0x90] sm:$0xf]
      %v305 = vld [vmem:[%s247 + $0x94] sm:$0xf]
      %v306 = vld [vmem:[%s247 + $0x98] sm:$0xf]
      %v307 = vld [vmem:[%s247 + $0x9c] sm:$0xf]
      %v308 = vld [vmem:[%s247 + $0xa0] sm:$0xf]
      %v309 = vld [vmem:[%s247 + $0xa4] sm:$0xf]
      %v310 = vld [vmem:[%s247 + $0xa8] sm:$0xf]
      %v311 = vld [vmem:[%s247 + $0xac] sm:$0xf]
      %v312 = vld [vmem:[%s247 + $0xb0] sm:$0xf]
      %v313 = vld [vmem:[%s247 + $0xb4] sm:$0xf]
      %v314 = vld [vmem:[%s247 + $0xb8] sm:$0xf]
      %v315 = vld [vmem:[%s247 + $0xbc] sm:$0xf]
      %v318 = vunpack.c.l.b16 %v266
      %v319 = vunpack.c.h.b16 %v266
      %v320 = vunpack.c.l.b16 %v267
      %v321 = vpack.c.b16 %v318, %v318
      %v322 = vpack.c.b16 %v319, %v319
      %v323 = vpack.c.b16 %v320, %v320
      %v375 = vunpack.c.l.b16 %v268
      %v376 = vunpack.c.l.b16 %v269
      %v377 = vunpack.c.l.b16 %v270
      %v378 = vunpack.c.l.b16 %v271
      %v379 = vunpack.c.l.b16 %v272
      %v380 = vunpack.c.l.b16 %v273
      %v381 = vunpack.c.l.b16 %v274
      %v382 = vunpack.c.l.b16 %v275
      %v383 = vunpack.c.l.b16 %v276
      %v384 = vunpack.c.l.b16 %v277
      %v385 = vunpack.c.l.b16 %v278
      %v386 = vunpack.c.l.b16 %v279
      %v387 = vunpack.c.l.b16 %v280
      %v388 = vunpack.c.l.b16 %v281
      %v389 = vunpack.c.l.b16 %v282
      %v390 = vunpack.c.l.b16 %v283
      %v391 = vunpack.c.l.b16 %v284
      %v392 = vunpack.c.l.b16 %v285
      %v393 = vunpack.c.l.b16 %v286
      %v394 = vunpack.c.l.b16 %v287
      %v395 = vunpack.c.l.b16 %v288
      %v396 = vunpack.c.l.b16 %v289
      %v397 = vunpack.c.l.b16 %v290
      %v398 = vunpack.c.l.b16 %v291
      %v399 = vunpack.c.l.b16 %v292
      %v400 = vunpack.c.l.b16 %v293
      %v401 = vunpack.c.l.b16 %v294
      %v402 = vunpack.c.l.b16 %v295
      %v403 = vunpack.c.l.b16 %v296
      %v404 = vunpack.c.l.b16 %v297
      %v405 = vunpack.c.l.b16 %v298
      %v406 = vunpack.c.l.b16 %v299
      %v407 = vunpack.c.l.b16 %v300
      %v408 = vunpack.c.l.b16 %v301
      %v409 = vunpack.c.l.b16 %v302
      %v410 = vunpack.c.l.b16 %v303
      %v411 = vunpack.c.l.b16 %v304
      %v412 = vunpack.c.l.b16 %v305
      %v413 = vunpack.c.l.b16 %v306
      %v414 = vunpack.c.l.b16 %v307
      %v415 = vunpack.c.l.b16 %v308
      %v416 = vunpack.c.l.b16 %v309
      %v417 = vunpack.c.l.b16 %v310
      %v418 = vunpack.c.l.b16 %v311
      %v419 = vunpack.c.l.b16 %v312
      %v420 = vunpack.c.l.b16 %v313
      %v421 = vunpack.c.l.b16 %v314
      %v422 = vunpack.c.l.b16 %v315
      %v423 = vpack.c.b16 %v376, %v375
      %v424 = vpack.c.b16 %v378, %v377
      %v425 = vpack.c.b16 %v380, %v379
      %v426 = vpack.c.b16 %v382, %v381
      %v427 = vpack.c.b16 %v384, %v383
      %v428 = vpack.c.b16 %v386, %v385
      %v429 = vpack.c.b16 %v388, %v387
      %v430 = vpack.c.b16 %v390, %v389
      %v431 = vpack.c.b16 %v392, %v391
      %v432 = vpack.c.b16 %v394, %v393
      %v433 = vpack.c.b16 %v396, %v395
      %v434 = vpack.c.b16 %v398, %v397
      %v435 = vpack.c.b16 %v400, %v399
      %v436 = vpack.c.b16 %v402, %v401
      %v437 = vpack.c.b16 %v404, %v403
      %v438 = vpack.c.b16 %v406, %v405
      %v439 = vpack.c.b16 %v408, %v407
      %v440 = vpack.c.b16 %v410, %v409
      %v441 = vpack.c.b16 %v412, %v411
      %v442 = vpack.c.b16 %v414, %v413
      %v443 = vpack.c.b16 %v416, %v415
      %v444 = vpack.c.b16 %v418, %v417
      %v445 = vpack.c.b16 %v420, %v419
      %v446 = vpack.c.b16 %v422, %v421
      %471 = vmatprep.subr.bf16.mxu0 0
      %472 = vmatpush1.bf16.msra.mxu0 %v423
      %473 = vmatprep.subr.bf16.mxu0 0
      %474 = vmatpush1.bf16.msra.mxu0 %v424
      %475 = vmatprep.subr.bf16.mxu0 0
      %476 = vmatpush1.bf16.msra.mxu0 %v425
      %477 = vmatprep.subr.bf16.mxu0 0
      %478 = vmatpush1.bf16.msra.mxu0 %v426
      %479 = vmatprep.subr.bf16.mxu0 0
      %480 = vmatpush1.bf16.msra.mxu0 %v427
      %481 = vmatprep.subr.bf16.mxu0 0
      %482 = vmatpush1.bf16.msra.mxu0 %v428
      %483 = vmatprep.subr.bf16.mxu0 0
      %484 = vmatpush1.bf16.msra.mxu0 %v429
      %485 = vmatprep.subr.bf16.mxu0 0
      %486 = vmatpush1.bf16.msra.mxu0 %v430
      %487 = vmatprep.subr.bf16.mxu0 0
      %488 = vmatpush1.bf16.msra.mxu0 %v431
      %489 = vmatprep.subr.bf16.mxu0 0
      %490 = vmatpush1.bf16.msra.mxu0 %v432
      %491 = vmatprep.subr.bf16.mxu0 0
      %492 = vmatpush1.bf16.msra.mxu0 %v433
      %493 = vmatprep.subr.bf16.mxu0 0
      %494 = vmatpush1.bf16.msra.mxu0 %v434
      %495 = vmatprep.subr.bf16.mxu0 0
      %496 = vmatpush1.bf16.msra.mxu0 %v435
      %497 = vmatprep.subr.bf16.mxu0 0
      %498 = vmatpush1.bf16.msra.mxu0 %v436
      %499 = vmatprep.subr.bf16.mxu0 0
      %500 = vmatpush1.bf16.msra.mxu0 %v437
      %501 = vmatprep.subr.bf16.mxu0 0
      %502 = vmatpush1.bf16.msra.mxu0 %v438
      %503 = vmatprep.mubr.bf16.mxu0 %v322
      %504 = vmatmul.mubr.bf16.gmra.mrb[0].mxu0 %v321
      %v505 = vpop.f32.mrb[0].mxu0
      %v506 = vadd.f32 0.0, %v505
      %v507 = vpop.f32.mrb[0].mxu0
      %v508 = vpop.f32.mrb[0].mxu0
      %v509 = vpop.f32.mrb[0].mxu0
      %510 = vdwg.mxu0
      %511 = vmatprep.subr.bf16.mxu0 0
      %512 = vmatpush1.bf16.msra.mxu0 %v439
      %513 = vmatprep.subr.bf16.mxu0 0
      %514 = vmatpush1.bf16.msra.mxu0 %v440
      %515 = vmatprep.subr.bf16.mxu0 0
      %516 = vmatpush1.bf16.msra.mxu0 %v441
      %517 = vmatprep.subr.bf16.mxu0 0
      %518 = vmatpush1.bf16.msra.mxu0 %v442
      %519 = vmatprep.subr.bf16.mxu0 0
      %520 = vmatpush1.bf16.msra.mxu0 %v443
      %521 = vmatprep.subr.bf16.mxu0 0
      %522 = vmatpush1.bf16.msra.mxu0 %v444
      %523 = vmatprep.subr.bf16.mxu0 0
      %524 = vmatpush1.bf16.msra.mxu0 %v445
      %525 = vmatprep.subr.bf16.mxu0 0
      %526 = vmatpush1.bf16.msra.mxu0 %v446
      %527 = vmatprep.subr.bf16.mxu0 0
      %528 = vmatpush1.bf16.msra.mxu0 0
      %529 = vmatprep.subr.bf16.mxu0 0
      %530 = vmatpush1.bf16.msra.mxu0 0
      %531 = vmatprep.subr.bf16.mxu0 0
      %532 = vmatpush1.bf16.msra.mxu0 0
      %533 = vmatprep.subr.bf16.mxu0 0
      %534 = vmatpush1.bf16.msra.mxu0 0
      %535 = vmatprep.subr.bf16.mxu0 0
      %536 = vmatpush1.bf16.msra.mxu0 0
      %537 = vmatprep.subr.bf16.mxu0 0
      %538 = vmatpush1.bf16.msra.mxu0 0
      %539 = vmatprep.subr.bf16.mxu0 0
      %540 = vmatpush1.bf16.msra.mxu0 0
      %541 = vmatprep.subr.bf16.mxu0 0
      %542 = vmatpush1.bf16.msra.mxu0 0
      %543 = vmatprep.mubr.bf16.mxu0 0
      %544 = vmatmul.mubr.bf16.gmra.mrb[0].mxu0 %v323
      %v545 = vpop.f32.mrb[0].mxu0
      %v546 = vadd.f32 %v506, %v545
      %v547 = vpop.f32.mrb[0].mxu0
      %v548 = vpop.f32.mrb[0].mxu0
      %v549 = vpop.f32.mrb[0].mxu0
      %550 = vdwg.mxu0
      %v551 = vadd.f32 %v265, %v546
      %552 = vst [vmem:[#allocation2] sm:$0xff] %v551
      %p553 = scmp.eq.s32.totalorder %s21, 2
      // Predicated region
      $region37: #{_lambda_.59} parent=31 // pred_check
        %p554 = pneg %p553
      $region38: #{_lambda_.59} parent=31 // pred_check_branch
        %556 = sbr.rel (%p554) target = $region40
      $region39: #{_lambda_.59} parent=31 // pred_region
        %v557 = vld [vmem:[#allocation2] sm:$0xff]
        %v558 = vld [vmem:[%s251] sm:$0x1]
        %v560 = vlaneseq
        %v561 = vshrl.u32 %v560, 7
        %v562 = vsub.s32 0, %v561
        %v563 = vrot.slane %v558, %v562
        %v565 = vadd.f32 %v557, %v563
        %v566 = vmax.f32 %v565, 0.0
        %v567 = vpack.c.bf16 %v566, %v566
        %568 = vst [vmem:[%s258] sm:$0xf] %v567
      $region40: #{_lambda_.59} parent=31 // pred_fallthru
        _
      %p569 = scmp.lt.s32.totalorder %s19, 0
      %s570 = scalar_select %p569, %s19, 0
      %p571 = scmp.lt.s32.totalorder %s20, 0
      %s572 = scalar_select %p571, %s20, 0
      %s573 = sadd.s32 %s572, %s570
      %s574 = smul.addr %s573, 4
      %s575 = scalar_lea.vmem %s3, %s574
      // Predicated region
      $region41: #{_lambda_.59} parent=31 // pred_check
        %p576 = pneg %p135
      $region42: #{_lambda_.59} parent=31 // pred_check_branch
        %578 = sbr.rel (%p576) target = $region44
      $region43: #{_lambda_.59} parent=31 // pred_region
        _
      $region44: #{_lambda_.59} parent=31 // pred_fallthru
        _
      // Predicated region
      $region45: #{_lambda_.59} parent=31 // pred_check
        %p579 = pneg %p135
      $region46: #{_lambda_.59} parent=31 // pred_check_branch
        %581 = sbr.rel (%p579) target = $region48
      $region47: #{_lambda_.59} parent=31 // pred_region
        %p582 = scmp.lt.s32.totalorder %s19, 0
        %s583 = scalar_select %p582, %s19, 0
        %p584 = scmp.lt.s32.totalorder %s20, 0
        %s585 = scalar_select %p584, %s20, 0
        %s586 = sadd.s32 %s585, %s583
        %s587 = smul.addr %s586, 4
        %s588 = scalar_lea.vmem %s3, %s587
      $region48: #{_lambda_.59} parent=31 // pred_fallthru
        _
    $region32: #{_lambda_.59} parent=5 // pred_fallthru
      _
    %p589 = scmp.le.s32.totalorder 2, %s9
    // Predicated region
    $region49: #{_lambda_.59} parent=5 // pred_check
      %p590 = pneg %p589
    $region50: #{_lambda_.59} parent=5 // pred_check_branch
      %592 = sbr.rel (%p590) target = $region52
    $region51: #{_lambda_.59} parent=5 // pred_region
      %s593 = ssub.s32 %s9, 2
    $region52: #{_lambda_.59} parent=5 // pred_fallthru
      _
  $region6: #{_lambda_.59} parent=0 // loop_footer
    %s13 = sadd.s32 1, %s9
  $region7: #{_lambda_.59} parent=0 // loop_footer_branch
    %8 = sbr.rel target = $region3
  $region8: #{_lambda_.59} parent=0 // loop_exit
    _

// kernel: _lambda_.62
$region0: #{_lambda_.62}
  #allocation0 [shape = 'u32[]', space=smem, size = 0x4, offset = 0x4, fixed_abs, tag = 'smem constant byte address 0x4 - core index']
  #allocation1 [shape = 'u32[144,128]{1,0:T(1,128)}', space=vmem, size = 0x12000, scoped, tag = 'internal scratch']
  #allocation2 [shape = 'f32[8,128]{1,0:T(8,128)}', space=vmem, size = 0x1000, scoped, tag = 'scratch operand']
  %s0 = inlined_call_operand.vmem [shape: bf16[8,512], index: 0, kind: input, shape index: {}]
  %s1 = inlined_call_operand.vmem [shape: bf16[512,128], index: 1, kind: input, shape index: {}]
  %s2 = inlined_call_operand.vmem [shape: f32[1,128], index: 2, kind: input, shape index: {}]
  %s3 = inlined_call_operand.vmem [shape: bf16[8,128], index: 3, kind: output, shape index: {}]
  %s4 = sld [smem:[#allocation0]]
  $region30: #{_lambda_.62} parent=0
    _
  %s6 = ssub.s32 1, %s4
  %s7 = scalar_select 0, %s6, %s4
  // Predicated region
  $region2: #{_lambda_.62} parent=0 // pred_check
    _
  $region3: #{_lambda_.62} parent=0 // pred_check_branch
    %9 = sbr.rel (0) target = $region5
  $region4: #{_lambda_.62} parent=0 // pred_region
    _
  $region5: #{_lambda_.62} parent=0 // pred_fallthru
    _
  // Predicated region
  $region6: #{_lambda_.62} parent=0 // pred_check
    _
  $region7: #{_lambda_.62} parent=0 // pred_check_branch
    %11 = sbr.rel (0) target = $region9
  $region8: #{_lambda_.62} parent=0 // pred_region
    _
  $region9: #{_lambda_.62} parent=0 // pred_fallthru
    _
  // Predicated region
  $region10: #{_lambda_.62} parent=0 // pred_check
    _
  $region11: #{_lambda_.62} parent=0 // pred_check_branch
    %13 = sbr.rel (0) target = $region13
  $region12: #{_lambda_.62} parent=0 // pred_region
    _
  $region13: #{_lambda_.62} parent=0 // pred_fallthru
    _
  %p15 = scmp.eq.s32.totalorder 0, 0
  // Predicated region
  $region14: #{_lambda_.62} parent=0 // pred_check
    %p16 = pneg %p15
  $region15: #{_lambda_.62} parent=0 // pred_check_branch
    %18 = sbr.rel (%p16) target = $region17
  $region16: #{_lambda_.62} parent=0 // pred_region
    %19 = vst [vmem:[#allocation2] sm:$0xff] 0.0
  $region17: #{_lambda_.62} parent=0 // pred_fallthru
    _
  %v20 = vld [vmem:[#allocation2] sm:$0xff]
  %v21 = vld [vmem:[%s0] sm:$0xff]
  %v22 = vld [vmem:[%s0 + $0x8] sm:$0xff]
  %v23 = vld [vmem:[%s1] sm:$0xf]
  %v24 = vld [vmem:[%s1 + $0x4] sm:$0xf]
  %v25 = vld [vmem:[%s1 + $0x8] sm:$0xf]
  %v26 = vld [vmem:[%s1 + $0xc] sm:$0xf]
  %v27 = vld [vmem:[%s1 + $0x10] sm:$0xf]
  %v28 = vld [vmem:[%s1 + $0x14] sm:$0xf]
  %v29 = vld [vmem:[%s1 + $0x18] sm:$0xf]
  %v30 = vld [vmem:[%s1 + $0x1c] sm:$0xf]
  %v31 = vld [vmem:[%s1 + $0x20] sm:$0xf]
  %v32 = vld [vmem:[%s1 + $0x24] sm:$0xf]
  %v33 = vld [vmem:[%s1 + $0x28] sm:$0xf]
  %v34 = vld [vmem:[%s1 + $0x2c] sm:$0xf]
  %v35 = vld [vmem:[%s1 + $0x30] sm:$0xf]
  %v36 = vld [vmem:[%s1 + $0x34] sm:$0xf]
  %v37 = vld [vmem:[%s1 + $0x38] sm:$0xf]
  %v38 = vld [vmem:[%s1 + $0x3c] sm:$0xf]
  %v39 = vld [vmem:[%s1 + $0x40] sm:$0xf]
  %v40 = vld [vmem:[%s1 + $0x44] sm:$0xf]
  %v41 = vld [vmem:[%s1 + $0x48] sm:$0xf]
  %v42 = vld [vmem:[%s1 + $0x4c] sm:$0xf]
  %v43 = vld [vmem:[%s1 + $0x50] sm:$0xf]
  %v44 = vld [vmem:[%s1 + $0x54] sm:$0xf]
  %v45 = vld [vmem:[%s1 + $0x58] sm:$0xf]
  %v46 = vld [vmem:[%s1 + $0x5c] sm:$0xf]
  %v47 = vld [vmem:[%s1 + $0x60] sm:$0xf]
  %v48 = vld [vmem:[%s1 + $0x64] sm:$0xf]
  %v49 = vld [vmem:[%s1 + $0x68] sm:$0xf]
  %v50 = vld [vmem:[%s1 + $0x6c] sm:$0xf]
  %v51 = vld [vmem:[%s1 + $0x70] sm:$0xf]
  %v52 = vld [vmem:[%s1 + $0x74] sm:$0xf]
  %v53 = vld [vmem:[%s1 + $0x78] sm:$0xf]
  %v54 = vld [vmem:[%s1 + $0x7c] sm:$0xf]
  %v55 = vld [vmem:[%s1 + $0x80] sm:$0xf]
  %v56 = vld [vmem:[%s1 + $0x84] sm:$0xf]
  %v57 = vld [vmem:[%s1 + $0x88] sm:$0xf]
  %v58 = vld [vmem:[%s1 + $0x8c] sm:$0xf]
  %v59 = vld [vmem:[%s1 + $0x90] sm:$0xf]
  %v60 = vld [vmem:[%s1 + $0x94] sm:$0xf]
  %v61 = vld [vmem:[%s1 + $0x98] sm:$0xf]
  %v62 = vld [vmem:[%s1 + $0x9c] sm:$0xf]
  %v63 = vld [vmem:[%s1 + $0xa0] sm:$0xf]
  %v64 = vld [vmem:[%s1 + $0xa4] sm:$0xf]
  %v65 = vld [vmem:[%s1 + $0xa8] sm:$0xf]
  %v66 = vld [vmem:[%s1 + $0xac] sm:$0xf]
  %v67 = vld [vmem:[%s1 + $0xb0] sm:$0xf]
  %v68 = vld [vmem:[%s1 + $0xb4] sm:$0xf]
  %v69 = vld [vmem:[%s1 + $0xb8] sm:$0xf]
  %v70 = vld [vmem:[%s1 + $0xbc] sm:$0xf]
  %v71 = vld [vmem:[%s1 + $0xc0] sm:$0xf]
  %v72 = vld [vmem:[%s1 + $0xc4] sm:$0xf]
  %v73 = vld [vmem:[%s1 + $0xc8] sm:$0xf]
  %v74 = vld [vmem:[%s1 + $0xcc] sm:$0xf]
  %v75 = vld [vmem:[%s1 + $0xd0] sm:$0xf]
  %v76 = vld [vmem:[%s1 + $0xd4] sm:$0xf]
  %v77 = vld [vmem:[%s1 + $0xd8] sm:$0xf]
  %v78 = vld [vmem:[%s1 + $0xdc] sm:$0xf]
  %v79 = vld [vmem:[%s1 + $0xe0] sm:$0xf]
  %v80 = vld [vmem:[%s1 + $0xe4] sm:$0xf]
  %v81 = vld [vmem:[%s1 + $0xe8] sm:$0xf]
  %v82 = vld [vmem:[%s1 + $0xec] sm:$0xf]
  %v83 = vld [vmem:[%s1 + $0xf0] sm:$0xf]
  %v84 = vld [vmem:[%s1 + $0xf4] sm:$0xf]
  %v85 = vld [vmem:[%s1 + $0xf8] sm:$0xf]
  %v86 = vld [vmem:[%s1 + $0xfc] sm:$0xf]
  %v89 = vunpack.c.l.b16 %v21
  %v90 = vunpack.c.h.b16 %v21
  %v91 = vunpack.c.l.b16 %v22
  %v92 = vunpack.c.h.b16 %v22
  %v93 = vpack.c.b16 %v89, %v89
  %v94 = vpack.c.b16 %v90, %v90
  %v95 = vpack.c.b16 %v91, %v91
  %v96 = vpack.c.b16 %v92, %v92
  %v165 = vunpack.c.l.b16 %v23
  %v166 = vunpack.c.l.b16 %v24
  %v167 = vunpack.c.l.b16 %v25
  %v168 = vunpack.c.l.b16 %v26
  %v169 = vunpack.c.l.b16 %v27
  %v170 = vunpack.c.l.b16 %v28
  %v171 = vunpack.c.l.b16 %v29
  %v172 = vunpack.c.l.b16 %v30
  %v173 = vunpack.c.l.b16 %v31
  %v174 = vunpack.c.l.b16 %v32
  %v175 = vunpack.c.l.b16 %v33
  %v176 = vunpack.c.l.b16 %v34
  %v177 = vunpack.c.l.b16 %v35
  %v178 = vunpack.c.l.b16 %v36
  %v179 = vunpack.c.l.b16 %v37
  %v180 = vunpack.c.l.b16 %v38
  %v181 = vunpack.c.l.b16 %v39
  %v182 = vunpack.c.l.b16 %v40
  %v183 = vunpack.c.l.b16 %v41
  %v184 = vunpack.c.l.b16 %v42
  %v185 = vunpack.c.l.b16 %v43
  %v186 = vunpack.c.l.b16 %v44
  %v187 = vunpack.c.l.b16 %v45
  %v188 = vunpack.c.l.b16 %v46
  %v189 = vunpack.c.l.b16 %v47
  %v190 = vunpack.c.l.b16 %v48
  %v191 = vunpack.c.l.b16 %v49
  %v192 = vunpack.c.l.b16 %v50
  %v193 = vunpack.c.l.b16 %v51
  %v194 = vunpack.c.l.b16 %v52
  %v195 = vunpack.c.l.b16 %v53
  %v196 = vunpack.c.l.b16 %v54
  %v197 = vunpack.c.l.b16 %v55
  %v198 = vunpack.c.l.b16 %v56
  %v199 = vunpack.c.l.b16 %v57
  %v200 = vunpack.c.l.b16 %v58
  %v201 = vunpack.c.l.b16 %v59
  %v202 = vunpack.c.l.b16 %v60
  %v203 = vunpack.c.l.b16 %v61
  %v204 = vunpack.c.l.b16 %v62
  %v205 = vunpack.c.l.b16 %v63
  %v206 = vunpack.c.l.b16 %v64
  %v207 = vunpack.c.l.b16 %v65
  %v208 = vunpack.c.l.b16 %v66
  %v209 = vunpack.c.l.b16 %v67
  %v210 = vunpack.c.l.b16 %v68
  %v211 = vunpack.c.l.b16 %v69
  %v212 = vunpack.c.l.b16 %v70
  %v213 = vunpack.c.l.b16 %v71
  %v214 = vunpack.c.l.b16 %v72
  %v215 = vunpack.c.l.b16 %v73
  %v216 = vunpack.c.l.b16 %v74
  %v217 = vunpack.c.l.b16 %v75
  %v218 = vunpack.c.l.b16 %v76
  %v219 = vunpack.c.l.b16 %v77
  %v220 = vunpack.c.l.b16 %v78
  %v221 = vunpack.c.l.b16 %v79
  %v222 = vunpack.c.l.b16 %v80
  %v223 = vunpack.c.l.b16 %v81
  %v224 = vunpack.c.l.b16 %v82
  %v225 = vunpack.c.l.b16 %v83
  %v226 = vunpack.c.l.b16 %v84
  %v227 = vunpack.c.l.b16 %v85
  %v228 = vunpack.c.l.b16 %v86
  %v229 = vpack.c.b16 %v166, %v165
  %v230 = vpack.c.b16 %v168, %v167
  %v231 = vpack.c.b16 %v170, %v169
  %v232 = vpack.c.b16 %v172, %v171
  %v233 = vpack.c.b16 %v174, %v173
  %v234 = vpack.c.b16 %v176, %v175
  %v235 = vpack.c.b16 %v178, %v177
  %v236 = vpack.c.b16 %v180, %v179
  %v237 = vpack.c.b16 %v182, %v181
  %v238 = vpack.c.b16 %v184, %v183
  %v239 = vpack.c.b16 %v186, %v185
  %v240 = vpack.c.b16 %v188, %v187
  %v241 = vpack.c.b16 %v190, %v189
  %v242 = vpack.c.b16 %v192, %v191
  %v243 = vpack.c.b16 %v194, %v193
  %v244 = vpack.c.b16 %v196, %v195
  %v245 = vpack.c.b16 %v198, %v197
  %v246 = vpack.c.b16 %v200, %v199
  %v247 = vpack.c.b16 %v202, %v201
  %v248 = vpack.c.b16 %v204, %v203
  %v249 = vpack.c.b16 %v206, %v205
  %v250 = vpack.c.b16 %v208, %v207
  %v251 = vpack.c.b16 %v210, %v209
  %v252 = vpack.c.b16 %v212, %v211
  %v253 = vpack.c.b16 %v214, %v213
  %v254 = vpack.c.b16 %v216, %v215
  %v255 = vpack.c.b16 %v218, %v217
  %v256 = vpack.c.b16 %v220, %v219
  %v257 = vpack.c.b16 %v222, %v221
  %v258 = vpack.c.b16 %v224, %v223
  %v259 = vpack.c.b16 %v226, %v225
  %v260 = vpack.c.b16 %v228, %v227
  %293 = vmatprep.subr.bf16.mxu0 0
  %294 = vmatpush1.bf16.msra.mxu0 %v229
  %295 = vmatprep.subr.bf16.mxu0 0
  %296 = vmatpush1.bf16.msra.mxu0 %v230
  %297 = vmatprep.subr.bf16.mxu0 0
  %298 = vmatpush1.bf16.msra.mxu0 %v231
  %299 = vmatprep.subr.bf16.mxu0 0
  %300 = vmatpush1.bf16.msra.mxu0 %v232
  %301 = vmatprep.subr.bf16.mxu0 0
  %302 = vmatpush1.bf16.msra.mxu0 %v233
  %303 = vmatprep.subr.bf16.mxu0 0
  %304 = vmatpush1.bf16.msra.mxu0 %v234
  %305 = vmatprep.subr.bf16.mxu0 0
  %306 = vmatpush1.bf16.msra.mxu0 %v235
  %307 = vmatprep.subr.bf16.mxu0 0
  %308 = vmatpush1.bf16.msra.mxu0 %v236
  %309 = vmatprep.subr.bf16.mxu0 0
  %310 = vmatpush1.bf16.msra.mxu0 %v237
  %311 = vmatprep.subr.bf16.mxu0 0
  %312 = vmatpush1.bf16.msra.mxu0 %v238
  %313 = vmatprep.subr.bf16.mxu0 0
  %314 = vmatpush1.bf16.msra.mxu0 %v239
  %315 = vmatprep.subr.bf16.mxu0 0
  %316 = vmatpush1.bf16.msra.mxu0 %v240
  %317 = vmatprep.subr.bf16.mxu0 0
  %318 = vmatpush1.bf16.msra.mxu0 %v241
  %319 = vmatprep.subr.bf16.mxu0 0
  %320 = vmatpush1.bf16.msra.mxu0 %v242
  %321 = vmatprep.subr.bf16.mxu0 0
  %322 = vmatpush1.bf16.msra.mxu0 %v243
  %323 = vmatprep.subr.bf16.mxu0 0
  %324 = vmatpush1.bf16.msra.mxu0 %v244
  %325 = vmatprep.mubr.bf16.mxu0 %v94
  %326 = vmatmul.mubr.bf16.gmra.mrb[0].mxu0 %v93
  %v327 = vpop.f32.mrb[0].mxu0
  %v328 = vadd.f32 0.0, %v327
  %v329 = vpop.f32.mrb[0].mxu0
  %v330 = vpop.f32.mrb[0].mxu0
  %v331 = vpop.f32.mrb[0].mxu0
  %332 = vdwg.mxu0
  %333 = vmatprep.subr.bf16.mxu0 0
  %334 = vmatpush1.bf16.msra.mxu0 %v245
  %335 = vmatprep.subr.bf16.mxu0 0
  %336 = vmatpush1.bf16.msra.mxu0 %v246
  %337 = vmatprep.subr.bf16.mxu0 0
  %338 = vmatpush1.bf16.msra.mxu0 %v247
  %339 = vmatprep.subr.bf16.mxu0 0
  %340 = vmatpush1.bf16.msra.mxu0 %v248
  %341 = vmatprep.subr.bf16.mxu0 0
  %342 = vmatpush1.bf16.msra.mxu0 %v249
  %343 = vmatprep.subr.bf16.mxu0 0
  %344 = vmatpush1.bf16.msra.mxu0 %v250
  %345 = vmatprep.subr.bf16.mxu0 0
  %346 = vmatpush1.bf16.msra.mxu0 %v251
  %347 = vmatprep.subr.bf16.mxu0 0
  %348 = vmatpush1.bf16.msra.mxu0 %v252
  %349 = vmatprep.subr.bf16.mxu0 0
  %350 = vmatpush1.bf16.msra.mxu0 %v253
  %351 = vmatprep.subr.bf16.mxu0 0
  %352 = vmatpush1.bf16.msra.mxu0 %v254
  %353 = vmatprep.subr.bf16.mxu0 0
  %354 = vmatpush1.bf16.msra.mxu0 %v255
  %355 = vmatprep.subr.bf16.mxu0 0
  %356 = vmatpush1.bf16.msra.mxu0 %v256
  %357 = vmatprep.subr.bf16.mxu0 0
  %358 = vmatpush1.bf16.msra.mxu0 %v257
  %359 = vmatprep.subr.bf16.mxu0 0
  %360 = vmatpush1.bf16.msra.mxu0 %v258
  %361 = vmatprep.subr.bf16.mxu0 0
  %362 = vmatpush1.bf16.msra.mxu0 %v259
  %363 = vmatprep.subr.bf16.mxu0 0
  %364 = vmatpush1.bf16.msra.mxu0 %v260
  %365 = vmatprep.mubr.bf16.mxu0 %v96
  %366 = vmatmul.mubr.bf16.gmra.mrb[0].mxu0 %v95
  %v367 = vpop.f32.mrb[0].mxu0
  %v368 = vadd.f32 %v328, %v367
  %v369 = vpop.f32.mrb[0].mxu0
  %v370 = vpop.f32.mrb[0].mxu0
  %v371 = vpop.f32.mrb[0].mxu0
  %372 = vdwg.mxu0
  %v373 = vadd.f32 %v20, %v368
  %374 = vst [vmem:[#allocation2] sm:$0xff] %v373
  // Predicated region
  $region18: #{_lambda_.62} parent=0 // pred_check
    %p375 = pneg %p15
  $region19: #{_lambda_.62} parent=0 // pred_check_branch
    %377 = sbr.rel (%p375) target = $region21
  $region20: #{_lambda_.62} parent=0 // pred_region
    %v378 = vld [vmem:[#allocation2] sm:$0xff]
    %v379 = vld [vmem:[%s2] sm:$0x1]
    %v381 = vlaneseq
    %v382 = vshrl.u32 %v381, 7
    %v383 = vsub.s32 0, %v382
    %v384 = vrot.slane %v379, %v383
    %v386 = vadd.f32 %v378, %v384
    %v387 = vmax.f32 %v386, 0.0
    %v388 = vpack.c.bf16 %v387, %v387
    %389 = vst [vmem:[%s3] sm:$0xf] %v388
  $region21: #{_lambda_.62} parent=0 // pred_fallthru
    _
  // Predicated region
  $region22: #{_lambda_.62} parent=0 // pred_check
    _
  $region23: #{_lambda_.62} parent=0 // pred_check_branch
    %391 = sbr.rel (0) target = $region25
  $region24: #{_lambda_.62} parent=0 // pred_region
    _
  $region25: #{_lambda_.62} parent=0 // pred_fallthru
    _
  // Predicated region
  $region26: #{_lambda_.62} parent=0 // pred_check
    _
  $region27: #{_lambda_.62} parent=0 // pred_check_branch
    %393 = sbr.rel (0) target = $region29
  $region28: #{_lambda_.62} parent=0 // pred_region
    _
  $region29: #{_lambda_.62} parent=0 // pred_fallthru
    _

// kernel: _lambda_.61
$region0: #{_lambda_.61}
  #allocation0 [shape = 'u32[]', space=smem, size = 0x4, offset = 0x4, fixed_abs, tag = 'smem constant byte address 0x4 - core index']
  #allocation1 [shape = 'u32[144,128]{1,0:T(1,128)}', space=vmem, size = 0x12000, scoped, tag = 'internal scratch']
  #allocation2 [shape = 'f32[8,256]{1,0:T(8,128)}', space=vmem, size = 0x2000, scoped, tag = 'scratch operand']
  %s0 = inlined_call_operand.vmem [shape: bf16[8,128], index: 0, kind: input, shape index: {}]
  %s1 = inlined_call_operand.vmem [shape: bf16[128,512], index: 1, kind: input, shape index: {}]
  %s2 = inlined_call_operand.vmem [shape: f32[1,512], index: 2, kind: input, shape index: {}]
  %s3 = inlined_call_operand.vmem [shape: bf16[8,512], index: 3, kind: input, shape index: {}]
  %s4 = inlined_call_operand.vmem [shape: bf16[8,512], index: 4, kind: output, shape index: {}]
  %s5 = sld [smem:[#allocation0]]
  $region95: #{_lambda_.61} parent=0
    _
  %s7 = ssub.s32 1, %s5
  %s8 = scalar_select 0, %s7, %s5
  $region1: #{_lambda_.61} parent=0
    #allocation3 [shape = 'u8[131072]{0}', space=vmem, size = 0x20000, scoped, tag = 'input window, operand 1']
    loop: start=0, step=1, limit=4
    $region2: #{_lambda_.61} parent=1 // loop_pre_header
      _
    $region3: #{_lambda_.61} parent=1 // loop_header
      %s10 = sphi 0, %s14
      %p11 = scmp.ge.s32.totalorder %s10, 4
      %s17 = sphi 0, %s36
      %s18 = sphi 0, %s32
      %s19 = sphi 0, %s28
      %s20 = sphi 0, %s17
      %s21 = sphi 0, %s18
      %s22 = sphi 0, %s19
      %s23 = sphi 0, %s20
      %s24 = sphi 0, %s21
      %s25 = sphi 0, %s22
      %s41 = sphi 0, %s43
      %s44 = sphi 0, %s41
      %s45 = sphi 0, %s44
      %s61 = sphi 0, %s45
      %s69 = sphi 0, %s71
      %s72 = sphi 0, %s69
      %s73 = sphi 0, %s72
      %s89 = sphi 0, %s73
      %s95 = sphi 0, %s97
      %s98 = sphi 0, %s95
      %s99 = sphi 0, %s98
      %s115 = sphi 0, %s99
      %s123 = sphi 0, %s125
      %s126 = sphi 0, %s123
      %s127 = sphi 0, %s126
      %s143 = sphi 0, %s127
      %s151 = sphi 0, %s153
      %s154 = sphi 0, %s151
      %s155 = sphi 0, %s154
      %s171 = sphi 0, %s155
    $region4: #{_lambda_.61} parent=1 // loop_header_branch
      %13 = sbr.rel (%p11) target = $region8
    $region5: #{_lambda_.61} parent=1 // loop_body
      %s15 = ssub.s32 %s10, 1
      %s16 = ssub.s32 %s10, 2
      %s26 = sadd.s32 1, %s19
      %p27 = scmp.ge.s32.totalorder %s26, 1
      %s28 = scalar_select %p27, 0, %s26
      %s29 = sadd.s32 1, %s18
      %s30 = scalar_select %p27, %s29, %s18
      %p31 = scmp.ge.s32.totalorder %s30, 2
      %s32 = scalar_select %p31, 0, %s30
      %s33 = sadd.s32 1, %s17
      %s34 = scalar_select %p31, %s33, %s17
      %p35 = scmp.ge.s32.totalorder %s34, 1
      %s36 = scalar_select %p35, 0, %s34
      %s37 = ssub.s32 %s17, %s36
      %s38 = ssub.s32 %s19, %s28
      %s39 = sor.u32 %s37, %s38
      %p40 = scmp.eq.s32.totalorder %s39, 0
      %s42 = sadd.s32 %s41, 1
      %s43 = scalar_select %p40, %s41, %s42
      %p46 = pneg %p40
      %p47 = scmp.eq.s32.totalorder %s10, 1
      %p48 = por %p46, %p47
      %p49 = scmp.ne.s32.totalorder %s41, %s44
      %p50 = scmp.eq.s32.totalorder %s10, 0
      %p51 = por %p49, %p50
      %p52 = scmp.ne.s32.totalorder %s41, %s44
      %p53 = scmp.eq.s32.totalorder %s15, 1
      %p54 = por %p52, %p53
      %p55 = scmp.ne.s32.totalorder %s44, %s45
      %p56 = scmp.eq.s32.totalorder %s15, 0
      %p57 = por %p55, %p56
      %p58 = scmp.ne.s32.totalorder %s44, %s45
      %p59 = scmp.eq.s32.totalorder %s16, 1
      %p60 = por %p58, %p59
      %p62 = scmp.ne.s32.totalorder %s45, %s61
      %p63 = scmp.eq.s32.totalorder %s16, 0
      %p64 = por %p62, %p63
      %s65 = ssub.s32 %s19, %s28
      %s66 = ssub.s32 %s18, %s32
      %s67 = sor.u32 %s65, %s66
      %p68 = scmp.eq.s32.totalorder %s67, 0
      %s70 = sadd.s32 %s69, 1
      %s71 = scalar_select %p68, %s69, %s70
      %p74 = pneg %p68
      %p75 = scmp.eq.s32.totalorder %s10, 1
      %p76 = por %p74, %p75
      %p77 = scmp.ne.s32.totalorder %s69, %s72
      %p78 = scmp.eq.s32.totalorder %s10, 0
      %p79 = por %p77, %p78
      %p80 = scmp.ne.s32.totalorder %s69, %s72
      %p81 = scmp.eq.s32.totalorder %s15, 1
      %p82 = por %p80, %p81
      %p83 = scmp.ne.s32.totalorder %s72, %s73
      %p84 = scmp.eq.s32.totalorder %s15, 0
      %p85 = por %p83, %p84
      %p86 = scmp.ne.s32.totalorder %s72, %s73
      %p87 = scmp.eq.s32.totalorder %s16, 1
      %p88 = por %p86, %p87
      %p90 = scmp.ne.s32.totalorder %s73, %s89
      %p91 = scmp.eq.s32.totalorder %s16, 0
      %p92 = por %p90, %p91
      %s93 = ssub.s32 %s18, %s32
      %p94 = scmp.eq.s32.totalorder %s93, 0
      %s96 = sadd.s32 %s95, 1
      %s97 = scalar_select %p94, %s95, %s96
      %p100 = pneg %p94
      %p101 = scmp.eq.s32.totalorder %s10, 1
      %p102 = por %p100, %p101
      %p103 = scmp.ne.s32.totalorder %s95, %s98
      %p104 = scmp.eq.s32.totalorder %s10, 0
      %p105 = por %p103, %p104
      %p106 = scmp.ne.s32.totalorder %s95, %s98
      %p107 = scmp.eq.s32.totalorder %s15, 1
      %p108 = por %p106, %p107
      %p109 = scmp.ne.s32.totalorder %s98, %s99
      %p110 = scmp.eq.s32.totalorder %s15, 0
      %p111 = por %p109, %p110
      %p112 = scmp.ne.s32.totalorder %s98, %s99
      %p113 = scmp.eq.s32.totalorder %s16, 1
      %p114 = por %p112, %p113
      %p116 = scmp.ne.s32.totalorder %s99, %s115
      %p117 = scmp.eq.s32.totalorder %s16, 0
      %p118 = por %p116, %p117
      %s119 = ssub.s32 %s17, %s36
      %s120 = ssub.s32 %s18, %s32
      %s121 = sor.u32 %s119, %s120
      %p122 = scmp.eq.s32.totalorder %s121, 0
      %s124 = sadd.s32 %s123, 1
      %s125 = scalar_select %p122, %s123, %s124
      %p128 = pneg %p122
      %p129 = scmp.eq.s32.totalorder %s10, 1
      %p130 = por %p128, %p129
      %p131 = scmp.ne.s32.totalorder %s123, %s126
      %p132 = scmp.eq.s32.totalorder %s10, 0
      %p133 = por %p131, %p132
      %p134 = scmp.ne.s32.totalorder %s123, %s126
      %p135 = scmp.eq.s32.totalorder %s15, 1
      %p136 = por %p134, %p135
      %p137 = scmp.ne.s32.totalorder %s126, %s127
      %p138 = scmp.eq.s32.totalorder %s15, 0
      %p139 = por %p137, %p138
      %p140 = scmp.ne.s32.totalorder %s126, %s127
      %p141 = scmp.eq.s32.totalorder %s16, 1
      %p142 = por %p140, %p141
      %p144 = scmp.ne.s32.totalorder %s127, %s143
      %p145 = scmp.eq.s32.totalorder %s16, 0
      %p146 = por %p144, %p145
      %s147 = ssub.s32 %s17, %s36
      %s148 = ssub.s32 %s18, %s32
      %s149 = sor.u32 %s147, %s148
      %p150 = scmp.eq.s32.totalorder %s149, 0
      %s152 = sadd.s32 %s151, 1
      %s153 = scalar_select %p150, %s151, %s152
      %p156 = pneg %p150
      %p157 = scmp.eq.s32.totalorder %s10, 1
      %p158 = por %p156, %p157
      %p159 = scmp.ne.s32.totalorder %s151, %s154
      %p160 = scmp.eq.s32.totalorder %s10, 0
      %p161 = por %p159, %p160
      %p162 = scmp.ne.s32.totalorder %s151, %s154
      %p163 = scmp.eq.s32.totalorder %s15, 1
      %p164 = por %p162, %p163
      %p165 = scmp.ne.s32.totalorder %s154, %s155
      %p166 = scmp.eq.s32.totalorder %s15, 0
      %p167 = por %p165, %p166
      %p168 = scmp.ne.s32.totalorder %s154, %s155
      %p169 = scmp.eq.s32.totalorder %s16, 1
      %p170 = por %p168, %p169
      %p172 = scmp.ne.s32.totalorder %s155, %s171
      %p173 = scmp.eq.s32.totalorder %s16, 0
      %p174 = por %p172, %p173
      %p175 = scmp.le.s32.totalorder 1, %s10
      %p176 = scmp.lt.s32.totalorder %s10, 3
      %p177 = pnand %p175, %p176
      %p178 = pneg %p177
      // Predicated region
      $region9: #{_lambda_.61} parent=5 // pred_check
        _
      $region10: #{_lambda_.61} parent=5 // pred_check_branch
        %180 = sbr.rel (%p177) target = $region12
      $region11: #{_lambda_.61} parent=5 // pred_region
        %s181 = ssub.s32 %s10, 1
        // Predicated region
        $region13: #{_lambda_.61} parent=11 // pred_check
          %p182 = pneg %p57
        $region14: #{_lambda_.61} parent=11 // pred_check_branch
          %184 = sbr.rel (%p182) target = $region16
        $region15: #{_lambda_.61} parent=11 // pred_region
          %p185 = scmp.lt.s32.totalorder %s20, 0
          %s186 = scalar_select %p185, %s20, 0
          %p187 = scmp.lt.s32.totalorder %s22, 0
          %s188 = scalar_select %p187, %s22, 0
          %s189 = sadd.s32 %s188, %s186
          %s190 = smul.addr %s189, 4
          %s191 = scalar_lea.vmem %s0, %s190
        $region16: #{_lambda_.61} parent=11 // pred_fallthru
          _
      $region12: #{_lambda_.61} parent=5 // pred_fallthru
        _
      %p192 = scmp.lt.s32.totalorder %s10, 2
      // Predicated region
      $region17: #{_lambda_.61} parent=5 // pred_check
        %p193 = pneg %p192
      $region18: #{_lambda_.61} parent=5 // pred_check_branch
        %195 = sbr.rel (%p193) target = $region20
      $region19: #{_lambda_.61} parent=5 // pred_region
        // Predicated region
        $region21: #{_lambda_.61} parent=19 // pred_check
          %p196 = pneg %p79
        $region22: #{_lambda_.61} parent=19 // pred_check_branch
          %198 = sbr.rel (%p196) target = $region24
        $region23: #{_lambda_.61} parent=19 // pred_region
          %s199 = sand.u32 %s69, 1
          %s200 = sand.u32 %s69, 1
          %s201 = smul.addr %s200, 128
          %s202 = scalar_lea.vmem [#allocation3], %s201
          %s203 = smul.u32 16, %s19
          %s204 = smul.u32 2, %s18
          %s205 = smul.addr %s203, 4
          %s206 = sadd.s32 %s204, %s205
          %s207 = smul.addr %s206, 4
          %s208 = scalar_lea.vmem %s1, %s207
          // Predicated region
          $region25: #{_lambda_.61} parent=23 // pred_check
            _
          $region26: #{_lambda_.61} parent=23 // pred_check_branch
            %210 = sbr.rel (0) target = $region28
          $region27: #{_lambda_.61} parent=23 // pred_region
            // Predicated region
            $region29: #{_lambda_.61} parent=27 // pred_check
              _
            $region30: #{_lambda_.61} parent=27 // pred_check_branch
              %212 = sbr.rel (0) target = $region32
            $region31: #{_lambda_.61} parent=27 // pred_region
              // Predicated region
              $region44: #{_lambda_.61} parent=31 // pred_check
                _
              $region45: #{_lambda_.61} parent=31 // pred_check_branch
                %257 = sbr.rel (0) target = $region47
              $region46: #{_lambda_.61} parent=31 // pred_region
                loop: start=0, step=1, limit=1
                $region48: #{_lambda_.61} parent=46 // loop_pre_header
                  _
                $region49: #{_lambda_.61} parent=46 // loop_header
                  %s259 = sphi 0, %s263
                  %p260 = scmp.ge.s32.totalorder %s259, 1
                  %s264 = sphi %s208, %s208
                  %s265 = sphi %s202, %s202
                $region50: #{_lambda_.61} parent=46 // loop_header_branch
                  %262 = sbr.rel (%p260) target = $region54
                $region51: #{_lambda_.61} parent=46 // loop_body
                  %v266 = vld [vmem:[%s264] sm:$0xff]
                  %267 = vst [vmem:[%s265] sm:$0xff] %v266
                  %v268 = vld [vmem:[%s264 + $0x10] sm:$0xff]
                  %269 = vst [vmem:[%s265 + $0x8] sm:$0xff] %v268
                  %v270 = vld [vmem:[%s264 + $0x20] sm:$0xff]
                  %271 = vst [vmem:[%s265 + $0x10] sm:$0xff] %v270
                  %v272 = vld [vmem:[%s264 + $0x30] sm:$0xff]
                  %273 = vst [vmem:[%s265 + $0x18] sm:$0xff] %v272
                  %v274 = vld [vmem:[%s264 + $0x40] sm:$0xff]
                  %275 = vst [vmem:[%s265 + $0x20] sm:$0xff] %v274
                  %v276 = vld [vmem:[%s264 + $0x50] sm:$0xff]
                  %277 = vst [vmem:[%s265 + $0x28] sm:$0xff] %v276
                  %v278 = vld [vmem:[%s264 + $0x60] sm:$0xff]
                  %279 = vst [vmem:[%s265 + $0x30] sm:$0xff] %v278
                  %v280 = vld [vmem:[%s264 + $0x70] sm:$0xff]
                  %281 = vst [vmem:[%s265 + $0x38] sm:$0xff] %v280
                  %v282 = vld [vmem:[%s264 + $0x80] sm:$0xff]
                  %283 = vst [vmem:[%s265 + $0x40] sm:$0xff] %v282
                  %v284 = vld [vmem:[%s264 + $0x90] sm:$0xff]
                  %285 = vst [vmem:[%s265 + $0x48] sm:$0xff] %v284
                  %v286 = vld [vmem:[%s264 + $0xa0] sm:$0xff]
                  %287 = vst [vmem:[%s265 + $0x50] sm:$0xff] %v286
                  %v288 = vld [vmem:[%s264 + $0xb0] sm:$0xff]
                  %289 = vst [vmem:[%s265 + $0x58] sm:$0xff] %v288
                  %v290 = vld [vmem:[%s264 + $0xc0] sm:$0xff]
                  %291 = vst [vmem:[%s265 + $0x60] sm:$0xff] %v290
                  %v292 = vld [vmem:[%s264 + $0xd0] sm:$0xff]
                  %293 = vst [vmem:[%s265 + $0x68] sm:$0xff] %v292
                  %v294 = vld [vmem:[%s264 + $0xe0] sm:$0xff]
                  %295 = vst [vmem:[%s265 + $0x70] sm:$0xff] %v294
                  %v296 = vld [vmem:[%s264 + $0xf0] sm:$0xff]
                  %297 = vst [vmem:[%s265 + $0x78] sm:$0xff] %v296
                $region52: #{_lambda_.61} parent=46 // loop_footer
                  %s263 = sadd.s32 1, %s259
                $region53: #{_lambda_.61} parent=46 // loop_footer_branch
                  %258 = sbr.rel target = $region49
                $region54: #{_lambda_.61} parent=46 // loop_exit
                  _
              $region47: #{_lambda_.61} parent=31 // pred_fallthru
                _
              // Predicated region
              $region55: #{_lambda_.61} parent=31 // pred_check
                _
              $region56: #{_lambda_.61} parent=31 // pred_check_branch
                %299 = sbr.rel target = $region58
              $region57: #{_lambda_.61} parent=31 // pred_region
                _
              $region58: #{_lambda_.61} parent=31 // pred_fallthru
                _
            $region32: #{_lambda_.61} parent=27 // pred_fallthru
              _
            // Predicated region
            $region33: #{_lambda_.61} parent=27 // pred_check
              _
            $region34: #{_lambda_.61} parent=27 // pred_check_branch
              %214 = sbr.rel target = $region36
            $region35: #{_lambda_.61} parent=27 // pred_region
              loop: start=0, step=1, limit=1
              $region37: #{_lambda_.61} parent=35 // loop_pre_header
                _
              $region38: #{_lambda_.61} parent=35 // loop_header
                %s217 = sphi 0, %s221
                %p218 = scmp.ge.s32.totalorder %s217, 1
                %s222 = sphi %s208, %s208
                %s223 = sphi %s202, %s202
              $region39: #{_lambda_.61} parent=35 // loop_header_branch
                %220 = sbr.rel (%p218) target = $region43
              $region40: #{_lambda_.61} parent=35 // loop_body
                %v224 = vld [vmem:[%s222] sm:$0xff]
                %225 = vst [vmem:[%s223] sm:$0xff] %v224
                %v226 = vld [vmem:[%s222 + $0x10] sm:$0xff]
                %227 = vst [vmem:[%s223 + $0x8] sm:$0xff] %v226
                %v228 = vld [vmem:[%s222 + $0x20] sm:$0xff]
                %229 = vst [vmem:[%s223 + $0x10] sm:$0xff] %v228
                %v230 = vld [vmem:[%s222 + $0x30] sm:$0xff]
                %231 = vst [vmem:[%s223 + $0x18] sm:$0xff] %v230
                %v232 = vld [vmem:[%s222 + $0x40] sm:$0xff]
                %233 = vst [vmem:[%s223 + $0x20] sm:$0xff] %v232
                %v234 = vld [vmem:[%s222 + $0x50] sm:$0xff]
                %235 = vst [vmem:[%s223 + $0x28] sm:$0xff] %v234
                %v236 = vld [vmem:[%s222 + $0x60] sm:$0xff]
                %237 = vst [vmem:[%s223 + $0x30] sm:$0xff] %v236
                %v238 = vld [vmem:[%s222 + $0x70] sm:$0xff]
                %239 = vst [vmem:[%s223 + $0x38] sm:$0xff] %v238
                %v240 = vld [vmem:[%s222 + $0x80] sm:$0xff]
                %241 = vst [vmem:[%s223 + $0x40] sm:$0xff] %v240
                %v242 = vld [vmem:[%s222 + $0x90] sm:$0xff]
                %243 = vst [vmem:[%s223 + $0x48] sm:$0xff] %v242
                %v244 = vld [vmem:[%s222 + $0xa0] sm:$0xff]
                %245 = vst [vmem:[%s223 + $0x50] sm:$0xff] %v244
                %v246 = vld [vmem:[%s222 + $0xb0] sm:$0xff]
                %247 = vst [vmem:[%s223 + $0x58] sm:$0xff] %v246
                %v248 = vld [vmem:[%s222 + $0xc0] sm:$0xff]
                %249 = vst [vmem:[%s223 + $0x60] sm:$0xff] %v248
                %v250 = vld [vmem:[%s222 + $0xd0] sm:$0xff]
                %251 = vst [vmem:[%s223 + $0x68] sm:$0xff] %v250
                %v252 = vld [vmem:[%s222 + $0xe0] sm:$0xff]
                %253 = vst [vmem:[%s223 + $0x70] sm:$0xff] %v252
                %v254 = vld [vmem:[%s222 + $0xf0] sm:$0xff]
                %255 = vst [vmem:[%s223 + $0x78] sm:$0xff] %v254
              $region41: #{_lambda_.61} parent=35 // loop_footer
                %s221 = sadd.s32 1, %s217
              $region42: #{_lambda_.61} parent=35 // loop_footer_branch
                %216 = sbr.rel target = $region38
              $region43: #{_lambda_.61} parent=35 // loop_exit
                _
            $region36: #{_lambda_.61} parent=27 // pred_fallthru
              _
          $region28: #{_lambda_.61} parent=23 // pred_fallthru
            _
          %300 = vnop
        $region24: #{_lambda_.61} parent=19 // pred_fallthru
          _
        // Predicated region
        $region59: #{_lambda_.61} parent=19 // pred_check
          %p301 = pneg %p105
        $region60: #{_lambda_.61} parent=19 // pred_check_branch
          %303 = sbr.rel (%p301) target = $region62
        $region61: #{_lambda_.61} parent=19 // pred_region
          %s304 = smul.u32 2, %s18
          %p305 = scmp.lt.s32.totalorder %s304, 3
          %s306 = scalar_select %p305, %s304, 3
          %s307 = scalar_lea.vmem %s2, %s306
          %s308 = smul.u32 2, %s18
        $region62: #{_lambda_.61} parent=19 // pred_fallthru
          _
        // Predicated region
        $region63: #{_lambda_.61} parent=19 // pred_check
          %p309 = pneg %p133
        $region64: #{_lambda_.61} parent=19 // pred_check_branch
          %311 = sbr.rel (%p309) target = $region66
        $region65: #{_lambda_.61} parent=19 // pred_region
          %s312 = smul.u32 2, %s18
          %p313 = scmp.lt.s32.totalorder %s17, 0
          %s314 = scalar_select %p313, %s17, 0
          %p315 = scmp.lt.s32.totalorder %s312, 3
          %s316 = scalar_select %p315, %s312, 3
          %s317 = smul.addr %s314, 4
          %s318 = sadd.s32 %s316, %s317
          %s319 = smul.addr %s318, 4
          %s320 = scalar_lea.vmem %s3, %s319
          %s321 = smul.u32 2, %s18
        $region66: #{_lambda_.61} parent=19 // pred_fallthru
          _
      $region20: #{_lambda_.61} parent=5 // pred_fallthru
        _
      %p322 = scmp.le.s32.totalorder 1, %s10
      %p323 = scmp.lt.s32.totalorder %s10, 3
      %p324 = pnand %p322, %p323
      %p325 = pneg %p324
      // Predicated region
      $region67: #{_lambda_.61} parent=5 // pred_check
        _
      $region68: #{_lambda_.61} parent=5 // pred_check_branch
        %327 = sbr.rel (%p324) target = $region70
      $region69: #{_lambda_.61} parent=5 // pred_region
        %s328 = ssub.s32 %s10, 1
        %s329 = sand.u32 %s72, 1
        %s330 = sand.u32 %s72, 1
        %s331 = smul.addr %s330, 128
        %s332 = scalar_lea.vmem [#allocation3], %s331
        // Predicated region
        $region71: #{_lambda_.61} parent=69 // pred_check
          %p333 = pneg %p85
        $region72: #{_lambda_.61} parent=69 // pred_check_branch
          %335 = sbr.rel (%p333) target = $region74
        $region73: #{_lambda_.61} parent=69 // pred_region
          _
        $region74: #{_lambda_.61} parent=69 // pred_fallthru
          _
        %p336 = scmp.lt.s32.totalorder %s20, 0
        %s337 = scalar_select %p336, %s20, 0
        %p338 = scmp.lt.s32.totalorder %s22, 0
        %s339 = scalar_select %p338, %s22, 0
        %s340 = sadd.s32 %s339, %s337
        %s341 = smul.addr %s340, 4
        %s342 = scalar_lea.vmem %s0, %s341
        %p343 = pneg %p57
        %p344 = pneg %p54
        %s345 = sand.u32 %s72, 1
        %s346 = sand.u32 %s72, 1
        %s347 = smul.addr %s346, 128
        %s348 = scalar_lea.vmem [#allocation3], %s347
        %p349 = pneg %p85
        %p350 = pneg %p82
        %s351 = smul.u32 2, %s21
        %p352 = scmp.lt.s32.totalorder %s351, 3
        %s353 = scalar_select %p352, %s351, 3
        %s354 = scalar_lea.vmem %s2, %s353
        %p355 = pneg %p111
        %p356 = pneg %p108
        %s357 = smul.u32 2, %s21
        %p358 = scmp.lt.s32.totalorder %s20, 0
        %s359 = scalar_select %p358, %s20, 0
        %p360 = scmp.lt.s32.totalorder %s357, 3
        %s361 = scalar_select %p360, %s357, 3
        %s362 = smul.addr %s359, 4
        %s363 = sadd.s32 %s361, %s362
        %s364 = smul.addr %s363, 4
        %s365 = scalar_lea.vmem %s3, %s364
        %p366 = pneg %p139
        %p367 = pneg %p136
        %p368 = pneg %p167
        %p369 = pneg %p164
        %s370 = smul.u32 2, %s21
        %p371 = scmp.lt.s32.totalorder %s20, 0
        %s372 = scalar_select %p371, %s20, 0
        %p373 = scmp.lt.s32.totalorder %s370, 3
        %s374 = scalar_select %p373, %s370, 3
        %s375 = smul.addr %s372, 4
        %s376 = sadd.s32 %s374, %s375
        %s377 = smul.addr %s376, 4
        %s378 = scalar_lea.vmem %s4, %s377
        %p379 = scmp.lt.s32.totalorder %s20, 0
        %s380 = scalar_select %p379, %s20, 0
        %p381 = scmp.lt.s32.totalorder %s22, 0
        %s382 = scalar_select %p381, %s22, 0
        %s383 = sadd.s32 %s382, %s380
        %s384 = smul.addr %s383, 4
        %s385 = scalar_lea.vmem %s0, %s384
        %s386 = smul.u32 16, %s22
        %s387 = smul.u32 2, %s21
        %s388 = smul.u32 2, %s21
        %p389 = scmp.lt.s32.totalorder %s388, 3
        %s390 = scalar_select %p389, %s388, 3
        %s391 = scalar_lea.vmem %s2, %s390
        %s392 = smul.u32 2, %s21
        %s393 = smul.u32 2, %s21
        %p394 = scmp.lt.s32.totalorder %s20, 0
        %s395 = scalar_select %p394, %s20, 0
        %p396 = scmp.lt.s32.totalorder %s393, 3
        %s397 = scalar_select %p396, %s393, 3
        %s398 = smul.addr %s395, 4
        %s399 = sadd.s32 %s397, %s398
        %s400 = smul.addr %s399, 4
        %s401 = scalar_lea.vmem %s3, %s400
        %s402 = smul.u32 2, %s21
        %s403 = smul.u32 2, %s21
        %p404 = scmp.lt.s32.totalorder %s20, 0
        %s405 = scalar_select %p404, %s20, 0
        %p406 = scmp.lt.s32.totalorder %s403, 3
        %s407 = scalar_select %p406, %s403, 3
        %s408 = smul.addr %s405, 4
        %s409 = sadd.s32 %s407, %s408
        %s410 = smul.addr %s409, 4
        %s411 = scalar_lea.vmem %s4, %s410
        %s412 = smul.u32 2, %s21
        %p414 = scmp.eq.s32.totalorder %s22, 0
        // Predicated region
        $region75: #{_lambda_.61} parent=69 // pred_check
          %p415 = pneg %p414
        $region76: #{_lambda_.61} parent=69 // pred_check_branch
          %417 = sbr.rel (%p415) target = $region78
        $region77: #{_lambda_.61} parent=69 // pred_region
          %418 = vst [vmem:[#allocation2] sm:$0xff] 0.0
          %419 = vst [vmem:[#allocation2 + $0x8] sm:$0xff] 0.0
        $region78: #{_lambda_.61} parent=69 // pred_fallthru
          _
        %v420 = vld [vmem:[#allocation2] sm:$0xff]
        %v421 = vld [vmem:[#allocation2 + $0x8] sm:$0xff]
        %v422 = vld [vmem:[%s385] sm:$0xf]
        %v423 = vld [vmem:[%s332] sm:$0xff]
        %v424 = vld [vmem:[%s332 + $0x8] sm:$0xff]
        %v425 = vld [vmem:[%s332 + $0x10] sm:$0xff]
        %v426 = vld [vmem:[%s332 + $0x18] sm:$0xff]
        %v427 = vld [vmem:[%s332 + $0x20] sm:$0xff]
        %v428 = vld [vmem:[%s332 + $0x28] sm:$0xff]
        %v429 = vld [vmem:[%s332 + $0x30] sm:$0xff]
        %v430 = vld [vmem:[%s332 + $0x38] sm:$0xff]
        %v431 = vld [vmem:[%s332 + $0x40] sm:$0xff]
        %v432 = vld [vmem:[%s332 + $0x48] sm:$0xff]
        %v433 = vld [vmem:[%s332 + $0x50] sm:$0xff]
        %v434 = vld [vmem:[%s332 + $0x58] sm:$0xff]
        %v435 = vld [vmem:[%s332 + $0x60] sm:$0xff]
        %v436 = vld [vmem:[%s332 + $0x68] sm:$0xff]
        %v437 = vld [vmem:[%s332 + $0x70] sm:$0xff]
        %v438 = vld [vmem:[%s332 + $0x78] sm:$0xff]
        %v455 = vunpack.c.l.b16 %v423
        %v456 = vunpack.c.h.b16 %v423
        %v457 = vunpack.c.l.b16 %v424
        %v458 = vunpack.c.h.b16 %v424
        %v459 = vunpack.c.l.b16 %v425
        %v460 = vunpack.c.h.b16 %v425
        %v461 = vunpack.c.l.b16 %v426
        %v462 = vunpack.c.h.b16 %v426
        %v463 = vunpack.c.l.b16 %v427
        %v464 = vunpack.c.h.b16 %v427
        %v465 = vunpack.c.l.b16 %v428
        %v466 = vunpack.c.h.b16 %v428
        %v467 = vunpack.c.l.b16 %v429
        %v468 = vunpack.c.h.b16 %v429
        %v469 = vunpack.c.l.b16 %v430
        %v470 = vunpack.c.h.b16 %v430
        %v471 = vunpack.c.l.b16 %v431
        %v472 = vunpack.c.h.b16 %v431
        %v473 = vunpack.c.l.b16 %v432
        %v474 = vunpack.c.h.b16 %v432
        %v475 = vunpack.c.l.b16 %v433
        %v476 = vunpack.c.h.b16 %v433
        %v477 = vunpack.c.l.b16 %v434
        %v478 = vunpack.c.h.b16 %v434
        %v479 = vunpack.c.l.b16 %v435
        %v480 = vunpack.c.h.b16 %v435
        %v481 = vunpack.c.l.b16 %v436
        %v482 = vunpack.c.h.b16 %v436
        %v483 = vunpack.c.l.b16 %v437
        %v484 = vunpack.c.h.b16 %v437
        %v485 = vunpack.c.l.b16 %v438
        %v486 = vunpack.c.h.b16 %v438
        %v487 = vpack.c.b16 %v457, %v455
        %v488 = vpack.c.b16 %v458, %v456
        %v489 = vpack.c.b16 %v461, %v459
        %v490 = vpack.c.b16 %v462, %v460
        %v491 = vpack.c.b16 %v465, %v463
        %v492 = vpack.c.b16 %v466, %v464
        %v493 = vpack.c.b16 %v469, %v467
        %v494 = vpack.c.b16 %v470, %v468
        %v495 = vpack.c.b16 %v473, %v471
        %v496 = vpack.c.b16 %v474, %v472
        %v497 = vpack.c.b16 %v477, %v475
        %v498 = vpack.c.b16 %v478, %v476
        %v499 = vpack.c.b16 %v481, %v479
        %v500 = vpack.c.b16 %v482, %v480
        %v501 = vpack.c.b16 %v485, %v483
        %v502 = vpack.c.b16 %v486, %v484
        %519 = vmatprep.subr.bf16.mxu0 %v488
        %520 = vmatpush1.bf16.msra.mxu0 %v487
        %521 = vmatprep.subr.bf16.mxu0 %v490
        %522 = vmatpush1.bf16.msra.mxu0 %v489
        %523 = vmatprep.subr.bf16.mxu0 %v492
        %524 = vmatpush1.bf16.msra.mxu0 %v491
        %525 = vmatprep.subr.bf16.mxu0 %v494
        %526 = vmatpush1.bf16.msra.mxu0 %v493
        %527 = vmatprep.subr.bf16.mxu0 %v496
        %528 = vmatpush1.bf16.msra.mxu0 %v495
        %529 = vmatprep.subr.bf16.mxu0 %v498
        %530 = vmatpush1.bf16.msra.mxu0 %v497
        %531 = vmatprep.subr.bf16.mxu0 %v500
        %532 = vmatpush1.bf16.msra.mxu0 %v499
        %533 = vmatprep.subr.bf16.mxu0 %v502
        %534 = vmatpush1.bf16.msra.mxu0 %v501
        %535 = vmatprep.subr.bf16.mxu0 0
        %536 = vmatpush1.bf16.msra.mxu0 0
        %537 = vmatprep.subr.bf16.mxu0 0
        %538 = vmatpush1.bf16.msra.mxu0 0
        %539 = vmatprep.subr.bf16.mxu0 0
        %540 = vmatpush1.bf16.msra.mxu0 0
        %541 = vmatprep.subr.bf16.mxu0 0
        %542 = vmatpush1.bf16.msra.mxu0 0
        %543 = vmatprep.subr.bf16.mxu0 0
        %544 = vmatpush1.bf16.msra.mxu0 0
        %545 = vmatprep.subr.bf16.mxu0 0
        %546 = vmatpush1.bf16.msra.mxu0 0
        %547 = vmatprep.subr.bf16.mxu0 0
        %548 = vmatpush1.bf16.msra.mxu0 0
        %549 = vmatprep.subr.bf16.mxu0 0
        %550 = vmatpush1.bf16.msra.mxu0 0
        %551 = vmatprep.mubr.bf16.mxu0 0
        %552 = vmatmul.mubr.bf16.gmra.mrb[0].mxu0 %v422
        %v553 = vpop.f32.mrb[0].mxu0
        %v554 = vadd.f32 0.0, %v553
        %v555 = vpop.f32.mrb[0].mxu0
        %v556 = vadd.f32 0.0, %v555
        %v557 = vpop.f32.mrb[0].mxu0
        %v558 = vpop.f32.mrb[0].mxu0
        %559 = vdwg.mxu0
        %v560 = vadd.f32 %v420, %v554
        %v561 = vadd.f32 %v421, %v556
        %562 = vst [vmem:[#allocation2] sm:$0xff] %v560
        %563 = vst [vmem:[#allocation2 + $0x8] sm:$0xff] %v561
        // Predicated region
        $region79: #{_lambda_.61} parent=69 // pred_check
          %p564 = pneg %p414
        $region80: #{_lambda_.61} parent=69 // pred_check_branch
          %566 = sbr.rel (%p564) target = $region82
        $region81: #{_lambda_.61} parent=69 // pred_region
          %v567 = vld [vmem:[#allocation2] sm:$0xff]
          %v568 = vld [vmem:[#allocation2 + $0x8] sm:$0xff]
          %v569 = vld [vmem:[%s391] sm:$0x3]
          %v571 = vlaneseq
          %v572 = vshrl.u32 %v571, 7
          %v573 = vsub.s32 0, %v572
          %v574 = vrot.slane %v569, %v573
          %v575 = vlaneseq
          %v576 = vshrl.u32 %v575, 7
          %v577 = vsub.s32 1, %v576
          %v578 = vrot.slane %v569, %v577
          %v581 = vadd.f32 %v567, %v574
          %v582 = vadd.f32 %v568, %v578
          %v583 = vld [vmem:[%s401] sm:$0xff]
          %v584 = vunpack.c.l.bf16 %v583
          %v585 = vunpack.c.h.bf16 %v583
          %v586 = vadd.f32 %v581, %v584
          %v587 = vadd.f32 %v582, %v585
          %v588 = vmax.f32 %v586, 0.0
          %v589 = vmax.f32 %v587, 0.0
          %v590 = vpack.c.bf16 %v588, %v588
          %v591 = vpack.c.bf16 %v589, %v589
          %v594 = vunpack.c.l.b16 %v590
          %v595 = vunpack.c.l.b16 %v591
          %v596 = vpack.c.b16 %v595, %v594
          %598 = vst [vmem:[%s411] sm:$0xff] %v596
        $region82: #{_lambda_.61} parent=69 // pred_fallthru
          _
        %s599 = smul.u32 2, %s21
        %p600 = scmp.lt.s32.totalorder %s20, 0
        %s601 = scalar_select %p600, %s20, 0
        %p602 = scmp.lt.s32.totalorder %s599, 3
        %s603 = scalar_select %p602, %s599, 3
        %s604 = smul.addr %s601, 4
        %s605 = sadd.s32 %s603, %s604
        %s606 = smul.addr %s605, 4
        %s607 = scalar_lea.vmem %s4, %s606
        // Predicated region
        $region83: #{_lambda_.61} parent=69 // pred_check
          %p608 = pneg %p164
        $region84: #{_lambda_.61} parent=69 // pred_check_branch
          %610 = sbr.rel (%p608) target = $region86
        $region85: #{_lambda_.61} parent=69 // pred_region
          %s611 = smul.u32 2, %s21
        $region86: #{_lambda_.61} parent=69 // pred_fallthru
          _
      $region70: #{_lambda_.61} parent=5 // pred_fallthru
        _
      %p612 = scmp.le.s32.totalorder 2, %s10
      // Predicated region
      $region87: #{_lambda_.61} parent=5 // pred_check
        %p613 = pneg %p612
      $region88: #{_lambda_.61} parent=5 // pred_check_branch
        %615 = sbr.rel (%p613) target = $region90
      $region89: #{_lambda_.61} parent=5 // pred_region
        %s616 = ssub.s32 %s10, 2
        // Predicated region
        $region91: #{_lambda_.61} parent=89 // pred_check
          %p617 = pneg %p170
        $region92: #{_lambda_.61} parent=89 // pred_check_branch
          %619 = sbr.rel (%p617) target = $region94
        $region93: #{_lambda_.61} parent=89 // pred_region
          %s620 = smul.u32 2, %s24
          %p621 = scmp.lt.s32.totalorder %s23, 0
          %s622 = scalar_select %p621, %s23, 0
          %p623 = scmp.lt.s32.totalorder %s620, 3
          %s624 = scalar_select %p623, %s620, 3
          %s625 = smul.addr %s622, 4
          %s626 = sadd.s32 %s624, %s625
          %s627 = smul.addr %s626, 4
          %s628 = scalar_lea.vmem %s4, %s627
        $region94: #{_lambda_.61} parent=89 // pred_fallthru
          _
      $region90: #{_lambda_.61} parent=5 // pred_fallthru
        _
    $region6: #{_lambda_.61} parent=1 // loop_footer
      %s14 = sadd.s32 1, %s10
    $region7: #{_lambda_.61} parent=1 // loop_footer_branch
      %9 = sbr.rel target = $region3
    $region8: #{_lambda_.61} parent=1 // loop_exit
      _

// kernel: _lambda_.71
$region0: #{_lambda_.71}
  #allocation0 [shape = 'u32[]', space=smem, size = 0x4, offset = 0x4, fixed_abs, tag = 'smem constant byte address 0x4 - core index']
  #allocation1 [shape = 'u32[144,128]{1,0:T(1,128)}', space=vmem, size = 0x12000, scoped, tag = 'internal scratch']
  #allocation2 [shape = 'f32[8,256]{1,0:T(8,128)}', space=vmem, size = 0x2000, scoped, tag = 'scratch operand']
  %s0 = inlined_call_operand.vmem [shape: bf16[8,512], index: 0, kind: input, shape index: {}]
  %s1 = inlined_call_operand.vmem [shape: bf16[512,256], index: 1, kind: input, shape index: {}]
  %s2 = inlined_call_operand.vmem [shape: f32[1,256], index: 2, kind: input, shape index: {}]
  %s3 = inlined_call_operand.vmem [shape: bf16[8,256], index: 3, kind: output, shape index: {}]
  %s4 = sld [smem:[#allocation0]]
  $region30: #{_lambda_.71} parent=0
    _
  %s6 = ssub.s32 1, %s4
  %s7 = scalar_select 0, %s6, %s4
  // Predicated region
  $region2: #{_lambda_.71} parent=0 // pred_check
    _
  $region3: #{_lambda_.71} parent=0 // pred_check_branch
    %9 = sbr.rel (0) target = $region5
  $region4: #{_lambda_.71} parent=0 // pred_region
    _
  $region5: #{_lambda_.71} parent=0 // pred_fallthru
    _
  // Predicated region
  $region6: #{_lambda_.71} parent=0 // pred_check
    _
  $region7: #{_lambda_.71} parent=0 // pred_check_branch
    %11 = sbr.rel (0) target = $region9
  $region8: #{_lambda_.71} parent=0 // pred_region
    _
  $region9: #{_lambda_.71} parent=0 // pred_fallthru
    _
  // Predicated region
  $region10: #{_lambda_.71} parent=0 // pred_check
    _
  $region11: #{_lambda_.71} parent=0 // pred_check_branch
    %13 = sbr.rel (0) target = $region13
  $region12: #{_lambda_.71} parent=0 // pred_region
    _
  $region13: #{_lambda_.71} parent=0 // pred_fallthru
    _
  %p14 = scmp.eq.s32.totalorder 0, 0
  // Predicated region
  $region14: #{_lambda_.71} parent=0 // pred_check
    %p15 = pneg %p14
  $region15: #{_lambda_.71} parent=0 // pred_check_branch
    %17 = sbr.rel (%p15) target = $region17
  $region16: #{_lambda_.71} parent=0 // pred_region
    %18 = vst [vmem:[#allocation2] sm:$0xff] 0.0
    %19 = vst [vmem:[#allocation2 + $0x8] sm:$0xff] 0.0
  $region17: #{_lambda_.71} parent=0 // pred_fallthru
    _
  %v20 = vld [vmem:[#allocation2] sm:$0xff]
  %v21 = vld [vmem:[#allocation2 + $0x8] sm:$0xff]
  %v22 = vld [vmem:[%s0] sm:$0xff]
  %v23 = vld [vmem:[%s0 + $0x8] sm:$0xff]
  %v24 = vld [vmem:[%s1] sm:$0xff]
  %v25 = vld [vmem:[%s1 + $0x8] sm:$0xff]
  %v26 = vld [vmem:[%s1 + $0x10] sm:$0xff]
  %v27 = vld [vmem:[%s1 + $0x18] sm:$0xff]
  %v28 = vld [vmem:[%s1 + $0x20] sm:$0xff]
  %v29 = vld [vmem:[%s1 + $0x28] sm:$0xff]
  %v30 = vld [vmem:[%s1 + $0x30] sm:$0xff]
  %v31 = vld [vmem:[%s1 + $0x38] sm:$0xff]
  %v32 = vld [vmem:[%s1 + $0x40] sm:$0xff]
  %v33 = vld [vmem:[%s1 + $0x48] sm:$0xff]
  %v34 = vld [vmem:[%s1 + $0x50] sm:$0xff]
  %v35 = vld [vmem:[%s1 + $0x58] sm:$0xff]
  %v36 = vld [vmem:[%s1 + $0x60] sm:$0xff]
  %v37 = vld [vmem:[%s1 + $0x68] sm:$0xff]
  %v38 = vld [vmem:[%s1 + $0x70] sm:$0xff]
  %v39 = vld [vmem:[%s1 + $0x78] sm:$0xff]
  %v40 = vld [vmem:[%s1 + $0x80] sm:$0xff]
  %v41 = vld [vmem:[%s1 + $0x88] sm:$0xff]
  %v42 = vld [vmem:[%s1 + $0x90] sm:$0xff]
  %v43 = vld [vmem:[%s1 + $0x98] sm:$0xff]
  %v44 = vld [vmem:[%s1 + $0xa0] sm:$0xff]
  %v45 = vld [vmem:[%s1 + $0xa8] sm:$0xff]
  %v46 = vld [vmem:[%s1 + $0xb0] sm:$0xff]
  %v47 = vld [vmem:[%s1 + $0xb8] sm:$0xff]
  %v48 = vld [vmem:[%s1 + $0xc0] sm:$0xff]
  %v49 = vld [vmem:[%s1 + $0xc8] sm:$0xff]
  %v50 = vld [vmem:[%s1 + $0xd0] sm:$0xff]
  %v51 = vld [vmem:[%s1 + $0xd8] sm:$0xff]
  %v52 = vld [vmem:[%s1 + $0xe0] sm:$0xff]
  %v53 = vld [vmem:[%s1 + $0xe8] sm:$0xff]
  %v54 = vld [vmem:[%s1 + $0xf0] sm:$0xff]
  %v55 = vld [vmem:[%s1 + $0xf8] sm:$0xff]
  %v56 = vld [vmem:[%s1 + $0x100] sm:$0xff]
  %v57 = vld [vmem:[%s1 + $0x108] sm:$0xff]
  %v58 = vld [vmem:[%s1 + $0x110] sm:$0xff]
  %v59 = vld [vmem:[%s1 + $0x118] sm:$0xff]
  %v60 = vld [vmem:[%s1 + $0x120] sm:$0xff]
  %v61 = vld [vmem:[%s1 + $0x128] sm:$0xff]
  %v62 = vld [vmem:[%s1 + $0x130] sm:$0xff]
  %v63 = vld [vmem:[%s1 + $0x138] sm:$0xff]
  %v64 = vld [vmem:[%s1 + $0x140] sm:$0xff]
  %v65 = vld [vmem:[%s1 + $0x148] sm:$0xff]
  %v66 = vld [vmem:[%s1 + $0x150] sm:$0xff]
  %v67 = vld [vmem:[%s1 + $0x158] sm:$0xff]
  %v68 = vld [vmem:[%s1 + $0x160] sm:$0xff]
  %v69 = vld [vmem:[%s1 + $0x168] sm:$0xff]
  %v70 = vld [vmem:[%s1 + $0x170] sm:$0xff]
  %v71 = vld [vmem:[%s1 + $0x178] sm:$0xff]
  %v72 = vld [vmem:[%s1 + $0x180] sm:$0xff]
  %v73 = vld [vmem:[%s1 + $0x188] sm:$0xff]
  %v74 = vld [vmem:[%s1 + $0x190] sm:$0xff]
  %v75 = vld [vmem:[%s1 + $0x198] sm:$0xff]
  %v76 = vld [vmem:[%s1 + $0x1a0] sm:$0xff]
  %v77 = vld [vmem:[%s1 + $0x1a8] sm:$0xff]
  %v78 = vld [vmem:[%s1 + $0x1b0] sm:$0xff]
  %v79 = vld [vmem:[%s1 + $0x1b8] sm:$0xff]
  %v80 = vld [vmem:[%s1 + $0x1c0] sm:$0xff]
  %v81 = vld [vmem:[%s1 + $0x1c8] sm:$0xff]
  %v82 = vld [vmem:[%s1 + $0x1d0] sm:$0xff]
  %v83 = vld [vmem:[%s1 + $0x1d8] sm:$0xff]
  %v84 = vld [vmem:[%s1 + $0x1e0] sm:$0xff]
  %v85 = vld [vmem:[%s1 + $0x1e8] sm:$0xff]
  %v86 = vld [vmem:[%s1 + $0x1f0] sm:$0xff]
  %v87 = vld [vmem:[%s1 + $0x1f8] sm:$0xff]
  %v90 = vunpack.c.l.b16 %v22
  %v91 = vunpack.c.h.b16 %v22
  %v92 = vunpack.c.l.b16 %v23
  %v93 = vunpack.c.h.b16 %v23
  %v94 = vpack.c.b16 %v90, %v90
  %v95 = vpack.c.b16 %v91, %v91
  %v96 = vpack.c.b16 %v92, %v92
  %v97 = vpack.c.b16 %v93, %v93
  %v166 = vunpack.c.l.b16 %v24
  %v167 = vunpack.c.h.b16 %v24
  %v168 = vunpack.c.l.b16 %v25
  %v169 = vunpack.c.h.b16 %v25
  %v170 = vunpack.c.l.b16 %v26
  %v171 = vunpack.c.h.b16 %v26
  %v172 = vunpack.c.l.b16 %v27
  %v173 = vunpack.c.h.b16 %v27
  %v174 = vunpack.c.l.b16 %v28
  %v175 = vunpack.c.h.b16 %v28
  %v176 = vunpack.c.l.b16 %v29
  %v177 = vunpack.c.h.b16 %v29
  %v178 = vunpack.c.l.b16 %v30
  %v179 = vunpack.c.h.b16 %v30
  %v180 = vunpack.c.l.b16 %v31
  %v181 = vunpack.c.h.b16 %v31
  %v182 = vunpack.c.l.b16 %v32
  %v183 = vunpack.c.h.b16 %v32
  %v184 = vunpack.c.l.b16 %v33
  %v185 = vunpack.c.h.b16 %v33
  %v186 = vunpack.c.l.b16 %v34
  %v187 = vunpack.c.h.b16 %v34
  %v188 = vunpack.c.l.b16 %v35
  %v189 = vunpack.c.h.b16 %v35
  %v190 = vunpack.c.l.b16 %v36
  %v191 = vunpack.c.h.b16 %v36
  %v192 = vunpack.c.l.b16 %v37
  %v193 = vunpack.c.h.b16 %v37
  %v194 = vunpack.c.l.b16 %v38
  %v195 = vunpack.c.h.b16 %v38
  %v196 = vunpack.c.l.b16 %v39
  %v197 = vunpack.c.h.b16 %v39
  %v198 = vunpack.c.l.b16 %v40
  %v199 = vunpack.c.h.b16 %v40
  %v200 = vunpack.c.l.b16 %v41
  %v201 = vunpack.c.h.b16 %v41
  %v202 = vunpack.c.l.b16 %v42
  %v203 = vunpack.c.h.b16 %v42
  %v204 = vunpack.c.l.b16 %v43
  %v205 = vunpack.c.h.b16 %v43
  %v206 = vunpack.c.l.b16 %v44
  %v207 = vunpack.c.h.b16 %v44
  %v208 = vunpack.c.l.b16 %v45
  %v209 = vunpack.c.h.b16 %v45
  %v210 = vunpack.c.l.b16 %v46
  %v211 = vunpack.c.h.b16 %v46
  %v212 = vunpack.c.l.b16 %v47
  %v213 = vunpack.c.h.b16 %v47
  %v214 = vunpack.c.l.b16 %v48
  %v215 = vunpack.c.h.b16 %v48
  %v216 = vunpack.c.l.b16 %v49
  %v217 = vunpack.c.h.b16 %v49
  %v218 = vunpack.c.l.b16 %v50
  %v219 = vunpack.c.h.b16 %v50
  %v220 = vunpack.c.l.b16 %v51
  %v221 = vunpack.c.h.b16 %v51
  %v222 = vunpack.c.l.b16 %v52
  %v223 = vunpack.c.h.b16 %v52
  %v224 = vunpack.c.l.b16 %v53
  %v225 = vunpack.c.h.b16 %v53
  %v226 = vunpack.c.l.b16 %v54
  %v227 = vunpack.c.h.b16 %v54
  %v228 = vunpack.c.l.b16 %v55
  %v229 = vunpack.c.h.b16 %v55
  %v230 = vunpack.c.l.b16 %v56
  %v231 = vunpack.c.h.b16 %v56
  %v232 = vunpack.c.l.b16 %v57
  %v233 = vunpack.c.h.b16 %v57
  %v234 = vunpack.c.l.b16 %v58
  %v235 = vunpack.c.h.b16 %v58
  %v236 = vunpack.c.l.b16 %v59
  %v237 = vunpack.c.h.b16 %v59
  %v238 = vunpack.c.l.b16 %v60
  %v239 = vunpack.c.h.b16 %v60
  %v240 = vunpack.c.l.b16 %v61
  %v241 = vunpack.c.h.b16 %v61
  %v242 = vunpack.c.l.b16 %v62
  %v243 = vunpack.c.h.b16 %v62
  %v244 = vunpack.c.l.b16 %v63
  %v245 = vunpack.c.h.b16 %v63
  %v246 = vunpack.c.l.b16 %v64
  %v247 = vunpack.c.h.b16 %v64
  %v248 = vunpack.c.l.b16 %v65
  %v249 = vunpack.c.h.b16 %v65
  %v250 = vunpack.c.l.b16 %v66
  %v251 = vunpack.c.h.b16 %v66
  %v252 = vunpack.c.l.b16 %v67
  %v253 = vunpack.c.h.b16 %v67
  %v254 = vunpack.c.l.b16 %v68
  %v255 = vunpack.c.h.b16 %v68
  %v256 = vunpack.c.l.b16 %v69
  %v257 = vunpack.c.h.b16 %v69
  %v258 = vunpack.c.l.b16 %v70
  %v259 = vunpack.c.h.b16 %v70
  %v260 = vunpack.c.l.b16 %v71
  %v261 = vunpack.c.h.b16 %v71
  %v262 = vunpack.c.l.b16 %v72
  %v263 = vunpack.c.h.b16 %v72
  %v264 = vunpack.c.l.b16 %v73
  %v265 = vunpack.c.h.b16 %v73
  %v266 = vunpack.c.l.b16 %v74
  %v267 = vunpack.c.h.b16 %v74
  %v268 = vunpack.c.l.b16 %v75
  %v269 = vunpack.c.h.b16 %v75
  %v270 = vunpack.c.l.b16 %v76
  %v271 = vunpack.c.h.b16 %v76
  %v272 = vunpack.c.l.b16 %v77
  %v273 = vunpack.c.h.b16 %v77
  %v274 = vunpack.c.l.b16 %v78
  %v275 = vunpack.c.h.b16 %v78
  %v276 = vunpack.c.l.b16 %v79
  %v277 = vunpack.c.h.b16 %v79
  %v278 = vunpack.c.l.b16 %v80
  %v279 = vunpack.c.h.b16 %v80
  %v280 = vunpack.c.l.b16 %v81
  %v281 = vunpack.c.h.b16 %v81
  %v282 = vunpack.c.l.b16 %v82
  %v283 = vunpack.c.h.b16 %v82
  %v284 = vunpack.c.l.b16 %v83
  %v285 = vunpack.c.h.b16 %v83
  %v286 = vunpack.c.l.b16 %v84
  %v287 = vunpack.c.h.b16 %v84
  %v288 = vunpack.c.l.b16 %v85
  %v289 = vunpack.c.h.b16 %v85
  %v290 = vunpack.c.l.b16 %v86
  %v291 = vunpack.c.h.b16 %v86
  %v292 = vunpack.c.l.b16 %v87
  %v293 = vunpack.c.h.b16 %v87
  %v294 = vpack.c.b16 %v168, %v166
  %v295 = vpack.c.b16 %v169, %v167
  %v296 = vpack.c.b16 %v172, %v170
  %v297 = vpack.c.b16 %v173, %v171
  %v298 = vpack.c.b16 %v176, %v174
  %v299 = vpack.c.b16 %v177, %v175
  %v300 = vpack.c.b16 %v180, %v178
  %v301 = vpack.c.b16 %v181, %v179
  %v302 = vpack.c.b16 %v184, %v182
  %v303 = vpack.c.b16 %v185, %v183
  %v304 = vpack.c.b16 %v188, %v186
  %v305 = vpack.c.b16 %v189, %v187
  %v306 = vpack.c.b16 %v192, %v190
  %v307 = vpack.c.b16 %v193, %v191
  %v308 = vpack.c.b16 %v196, %v194
  %v309 = vpack.c.b16 %v197, %v195
  %v310 = vpack.c.b16 %v200, %v198
  %v311 = vpack.c.b16 %v201, %v199
  %v312 = vpack.c.b16 %v204, %v202
  %v313 = vpack.c.b16 %v205, %v203
  %v314 = vpack.c.b16 %v208, %v206
  %v315 = vpack.c.b16 %v209, %v207
  %v316 = vpack.c.b16 %v212, %v210
  %v317 = vpack.c.b16 %v213, %v211
  %v318 = vpack.c.b16 %v216, %v214
  %v319 = vpack.c.b16 %v217, %v215
  %v320 = vpack.c.b16 %v220, %v218
  %v321 = vpack.c.b16 %v221, %v219
  %v322 = vpack.c.b16 %v224, %v222
  %v323 = vpack.c.b16 %v225, %v223
  %v324 = vpack.c.b16 %v228, %v226
  %v325 = vpack.c.b16 %v229, %v227
  %v326 = vpack.c.b16 %v232, %v230
  %v327 = vpack.c.b16 %v233, %v231
  %v328 = vpack.c.b16 %v236, %v234
  %v329 = vpack.c.b16 %v237, %v235
  %v330 = vpack.c.b16 %v240, %v238
  %v331 = vpack.c.b16 %v241, %v239
  %v332 = vpack.c.b16 %v244, %v242
  %v333 = vpack.c.b16 %v245, %v243
  %v334 = vpack.c.b16 %v248, %v246
  %v335 = vpack.c.b16 %v249, %v247
  %v336 = vpack.c.b16 %v252, %v250
  %v337 = vpack.c.b16 %v253, %v251
  %v338 = vpack.c.b16 %v256, %v254
  %v339 = vpack.c.b16 %v257, %v255
  %v340 = vpack.c.b16 %v260, %v258
  %v341 = vpack.c.b16 %v261, %v259
  %v342 = vpack.c.b16 %v264, %v262
  %v343 = vpack.c.b16 %v265, %v263
  %v344 = vpack.c.b16 %v268, %v266
  %v345 = vpack.c.b16 %v269, %v267
  %v346 = vpack.c.b16 %v272, %v270
  %v347 = vpack.c.b16 %v273, %v271
  %v348 = vpack.c.b16 %v276, %v274
  %v349 = vpack.c.b16 %v277, %v275
  %v350 = vpack.c.b16 %v280, %v278
  %v351 = vpack.c.b16 %v281, %v279
  %v352 = vpack.c.b16 %v284, %v282
  %v353 = vpack.c.b16 %v285, %v283
  %v354 = vpack.c.b16 %v288, %v286
  %v355 = vpack.c.b16 %v289, %v287
  %v356 = vpack.c.b16 %v292, %v290
  %v357 = vpack.c.b16 %v293, %v291
  %422 = vmatprep.subr.bf16.mxu0 %v295
  %423 = vmatpush1.bf16.msra.mxu0 %v294
  %424 = vmatprep.subr.bf16.mxu0 %v297
  %425 = vmatpush1.bf16.msra.mxu0 %v296
  %426 = vmatprep.subr.bf16.mxu0 %v299
  %427 = vmatpush1.bf16.msra.mxu0 %v298
  %428 = vmatprep.subr.bf16.mxu0 %v301
  %429 = vmatpush1.bf16.msra.mxu0 %v300
  %430 = vmatprep.subr.bf16.mxu0 %v303
  %431 = vmatpush1.bf16.msra.mxu0 %v302
  %432 = vmatprep.subr.bf16.mxu0 %v305
  %433 = vmatpush1.bf16.msra.mxu0 %v304
  %434 = vmatprep.subr.bf16.mxu0 %v307
  %435 = vmatpush1.bf16.msra.mxu0 %v306
  %436 = vmatprep.subr.bf16.mxu0 %v309
  %437 = vmatpush1.bf16.msra.mxu0 %v308
  %438 = vmatprep.subr.bf16.mxu0 %v311
  %439 = vmatpush1.bf16.msra.mxu0 %v310
  %440 = vmatprep.subr.bf16.mxu0 %v313
  %441 = vmatpush1.bf16.msra.mxu0 %v312
  %442 = vmatprep.subr.bf16.mxu0 %v315
  %443 = vmatpush1.bf16.msra.mxu0 %v314
  %444 = vmatprep.subr.bf16.mxu0 %v317
  %445 = vmatpush1.bf16.msra.mxu0 %v316
  %446 = vmatprep.subr.bf16.mxu0 %v319
  %447 = vmatpush1.bf16.msra.mxu0 %v318
  %448 = vmatprep.subr.bf16.mxu0 %v321
  %449 = vmatpush1.bf16.msra.mxu0 %v320
  %450 = vmatprep.subr.bf16.mxu0 %v323
  %451 = vmatpush1.bf16.msra.mxu0 %v322
  %452 = vmatprep.subr.bf16.mxu0 %v325
  %453 = vmatpush1.bf16.msra.mxu0 %v324
  %454 = vmatprep.mubr.bf16.mxu0 %v95
  %455 = vmatmul.mubr.bf16.gmra.mrb[0].mxu0 %v94
  %v456 = vpop.f32.mrb[0].mxu0
  %v457 = vadd.f32 0.0, %v456
  %v458 = vpop.f32.mrb[0].mxu0
  %v459 = vadd.f32 0.0, %v458
  %v460 = vpop.f32.mrb[0].mxu0
  %v461 = vpop.f32.mrb[0].mxu0
  %462 = vdwg.mxu0
  %463 = vmatprep.subr.bf16.mxu0 %v327
  %464 = vmatpush1.bf16.msra.mxu0 %v326
  %465 = vmatprep.subr.bf16.mxu0 %v329
  %466 = vmatpush1.bf16.msra.mxu0 %v328
  %467 = vmatprep.subr.bf16.mxu0 %v331
  %468 = vmatpush1.bf16.msra.mxu0 %v330
  %469 = vmatprep.subr.bf16.mxu0 %v333
  %470 = vmatpush1.bf16.msra.mxu0 %v332
  %471 = vmatprep.subr.bf16.mxu0 %v335
  %472 = vmatpush1.bf16.msra.mxu0 %v334
  %473 = vmatprep.subr.bf16.mxu0 %v337
  %474 = vmatpush1.bf16.msra.mxu0 %v336
  %475 = vmatprep.subr.bf16.mxu0 %v339
  %476 = vmatpush1.bf16.msra.mxu0 %v338
  %477 = vmatprep.subr.bf16.mxu0 %v341
  %478 = vmatpush1.bf16.msra.mxu0 %v340
  %479 = vmatprep.subr.bf16.mxu0 %v343
  %480 = vmatpush1.bf16.msra.mxu0 %v342
  %481 = vmatprep.subr.bf16.mxu0 %v345
  %482 = vmatpush1.bf16.msra.mxu0 %v344
  %483 = vmatprep.subr.bf16.mxu0 %v347
  %484 = vmatpush1.bf16.msra.mxu0 %v346
  %485 = vmatprep.subr.bf16.mxu0 %v349
  %486 = vmatpush1.bf16.msra.mxu0 %v348
  %487 = vmatprep.subr.bf16.mxu0 %v351
  %488 = vmatpush1.bf16.msra.mxu0 %v350
  %489 = vmatprep.subr.bf16.mxu0 %v353
  %490 = vmatpush1.bf16.msra.mxu0 %v352
  %491 = vmatprep.subr.bf16.mxu0 %v355
  %492 = vmatpush1.bf16.msra.mxu0 %v354
  %493 = vmatprep.subr.bf16.mxu0 %v357
  %494 = vmatpush1.bf16.msra.mxu0 %v356
  %495 = vmatprep.mubr.bf16.mxu0 %v97
  %496 = vmatmul.mubr.bf16.gmra.mrb[0].mxu0 %v96
  %v497 = vpop.f32.mrb[0].mxu0
  %v498 = vadd.f32 %v457, %v497
  %v499 = vpop.f32.mrb[0].mxu0
  %v500 = vadd.f32 %v459, %v499
  %v501 = vpop.f32.mrb[0].mxu0
  %v502 = vpop.f32.mrb[0].mxu0
  %503 = vdwg.mxu0
  %v504 = vadd.f32 %v20, %v498
  %v505 = vadd.f32 %v21, %v500
  %506 = vst [vmem:[#allocation2] sm:$0xff] %v504
  %507 = vst [vmem:[#allocation2 + $0x8] sm:$0xff] %v505
  // Predicated region
  $region18: #{_lambda_.71} parent=0 // pred_check
    %p508 = pneg %p14
  $region19: #{_lambda_.71} parent=0 // pred_check_branch
    %510 = sbr.rel (%p508) target = $region21
  $region20: #{_lambda_.71} parent=0 // pred_region
    %v511 = vld [vmem:[#allocation2] sm:$0xff]
    %v512 = vld [vmem:[#allocation2 + $0x8] sm:$0xff]
    %v513 = vld [vmem:[%s2] sm:$0x3]
    %v515 = vlaneseq
    %v516 = vshrl.u32 %v515, 7
    %v517 = vsub.s32 0, %v516
    %v518 = vrot.slane %v513, %v517
    %v519 = vlaneseq
    %v520 = vshrl.u32 %v519, 7
    %v521 = vsub.s32 1, %v520
    %v522 = vrot.slane %v513, %v521
    %v525 = vadd.f32 %v511, %v518
    %v526 = vadd.f32 %v512, %v522
    %v527 = vmax.f32 %v525, 0.0
    %v528 = vmax.f32 %v526, 0.0
    %v529 = vpack.c.bf16 %v527, %v527
    %v530 = vpack.c.bf16 %v528, %v528
    %v533 = vunpack.c.l.b16 %v529
    %v534 = vunpack.c.l.b16 %v530
    %v535 = vpack.c.b16 %v534, %v533
    %537 = vst [vmem:[%s3] sm:$0xff] %v535
  $region21: #{_lambda_.71} parent=0 // pred_fallthru
    _
  // Predicated region
  $region22: #{_lambda_.71} parent=0 // pred_check
    _
  $region23: #{_lambda_.71} parent=0 // pred_check_branch
    %539 = sbr.rel (0) target = $region25
  $region24: #{_lambda_.71} parent=0 // pred_region
    _
  $region25: #{_lambda_.71} parent=0 // pred_fallthru
    _
  // Predicated region
  $region26: #{_lambda_.71} parent=0 // pred_check
    _
  $region27: #{_lambda_.71} parent=0 // pred_check_branch
    %541 = sbr.rel (0) target = $region29
  $region28: #{_lambda_.71} parent=0 // pred_region
    _
  $region29: #{_lambda_.71} parent=0 // pred_fallthru
    _

// kernel: _lambda_.73
$region0: #{_lambda_.73}
  #allocation0 [shape = 'u32[]', space=smem, size = 0x4, offset = 0x4, fixed_abs, tag = 'smem constant byte address 0x4 - core index']
  #allocation1 [shape = 'u32[144,128]{1,0:T(1,128)}', space=vmem, size = 0x12000, scoped, tag = 'internal scratch']
  #allocation2 [shape = 'f32[8,256]{1,0:T(8,128)}', space=vmem, size = 0x2000, scoped, tag = 'scratch operand']
  %s0 = inlined_call_operand.vmem [shape: bf16[8,512], index: 0, kind: input, shape index: {}]
  %s1 = inlined_call_operand.vmem [shape: bf16[512,1024], index: 1, kind: input, shape index: {}]
  %s2 = inlined_call_operand.vmem [shape: f32[1,1024], index: 2, kind: input, shape index: {}]
  %s3 = inlined_call_operand.vmem [shape: bf16[8,1024], index: 3, kind: output, shape index: {}]
  %s4 = sld [smem:[#allocation0]]
  $region91: #{_lambda_.73} parent=0
    _
  %s6 = ssub.s32 1, %s4
  %s7 = scalar_select 0, %s6, %s4
  $region1: #{_lambda_.73} parent=0
    #allocation3 [shape = 'u8[524288]{0}', space=vmem, size = 0x80000, scoped, tag = 'input window, operand 1']
    loop: start=0, step=1, limit=6
    $region2: #{_lambda_.73} parent=1 // loop_pre_header
      _
    $region3: #{_lambda_.73} parent=1 // loop_header
      %s9 = sphi 0, %s13
      %p10 = scmp.ge.s32.totalorder %s9, 6
      %s16 = sphi 0, %s35
      %s17 = sphi 0, %s31
      %s18 = sphi 0, %s27
      %s19 = sphi 0, %s16
      %s20 = sphi 0, %s17
      %s21 = sphi 0, %s18
      %s22 = sphi 0, %s19
      %s23 = sphi 0, %s20
      %s24 = sphi 0, %s21
      %s40 = sphi 0, %s42
      %s43 = sphi 0, %s40
      %s44 = sphi 0, %s43
      %s60 = sphi 0, %s44
      %s68 = sphi 0, %s70
      %s71 = sphi 0, %s68
      %s72 = sphi 0, %s71
      %s88 = sphi 0, %s72
      %s94 = sphi 0, %s96
      %s97 = sphi 0, %s94
      %s98 = sphi 0, %s97
      %s114 = sphi 0, %s98
      %s122 = sphi 0, %s124
      %s125 = sphi 0, %s122
      %s126 = sphi 0, %s125
      %s142 = sphi 0, %s126
    $region4: #{_lambda_.73} parent=1 // loop_header_branch
      %12 = sbr.rel (%p10) target = $region8
    $region5: #{_lambda_.73} parent=1 // loop_body
      %s14 = ssub.s32 %s9, 1
      %s15 = ssub.s32 %s9, 2
      %s25 = sadd.s32 1, %s18
      %p26 = scmp.ge.s32.totalorder %s25, 1
      %s27 = scalar_select %p26, 0, %s25
      %s28 = sadd.s32 1, %s17
      %s29 = scalar_select %p26, %s28, %s17
      %p30 = scmp.ge.s32.totalorder %s29, 4
      %s31 = scalar_select %p30, 0, %s29
      %s32 = sadd.s32 1, %s16
      %s33 = scalar_select %p30, %s32, %s16
      %p34 = scmp.ge.s32.totalorder %s33, 1
      %s35 = scalar_select %p34, 0, %s33
      %s36 = ssub.s32 %s16, %s35
      %s37 = ssub.s32 %s18, %s27
      %s38 = sor.u32 %s36, %s37
      %p39 = scmp.eq.s32.totalorder %s38, 0
      %s41 = sadd.s32 %s40, 1
      %s42 = scalar_select %p39, %s40, %s41
      %p45 = pneg %p39
      %p46 = scmp.eq.s32.totalorder %s9, 3
      %p47 = por %p45, %p46
      %p48 = scmp.ne.s32.totalorder %s40, %s43
      %p49 = scmp.eq.s32.totalorder %s9, 0
      %p50 = por %p48, %p49
      %p51 = scmp.ne.s32.totalorder %s40, %s43
      %p52 = scmp.eq.s32.totalorder %s14, 3
      %p53 = por %p51, %p52
      %p54 = scmp.ne.s32.totalorder %s43, %s44
      %p55 = scmp.eq.s32.totalorder %s14, 0
      %p56 = por %p54, %p55
      %p57 = scmp.ne.s32.totalorder %s43, %s44
      %p58 = scmp.eq.s32.totalorder %s15, 3
      %p59 = por %p57, %p58
      %p61 = scmp.ne.s32.totalorder %s44, %s60
      %p62 = scmp.eq.s32.totalorder %s15, 0
      %p63 = por %p61, %p62
      %s64 = ssub.s32 %s18, %s27
      %s65 = ssub.s32 %s17, %s31
      %s66 = sor.u32 %s64, %s65
      %p67 = scmp.eq.s32.totalorder %s66, 0
      %s69 = sadd.s32 %s68, 1
      %s70 = scalar_select %p67, %s68, %s69
      %p73 = pneg %p67
      %p74 = scmp.eq.s32.totalorder %s9, 3
      %p75 = por %p73, %p74
      %p76 = scmp.ne.s32.totalorder %s68, %s71
      %p77 = scmp.eq.s32.totalorder %s9, 0
      %p78 = por %p76, %p77
      %p79 = scmp.ne.s32.totalorder %s68, %s71
      %p80 = scmp.eq.s32.totalorder %s14, 3
      %p81 = por %p79, %p80
      %p82 = scmp.ne.s32.totalorder %s71, %s72
      %p83 = scmp.eq.s32.totalorder %s14, 0
      %p84 = por %p82, %p83
      %p85 = scmp.ne.s32.totalorder %s71, %s72
      %p86 = scmp.eq.s32.totalorder %s15, 3
      %p87 = por %p85, %p86
      %p89 = scmp.ne.s32.totalorder %s72, %s88
      %p90 = scmp.eq.s32.totalorder %s15, 0
      %p91 = por %p89, %p90
      %s92 = ssub.s32 %s17, %s31
      %p93 = scmp.eq.s32.totalorder %s92, 0
      %s95 = sadd.s32 %s94, 1
      %s96 = scalar_select %p93, %s94, %s95
      %p99 = pneg %p93
      %p100 = scmp.eq.s32.totalorder %s9, 3
      %p101 = por %p99, %p100
      %p102 = scmp.ne.s32.totalorder %s94, %s97
      %p103 = scmp.eq.s32.totalorder %s9, 0
      %p104 = por %p102, %p103
      %p105 = scmp.ne.s32.totalorder %s94, %s97
      %p106 = scmp.eq.s32.totalorder %s14, 3
      %p107 = por %p105, %p106
      %p108 = scmp.ne.s32.totalorder %s97, %s98
      %p109 = scmp.eq.s32.totalorder %s14, 0
      %p110 = por %p108, %p109
      %p111 = scmp.ne.s32.totalorder %s97, %s98
      %p112 = scmp.eq.s32.totalorder %s15, 3
      %p113 = por %p111, %p112
      %p115 = scmp.ne.s32.totalorder %s98, %s114
      %p116 = scmp.eq.s32.totalorder %s15, 0
      %p117 = por %p115, %p116
      %s118 = ssub.s32 %s16, %s35
      %s119 = ssub.s32 %s17, %s31
      %s120 = sor.u32 %s118, %s119
      %p121 = scmp.eq.s32.totalorder %s120, 0
      %s123 = sadd.s32 %s122, 1
      %s124 = scalar_select %p121, %s122, %s123
      %p127 = pneg %p121
      %p128 = scmp.eq.s32.totalorder %s9, 3
      %p129 = por %p127, %p128
      %p130 = scmp.ne.s32.totalorder %s122, %s125
      %p131 = scmp.eq.s32.totalorder %s9, 0
      %p132 = por %p130, %p131
      %p133 = scmp.ne.s32.totalorder %s122, %s125
      %p134 = scmp.eq.s32.totalorder %s14, 3
      %p135 = por %p133, %p134
      %p136 = scmp.ne.s32.totalorder %s125, %s126
      %p137 = scmp.eq.s32.totalorder %s14, 0
      %p138 = por %p136, %p137
      %p139 = scmp.ne.s32.totalorder %s125, %s126
      %p140 = scmp.eq.s32.totalorder %s15, 3
      %p141 = por %p139, %p140
      %p143 = scmp.ne.s32.totalorder %s126, %s142
      %p144 = scmp.eq.s32.totalorder %s15, 0
      %p145 = por %p143, %p144
      %p146 = scmp.le.s32.totalorder 1, %s9
      %p147 = scmp.lt.s32.totalorder %s9, 5
      %p148 = pnand %p146, %p147
      %p149 = pneg %p148
      // Predicated region
      $region9: #{_lambda_.73} parent=5 // pred_check
        _
      $region10: #{_lambda_.73} parent=5 // pred_check_branch
        %151 = sbr.rel (%p148) target = $region12
      $region11: #{_lambda_.73} parent=5 // pred_region
        %s152 = ssub.s32 %s9, 1
        // Predicated region
        $region13: #{_lambda_.73} parent=11 // pred_check
          %p153 = pneg %p56
        $region14: #{_lambda_.73} parent=11 // pred_check_branch
          %155 = sbr.rel (%p153) target = $region16
        $region15: #{_lambda_.73} parent=11 // pred_region
          %s156 = smul.u32 4, %s21
          %p157 = scmp.lt.s32.totalorder %s19, 0
          %s158 = scalar_select %p157, %s19, 0
          %p159 = scmp.lt.s32.totalorder %s156, 3
          %s160 = scalar_select %p159, %s156, 3
          %s161 = smul.addr %s158, 4
          %s162 = sadd.s32 %s160, %s161
          %s163 = smul.addr %s162, 4
          %s164 = scalar_lea.vmem %s0, %s163
          %s165 = smul.u32 4, %s21
        $region16: #{_lambda_.73} parent=11 // pred_fallthru
          _
      $region12: #{_lambda_.73} parent=5 // pred_fallthru
        _
      %p166 = scmp.lt.s32.totalorder %s9, 4
      // Predicated region
      $region17: #{_lambda_.73} parent=5 // pred_check
        %p167 = pneg %p166
      $region18: #{_lambda_.73} parent=5 // pred_check_branch
        %169 = sbr.rel (%p167) target = $region20
      $region19: #{_lambda_.73} parent=5 // pred_region
        // Predicated region
        $region21: #{_lambda_.73} parent=19 // pred_check
          %p170 = pneg %p78
        $region22: #{_lambda_.73} parent=19 // pred_check_branch
          %172 = sbr.rel (%p170) target = $region24
        $region23: #{_lambda_.73} parent=19 // pred_region
          %s173 = sand.u32 %s68, 1
          %s174 = sand.u32 %s68, 1
          %s175 = smul.addr %s174, 512
          %s176 = scalar_lea.vmem [#allocation3], %s175
          %s177 = smul.u32 64, %s18
          %s178 = smul.u32 2, %s17
          %s179 = smul.addr %s177, 8
          %s180 = sadd.s32 %s178, %s179
          %s181 = smul.addr %s180, 4
          %s182 = scalar_lea.vmem %s1, %s181
          // Predicated region
          $region25: #{_lambda_.73} parent=23 // pred_check
            _
          $region26: #{_lambda_.73} parent=23 // pred_check_branch
            %184 = sbr.rel (0) target = $region28
          $region27: #{_lambda_.73} parent=23 // pred_region
            // Predicated region
            $region29: #{_lambda_.73} parent=27 // pred_check
              _
            $region30: #{_lambda_.73} parent=27 // pred_check_branch
              %186 = sbr.rel (0) target = $region32
            $region31: #{_lambda_.73} parent=27 // pred_region
              // Predicated region
              $region44: #{_lambda_.73} parent=31 // pred_check
                _
              $region45: #{_lambda_.73} parent=31 // pred_check_branch
                %327 = sbr.rel (0) target = $region47
              $region46: #{_lambda_.73} parent=31 // pred_region
                loop: start=0, step=1, limit=1
                $region48: #{_lambda_.73} parent=46 // loop_pre_header
                  _
                $region49: #{_lambda_.73} parent=46 // loop_header
                  %s329 = sphi 0, %s333
                  %p330 = scmp.ge.s32.totalorder %s329, 1
                  %s334 = sphi %s182, %s182
                  %s335 = sphi %s176, %s176
                $region50: #{_lambda_.73} parent=46 // loop_header_branch
                  %332 = sbr.rel (%p330) target = $region54
                $region51: #{_lambda_.73} parent=46 // loop_body
                  %v336 = vld [vmem:[%s334] sm:$0xff]
                  %337 = vst [vmem:[%s335] sm:$0xff] %v336
                  %v338 = vld [vmem:[%s334 + $0x20] sm:$0xff]
                  %339 = vst [vmem:[%s335 + $0x8] sm:$0xff] %v338
                  %v340 = vld [vmem:[%s334 + $0x40] sm:$0xff]
                  %341 = vst [vmem:[%s335 + $0x10] sm:$0xff] %v340
                  %v342 = vld [vmem:[%s334 + $0x60] sm:$0xff]
                  %343 = vst [vmem:[%s335 + $0x18] sm:$0xff] %v342
                  %v344 = vld [vmem:[%s334 + $0x80] sm:$0xff]
                  %345 = vst [vmem:[%s335 + $0x20] sm:$0xff] %v344
                  %v346 = vld [vmem:[%s334 + $0xa0] sm:$0xff]
                  %347 = vst [vmem:[%s335 + $0x28] sm:$0xff] %v346
                  %v348 = vld [vmem:[%s334 + $0xc0] sm:$0xff]
                  %349 = vst [vmem:[%s335 + $0x30] sm:$0xff] %v348
                  %v350 = vld [vmem:[%s334 + $0xe0] sm:$0xff]
                  %351 = vst [vmem:[%s335 + $0x38] sm:$0xff] %v350
                  %v352 = vld [vmem:[%s334 + $0x100] sm:$0xff]
                  %353 = vst [vmem:[%s335 + $0x40] sm:$0xff] %v352
                  %v354 = vld [vmem:[%s334 + $0x120] sm:$0xff]
                  %355 = vst [vmem:[%s335 + $0x48] sm:$0xff] %v354
                  %v356 = vld [vmem:[%s334 + $0x140] sm:$0xff]
                  %357 = vst [vmem:[%s335 + $0x50] sm:$0xff] %v356
                  %v358 = vld [vmem:[%s334 + $0x160] sm:$0xff]
                  %359 = vst [vmem:[%s335 + $0x58] sm:$0xff] %v358
                  %v360 = vld [vmem:[%s334 + $0x180] sm:$0xff]
                  %361 = vst [vmem:[%s335 + $0x60] sm:$0xff] %v360
                  %v362 = vld [vmem:[%s334 + $0x1a0] sm:$0xff]
                  %363 = vst [vmem:[%s335 + $0x68] sm:$0xff] %v362
                  %v364 = vld [vmem:[%s334 + $0x1c0] sm:$0xff]
                  %365 = vst [vmem:[%s335 + $0x70] sm:$0xff] %v364
                  %v366 = vld [vmem:[%s334 + $0x1e0] sm:$0xff]
                  %367 = vst [vmem:[%s335 + $0x78] sm:$0xff] %v366
                  %v368 = vld [vmem:[%s334 + $0x200] sm:$0xff]
                  %369 = vst [vmem:[%s335 + $0x80] sm:$0xff] %v368
                  %v370 = vld [vmem:[%s334 + $0x220] sm:$0xff]
                  %371 = vst [vmem:[%s335 + $0x88] sm:$0xff] %v370
                  %v372 = vld [vmem:[%s334 + $0x240] sm:$0xff]
                  %373 = vst [vmem:[%s335 + $0x90] sm:$0xff] %v372
                  %v374 = vld [vmem:[%s334 + $0x260] sm:$0xff]
                  %375 = vst [vmem:[%s335 + $0x98] sm:$0xff] %v374
                  %v376 = vld [vmem:[%s334 + $0x280] sm:$0xff]
                  %377 = vst [vmem:[%s335 + $0xa0] sm:$0xff] %v376
                  %v378 = vld [vmem:[%s334 + $0x2a0] sm:$0xff]
                  %379 = vst [vmem:[%s335 + $0xa8] sm:$0xff] %v378
                  %v380 = vld [vmem:[%s334 + $0x2c0] sm:$0xff]
                  %381 = vst [vmem:[%s335 + $0xb0] sm:$0xff] %v380
                  %v382 = vld [vmem:[%s334 + $0x2e0] sm:$0xff]
                  %383 = vst [vmem:[%s335 + $0xb8] sm:$0xff] %v382
                  %v384 = vld [vmem:[%s334 + $0x300] sm:$0xff]
                  %385 = vst [vmem:[%s335 + $0xc0] sm:$0xff] %v384
                  %v386 = vld [vmem:[%s334 + $0x320] sm:$0xff]
                  %387 = vst [vmem:[%s335 + $0xc8] sm:$0xff] %v386
                  %v388 = vld [vmem:[%s334 + $0x340] sm:$0xff]
                  %389 = vst [vmem:[%s335 + $0xd0] sm:$0xff] %v388
                  %v390 = vld [vmem:[%s334 + $0x360] sm:$0xff]
                  %391 = vst [vmem:[%s335 + $0xd8] sm:$0xff] %v390
                  %v392 = vld [vmem:[%s334 + $0x380] sm:$0xff]
                  %393 = vst [vmem:[%s335 + $0xe0] sm:$0xff] %v392
                  %v394 = vld [vmem:[%s334 + $0x3a0] sm:$0xff]
                  %395 = vst [vmem:[%s335 + $0xe8] sm:$0xff] %v394
                  %v396 = vld [vmem:[%s334 + $0x3c0] sm:$0xff]
                  %397 = vst [vmem:[%s335 + $0xf0] sm:$0xff] %v396
                  %v398 = vld [vmem:[%s334 + $0x3e0] sm:$0xff]
                  %399 = vst [vmem:[%s335 + $0xf8] sm:$0xff] %v398
                  %v400 = vld [vmem:[%s334 + $0x400] sm:$0xff]
                  %401 = vst [vmem:[%s335 + $0x100] sm:$0xff] %v400
                  %v402 = vld [vmem:[%s334 + $0x420] sm:$0xff]
                  %403 = vst [vmem:[%s335 + $0x108] sm:$0xff] %v402
                  %v404 = vld [vmem:[%s334 + $0x440] sm:$0xff]
                  %405 = vst [vmem:[%s335 + $0x110] sm:$0xff] %v404
                  %v406 = vld [vmem:[%s334 + $0x460] sm:$0xff]
                  %407 = vst [vmem:[%s335 + $0x118] sm:$0xff] %v406
                  %v408 = vld [vmem:[%s334 + $0x480] sm:$0xff]
                  %409 = vst [vmem:[%s335 + $0x120] sm:$0xff] %v408
                  %v410 = vld [vmem:[%s334 + $0x4a0] sm:$0xff]
                  %411 = vst [vmem:[%s335 + $0x128] sm:$0xff] %v410
                  %v412 = vld [vmem:[%s334 + $0x4c0] sm:$0xff]
                  %413 = vst [vmem:[%s335 + $0x130] sm:$0xff] %v412
                  %v414 = vld [vmem:[%s334 + $0x4e0] sm:$0xff]
                  %415 = vst [vmem:[%s335 + $0x138] sm:$0xff] %v414
                  %v416 = vld [vmem:[%s334 + $0x500] sm:$0xff]
                  %417 = vst [vmem:[%s335 + $0x140] sm:$0xff] %v416
                  %v418 = vld [vmem:[%s334 + $0x520] sm:$0xff]
                  %419 = vst [vmem:[%s335 + $0x148] sm:$0xff] %v418
                  %v420 = vld [vmem:[%s334 + $0x540] sm:$0xff]
                  %421 = vst [vmem:[%s335 + $0x150] sm:$0xff] %v420
                  %v422 = vld [vmem:[%s334 + $0x560] sm:$0xff]
                  %423 = vst [vmem:[%s335 + $0x158] sm:$0xff] %v422
                  %v424 = vld [vmem:[%s334 + $0x580] sm:$0xff]
                  %425 = vst [vmem:[%s335 + $0x160] sm:$0xff] %v424
                  %v426 = vld [vmem:[%s334 + $0x5a0] sm:$0xff]
                  %427 = vst [vmem:[%s335 + $0x168] sm:$0xff] %v426
                  %v428 = vld [vmem:[%s334 + $0x5c0] sm:$0xff]
                  %429 = vst [vmem:[%s335 + $0x170] sm:$0xff] %v428
                  %v430 = vld [vmem:[%s334 + $0x5e0] sm:$0xff]
                  %431 = vst [vmem:[%s335 + $0x178] sm:$0xff] %v430
                  %v432 = vld [vmem:[%s334 + $0x600] sm:$0xff]
                  %433 = vst [vmem:[%s335 + $0x180] sm:$0xff] %v432
                  %v434 = vld [vmem:[%s334 + $0x620] sm:$0xff]
                  %435 = vst [vmem:[%s335 + $0x188] sm:$0xff] %v434
                  %v436 = vld [vmem:[%s334 + $0x640] sm:$0xff]
                  %437 = vst [vmem:[%s335 + $0x190] sm:$0xff] %v436
                  %v438 = vld [vmem:[%s334 + $0x660] sm:$0xff]
                  %439 = vst [vmem:[%s335 + $0x198] sm:$0xff] %v438
                  %v440 = vld [vmem:[%s334 + $0x680] sm:$0xff]
                  %441 = vst [vmem:[%s335 + $0x1a0] sm:$0xff] %v440
                  %v442 = vld [vmem:[%s334 + $0x6a0] sm:$0xff]
                  %443 = vst [vmem:[%s335 + $0x1a8] sm:$0xff] %v442
                  %v444 = vld [vmem:[%s334 + $0x6c0] sm:$0xff]
                  %445 = vst [vmem:[%s335 + $0x1b0] sm:$0xff] %v444
                  %v446 = vld [vmem:[%s334 + $0x6e0] sm:$0xff]
                  %447 = vst [vmem:[%s335 + $0x1b8] sm:$0xff] %v446
                  %v448 = vld [vmem:[%s334 + $0x700] sm:$0xff]
                  %449 = vst [vmem:[%s335 + $0x1c0] sm:$0xff] %v448
                  %v450 = vld [vmem:[%s334 + $0x720] sm:$0xff]
                  %451 = vst [vmem:[%s335 + $0x1c8] sm:$0xff] %v450
                  %v452 = vld [vmem:[%s334 + $0x740] sm:$0xff]
                  %453 = vst [vmem:[%s335 + $0x1d0] sm:$0xff] %v452
                  %v454 = vld [vmem:[%s334 + $0x760] sm:$0xff]
                  %455 = vst [vmem:[%s335 + $0x1d8] sm:$0xff] %v454
                  %v456 = vld [vmem:[%s334 + $0x780] sm:$0xff]
                  %457 = vst [vmem:[%s335 + $0x1e0] sm:$0xff] %v456
                  %v458 = vld [vmem:[%s334 + $0x7a0] sm:$0xff]
                  %459 = vst [vmem:[%s335 + $0x1e8] sm:$0xff] %v458
                  %v460 = vld [vmem:[%s334 + $0x7c0] sm:$0xff]
                  %461 = vst [vmem:[%s335 + $0x1f0] sm:$0xff] %v460
                  %v462 = vld [vmem:[%s334 + $0x7e0] sm:$0xff]
                  %463 = vst [vmem:[%s335 + $0x1f8] sm:$0xff] %v462
                $region52: #{_lambda_.73} parent=46 // loop_footer
                  %s333 = sadd.s32 1, %s329
                $region53: #{_lambda_.73} parent=46 // loop_footer_branch
                  %328 = sbr.rel target = $region49
                $region54: #{_lambda_.73} parent=46 // loop_exit
                  _
              $region47: #{_lambda_.73} parent=31 // pred_fallthru
                _
              // Predicated region
              $region55: #{_lambda_.73} parent=31 // pred_check
                _
              $region56: #{_lambda_.73} parent=31 // pred_check_branch
                %465 = sbr.rel target = $region58
              $region57: #{_lambda_.73} parent=31 // pred_region
                _
              $region58: #{_lambda_.73} parent=31 // pred_fallthru
                _
            $region32: #{_lambda_.73} parent=27 // pred_fallthru
              _
            // Predicated region
            $region33: #{_lambda_.73} parent=27 // pred_check
              _
            $region34: #{_lambda_.73} parent=27 // pred_check_branch
              %188 = sbr.rel target = $region36
            $region35: #{_lambda_.73} parent=27 // pred_region
              loop: start=0, step=1, limit=1
              $region37: #{_lambda_.73} parent=35 // loop_pre_header
                _
              $region38: #{_lambda_.73} parent=35 // loop_header
                %s191 = sphi 0, %s195
                %p192 = scmp.ge.s32.totalorder %s191, 1
                %s196 = sphi %s182, %s182
                %s197 = sphi %s176, %s176
              $region39: #{_lambda_.73} parent=35 // loop_header_branch
                %194 = sbr.rel (%p192) target = $region43
              $region40: #{_lambda_.73} parent=35 // loop_body
                %v198 = vld [vmem:[%s196] sm:$0xff]
                %199 = vst [vmem:[%s197] sm:$0xff] %v198
                %v200 = vld [vmem:[%s196 + $0x20] sm:$0xff]
                %201 = vst [vmem:[%s197 + $0x8] sm:$0xff] %v200
                %v202 = vld [vmem:[%s196 + $0x40] sm:$0xff]
                %203 = vst [vmem:[%s197 + $0x10] sm:$0xff] %v202
                %v204 = vld [vmem:[%s196 + $0x60] sm:$0xff]
                %205 = vst [vmem:[%s197 + $0x18] sm:$0xff] %v204
                %v206 = vld [vmem:[%s196 + $0x80] sm:$0xff]
                %207 = vst [vmem:[%s197 + $0x20] sm:$0xff] %v206
                %v208 = vld [vmem:[%s196 + $0xa0] sm:$0xff]
                %209 = vst [vmem:[%s197 + $0x28] sm:$0xff] %v208
                %v210 = vld [vmem:[%s196 + $0xc0] sm:$0xff]
                %211 = vst [vmem:[%s197 + $0x30] sm:$0xff] %v210
                %v212 = vld [vmem:[%s196 + $0xe0] sm:$0xff]
                %213 = vst [vmem:[%s197 + $0x38] sm:$0xff] %v212
                %v214 = vld [vmem:[%s196 + $0x100] sm:$0xff]
                %215 = vst [vmem:[%s197 + $0x40] sm:$0xff] %v214
                %v216 = vld [vmem:[%s196 + $0x120] sm:$0xff]
                %217 = vst [vmem:[%s197 + $0x48] sm:$0xff] %v216
                %v218 = vld [vmem:[%s196 + $0x140] sm:$0xff]
                %219 = vst [vmem:[%s197 + $0x50] sm:$0xff] %v218
                %v220 = vld [vmem:[%s196 + $0x160] sm:$0xff]
                %221 = vst [vmem:[%s197 + $0x58] sm:$0xff] %v220
                %v222 = vld [vmem:[%s196 + $0x180] sm:$0xff]
                %223 = vst [vmem:[%s197 + $0x60] sm:$0xff] %v222
                %v224 = vld [vmem:[%s196 + $0x1a0] sm:$0xff]
                %225 = vst [vmem:[%s197 + $0x68] sm:$0xff] %v224
                %v226 = vld [vmem:[%s196 + $0x1c0] sm:$0xff]
                %227 = vst [vmem:[%s197 + $0x70] sm:$0xff] %v226
                %v228 = vld [vmem:[%s196 + $0x1e0] sm:$0xff]
                %229 = vst [vmem:[%s197 + $0x78] sm:$0xff] %v228
                %v230 = vld [vmem:[%s196 + $0x200] sm:$0xff]
                %231 = vst [vmem:[%s197 + $0x80] sm:$0xff] %v230
                %v232 = vld [vmem:[%s196 + $0x220] sm:$0xff]
                %233 = vst [vmem:[%s197 + $0x88] sm:$0xff] %v232
                %v234 = vld [vmem:[%s196 + $0x240] sm:$0xff]
                %235 = vst [vmem:[%s197 + $0x90] sm:$0xff] %v234
                %v236 = vld [vmem:[%s196 + $0x260] sm:$0xff]
                %237 = vst [vmem:[%s197 + $0x98] sm:$0xff] %v236
                %v238 = vld [vmem:[%s196 + $0x280] sm:$0xff]
                %239 = vst [vmem:[%s197 + $0xa0] sm:$0xff] %v238
                %v240 = vld [vmem:[%s196 + $0x2a0] sm:$0xff]
                %241 = vst [vmem:[%s197 + $0xa8] sm:$0xff] %v240
                %v242 = vld [vmem:[%s196 + $0x2c0] sm:$0xff]
                %243 = vst [vmem:[%s197 + $0xb0] sm:$0xff] %v242
                %v244 = vld [vmem:[%s196 + $0x2e0] sm:$0xff]
                %245 = vst [vmem:[%s197 + $0xb8] sm:$0xff] %v244
                %v246 = vld [vmem:[%s196 + $0x300] sm:$0xff]
                %247 = vst [vmem:[%s197 + $0xc0] sm:$0xff] %v246
                %v248 = vld [vmem:[%s196 + $0x320] sm:$0xff]
                %249 = vst [vmem:[%s197 + $0xc8] sm:$0xff] %v248
                %v250 = vld [vmem:[%s196 + $0x340] sm:$0xff]
                %251 = vst [vmem:[%s197 + $0xd0] sm:$0xff] %v250
                %v252 = vld [vmem:[%s196 + $0x360] sm:$0xff]
                %253 = vst [vmem:[%s197 + $0xd8] sm:$0xff] %v252
                %v254 = vld [vmem:[%s196 + $0x380] sm:$0xff]
                %255 = vst [vmem:[%s197 + $0xe0] sm:$0xff] %v254
                %v256 = vld [vmem:[%s196 + $0x3a0] sm:$0xff]
                %257 = vst [vmem:[%s197 + $0xe8] sm:$0xff] %v256
                %v258 = vld [vmem:[%s196 + $0x3c0] sm:$0xff]
                %259 = vst [vmem:[%s197 + $0xf0] sm:$0xff] %v258
                %v260 = vld [vmem:[%s196 + $0x3e0] sm:$0xff]
                %261 = vst [vmem:[%s197 + $0xf8] sm:$0xff] %v260
                %v262 = vld [vmem:[%s196 + $0x400] sm:$0xff]
                %263 = vst [vmem:[%s197 + $0x100] sm:$0xff] %v262
                %v264 = vld [vmem:[%s196 + $0x420] sm:$0xff]
                %265 = vst [vmem:[%s197 + $0x108] sm:$0xff] %v264
                %v266 = vld [vmem:[%s196 + $0x440] sm:$0xff]
                %267 = vst [vmem:[%s197 + $0x110] sm:$0xff] %v266
                %v268 = vld [vmem:[%s196 + $0x460] sm:$0xff]
                %269 = vst [vmem:[%s197 + $0x118] sm:$0xff] %v268
                %v270 = vld [vmem:[%s196 + $0x480] sm:$0xff]
                %271 = vst [vmem:[%s197 + $0x120] sm:$0xff] %v270
                %v272 = vld [vmem:[%s196 + $0x4a0] sm:$0xff]
                %273 = vst [vmem:[%s197 + $0x128] sm:$0xff] %v272
                %v274 = vld [vmem:[%s196 + $0x4c0] sm:$0xff]
                %275 = vst [vmem:[%s197 + $0x130] sm:$0xff] %v274
                %v276 = vld [vmem:[%s196 + $0x4e0] sm:$0xff]
                %277 = vst [vmem:[%s197 + $0x138] sm:$0xff] %v276
                %v278 = vld [vmem:[%s196 + $0x500] sm:$0xff]
                %279 = vst [vmem:[%s197 + $0x140] sm:$0xff] %v278
                %v280 = vld [vmem:[%s196 + $0x520] sm:$0xff]
                %281 = vst [vmem:[%s197 + $0x148] sm:$0xff] %v280
                %v282 = vld [vmem:[%s196 + $0x540] sm:$0xff]
                %283 = vst [vmem:[%s197 + $0x150] sm:$0xff] %v282
                %v284 = vld [vmem:[%s196 + $0x560] sm:$0xff]
                %285 = vst [vmem:[%s197 + $0x158] sm:$0xff] %v284
                %v286 = vld [vmem:[%s196 + $0x580] sm:$0xff]
                %287 = vst [vmem:[%s197 + $0x160] sm:$0xff] %v286
                %v288 = vld [vmem:[%s196 + $0x5a0] sm:$0xff]
                %289 = vst [vmem:[%s197 + $0x168] sm:$0xff] %v288
                %v290 = vld [vmem:[%s196 + $0x5c0] sm:$0xff]
                %291 = vst [vmem:[%s197 + $0x170] sm:$0xff] %v290
                %v292 = vld [vmem:[%s196 + $0x5e0] sm:$0xff]
                %293 = vst [vmem:[%s197 + $0x178] sm:$0xff] %v292
                %v294 = vld [vmem:[%s196 + $0x600] sm:$0xff]
                %295 = vst [vmem:[%s197 + $0x180] sm:$0xff] %v294
                %v296 = vld [vmem:[%s196 + $0x620] sm:$0xff]
                %297 = vst [vmem:[%s197 + $0x188] sm:$0xff] %v296
                %v298 = vld [vmem:[%s196 + $0x640] sm:$0xff]
                %299 = vst [vmem:[%s197 + $0x190] sm:$0xff] %v298
                %v300 = vld [vmem:[%s196 + $0x660] sm:$0xff]
                %301 = vst [vmem:[%s197 + $0x198] sm:$0xff] %v300
                %v302 = vld [vmem:[%s196 + $0x680] sm:$0xff]
                %303 = vst [vmem:[%s197 + $0x1a0] sm:$0xff] %v302
                %v304 = vld [vmem:[%s196 + $0x6a0] sm:$0xff]
                %305 = vst [vmem:[%s197 + $0x1a8] sm:$0xff] %v304
                %v306 = vld [vmem:[%s196 + $0x6c0] sm:$0xff]
                %307 = vst [vmem:[%s197 + $0x1b0] sm:$0xff] %v306
                %v308 = vld [vmem:[%s196 + $0x6e0] sm:$0xff]
                %309 = vst [vmem:[%s197 + $0x1b8] sm:$0xff] %v308
                %v310 = vld [vmem:[%s196 + $0x700] sm:$0xff]
                %311 = vst [vmem:[%s197 + $0x1c0] sm:$0xff] %v310
                %v312 = vld [vmem:[%s196 + $0x720] sm:$0xff]
                %313 = vst [vmem:[%s197 + $0x1c8] sm:$0xff] %v312
                %v314 = vld [vmem:[%s196 + $0x740] sm:$0xff]
                %315 = vst [vmem:[%s197 + $0x1d0] sm:$0xff] %v314
                %v316 = vld [vmem:[%s196 + $0x760] sm:$0xff]
                %317 = vst [vmem:[%s197 + $0x1d8] sm:$0xff] %v316
                %v318 = vld [vmem:[%s196 + $0x780] sm:$0xff]
                %319 = vst [vmem:[%s197 + $0x1e0] sm:$0xff] %v318
                %v320 = vld [vmem:[%s196 + $0x7a0] sm:$0xff]
                %321 = vst [vmem:[%s197 + $0x1e8] sm:$0xff] %v320
                %v322 = vld [vmem:[%s196 + $0x7c0] sm:$0xff]
                %323 = vst [vmem:[%s197 + $0x1f0] sm:$0xff] %v322
                %v324 = vld [vmem:[%s196 + $0x7e0] sm:$0xff]
                %325 = vst [vmem:[%s197 + $0x1f8] sm:$0xff] %v324
              $region41: #{_lambda_.73} parent=35 // loop_footer
                %s195 = sadd.s32 1, %s191
              $region42: #{_lambda_.73} parent=35 // loop_footer_branch
                %190 = sbr.rel target = $region38
              $region43: #{_lambda_.73} parent=35 // loop_exit
                _
            $region36: #{_lambda_.73} parent=27 // pred_fallthru
              _
          $region28: #{_lambda_.73} parent=23 // pred_fallthru
            _
          %466 = vnop
        $region24: #{_lambda_.73} parent=19 // pred_fallthru
          _
        // Predicated region
        $region59: #{_lambda_.73} parent=19 // pred_check
          %p467 = pneg %p104
        $region60: #{_lambda_.73} parent=19 // pred_check_branch
          %469 = sbr.rel (%p467) target = $region62
        $region61: #{_lambda_.73} parent=19 // pred_region
          %s470 = smul.u32 2, %s17
          %p471 = scmp.lt.s32.totalorder %s470, 7
          %s472 = scalar_select %p471, %s470, 7
          %s473 = scalar_lea.vmem %s2, %s472
          %s474 = smul.u32 2, %s17
        $region62: #{_lambda_.73} parent=19 // pred_fallthru
          _
      $region20: #{_lambda_.73} parent=5 // pred_fallthru
        _
      %p475 = scmp.le.s32.totalorder 1, %s9
      %p476 = scmp.lt.s32.totalorder %s9, 5
      %p477 = pnand %p475, %p476
      %p478 = pneg %p477
      // Predicated region
      $region63: #{_lambda_.73} parent=5 // pred_check
        _
      $region64: #{_lambda_.73} parent=5 // pred_check_branch
        %480 = sbr.rel (%p477) target = $region66
      $region65: #{_lambda_.73} parent=5 // pred_region
        %s481 = ssub.s32 %s9, 1
        %s482 = sand.u32 %s71, 1
        %s483 = sand.u32 %s71, 1
        %s484 = smul.addr %s483, 512
        %s485 = scalar_lea.vmem [#allocation3], %s484
        // Predicated region
        $region67: #{_lambda_.73} parent=65 // pred_check
          %p486 = pneg %p84
        $region68: #{_lambda_.73} parent=65 // pred_check_branch
          %488 = sbr.rel (%p486) target = $region70
        $region69: #{_lambda_.73} parent=65 // pred_region
          _
        $region70: #{_lambda_.73} parent=65 // pred_fallthru
          _
        %s489 = smul.u32 4, %s21
        %p490 = scmp.lt.s32.totalorder %s19, 0
        %s491 = scalar_select %p490, %s19, 0
        %p492 = scmp.lt.s32.totalorder %s489, 3
        %s493 = scalar_select %p492, %s489, 3
        %s494 = smul.addr %s491, 4
        %s495 = sadd.s32 %s493, %s494
        %s496 = smul.addr %s495, 4
        %s497 = scalar_lea.vmem %s0, %s496
        %p498 = pneg %p56
        %p499 = pneg %p53
        %s500 = sand.u32 %s71, 1
        %s501 = sand.u32 %s71, 1
        %s502 = smul.addr %s501, 512
        %s503 = scalar_lea.vmem [#allocation3], %s502
        %p504 = pneg %p84
        %p505 = pneg %p81
        %s506 = smul.u32 2, %s20
        %p507 = scmp.lt.s32.totalorder %s506, 7
        %s508 = scalar_select %p507, %s506, 7
        %s509 = scalar_lea.vmem %s2, %s508
        %p510 = pneg %p110
        %p511 = pneg %p107
        %p512 = pneg %p138
        %p513 = pneg %p135
        %s514 = smul.u32 2, %s20
        %p515 = scmp.lt.s32.totalorder %s19, 0
        %s516 = scalar_select %p515, %s19, 0
        %p517 = scmp.lt.s32.totalorder %s514, 7
        %s518 = scalar_select %p517, %s514, 7
        %s519 = smul.addr %s516, 8
        %s520 = sadd.s32 %s518, %s519
        %s521 = smul.addr %s520, 4
        %s522 = scalar_lea.vmem %s3, %s521
        %s523 = smul.u32 4, %s21
        %p524 = scmp.lt.s32.totalorder %s19, 0
        %s525 = scalar_select %p524, %s19, 0
        %p526 = scmp.lt.s32.totalorder %s523, 3
        %s527 = scalar_select %p526, %s523, 3
        %s528 = smul.addr %s525, 4
        %s529 = sadd.s32 %s527, %s528
        %s530 = smul.addr %s529, 4
        %s531 = scalar_lea.vmem %s0, %s530
        %s532 = smul.u32 4, %s21
        %s533 = smul.u32 64, %s21
        %s534 = smul.u32 2, %s20
        %s535 = smul.u32 2, %s20
        %p536 = scmp.lt.s32.totalorder %s535, 7
        %s537 = scalar_select %p536, %s535, 7
        %s538 = scalar_lea.vmem %s2, %s537
        %s539 = smul.u32 2, %s20
        %s540 = smul.u32 2, %s20
        %p541 = scmp.lt.s32.totalorder %s19, 0
        %s542 = scalar_select %p541, %s19, 0
        %p543 = scmp.lt.s32.totalorder %s540, 7
        %s544 = scalar_select %p543, %s540, 7
        %s545 = smul.addr %s542, 8
        %s546 = sadd.s32 %s544, %s545
        %s547 = smul.addr %s546, 4
        %s548 = scalar_lea.vmem %s3, %s547
        %s549 = smul.u32 2, %s20
        %p550 = scmp.eq.s32.totalorder %s21, 0
        // Predicated region
        $region71: #{_lambda_.73} parent=65 // pred_check
          %p551 = pneg %p550
        $region72: #{_lambda_.73} parent=65 // pred_check_branch
          %553 = sbr.rel (%p551) target = $region74
        $region73: #{_lambda_.73} parent=65 // pred_region
          %554 = vst [vmem:[#allocation2] sm:$0xff] 0.0
          %555 = vst [vmem:[#allocation2 + $0x8] sm:$0xff] 0.0
        $region74: #{_lambda_.73} parent=65 // pred_fallthru
          _
        %v556 = vld [vmem:[#allocation2] sm:$0xff]
        %v557 = vld [vmem:[#allocation2 + $0x8] sm:$0xff]
        %v558 = vld [vmem:[%s531] sm:$0xff]
        %v559 = vld [vmem:[%s531 + $0x8] sm:$0xff]
        %v560 = vld [vmem:[%s485] sm:$0xff]
        %v561 = vld [vmem:[%s485 + $0x8] sm:$0xff]
        %v562 = vld [vmem:[%s485 + $0x10] sm:$0xff]
        %v563 = vld [vmem:[%s485 + $0x18] sm:$0xff]
        %v564 = vld [vmem:[%s485 + $0x20] sm:$0xff]
        %v565 = vld [vmem:[%s485 + $0x28] sm:$0xff]
        %v566 = vld [vmem:[%s485 + $0x30] sm:$0xff]
        %v567 = vld [vmem:[%s485 + $0x38] sm:$0xff]
        %v568 = vld [vmem:[%s485 + $0x40] sm:$0xff]
        %v569 = vld [vmem:[%s485 + $0x48] sm:$0xff]
        %v570 = vld [vmem:[%s485 + $0x50] sm:$0xff]
        %v571 = vld [vmem:[%s485 + $0x58] sm:$0xff]
        %v572 = vld [vmem:[%s485 + $0x60] sm:$0xff]
        %v573 = vld [vmem:[%s485 + $0x68] sm:$0xff]
        %v574 = vld [vmem:[%s485 + $0x70] sm:$0xff]
        %v575 = vld [vmem:[%s485 + $0x78] sm:$0xff]
        %v576 = vld [vmem:[%s485 + $0x80] sm:$0xff]
        %v577 = vld [vmem:[%s485 + $0x88] sm:$0xff]
        %v578 = vld [vmem:[%s485 + $0x90] sm:$0xff]
        %v579 = vld [vmem:[%s485 + $0x98] sm:$0xff]
        %v580 = vld [vmem:[%s485 + $0xa0] sm:$0xff]
        %v581 = vld [vmem:[%s485 + $0xa8] sm:$0xff]
        %v582 = vld [vmem:[%s485 + $0xb0] sm:$0xff]
        %v583 = vld [vmem:[%s485 + $0xb8] sm:$0xff]
        %v584 = vld [vmem:[%s485 + $0xc0] sm:$0xff]
        %v585 = vld [vmem:[%s485 + $0xc8] sm:$0xff]
        %v586 = vld [vmem:[%s485 + $0xd0] sm:$0xff]
        %v587 = vld [vmem:[%s485 + $0xd8] sm:$0xff]
        %v588 = vld [vmem:[%s485 + $0xe0] sm:$0xff]
        %v589 = vld [vmem:[%s485 + $0xe8] sm:$0xff]
        %v590 = vld [vmem:[%s485 + $0xf0] sm:$0xff]
        %v591 = vld [vmem:[%s485 + $0xf8] sm:$0xff]
        %v592 = vld [vmem:[%s485 + $0x100] sm:$0xff]
        %v593 = vld [vmem:[%s485 + $0x108] sm:$0xff]
        %v594 = vld [vmem:[%s485 + $0x110] sm:$0xff]
        %v595 = vld [vmem:[%s485 + $0x118] sm:$0xff]
        %v596 = vld [vmem:[%s485 + $0x120] sm:$0xff]
        %v597 = vld [vmem:[%s485 + $0x128] sm:$0xff]
        %v598 = vld [vmem:[%s485 + $0x130] sm:$0xff]
        %v599 = vld [vmem:[%s485 + $0x138] sm:$0xff]
        %v600 = vld [vmem:[%s485 + $0x140] sm:$0xff]
        %v601 = vld [vmem:[%s485 + $0x148] sm:$0xff]
        %v602 = vld [vmem:[%s485 + $0x150] sm:$0xff]
        %v603 = vld [vmem:[%s485 + $0x158] sm:$0xff]
        %v604 = vld [vmem:[%s485 + $0x160] sm:$0xff]
        %v605 = vld [vmem:[%s485 + $0x168] sm:$0xff]
        %v606 = vld [vmem:[%s485 + $0x170] sm:$0xff]
        %v607 = vld [vmem:[%s485 + $0x178] sm:$0xff]
        %v608 = vld [vmem:[%s485 + $0x180] sm:$0xff]
        %v609 = vld [vmem:[%s485 + $0x188] sm:$0xff]
        %v610 = vld [vmem:[%s485 + $0x190] sm:$0xff]
        %v611 = vld [vmem:[%s485 + $0x198] sm:$0xff]
        %v612 = vld [vmem:[%s485 + $0x1a0] sm:$0xff]
        %v613 = vld [vmem:[%s485 + $0x1a8] sm:$0xff]
        %v614 = vld [vmem:[%s485 + $0x1b0] sm:$0xff]
        %v615 = vld [vmem:[%s485 + $0x1b8] sm:$0xff]
        %v616 = vld [vmem:[%s485 + $0x1c0] sm:$0xff]
        %v617 = vld [vmem:[%s485 + $0x1c8] sm:$0xff]
        %v618 = vld [vmem:[%s485 + $0x1d0] sm:$0xff]
        %v619 = vld [vmem:[%s485 + $0x1d8] sm:$0xff]
        %v620 = vld [vmem:[%s485 + $0x1e0] sm:$0xff]
        %v621 = vld [vmem:[%s485 + $0x1e8] sm:$0xff]
        %v622 = vld [vmem:[%s485 + $0x1f0] sm:$0xff]
        %v623 = vld [vmem:[%s485 + $0x1f8] sm:$0xff]
        %v626 = vunpack.c.l.b16 %v558
        %v627 = vunpack.c.h.b16 %v558
        %v628 = vunpack.c.l.b16 %v559
        %v629 = vunpack.c.h.b16 %v559
        %v630 = vpack.c.b16 %v626, %v626
        %v631 = vpack.c.b16 %v627, %v627
        %v632 = vpack.c.b16 %v628, %v628
        %v633 = vpack.c.b16 %v629, %v629
        %v702 = vunpack.c.l.b16 %v560
        %v703 = vunpack.c.h.b16 %v560
        %v704 = vunpack.c.l.b16 %v561
        %v705 = vunpack.c.h.b16 %v561
        %v706 = vunpack.c.l.b16 %v562
        %v707 = vunpack.c.h.b16 %v562
        %v708 = vunpack.c.l.b16 %v563
        %v709 = vunpack.c.h.b16 %v563
        %v710 = vunpack.c.l.b16 %v564
        %v711 = vunpack.c.h.b16 %v564
        %v712 = vunpack.c.l.b16 %v565
        %v713 = vunpack.c.h.b16 %v565
        %v714 = vunpack.c.l.b16 %v566
        %v715 = vunpack.c.h.b16 %v566
        %v716 = vunpack.c.l.b16 %v567
        %v717 = vunpack.c.h.b16 %v567
        %v718 = vunpack.c.l.b16 %v568
        %v719 = vunpack.c.h.b16 %v568
        %v720 = vunpack.c.l.b16 %v569
        %v721 = vunpack.c.h.b16 %v569
        %v722 = vunpack.c.l.b16 %v570
        %v723 = vunpack.c.h.b16 %v570
        %v724 = vunpack.c.l.b16 %v571
        %v725 = vunpack.c.h.b16 %v571
        %v726 = vunpack.c.l.b16 %v572
        %v727 = vunpack.c.h.b16 %v572
        %v728 = vunpack.c.l.b16 %v573
        %v729 = vunpack.c.h.b16 %v573
        %v730 = vunpack.c.l.b16 %v574
        %v731 = vunpack.c.h.b16 %v574
        %v732 = vunpack.c.l.b16 %v575
        %v733 = vunpack.c.h.b16 %v575
        %v734 = vunpack.c.l.b16 %v576
        %v735 = vunpack.c.h.b16 %v576
        %v736 = vunpack.c.l.b16 %v577
        %v737 = vunpack.c.h.b16 %v577
        %v738 = vunpack.c.l.b16 %v578
        %v739 = vunpack.c.h.b16 %v578
        %v740 = vunpack.c.l.b16 %v579
        %v741 = vunpack.c.h.b16 %v579
        %v742 = vunpack.c.l.b16 %v580
        %v743 = vunpack.c.h.b16 %v580
        %v744 = vunpack.c.l.b16 %v581
        %v745 = vunpack.c.h.b16 %v581
        %v746 = vunpack.c.l.b16 %v582
        %v747 = vunpack.c.h.b16 %v582
        %v748 = vunpack.c.l.b16 %v583
        %v749 = vunpack.c.h.b16 %v583
        %v750 = vunpack.c.l.b16 %v584
        %v751 = vunpack.c.h.b16 %v584
        %v752 = vunpack.c.l.b16 %v585
        %v753 = vunpack.c.h.b16 %v585
        %v754 = vunpack.c.l.b16 %v586
        %v755 = vunpack.c.h.b16 %v586
        %v756 = vunpack.c.l.b16 %v587
        %v757 = vunpack.c.h.b16 %v587
        %v758 = vunpack.c.l.b16 %v588
        %v759 = vunpack.c.h.b16 %v588
        %v760 = vunpack.c.l.b16 %v589
        %v761 = vunpack.c.h.b16 %v589
        %v762 = vunpack.c.l.b16 %v590
        %v763 = vunpack.c.h.b16 %v590
        %v764 = vunpack.c.l.b16 %v591
        %v765 = vunpack.c.h.b16 %v591
        %v766 = vunpack.c.l.b16 %v592
        %v767 = vunpack.c.h.b16 %v592
        %v768 = vunpack.c.l.b16 %v593
        %v769 = vunpack.c.h.b16 %v593
        %v770 = vunpack.c.l.b16 %v594
        %v771 = vunpack.c.h.b16 %v594
        %v772 = vunpack.c.l.b16 %v595
        %v773 = vunpack.c.h.b16 %v595
        %v774 = vunpack.c.l.b16 %v596
        %v775 = vunpack.c.h.b16 %v596
        %v776 = vunpack.c.l.b16 %v597
        %v777 = vunpack.c.h.b16 %v597
        %v778 = vunpack.c.l.b16 %v598
        %v779 = vunpack.c.h.b16 %v598
        %v780 = vunpack.c.l.b16 %v599
        %v781 = vunpack.c.h.b16 %v599
        %v782 = vunpack.c.l.b16 %v600
        %v783 = vunpack.c.h.b16 %v600
        %v784 = vunpack.c.l.b16 %v601
        %v785 = vunpack.c.h.b16 %v601
        %v786 = vunpack.c.l.b16 %v602
        %v787 = vunpack.c.h.b16 %v602
        %v788 = vunpack.c.l.b16 %v603
        %v789 = vunpack.c.h.b16 %v603
        %v790 = vunpack.c.l.b16 %v604
        %v791 = vunpack.c.h.b16 %v604
        %v792 = vunpack.c.l.b16 %v605
        %v793 = vunpack.c.h.b16 %v605
        %v794 = vunpack.c.l.b16 %v606
        %v795 = vunpack.c.h.b16 %v606
        %v796 = vunpack.c.l.b16 %v607
        %v797 = vunpack.c.h.b16 %v607
        %v798 = vunpack.c.l.b16 %v608
        %v799 = vunpack.c.h.b16 %v608
        %v800 = vunpack.c.l.b16 %v609
        %v801 = vunpack.c.h.b16 %v609
        %v802 = vunpack.c.l.b16 %v610
        %v803 = vunpack.c.h.b16 %v610
        %v804 = vunpack.c.l.b16 %v611
        %v805 = vunpack.c.h.b16 %v611
        %v806 = vunpack.c.l.b16 %v612
        %v807 = vunpack.c.h.b16 %v612
        %v808 = vunpack.c.l.b16 %v613
        %v809 = vunpack.c.h.b16 %v613
        %v810 = vunpack.c.l.b16 %v614
        %v811 = vunpack.c.h.b16 %v614
        %v812 = vunpack.c.l.b16 %v615
        %v813 = vunpack.c.h.b16 %v615
        %v814 = vunpack.c.l.b16 %v616
        %v815 = vunpack.c.h.b16 %v616
        %v816 = vunpack.c.l.b16 %v617
        %v817 = vunpack.c.h.b16 %v617
        %v818 = vunpack.c.l.b16 %v618
        %v819 = vunpack.c.h.b16 %v618
        %v820 = vunpack.c.l.b16 %v619
        %v821 = vunpack.c.h.b16 %v619
        %v822 = vunpack.c.l.b16 %v620
        %v823 = vunpack.c.h.b16 %v620
        %v824 = vunpack.c.l.b16 %v621
        %v825 = vunpack.c.h.b16 %v621
        %v826 = vunpack.c.l.b16 %v622
        %v827 = vunpack.c.h.b16 %v622
        %v828 = vunpack.c.l.b16 %v623
        %v829 = vunpack.c.h.b16 %v623
        %v830 = vpack.c.b16 %v704, %v702
        %v831 = vpack.c.b16 %v705, %v703
        %v832 = vpack.c.b16 %v708, %v706
        %v833 = vpack.c.b16 %v709, %v707
        %v834 = vpack.c.b16 %v712, %v710
        %v835 = vpack.c.b16 %v713, %v711
        %v836 = vpack.c.b16 %v716, %v714
        %v837 = vpack.c.b16 %v717, %v715
        %v838 = vpack.c.b16 %v720, %v718
        %v839 = vpack.c.b16 %v721, %v719
        %v840 = vpack.c.b16 %v724, %v722
        %v841 = vpack.c.b16 %v725, %v723
        %v842 = vpack.c.b16 %v728, %v726
        %v843 = vpack.c.b16 %v729, %v727
        %v844 = vpack.c.b16 %v732, %v730
        %v845 = vpack.c.b16 %v733, %v731
        %v846 = vpack.c.b16 %v736, %v734
        %v847 = vpack.c.b16 %v737, %v735
        %v848 = vpack.c.b16 %v740, %v738
        %v849 = vpack.c.b16 %v741, %v739
        %v850 = vpack.c.b16 %v744, %v742
        %v851 = vpack.c.b16 %v745, %v743
        %v852 = vpack.c.b16 %v748, %v746
        %v853 = vpack.c.b16 %v749, %v747
        %v854 = vpack.c.b16 %v752, %v750
        %v855 = vpack.c.b16 %v753, %v751
        %v856 = vpack.c.b16 %v756, %v754
        %v857 = vpack.c.b16 %v757, %v755
        %v858 = vpack.c.b16 %v760, %v758
        %v859 = vpack.c.b16 %v761, %v759
        %v860 = vpack.c.b16 %v764, %v762
        %v861 = vpack.c.b16 %v765, %v763
        %v862 = vpack.c.b16 %v768, %v766
        %v863 = vpack.c.b16 %v769, %v767
        %v864 = vpack.c.b16 %v772, %v770
        %v865 = vpack.c.b16 %v773, %v771
        %v866 = vpack.c.b16 %v776, %v774
        %v867 = vpack.c.b16 %v777, %v775
        %v868 = vpack.c.b16 %v780, %v778
        %v869 = vpack.c.b16 %v781, %v779
        %v870 = vpack.c.b16 %v784, %v782
        %v871 = vpack.c.b16 %v785, %v783
        %v872 = vpack.c.b16 %v788, %v786
        %v873 = vpack.c.b16 %v789, %v787
        %v874 = vpack.c.b16 %v792, %v790
        %v875 = vpack.c.b16 %v793, %v791
        %v876 = vpack.c.b16 %v796, %v794
        %v877 = vpack.c.b16 %v797, %v795
        %v878 = vpack.c.b16 %v800, %v798
        %v879 = vpack.c.b16 %v801, %v799
        %v880 = vpack.c.b16 %v804, %v802
        %v881 = vpack.c.b16 %v805, %v803
        %v882 = vpack.c.b16 %v808, %v806
        %v883 = vpack.c.b16 %v809, %v807
        %v884 = vpack.c.b16 %v812, %v810
        %v885 = vpack.c.b16 %v813, %v811
        %v886 = vpack.c.b16 %v816, %v814
        %v887 = vpack.c.b16 %v817, %v815
        %v888 = vpack.c.b16 %v820, %v818
        %v889 = vpack.c.b16 %v821, %v819
        %v890 = vpack.c.b16 %v824, %v822
        %v891 = vpack.c.b16 %v825, %v823
        %v892 = vpack.c.b16 %v828, %v826
        %v893 = vpack.c.b16 %v829, %v827
        %958 = vmatprep.subr.bf16.mxu0 %v831
        %959 = vmatpush1.bf16.msra.mxu0 %v830
        %960 = vmatprep.subr.bf16.mxu0 %v833
        %961 = vmatpush1.bf16.msra.mxu0 %v832
        %962 = vmatprep.subr.bf16.mxu0 %v835
        %963 = vmatpush1.bf16.msra.mxu0 %v834
        %964 = vmatprep.subr.bf16.mxu0 %v837
        %965 = vmatpush1.bf16.msra.mxu0 %v836
        %966 = vmatprep.subr.bf16.mxu0 %v839
        %967 = vmatpush1.bf16.msra.mxu0 %v838
        %968 = vmatprep.subr.bf16.mxu0 %v841
        %969 = vmatpush1.bf16.msra.mxu0 %v840
        %970 = vmatprep.subr.bf16.mxu0 %v843
        %971 = vmatpush1.bf16.msra.mxu0 %v842
        %972 = vmatprep.subr.bf16.mxu0 %v845
        %973 = vmatpush1.bf16.msra.mxu0 %v844
        %974 = vmatprep.subr.bf16.mxu0 %v847
        %975 = vmatpush1.bf16.msra.mxu0 %v846
        %976 = vmatprep.subr.bf16.mxu0 %v849
        %977 = vmatpush1.bf16.msra.mxu0 %v848
        %978 = vmatprep.subr.bf16.mxu0 %v851
        %979 = vmatpush1.bf16.msra.mxu0 %v850
        %980 = vmatprep.subr.bf16.mxu0 %v853
        %981 = vmatpush1.bf16.msra.mxu0 %v852
        %982 = vmatprep.subr.bf16.mxu0 %v855
        %983 = vmatpush1.bf16.msra.mxu0 %v854
        %984 = vmatprep.subr.bf16.mxu0 %v857
        %985 = vmatpush1.bf16.msra.mxu0 %v856
        %986 = vmatprep.subr.bf16.mxu0 %v859
        %987 = vmatpush1.bf16.msra.mxu0 %v858
        %988 = vmatprep.subr.bf16.mxu0 %v861
        %989 = vmatpush1.bf16.msra.mxu0 %v860
        %990 = vmatprep.mubr.bf16.mxu0 %v631
        %991 = vmatmul.mubr.bf16.gmra.mrb[0].mxu0 %v630
        %v992 = vpop.f32.mrb[0].mxu0
        %v993 = vadd.f32 0.0, %v992
        %v994 = vpop.f32.mrb[0].mxu0
        %v995 = vadd.f32 0.0, %v994
        %v996 = vpop.f32.mrb[0].mxu0
        %v997 = vpop.f32.mrb[0].mxu0
        %998 = vdwg.mxu0
        %999 = vmatprep.subr.bf16.mxu0 %v863
        %1000 = vmatpush1.bf16.msra.mxu0 %v862
        %1001 = vmatprep.subr.bf16.mxu0 %v865
        %1002 = vmatpush1.bf16.msra.mxu0 %v864
        %1003 = vmatprep.subr.bf16.mxu0 %v867
        %1004 = vmatpush1.bf16.msra.mxu0 %v866
        %1005 = vmatprep.subr.bf16.mxu0 %v869
        %1006 = vmatpush1.bf16.msra.mxu0 %v868
        %1007 = vmatprep.subr.bf16.mxu0 %v871
        %1008 = vmatpush1.bf16.msra.mxu0 %v870
        %1009 = vmatprep.subr.bf16.mxu0 %v873
        %1010 = vmatpush1.bf16.msra.mxu0 %v872
        %1011 = vmatprep.subr.bf16.mxu0 %v875
        %1012 = vmatpush1.bf16.msra.mxu0 %v874
        %1013 = vmatprep.subr.bf16.mxu0 %v877
        %1014 = vmatpush1.bf16.msra.mxu0 %v876
        %1015 = vmatprep.subr.bf16.mxu0 %v879
        %1016 = vmatpush1.bf16.msra.mxu0 %v878
        %1017 = vmatprep.subr.bf16.mxu0 %v881
        %1018 = vmatpush1.bf16.msra.mxu0 %v880
        %1019 = vmatprep.subr.bf16.mxu0 %v883
        %1020 = vmatpush1.bf16.msra.mxu0 %v882
        %1021 = vmatprep.subr.bf16.mxu0 %v885
        %1022 = vmatpush1.bf16.msra.mxu0 %v884
        %1023 = vmatprep.subr.bf16.mxu0 %v887
        %1024 = vmatpush1.bf16.msra.mxu0 %v886
        %1025 = vmatprep.subr.bf16.mxu0 %v889
        %1026 = vmatpush1.bf16.msra.mxu0 %v888
        %1027 = vmatprep.subr.bf16.mxu0 %v891
        %1028 = vmatpush1.bf16.msra.mxu0 %v890
        %1029 = vmatprep.subr.bf16.mxu0 %v893
        %1030 = vmatpush1.bf16.msra.mxu0 %v892
        %1031 = vmatprep.mubr.bf16.mxu0 %v633
        %1032 = vmatmul.mubr.bf16.gmra.mrb[0].mxu0 %v632
        %v1033 = vpop.f32.mrb[0].mxu0
        %v1034 = vadd.f32 %v993, %v1033
        %v1035 = vpop.f32.mrb[0].mxu0
        %v1036 = vadd.f32 %v995, %v1035
        %v1037 = vpop.f32.mrb[0].mxu0
        %v1038 = vpop.f32.mrb[0].mxu0
        %1039 = vdwg.mxu0
        %v1040 = vadd.f32 %v556, %v1034
        %v1041 = vadd.f32 %v557, %v1036
        %1042 = vst [vmem:[#allocation2] sm:$0xff] %v1040
        %1043 = vst [vmem:[#allocation2 + $0x8] sm:$0xff] %v1041
        // Predicated region
        $region75: #{_lambda_.73} parent=65 // pred_check
          %p1044 = pneg %p550
        $region76: #{_lambda_.73} parent=65 // pred_check_branch
          %1046 = sbr.rel (%p1044) target = $region78
        $region77: #{_lambda_.73} parent=65 // pred_region
          %v1047 = vld [vmem:[#allocation2] sm:$0xff]
          %v1048 = vld [vmem:[#allocation2 + $0x8] sm:$0xff]
          %v1049 = vld [vmem:[%s538] sm:$0x3]
          %v1051 = vlaneseq
          %v1052 = vshrl.u32 %v1051, 7
          %v1053 = vsub.s32 0, %v1052
          %v1054 = vrot.slane %v1049, %v1053
          %v1055 = vlaneseq
          %v1056 = vshrl.u32 %v1055, 7
          %v1057 = vsub.s32 1, %v1056
          %v1058 = vrot.slane %v1049, %v1057
          %v1061 = vadd.f32 %v1047, %v1054
          %v1062 = vadd.f32 %v1048, %v1058
          %v1063 = vpack.c.bf16 %v1061, %v1061
          %v1064 = vpack.c.bf16 %v1062, %v1062
          %v1067 = vunpack.c.l.b16 %v1063
          %v1068 = vunpack.c.l.b16 %v1064
          %v1069 = vpack.c.b16 %v1068, %v1067
          %1071 = vst [vmem:[%s548] sm:$0xff] %v1069
        $region78: #{_lambda_.73} parent=65 // pred_fallthru
          _
        %s1072 = smul.u32 2, %s20
        %p1073 = scmp.lt.s32.totalorder %s19, 0
        %s1074 = scalar_select %p1073, %s19, 0
        %p1075 = scmp.lt.s32.totalorder %s1072, 7
        %s1076 = scalar_select %p1075, %s1072, 7
        %s1077 = smul.addr %s1074, 8
        %s1078 = sadd.s32 %s1076, %s1077
        %s1079 = smul.addr %s1078, 4
        %s1080 = scalar_lea.vmem %s3, %s1079
        // Predicated region
        $region79: #{_lambda_.73} parent=65 // pred_check
          %p1081 = pneg %p135
        $region80: #{_lambda_.73} parent=65 // pred_check_branch
          %1083 = sbr.rel (%p1081) target = $region82
        $region81: #{_lambda_.73} parent=65 // pred_region
          %s1084 = smul.u32 2, %s20
        $region82: #{_lambda_.73} parent=65 // pred_fallthru
          _
      $region66: #{_lambda_.73} parent=5 // pred_fallthru
        _
      %p1085 = scmp.le.s32.totalorder 2, %s9
      // Predicated region
      $region83: #{_lambda_.73} parent=5 // pred_check
        %p1086 = pneg %p1085
      $region84: #{_lambda_.73} parent=5 // pred_check_branch
        %1088 = sbr.rel (%p1086) target = $region86
      $region85: #{_lambda_.73} parent=5 // pred_region
        %s1089 = ssub.s32 %s9, 2
        // Predicated region
        $region87: #{_lambda_.73} parent=85 // pred_check
          %p1090 = pneg %p141
        $region88: #{_lambda_.73} parent=85 // pred_check_branch
          %1092 = sbr.rel (%p1090) target = $region90
        $region89: #{_lambda_.73} parent=85 // pred_region
          %s1093 = smul.u32 2, %s23
          %p1094 = scmp.lt.s32.totalorder %s22, 0
          %s1095 = scalar_select %p1094, %s22, 0
          %p1096 = scmp.lt.s32.totalorder %s1093, 7
          %s1097 = scalar_select %p1096, %s1093, 7
          %s1098 = smul.addr %s1095, 8
          %s1099 = sadd.s32 %s1097, %s1098
          %s1100 = smul.addr %s1099, 4
          %s1101 = scalar_lea.vmem %s3, %s1100
        $region90: #{_lambda_.73} parent=85 // pred_fallthru
          _
      $region86: #{_lambda_.73} parent=5 // pred_fallthru
        _
    $region6: #{_lambda_.73} parent=1 // loop_footer
      %s13 = sadd.s32 1, %s9
    $region7: #{_lambda_.73} parent=1 // loop_footer_branch
      %8 = sbr.rel target = $region3
    $region8: #{_lambda_.73} parent=1 // loop_exit
      _

// kernel: _lambda_.72
$region0: #{_lambda_.72}
  #allocation0 [shape = 'u32[]', space=smem, size = 0x4, offset = 0x4, fixed_abs, tag = 'smem constant byte address 0x4 - core index']
  #allocation1 [shape = 'u32[144,128]{1,0:T(1,128)}', space=vmem, size = 0x12000, scoped, tag = 'internal scratch']
  #allocation2 [shape = 'f32[8,256]{1,0:T(8,128)}', space=vmem, size = 0x2000, scoped, tag = 'scratch operand']
  %s0 = inlined_call_operand.vmem [shape: bf16[8,2304], index: 0, kind: input, shape index: {}]
  %s1 = inlined_call_operand.vmem [shape: bf16[2304,256], index: 1, kind: input, shape index: {}]
  %s2 = inlined_call_operand.vmem [shape: f32[1,256], index: 2, kind: input, shape index: {}]
  %s3 = inlined_call_operand.vmem [shape: bf16[8,256], index: 3, kind: output, shape index: {}]
  %s4 = sld [smem:[#allocation0]]
  $region53: #{_lambda_.72} parent=0
    _
  %s6 = ssub.s32 1, %s4
  %s7 = scalar_select 0, %s6, %s4
  loop: start=0, step=1, limit=8
  $region2: #{_lambda_.72} parent=0 // loop_pre_header
    _
  $region3: #{_lambda_.72} parent=0 // loop_header
    %s9 = sphi 0, %s13
    %p10 = scmp.ge.s32.totalorder %s9, 8
    %s16 = sphi 0, %s35
    %s17 = sphi 0, %s31
    %s18 = sphi 0, %s27
    %s19 = sphi 0, %s16
    %s20 = sphi 0, %s17
    %s21 = sphi 0, %s18
    %s22 = sphi 0, %s19
    %s23 = sphi 0, %s20
    %s24 = sphi 0, %s21
    %s40 = sphi 0, %s42
    %s43 = sphi 0, %s40
    %s44 = sphi 0, %s43
    %s60 = sphi 0, %s44
    %s68 = sphi 0, %s70
    %s71 = sphi 0, %s68
    %s72 = sphi 0, %s71
    %s88 = sphi 0, %s72
    %s94 = sphi 0, %s96
    %s97 = sphi 0, %s94
    %s98 = sphi 0, %s97
    %s114 = sphi 0, %s98
    %s122 = sphi 0, %s124
    %s125 = sphi 0, %s122
    %s126 = sphi 0, %s125
    %s142 = sphi 0, %s126
  $region4: #{_lambda_.72} parent=0 // loop_header_branch
    %12 = sbr.rel (%p10) target = $region8
  $region5: #{_lambda_.72} parent=0 // loop_body
    %s14 = ssub.s32 %s9, 1
    %s15 = ssub.s32 %s9, 2
    %s25 = sadd.s32 1, %s18
    %p26 = scmp.ge.s32.totalorder %s25, 6
    %s27 = scalar_select %p26, 0, %s25
    %s28 = sadd.s32 1, %s17
    %s29 = scalar_select %p26, %s28, %s17
    %p30 = scmp.ge.s32.totalorder %s29, 1
    %s31 = scalar_select %p30, 0, %s29
    %s32 = sadd.s32 1, %s16
    %s33 = scalar_select %p30, %s32, %s16
    %p34 = scmp.ge.s32.totalorder %s33, 1
    %s35 = scalar_select %p34, 0, %s33
    %s36 = ssub.s32 %s16, %s35
    %s37 = ssub.s32 %s18, %s27
    %s38 = sor.u32 %s36, %s37
    %p39 = scmp.eq.s32.totalorder %s38, 0
    %s41 = sadd.s32 %s40, 1
    %s42 = scalar_select %p39, %s40, %s41
    %p45 = pneg %p39
    %p46 = scmp.eq.s32.totalorder %s9, 5
    %p47 = por %p45, %p46
    %p48 = scmp.ne.s32.totalorder %s40, %s43
    %p49 = scmp.eq.s32.totalorder %s9, 0
    %p50 = por %p48, %p49
    %p51 = scmp.ne.s32.totalorder %s40, %s43
    %p52 = scmp.eq.s32.totalorder %s14, 5
    %p53 = por %p51, %p52
    %p54 = scmp.ne.s32.totalorder %s43, %s44
    %p55 = scmp.eq.s32.totalorder %s14, 0
    %p56 = por %p54, %p55
    %p57 = scmp.ne.s32.totalorder %s43, %s44
    %p58 = scmp.eq.s32.totalorder %s15, 5
    %p59 = por %p57, %p58
    %p61 = scmp.ne.s32.totalorder %s44, %s60
    %p62 = scmp.eq.s32.totalorder %s15, 0
    %p63 = por %p61, %p62
    %s64 = ssub.s32 %s18, %s27
    %s65 = ssub.s32 %s17, %s31
    %s66 = sor.u32 %s64, %s65
    %p67 = scmp.eq.s32.totalorder %s66, 0
    %s69 = sadd.s32 %s68, 1
    %s70 = scalar_select %p67, %s68, %s69
    %p73 = pneg %p67
    %p74 = scmp.eq.s32.totalorder %s9, 5
    %p75 = por %p73, %p74
    %p76 = scmp.ne.s32.totalorder %s68, %s71
    %p77 = scmp.eq.s32.totalorder %s9, 0
    %p78 = por %p76, %p77
    %p79 = scmp.ne.s32.totalorder %s68, %s71
    %p80 = scmp.eq.s32.totalorder %s14, 5
    %p81 = por %p79, %p80
    %p82 = scmp.ne.s32.totalorder %s71, %s72
    %p83 = scmp.eq.s32.totalorder %s14, 0
    %p84 = por %p82, %p83
    %p85 = scmp.ne.s32.totalorder %s71, %s72
    %p86 = scmp.eq.s32.totalorder %s15, 5
    %p87 = por %p85, %p86
    %p89 = scmp.ne.s32.totalorder %s72, %s88
    %p90 = scmp.eq.s32.totalorder %s15, 0
    %p91 = por %p89, %p90
    %s92 = ssub.s32 %s17, %s31
    %p93 = scmp.eq.s32.totalorder %s92, 0
    %s95 = sadd.s32 %s94, 1
    %s96 = scalar_select %p93, %s94, %s95
    %p99 = pneg %p93
    %p100 = scmp.eq.s32.totalorder %s9, 5
    %p101 = por %p99, %p100
    %p102 = scmp.ne.s32.totalorder %s94, %s97
    %p103 = scmp.eq.s32.totalorder %s9, 0
    %p104 = por %p102, %p103
    %p105 = scmp.ne.s32.totalorder %s94, %s97
    %p106 = scmp.eq.s32.totalorder %s14, 5
    %p107 = por %p105, %p106
    %p108 = scmp.ne.s32.totalorder %s97, %s98
    %p109 = scmp.eq.s32.totalorder %s14, 0
    %p110 = por %p108, %p109
    %p111 = scmp.ne.s32.totalorder %s97, %s98
    %p112 = scmp.eq.s32.totalorder %s15, 5
    %p113 = por %p111, %p112
    %p115 = scmp.ne.s32.totalorder %s98, %s114
    %p116 = scmp.eq.s32.totalorder %s15, 0
    %p117 = por %p115, %p116
    %s118 = ssub.s32 %s16, %s35
    %s119 = ssub.s32 %s17, %s31
    %s120 = sor.u32 %s118, %s119
    %p121 = scmp.eq.s32.totalorder %s120, 0
    %s123 = sadd.s32 %s122, 1
    %s124 = scalar_select %p121, %s122, %s123
    %p127 = pneg %p121
    %p128 = scmp.eq.s32.totalorder %s9, 5
    %p129 = por %p127, %p128
    %p130 = scmp.ne.s32.totalorder %s122, %s125
    %p131 = scmp.eq.s32.totalorder %s9, 0
    %p132 = por %p130, %p131
    %p133 = scmp.ne.s32.totalorder %s122, %s125
    %p134 = scmp.eq.s32.totalorder %s14, 5
    %p135 = por %p133, %p134
    %p136 = scmp.ne.s32.totalorder %s125, %s126
    %p137 = scmp.eq.s32.totalorder %s14, 0
    %p138 = por %p136, %p137
    %p139 = scmp.ne.s32.totalorder %s125, %s126
    %p140 = scmp.eq.s32.totalorder %s15, 5
    %p141 = por %p139, %p140
    %p143 = scmp.ne.s32.totalorder %s126, %s142
    %p144 = scmp.eq.s32.totalorder %s15, 0
    %p145 = por %p143, %p144
    %p146 = scmp.le.s32.totalorder 1, %s9
    %p147 = scmp.lt.s32.totalorder %s9, 7
    %p148 = pnand %p146, %p147
    %p149 = pneg %p148
    // Predicated region
    $region9: #{_lambda_.72} parent=5 // pred_check
      _
    $region10: #{_lambda_.72} parent=5 // pred_check_branch
      %151 = sbr.rel (%p148) target = $region12
    $region11: #{_lambda_.72} parent=5 // pred_region
      %s152 = ssub.s32 %s9, 1
      // Predicated region
      $region13: #{_lambda_.72} parent=11 // pred_check
        %p153 = pneg %p110
      $region14: #{_lambda_.72} parent=11 // pred_check_branch
        %155 = sbr.rel (%p153) target = $region16
      $region15: #{_lambda_.72} parent=11 // pred_region
        %s156 = smul.u32 2, %s20
        %p157 = scmp.lt.s32.totalorder %s156, 1
        %s158 = scalar_select %p157, %s156, 1
        %s159 = scalar_lea.vmem %s2, %s158
        %s160 = smul.u32 2, %s20
      $region16: #{_lambda_.72} parent=11 // pred_fallthru
        _
    $region12: #{_lambda_.72} parent=5 // pred_fallthru
      _
    %p161 = scmp.lt.s32.totalorder %s9, 6
    // Predicated region
    $region17: #{_lambda_.72} parent=5 // pred_check
      %p162 = pneg %p161
    $region18: #{_lambda_.72} parent=5 // pred_check_branch
      %164 = sbr.rel (%p162) target = $region20
    $region19: #{_lambda_.72} parent=5 // pred_region
      // Predicated region
      $region21: #{_lambda_.72} parent=19 // pred_check
        %p165 = pneg %p50
      $region22: #{_lambda_.72} parent=19 // pred_check_branch
        %167 = sbr.rel (%p165) target = $region24
      $region23: #{_lambda_.72} parent=19 // pred_region
        %s168 = smul.u32 3, %s18
        %p169 = scmp.lt.s32.totalorder %s16, 0
        %s170 = scalar_select %p169, %s16, 0
        %p171 = scmp.lt.s32.totalorder %s168, 17
        %s172 = scalar_select %p171, %s168, 17
        %s173 = smul.addr %s170, 18
        %s174 = sadd.s32 %s172, %s173
        %s175 = smul.addr %s174, 4
        %s176 = scalar_lea.vmem %s0, %s175
        %s177 = smul.u32 3, %s18
      $region24: #{_lambda_.72} parent=19 // pred_fallthru
        _
      // Predicated region
      $region25: #{_lambda_.72} parent=19 // pred_check
        %p178 = pneg %p78
      $region26: #{_lambda_.72} parent=19 // pred_check_branch
        %180 = sbr.rel (%p178) target = $region28
      $region27: #{_lambda_.72} parent=19 // pred_region
        %s181 = smul.u32 48, %s18
        %s182 = smul.u32 2, %s17
        %p183 = scmp.lt.s32.totalorder %s181, 287
        %s184 = scalar_select %p183, %s181, 287
        %p185 = scmp.lt.s32.totalorder %s182, 1
        %s186 = scalar_select %p185, %s182, 1
        %s187 = smul.addr %s184, 2
        %s188 = sadd.s32 %s186, %s187
        %s189 = smul.addr %s188, 4
        %s190 = scalar_lea.vmem %s1, %s189
        %s191 = smul.u32 48, %s18
        %s192 = smul.u32 2, %s17
      $region28: #{_lambda_.72} parent=19 // pred_fallthru
        _
    $region20: #{_lambda_.72} parent=5 // pred_fallthru
      _
    %p193 = scmp.le.s32.totalorder 1, %s9
    %p194 = scmp.lt.s32.totalorder %s9, 7
    %p195 = pnand %p193, %p194
    %p196 = pneg %p195
    // Predicated region
    $region29: #{_lambda_.72} parent=5 // pred_check
      _
    $region30: #{_lambda_.72} parent=5 // pred_check_branch
      %198 = sbr.rel (%p195) target = $region32
    $region31: #{_lambda_.72} parent=5 // pred_region
      %s199 = ssub.s32 %s9, 1
      %s200 = smul.u32 3, %s21
      %p201 = scmp.lt.s32.totalorder %s19, 0
      %s202 = scalar_select %p201, %s19, 0
      %p203 = scmp.lt.s32.totalorder %s200, 17
      %s204 = scalar_select %p203, %s200, 17
      %s205 = smul.addr %s202, 18
      %s206 = sadd.s32 %s204, %s205
      %s207 = smul.addr %s206, 4
      %s208 = scalar_lea.vmem %s0, %s207
      %p209 = pneg %p56
      %p210 = pneg %p53
      %s211 = smul.u32 48, %s21
      %s212 = smul.u32 2, %s20
      %p213 = scmp.lt.s32.totalorder %s211, 287
      %s214 = scalar_select %p213, %s211, 287
      %p215 = scmp.lt.s32.totalorder %s212, 1
      %s216 = scalar_select %p215, %s212, 1
      %s217 = smul.addr %s214, 2
      %s218 = sadd.s32 %s216, %s217
      %s219 = smul.addr %s218, 4
      %s220 = scalar_lea.vmem %s1, %s219
      %p221 = pneg %p84
      %p222 = pneg %p81
      %s223 = smul.u32 2, %s20
      %p224 = scmp.lt.s32.totalorder %s223, 1
      %s225 = scalar_select %p224, %s223, 1
      %s226 = scalar_lea.vmem %s2, %s225
      %p227 = pneg %p110
      %p228 = pneg %p107
      %p229 = pneg %p138
      %p230 = pneg %p135
      %s231 = smul.u32 2, %s20
      %p232 = scmp.lt.s32.totalorder %s19, 0
      %s233 = scalar_select %p232, %s19, 0
      %p234 = scmp.lt.s32.totalorder %s231, 1
      %s235 = scalar_select %p234, %s231, 1
      %s236 = smul.addr %s233, 2
      %s237 = sadd.s32 %s235, %s236
      %s238 = smul.addr %s237, 4
      %s239 = scalar_lea.vmem %s3, %s238
      %s240 = smul.u32 3, %s21
      %p241 = scmp.lt.s32.totalorder %s19, 0
      %s242 = scalar_select %p241, %s19, 0
      %p243 = scmp.lt.s32.totalorder %s240, 17
      %s244 = scalar_select %p243, %s240, 17
      %s245 = smul.addr %s242, 18
      %s246 = sadd.s32 %s244, %s245
      %s247 = smul.addr %s246, 4
      %s248 = scalar_lea.vmem %s0, %s247
      %s249 = smul.u32 3, %s21
      %s250 = smul.u32 48, %s21
      %s251 = smul.u32 2, %s20
      %p252 = scmp.lt.s32.totalorder %s250, 287
      %s253 = scalar_select %p252, %s250, 287
      %p254 = scmp.lt.s32.totalorder %s251, 1
      %s255 = scalar_select %p254, %s251, 1
      %s256 = smul.addr %s253, 2
      %s257 = sadd.s32 %s255, %s256
      %s258 = smul.addr %s257, 4
      %s259 = scalar_lea.vmem %s1, %s258
      %s260 = smul.u32 48, %s21
      %s261 = smul.u32 2, %s20
      %s262 = smul.u32 2, %s20
      %p263 = scmp.lt.s32.totalorder %s262, 1
      %s264 = scalar_select %p263, %s262, 1
      %s265 = scalar_lea.vmem %s2, %s264
      %s266 = smul.u32 2, %s20
      %s267 = smul.u32 2, %s20
      %p268 = scmp.lt.s32.totalorder %s19, 0
      %s269 = scalar_select %p268, %s19, 0
      %p270 = scmp.lt.s32.totalorder %s267, 1
      %s271 = scalar_select %p270, %s267, 1
      %s272 = smul.addr %s269, 2
      %s273 = sadd.s32 %s271, %s272
      %s274 = smul.addr %s273, 4
      %s275 = scalar_lea.vmem %s3, %s274
      %s276 = smul.u32 2, %s20
      %p278 = scmp.eq.s32.totalorder %s21, 0
      // Predicated region
      $region33: #{_lambda_.72} parent=31 // pred_check
        %p279 = pneg %p278
      $region34: #{_lambda_.72} parent=31 // pred_check_branch
        %281 = sbr.rel (%p279) target = $region36
      $region35: #{_lambda_.72} parent=31 // pred_region
        %282 = vst [vmem:[#allocation2] sm:$0xff] 0.0
        %283 = vst [vmem:[#allocation2 + $0x8] sm:$0xff] 0.0
      $region36: #{_lambda_.72} parent=31 // pred_fallthru
        _
      %v284 = vld [vmem:[#allocation2] sm:$0xff]
      %v285 = vld [vmem:[#allocation2 + $0x8] sm:$0xff]
      %v286 = vld [vmem:[%s248] sm:$0xff]
      %v287 = vld [vmem:[%s248 + $0x8] sm:$0xf]
      %v288 = vld [vmem:[%s259] sm:$0xff]
      %v289 = vld [vmem:[%s259 + $0x8] sm:$0xff]
      %v290 = vld [vmem:[%s259 + $0x10] sm:$0xff]
      %v291 = vld [vmem:[%s259 + $0x18] sm:$0xff]
      %v292 = vld [vmem:[%s259 + $0x20] sm:$0xff]
      %v293 = vld [vmem:[%s259 + $0x28] sm:$0xff]
      %v294 = vld [vmem:[%s259 + $0x30] sm:$0xff]
      %v295 = vld [vmem:[%s259 + $0x38] sm:$0xff]
      %v296 = vld [vmem:[%s259 + $0x40] sm:$0xff]
      %v297 = vld [vmem:[%s259 + $0x48] sm:$0xff]
      %v298 = vld [vmem:[%s259 + $0x50] sm:$0xff]
      %v299 = vld [vmem:[%s259 + $0x58] sm:$0xff]
      %v300 = vld [vmem:[%s259 + $0x60] sm:$0xff]
      %v301 = vld [vmem:[%s259 + $0x68] sm:$0xff]
      %v302 = vld [vmem:[%s259 + $0x70] sm:$0xff]
      %v303 = vld [vmem:[%s259 + $0x78] sm:$0xff]
      %v304 = vld [vmem:[%s259 + $0x80] sm:$0xff]
      %v305 = vld [vmem:[%s259 + $0x88] sm:$0xff]
      %v306 = vld [vmem:[%s259 + $0x90] sm:$0xff]
      %v307 = vld [vmem:[%s259 + $0x98] sm:$0xff]
      %v308 = vld [vmem:[%s259 + $0xa0] sm:$0xff]
      %v309 = vld [vmem:[%s259 + $0xa8] sm:$0xff]
      %v310 = vld [vmem:[%s259 + $0xb0] sm:$0xff]
      %v311 = vld [vmem:[%s259 + $0xb8] sm:$0xff]
      %v312 = vld [vmem:[%s259 + $0xc0] sm:$0xff]
      %v313 = vld [vmem:[%s259 + $0xc8] sm:$0xff]
      %v314 = vld [vmem:[%s259 + $0xd0] sm:$0xff]
      %v315 = vld [vmem:[%s259 + $0xd8] sm:$0xff]
      %v316 = vld [vmem:[%s259 + $0xe0] sm:$0xff]
      %v317 = vld [vmem:[%s259 + $0xe8] sm:$0xff]
      %v318 = vld [vmem:[%s259 + $0xf0] sm:$0xff]
      %v319 = vld [vmem:[%s259 + $0xf8] sm:$0xff]
      %v320 = vld [vmem:[%s259 + $0x100] sm:$0xff]
      %v321 = vld [vmem:[%s259 + $0x108] sm:$0xff]
      %v322 = vld [vmem:[%s259 + $0x110] sm:$0xff]
      %v323 = vld [vmem:[%s259 + $0x118] sm:$0xff]
      %v324 = vld [vmem:[%s259 + $0x120] sm:$0xff]
      %v325 = vld [vmem:[%s259 + $0x128] sm:$0xff]
      %v326 = vld [vmem:[%s259 + $0x130] sm:$0xff]
      %v327 = vld [vmem:[%s259 + $0x138] sm:$0xff]
      %v328 = vld [vmem:[%s259 + $0x140] sm:$0xff]
      %v329 = vld [vmem:[%s259 + $0x148] sm:$0xff]
      %v330 = vld [vmem:[%s259 + $0x150] sm:$0xff]
      %v331 = vld [vmem:[%s259 + $0x158] sm:$0xff]
      %v332 = vld [vmem:[%s259 + $0x160] sm:$0xff]
      %v333 = vld [vmem:[%s259 + $0x168] sm:$0xff]
      %v334 = vld [vmem:[%s259 + $0x170] sm:$0xff]
      %v335 = vld [vmem:[%s259 + $0x178] sm:$0xff]
      %v338 = vunpack.c.l.b16 %v286
      %v339 = vunpack.c.h.b16 %v286
      %v340 = vunpack.c.l.b16 %v287
      %v341 = vpack.c.b16 %v338, %v338
      %v342 = vpack.c.b16 %v339, %v339
      %v343 = vpack.c.b16 %v340, %v340
      %v395 = vunpack.c.l.b16 %v288
      %v396 = vunpack.c.h.b16 %v288
      %v397 = vunpack.c.l.b16 %v289
      %v398 = vunpack.c.h.b16 %v289
      %v399 = vunpack.c.l.b16 %v290
      %v400 = vunpack.c.h.b16 %v290
      %v401 = vunpack.c.l.b16 %v291
      %v402 = vunpack.c.h.b16 %v291
      %v403 = vunpack.c.l.b16 %v292
      %v404 = vunpack.c.h.b16 %v292
      %v405 = vunpack.c.l.b16 %v293
      %v406 = vunpack.c.h.b16 %v293
      %v407 = vunpack.c.l.b16 %v294
      %v408 = vunpack.c.h.b16 %v294
      %v409 = vunpack.c.l.b16 %v295
      %v410 = vunpack.c.h.b16 %v295
      %v411 = vunpack.c.l.b16 %v296
      %v412 = vunpack.c.h.b16 %v296
      %v413 = vunpack.c.l.b16 %v297
      %v414 = vunpack.c.h.b16 %v297
      %v415 = vunpack.c.l.b16 %v298
      %v416 = vunpack.c.h.b16 %v298
      %v417 = vunpack.c.l.b16 %v299
      %v418 = vunpack.c.h.b16 %v299
      %v419 = vunpack.c.l.b16 %v300
      %v420 = vunpack.c.h.b16 %v300
      %v421 = vunpack.c.l.b16 %v301
      %v422 = vunpack.c.h.b16 %v301
      %v423 = vunpack.c.l.b16 %v302
      %v424 = vunpack.c.h.b16 %v302
      %v425 = vunpack.c.l.b16 %v303
      %v426 = vunpack.c.h.b16 %v303
      %v427 = vunpack.c.l.b16 %v304
      %v428 = vunpack.c.h.b16 %v304
      %v429 = vunpack.c.l.b16 %v305
      %v430 = vunpack.c.h.b16 %v305
      %v431 = vunpack.c.l.b16 %v306
      %v432 = vunpack.c.h.b16 %v306
      %v433 = vunpack.c.l.b16 %v307
      %v434 = vunpack.c.h.b16 %v307
      %v435 = vunpack.c.l.b16 %v308
      %v436 = vunpack.c.h.b16 %v308
      %v437 = vunpack.c.l.b16 %v309
      %v438 = vunpack.c.h.b16 %v309
      %v439 = vunpack.c.l.b16 %v310
      %v440 = vunpack.c.h.b16 %v310
      %v441 = vunpack.c.l.b16 %v311
      %v442 = vunpack.c.h.b16 %v311
      %v443 = vunpack.c.l.b16 %v312
      %v444 = vunpack.c.h.b16 %v312
      %v445 = vunpack.c.l.b16 %v313
      %v446 = vunpack.c.h.b16 %v313
      %v447 = vunpack.c.l.b16 %v314
      %v448 = vunpack.c.h.b16 %v314
      %v449 = vunpack.c.l.b16 %v315
      %v450 = vunpack.c.h.b16 %v315
      %v451 = vunpack.c.l.b16 %v316
      %v452 = vunpack.c.h.b16 %v316
      %v453 = vunpack.c.l.b16 %v317
      %v454 = vunpack.c.h.b16 %v317
      %v455 = vunpack.c.l.b16 %v318
      %v456 = vunpack.c.h.b16 %v318
      %v457 = vunpack.c.l.b16 %v319
      %v458 = vunpack.c.h.b16 %v319
      %v459 = vunpack.c.l.b16 %v320
      %v460 = vunpack.c.h.b16 %v320
      %v461 = vunpack.c.l.b16 %v321
      %v462 = vunpack.c.h.b16 %v321
      %v463 = vunpack.c.l.b16 %v322
      %v464 = vunpack.c.h.b16 %v322
      %v465 = vunpack.c.l.b16 %v323
      %v466 = vunpack.c.h.b16 %v323
      %v467 = vunpack.c.l.b16 %v324
      %v468 = vunpack.c.h.b16 %v324
      %v469 = vunpack.c.l.b16 %v325
      %v470 = vunpack.c.h.b16 %v325
      %v471 = vunpack.c.l.b16 %v326
      %v472 = vunpack.c.h.b16 %v326
      %v473 = vunpack.c.l.b16 %v327
      %v474 = vunpack.c.h.b16 %v327
      %v475 = vunpack.c.l.b16 %v328
      %v476 = vunpack.c.h.b16 %v328
      %v477 = vunpack.c.l.b16 %v329
      %v478 = vunpack.c.h.b16 %v329
      %v479 = vunpack.c.l.b16 %v330
      %v480 = vunpack.c.h.b16 %v330
      %v481 = vunpack.c.l.b16 %v331
      %v482 = vunpack.c.h.b16 %v331
      %v483 = vunpack.c.l.b16 %v332
      %v484 = vunpack.c.h.b16 %v332
      %v485 = vunpack.c.l.b16 %v333
      %v486 = vunpack.c.h.b16 %v333
      %v487 = vunpack.c.l.b16 %v334
      %v488 = vunpack.c.h.b16 %v334
      %v489 = vunpack.c.l.b16 %v335
      %v490 = vunpack.c.h.b16 %v335
      %v491 = vpack.c.b16 %v397, %v395
      %v492 = vpack.c.b16 %v398, %v396
      %v493 = vpack.c.b16 %v401, %v399
      %v494 = vpack.c.b16 %v402, %v400
      %v495 = vpack.c.b16 %v405, %v403
      %v496 = vpack.c.b16 %v406, %v404
      %v497 = vpack.c.b16 %v409, %v407
      %v498 = vpack.c.b16 %v410, %v408
      %v499 = vpack.c.b16 %v413, %v411
      %v500 = vpack.c.b16 %v414, %v412
      %v501 = vpack.c.b16 %v417, %v415
      %v502 = vpack.c.b16 %v418, %v416
      %v503 = vpack.c.b16 %v421, %v419
      %v504 = vpack.c.b16 %v422, %v420
      %v505 = vpack.c.b16 %v425, %v423
      %v506 = vpack.c.b16 %v426, %v424
      %v507 = vpack.c.b16 %v429, %v427
      %v508 = vpack.c.b16 %v430, %v428
      %v509 = vpack.c.b16 %v433, %v431
      %v510 = vpack.c.b16 %v434, %v432
      %v511 = vpack.c.b16 %v437, %v435
      %v512 = vpack.c.b16 %v438, %v436
      %v513 = vpack.c.b16 %v441, %v439
      %v514 = vpack.c.b16 %v442, %v440
      %v515 = vpack.c.b16 %v445, %v443
      %v516 = vpack.c.b16 %v446, %v444
      %v517 = vpack.c.b16 %v449, %v447
      %v518 = vpack.c.b16 %v450, %v448
      %v519 = vpack.c.b16 %v453, %v451
      %v520 = vpack.c.b16 %v454, %v452
      %v521 = vpack.c.b16 %v457, %v455
      %v522 = vpack.c.b16 %v458, %v456
      %v523 = vpack.c.b16 %v461, %v459
      %v524 = vpack.c.b16 %v462, %v460
      %v525 = vpack.c.b16 %v465, %v463
      %v526 = vpack.c.b16 %v466, %v464
      %v527 = vpack.c.b16 %v469, %v467
      %v528 = vpack.c.b16 %v470, %v468
      %v529 = vpack.c.b16 %v473, %v471
      %v530 = vpack.c.b16 %v474, %v472
      %v531 = vpack.c.b16 %v477, %v475
      %v532 = vpack.c.b16 %v478, %v476
      %v533 = vpack.c.b16 %v481, %v479
      %v534 = vpack.c.b16 %v482, %v480
      %v535 = vpack.c.b16 %v485, %v483
      %v536 = vpack.c.b16 %v486, %v484
      %v537 = vpack.c.b16 %v489, %v487
      %v538 = vpack.c.b16 %v490, %v488
      %587 = vmatprep.subr.bf16.mxu0 %v492
      %588 = vmatpush1.bf16.msra.mxu0 %v491
      %589 = vmatprep.subr.bf16.mxu0 %v494
      %590 = vmatpush1.bf16.msra.mxu0 %v493
      %591 = vmatprep.subr.bf16.mxu0 %v496
      %592 = vmatpush1.bf16.msra.mxu0 %v495
      %593 = vmatprep.subr.bf16.mxu0 %v498
      %594 = vmatpush1.bf16.msra.mxu0 %v497
      %595 = vmatprep.subr.bf16.mxu0 %v500
      %596 = vmatpush1.bf16.msra.mxu0 %v499
      %597 = vmatprep.subr.bf16.mxu0 %v502
      %598 = vmatpush1.bf16.msra.mxu0 %v501
      %599 = vmatprep.subr.bf16.mxu0 %v504
      %600 = vmatpush1.bf16.msra.mxu0 %v503
      %601 = vmatprep.subr.bf16.mxu0 %v506
      %602 = vmatpush1.bf16.msra.mxu0 %v505
      %603 = vmatprep.subr.bf16.mxu0 %v508
      %604 = vmatpush1.bf16.msra.mxu0 %v507
      %605 = vmatprep.subr.bf16.mxu0 %v510
      %606 = vmatpush1.bf16.msra.mxu0 %v509
      %607 = vmatprep.subr.bf16.mxu0 %v512
      %608 = vmatpush1.bf16.msra.mxu0 %v511
      %609 = vmatprep.subr.bf16.mxu0 %v514
      %610 = vmatpush1.bf16.msra.mxu0 %v513
      %611 = vmatprep.subr.bf16.mxu0 %v516
      %612 = vmatpush1.bf16.msra.mxu0 %v515
      %613 = vmatprep.subr.bf16.mxu0 %v518
      %614 = vmatpush1.bf16.msra.mxu0 %v517
      %615 = vmatprep.subr.bf16.mxu0 %v520
      %616 = vmatpush1.bf16.msra.mxu0 %v519
      %617 = vmatprep.subr.bf16.mxu0 %v522
      %618 = vmatpush1.bf16.msra.mxu0 %v521
      %619 = vmatprep.mubr.bf16.mxu0 %v342
      %620 = vmatmul.mubr.bf16.gmra.mrb[0].mxu0 %v341
      %v621 = vpop.f32.mrb[0].mxu0
      %v622 = vadd.f32 0.0, %v621
      %v623 = vpop.f32.mrb[0].mxu0
      %v624 = vadd.f32 0.0, %v623
      %v625 = vpop.f32.mrb[0].mxu0
      %v626 = vpop.f32.mrb[0].mxu0
      %627 = vdwg.mxu0
      %628 = vmatprep.subr.bf16.mxu0 %v524
      %629 = vmatpush1.bf16.msra.mxu0 %v523
      %630 = vmatprep.subr.bf16.mxu0 %v526
      %631 = vmatpush1.bf16.msra.mxu0 %v525
      %632 = vmatprep.subr.bf16.mxu0 %v528
      %633 = vmatpush1.bf16.msra.mxu0 %v527
      %634 = vmatprep.subr.bf16.mxu0 %v530
      %635 = vmatpush1.bf16.msra.mxu0 %v529
      %636 = vmatprep.subr.bf16.mxu0 %v532
      %637 = vmatpush1.bf16.msra.mxu0 %v531
      %638 = vmatprep.subr.bf16.mxu0 %v534
      %639 = vmatpush1.bf16.msra.mxu0 %v533
      %640 = vmatprep.subr.bf16.mxu0 %v536
      %641 = vmatpush1.bf16.msra.mxu0 %v535
      %642 = vmatprep.subr.bf16.mxu0 %v538
      %643 = vmatpush1.bf16.msra.mxu0 %v537
      %644 = vmatprep.subr.bf16.mxu0 0
      %645 = vmatpush1.bf16.msra.mxu0 0
      %646 = vmatprep.subr.bf16.mxu0 0
      %647 = vmatpush1.bf16.msra.mxu0 0
      %648 = vmatprep.subr.bf16.mxu0 0
      %649 = vmatpush1.bf16.msra.mxu0 0
      %650 = vmatprep.subr.bf16.mxu0 0
      %651 = vmatpush1.bf16.msra.mxu0 0
      %652 = vmatprep.subr.bf16.mxu0 0
      %653 = vmatpush1.bf16.msra.mxu0 0
      %654 = vmatprep.subr.bf16.mxu0 0
      %655 = vmatpush1.bf16.msra.mxu0 0
      %656 = vmatprep.subr.bf16.mxu0 0
      %657 = vmatpush1.bf16.msra.mxu0 0
      %658 = vmatprep.subr.bf16.mxu0 0
      %659 = vmatpush1.bf16.msra.mxu0 0
      %660 = vmatprep.mubr.bf16.mxu0 0
      %661 = vmatmul.mubr.bf16.gmra.mrb[0].mxu0 %v343
      %v662 = vpop.f32.mrb[0].mxu0
      %v663 = vadd.f32 %v622, %v662
      %v664 = vpop.f32.mrb[0].mxu0
      %v665 = vadd.f32 %v624, %v664
      %v666 = vpop.f32.mrb[0].mxu0
      %v667 = vpop.f32.mrb[0].mxu0
      %668 = vdwg.mxu0
      %v669 = vadd.f32 %v284, %v663
      %v670 = vadd.f32 %v285, %v665
      %671 = vst [vmem:[#allocation2] sm:$0xff] %v669
      %672 = vst [vmem:[#allocation2 + $0x8] sm:$0xff] %v670
      %p673 = scmp.eq.s32.totalorder %s21, 5
      // Predicated region
      $region37: #{_lambda_.72} parent=31 // pred_check
        %p674 = pneg %p673
      $region38: #{_lambda_.72} parent=31 // pred_check_branch
        %676 = sbr.rel (%p674) target = $region40
      $region39: #{_lambda_.72} parent=31 // pred_region
        %v677 = vld [vmem:[#allocation2] sm:$0xff]
        %v678 = vld [vmem:[#allocation2 + $0x8] sm:$0xff]
        %v679 = vld [vmem:[%s265] sm:$0x3]
        %v681 = vlaneseq
        %v682 = vshrl.u32 %v681, 7
        %v683 = vsub.s32 0, %v682
        %v684 = vrot.slane %v679, %v683
        %v685 = vlaneseq
        %v686 = vshrl.u32 %v685, 7
        %v687 = vsub.s32 1, %v686
        %v688 = vrot.slane %v679, %v687
        %v691 = vadd.f32 %v677, %v684
        %v692 = vadd.f32 %v678, %v688
        %v693 = vmax.f32 %v691, 0.0
        %v694 = vmax.f32 %v692, 0.0
        %v695 = vpack.c.bf16 %v693, %v693
        %v696 = vpack.c.bf16 %v694, %v694
        %v699 = vunpack.c.l.b16 %v695
        %v700 = vunpack.c.l.b16 %v696
        %v701 = vpack.c.b16 %v700, %v699
        %703 = vst [vmem:[%s275] sm:$0xff] %v701
      $region40: #{_lambda_.72} parent=31 // pred_fallthru
        _
      %s704 = smul.u32 2, %s20
      %p705 = scmp.lt.s32.totalorder %s19, 0
      %s706 = scalar_select %p705, %s19, 0
      %p707 = scmp.lt.s32.totalorder %s704, 1
      %s708 = scalar_select %p707, %s704, 1
      %s709 = smul.addr %s706, 2
      %s710 = sadd.s32 %s708, %s709
      %s711 = smul.addr %s710, 4
      %s712 = scalar_lea.vmem %s3, %s711
      // Predicated region
      $region41: #{_lambda_.72} parent=31 // pred_check
        %p713 = pneg %p135
      $region42: #{_lambda_.72} parent=31 // pred_check_branch
        %715 = sbr.rel (%p713) target = $region44
      $region43: #{_lambda_.72} parent=31 // pred_region
        %s716 = smul.u32 2, %s20
      $region44: #{_lambda_.72} parent=31 // pred_fallthru
        _
      // Predicated region
      $region45: #{_lambda_.72} parent=31 // pred_check
        %p717 = pneg %p135
      $region46: #{_lambda_.72} parent=31 // pred_check_branch
        %719 = sbr.rel (%p717) target = $region48
      $region47: #{_lambda_.72} parent=31 // pred_region
        %s720 = smul.u32 2, %s20
        %p721 = scmp.lt.s32.totalorder %s19, 0
        %s722 = scalar_select %p721, %s19, 0
        %p723 = scmp.lt.s32.totalorder %s720, 1
        %s724 = scalar_select %p723, %s720, 1
        %s725 = smul.addr %s722, 2
        %s726 = sadd.s32 %s724, %s725
        %s727 = smul.addr %s726, 4
        %s728 = scalar_lea.vmem %s3, %s727
      $region48: #{_lambda_.72} parent=31 // pred_fallthru
        _
    $region32: #{_lambda_.72} parent=5 // pred_fallthru
      _
    %p729 = scmp.le.s32.totalorder 2, %s9
    // Predicated region
    $region49: #{_lambda_.72} parent=5 // pred_check
      %p730 = pneg %p729
    $region50: #{_lambda_.72} parent=5 // pred_check_branch
      %732 = sbr.rel (%p730) target = $region52
    $region51: #{_lambda_.72} parent=5 // pred_region
      %s733 = ssub.s32 %s9, 2
    $region52: #{_lambda_.72} parent=5 // pred_fallthru
      _
  $region6: #{_lambda_.72} parent=0 // loop_footer
    %s13 = sadd.s32 1, %s9
  $region7: #{_lambda_.72} parent=0 // loop_footer_branch
    %8 = sbr.rel target = $region3
  $region8: #{_lambda_.72} parent=0 // loop_exit
    _

// kernel: _lambda_.74
$region0: #{_lambda_.74}
  #allocation0 [shape = 'u32[]', space=smem, size = 0x4, offset = 0x4, fixed_abs, tag = 'smem constant byte address 0x4 - core index']
  #allocation1 [shape = 'u32[144,128]{1,0:T(1,128)}', space=vmem, size = 0x12000, scoped, tag = 'internal scratch']
  #allocation2 [shape = 'f32[8,256]{1,0:T(8,128)}', space=vmem, size = 0x2000, scoped, tag = 'scratch operand']
  %s0 = inlined_call_operand.vmem [shape: bf16[8,256], index: 0, kind: input, shape index: {}]
  %s1 = inlined_call_operand.vmem [shape: bf16[256,1024], index: 1, kind: input, shape index: {}]
  %s2 = inlined_call_operand.vmem [shape: f32[1,1024], index: 2, kind: input, shape index: {}]
  %s3 = inlined_call_operand.vmem [shape: bf16[8,1024], index: 3, kind: input, shape index: {}]
  %s4 = inlined_call_operand.vmem [shape: bf16[8,1024], index: 4, kind: output, shape index: {}]
  %s5 = sld [smem:[#allocation0]]
  $region95: #{_lambda_.74} parent=0
    _
  %s7 = ssub.s32 1, %s5
  %s8 = scalar_select 0, %s7, %s5
  $region1: #{_lambda_.74} parent=0
    #allocation3 [shape = 'u8[262144]{0}', space=vmem, size = 0x40000, scoped, tag = 'input window, operand 1']
    loop: start=0, step=1, limit=6
    $region2: #{_lambda_.74} parent=1 // loop_pre_header
      _
    $region3: #{_lambda_.74} parent=1 // loop_header
      %s10 = sphi 0, %s14
      %p11 = scmp.ge.s32.totalorder %s10, 6
      %s17 = sphi 0, %s36
      %s18 = sphi 0, %s32
      %s19 = sphi 0, %s28
      %s20 = sphi 0, %s17
      %s21 = sphi 0, %s18
      %s22 = sphi 0, %s19
      %s23 = sphi 0, %s20
      %s24 = sphi 0, %s21
      %s25 = sphi 0, %s22
      %s41 = sphi 0, %s43
      %s44 = sphi 0, %s41
      %s45 = sphi 0, %s44
      %s61 = sphi 0, %s45
      %s69 = sphi 0, %s71
      %s72 = sphi 0, %s69
      %s73 = sphi 0, %s72
      %s89 = sphi 0, %s73
      %s95 = sphi 0, %s97
      %s98 = sphi 0, %s95
      %s99 = sphi 0, %s98
      %s115 = sphi 0, %s99
      %s123 = sphi 0, %s125
      %s126 = sphi 0, %s123
      %s127 = sphi 0, %s126
      %s143 = sphi 0, %s127
      %s151 = sphi 0, %s153
      %s154 = sphi 0, %s151
      %s155 = sphi 0, %s154
      %s171 = sphi 0, %s155
    $region4: #{_lambda_.74} parent=1 // loop_header_branch
      %13 = sbr.rel (%p11) target = $region8
    $region5: #{_lambda_.74} parent=1 // loop_body
      %s15 = ssub.s32 %s10, 1
      %s16 = ssub.s32 %s10, 2
      %s26 = sadd.s32 1, %s19
      %p27 = scmp.ge.s32.totalorder %s26, 1
      %s28 = scalar_select %p27, 0, %s26
      %s29 = sadd.s32 1, %s18
      %s30 = scalar_select %p27, %s29, %s18
      %p31 = scmp.ge.s32.totalorder %s30, 4
      %s32 = scalar_select %p31, 0, %s30
      %s33 = sadd.s32 1, %s17
      %s34 = scalar_select %p31, %s33, %s17
      %p35 = scmp.ge.s32.totalorder %s34, 1
      %s36 = scalar_select %p35, 0, %s34
      %s37 = ssub.s32 %s17, %s36
      %s38 = ssub.s32 %s19, %s28
      %s39 = sor.u32 %s37, %s38
      %p40 = scmp.eq.s32.totalorder %s39, 0
      %s42 = sadd.s32 %s41, 1
      %s43 = scalar_select %p40, %s41, %s42
      %p46 = pneg %p40
      %p47 = scmp.eq.s32.totalorder %s10, 3
      %p48 = por %p46, %p47
      %p49 = scmp.ne.s32.totalorder %s41, %s44
      %p50 = scmp.eq.s32.totalorder %s10, 0
      %p51 = por %p49, %p50
      %p52 = scmp.ne.s32.totalorder %s41, %s44
      %p53 = scmp.eq.s32.totalorder %s15, 3
      %p54 = por %p52, %p53
      %p55 = scmp.ne.s32.totalorder %s44, %s45
      %p56 = scmp.eq.s32.totalorder %s15, 0
      %p57 = por %p55, %p56
      %p58 = scmp.ne.s32.totalorder %s44, %s45
      %p59 = scmp.eq.s32.totalorder %s16, 3
      %p60 = por %p58, %p59
      %p62 = scmp.ne.s32.totalorder %s45, %s61
      %p63 = scmp.eq.s32.totalorder %s16, 0
      %p64 = por %p62, %p63
      %s65 = ssub.s32 %s19, %s28
      %s66 = ssub.s32 %s18, %s32
      %s67 = sor.u32 %s65, %s66
      %p68 = scmp.eq.s32.totalorder %s67, 0
      %s70 = sadd.s32 %s69, 1
      %s71 = scalar_select %p68, %s69, %s70
      %p74 = pneg %p68
      %p75 = scmp.eq.s32.totalorder %s10, 3
      %p76 = por %p74, %p75
      %p77 = scmp.ne.s32.totalorder %s69, %s72
      %p78 = scmp.eq.s32.totalorder %s10, 0
      %p79 = por %p77, %p78
      %p80 = scmp.ne.s32.totalorder %s69, %s72
      %p81 = scmp.eq.s32.totalorder %s15, 3
      %p82 = por %p80, %p81
      %p83 = scmp.ne.s32.totalorder %s72, %s73
      %p84 = scmp.eq.s32.totalorder %s15, 0
      %p85 = por %p83, %p84
      %p86 = scmp.ne.s32.totalorder %s72, %s73
      %p87 = scmp.eq.s32.totalorder %s16, 3
      %p88 = por %p86, %p87
      %p90 = scmp.ne.s32.totalorder %s73, %s89
      %p91 = scmp.eq.s32.totalorder %s16, 0
      %p92 = por %p90, %p91
      %s93 = ssub.s32 %s18, %s32
      %p94 = scmp.eq.s32.totalorder %s93, 0
      %s96 = sadd.s32 %s95, 1
      %s97 = scalar_select %p94, %s95, %s96
      %p100 = pneg %p94
      %p101 = scmp.eq.s32.totalorder %s10, 3
      %p102 = por %p100, %p101
      %p103 = scmp.ne.s32.totalorder %s95, %s98
      %p104 = scmp.eq.s32.totalorder %s10, 0
      %p105 = por %p103, %p104
      %p106 = scmp.ne.s32.totalorder %s95, %s98
      %p107 = scmp.eq.s32.totalorder %s15, 3
      %p108 = por %p106, %p107
      %p109 = scmp.ne.s32.totalorder %s98, %s99
      %p110 = scmp.eq.s32.totalorder %s15, 0
      %p111 = por %p109, %p110
      %p112 = scmp.ne.s32.totalorder %s98, %s99
      %p113 = scmp.eq.s32.totalorder %s16, 3
      %p114 = por %p112, %p113
      %p116 = scmp.ne.s32.totalorder %s99, %s115
      %p117 = scmp.eq.s32.totalorder %s16, 0
      %p118 = por %p116, %p117
      %s119 = ssub.s32 %s17, %s36
      %s120 = ssub.s32 %s18, %s32
      %s121 = sor.u32 %s119, %s120
      %p122 = scmp.eq.s32.totalorder %s121, 0
      %s124 = sadd.s32 %s123, 1
      %s125 = scalar_select %p122, %s123, %s124
      %p128 = pneg %p122
      %p129 = scmp.eq.s32.totalorder %s10, 3
      %p130 = por %p128, %p129
      %p131 = scmp.ne.s32.totalorder %s123, %s126
      %p132 = scmp.eq.s32.totalorder %s10, 0
      %p133 = por %p131, %p132
      %p134 = scmp.ne.s32.totalorder %s123, %s126
      %p135 = scmp.eq.s32.totalorder %s15, 3
      %p136 = por %p134, %p135
      %p137 = scmp.ne.s32.totalorder %s126, %s127
      %p138 = scmp.eq.s32.totalorder %s15, 0
      %p139 = por %p137, %p138
      %p140 = scmp.ne.s32.totalorder %s126, %s127
      %p141 = scmp.eq.s32.totalorder %s16, 3
      %p142 = por %p140, %p141
      %p144 = scmp.ne.s32.totalorder %s127, %s143
      %p145 = scmp.eq.s32.totalorder %s16, 0
      %p146 = por %p144, %p145
      %s147 = ssub.s32 %s17, %s36
      %s148 = ssub.s32 %s18, %s32
      %s149 = sor.u32 %s147, %s148
      %p150 = scmp.eq.s32.totalorder %s149, 0
      %s152 = sadd.s32 %s151, 1
      %s153 = scalar_select %p150, %s151, %s152
      %p156 = pneg %p150
      %p157 = scmp.eq.s32.totalorder %s10, 3
      %p158 = por %p156, %p157
      %p159 = scmp.ne.s32.totalorder %s151, %s154
      %p160 = scmp.eq.s32.totalorder %s10, 0
      %p161 = por %p159, %p160
      %p162 = scmp.ne.s32.totalorder %s151, %s154
      %p163 = scmp.eq.s32.totalorder %s15, 3
      %p164 = por %p162, %p163
      %p165 = scmp.ne.s32.totalorder %s154, %s155
      %p166 = scmp.eq.s32.totalorder %s15, 0
      %p167 = por %p165, %p166
      %p168 = scmp.ne.s32.totalorder %s154, %s155
      %p169 = scmp.eq.s32.totalorder %s16, 3
      %p170 = por %p168, %p169
      %p172 = scmp.ne.s32.totalorder %s155, %s171
      %p173 = scmp.eq.s32.totalorder %s16, 0
      %p174 = por %p172, %p173
      %p175 = scmp.le.s32.totalorder 1, %s10
      %p176 = scmp.lt.s32.totalorder %s10, 5
      %p177 = pnand %p175, %p176
      %p178 = pneg %p177
      // Predicated region
      $region9: #{_lambda_.74} parent=5 // pred_check
        _
      $region10: #{_lambda_.74} parent=5 // pred_check_branch
        %180 = sbr.rel (%p177) target = $region12
      $region11: #{_lambda_.74} parent=5 // pred_region
        %s181 = ssub.s32 %s10, 1
        // Predicated region
        $region13: #{_lambda_.74} parent=11 // pred_check
          %p182 = pneg %p57
        $region14: #{_lambda_.74} parent=11 // pred_check_branch
          %184 = sbr.rel (%p182) target = $region16
        $region15: #{_lambda_.74} parent=11 // pred_region
          %s185 = smul.u32 2, %s22
          %p186 = scmp.lt.s32.totalorder %s20, 0
          %s187 = scalar_select %p186, %s20, 0
          %p188 = scmp.lt.s32.totalorder %s185, 1
          %s189 = scalar_select %p188, %s185, 1
          %s190 = smul.addr %s187, 2
          %s191 = sadd.s32 %s189, %s190
          %s192 = smul.addr %s191, 4
          %s193 = scalar_lea.vmem %s0, %s192
          %s194 = smul.u32 2, %s22
        $region16: #{_lambda_.74} parent=11 // pred_fallthru
          _
      $region12: #{_lambda_.74} parent=5 // pred_fallthru
        _
      %p195 = scmp.lt.s32.totalorder %s10, 4
      // Predicated region
      $region17: #{_lambda_.74} parent=5 // pred_check
        %p196 = pneg %p195
      $region18: #{_lambda_.74} parent=5 // pred_check_branch
        %198 = sbr.rel (%p196) target = $region20
      $region19: #{_lambda_.74} parent=5 // pred_region
        // Predicated region
        $region21: #{_lambda_.74} parent=19 // pred_check
          %p199 = pneg %p79
        $region22: #{_lambda_.74} parent=19 // pred_check_branch
          %201 = sbr.rel (%p199) target = $region24
        $region23: #{_lambda_.74} parent=19 // pred_region
          %s202 = sand.u32 %s69, 1
          %s203 = sand.u32 %s69, 1
          %s204 = smul.addr %s203, 256
          %s205 = scalar_lea.vmem [#allocation3], %s204
          %s206 = smul.u32 32, %s19
          %s207 = smul.u32 2, %s18
          %s208 = smul.addr %s206, 8
          %s209 = sadd.s32 %s207, %s208
          %s210 = smul.addr %s209, 4
          %s211 = scalar_lea.vmem %s1, %s210
          // Predicated region
          $region25: #{_lambda_.74} parent=23 // pred_check
            _
          $region26: #{_lambda_.74} parent=23 // pred_check_branch
            %213 = sbr.rel (0) target = $region28
          $region27: #{_lambda_.74} parent=23 // pred_region
            // Predicated region
            $region29: #{_lambda_.74} parent=27 // pred_check
              _
            $region30: #{_lambda_.74} parent=27 // pred_check_branch
              %215 = sbr.rel (0) target = $region32
            $region31: #{_lambda_.74} parent=27 // pred_region
              // Predicated region
              $region44: #{_lambda_.74} parent=31 // pred_check
                _
              $region45: #{_lambda_.74} parent=31 // pred_check_branch
                %292 = sbr.rel (0) target = $region47
              $region46: #{_lambda_.74} parent=31 // pred_region
                loop: start=0, step=1, limit=1
                $region48: #{_lambda_.74} parent=46 // loop_pre_header
                  _
                $region49: #{_lambda_.74} parent=46 // loop_header
                  %s294 = sphi 0, %s298
                  %p295 = scmp.ge.s32.totalorder %s294, 1
                  %s299 = sphi %s211, %s211
                  %s300 = sphi %s205, %s205
                $region50: #{_lambda_.74} parent=46 // loop_header_branch
                  %297 = sbr.rel (%p295) target = $region54
                $region51: #{_lambda_.74} parent=46 // loop_body
                  %v301 = vld [vmem:[%s299] sm:$0xff]
                  %302 = vst [vmem:[%s300] sm:$0xff] %v301
                  %v303 = vld [vmem:[%s299 + $0x20] sm:$0xff]
                  %304 = vst [vmem:[%s300 + $0x8] sm:$0xff] %v303
                  %v305 = vld [vmem:[%s299 + $0x40] sm:$0xff]
                  %306 = vst [vmem:[%s300 + $0x10] sm:$0xff] %v305
                  %v307 = vld [vmem:[%s299 + $0x60] sm:$0xff]
                  %308 = vst [vmem:[%s300 + $0x18] sm:$0xff] %v307
                  %v309 = vld [vmem:[%s299 + $0x80] sm:$0xff]
                  %310 = vst [vmem:[%s300 + $0x20] sm:$0xff] %v309
                  %v311 = vld [vmem:[%s299 + $0xa0] sm:$0xff]
                  %312 = vst [vmem:[%s300 + $0x28] sm:$0xff] %v311
                  %v313 = vld [vmem:[%s299 + $0xc0] sm:$0xff]
                  %314 = vst [vmem:[%s300 + $0x30] sm:$0xff] %v313
                  %v315 = vld [vmem:[%s299 + $0xe0] sm:$0xff]
                  %316 = vst [vmem:[%s300 + $0x38] sm:$0xff] %v315
                  %v317 = vld [vmem:[%s299 + $0x100] sm:$0xff]
                  %318 = vst [vmem:[%s300 + $0x40] sm:$0xff] %v317
                  %v319 = vld [vmem:[%s299 + $0x120] sm:$0xff]
                  %320 = vst [vmem:[%s300 + $0x48] sm:$0xff] %v319
                  %v321 = vld [vmem:[%s299 + $0x140] sm:$0xff]
                  %322 = vst [vmem:[%s300 + $0x50] sm:$0xff] %v321
                  %v323 = vld [vmem:[%s299 + $0x160] sm:$0xff]
                  %324 = vst [vmem:[%s300 + $0x58] sm:$0xff] %v323
                  %v325 = vld [vmem:[%s299 + $0x180] sm:$0xff]
                  %326 = vst [vmem:[%s300 + $0x60] sm:$0xff] %v325
                  %v327 = vld [vmem:[%s299 + $0x1a0] sm:$0xff]
                  %328 = vst [vmem:[%s300 + $0x68] sm:$0xff] %v327
                  %v329 = vld [vmem:[%s299 + $0x1c0] sm:$0xff]
                  %330 = vst [vmem:[%s300 + $0x70] sm:$0xff] %v329
                  %v331 = vld [vmem:[%s299 + $0x1e0] sm:$0xff]
                  %332 = vst [vmem:[%s300 + $0x78] sm:$0xff] %v331
                  %v333 = vld [vmem:[%s299 + $0x200] sm:$0xff]
                  %334 = vst [vmem:[%s300 + $0x80] sm:$0xff] %v333
                  %v335 = vld [vmem:[%s299 + $0x220] sm:$0xff]
                  %336 = vst [vmem:[%s300 + $0x88] sm:$0xff] %v335
                  %v337 = vld [vmem:[%s299 + $0x240] sm:$0xff]
                  %338 = vst [vmem:[%s300 + $0x90] sm:$0xff] %v337
                  %v339 = vld [vmem:[%s299 + $0x260] sm:$0xff]
                  %340 = vst [vmem:[%s300 + $0x98] sm:$0xff] %v339
                  %v341 = vld [vmem:[%s299 + $0x280] sm:$0xff]
                  %342 = vst [vmem:[%s300 + $0xa0] sm:$0xff] %v341
                  %v343 = vld [vmem:[%s299 + $0x2a0] sm:$0xff]
                  %344 = vst [vmem:[%s300 + $0xa8] sm:$0xff] %v343
                  %v345 = vld [vmem:[%s299 + $0x2c0] sm:$0xff]
                  %346 = vst [vmem:[%s300 + $0xb0] sm:$0xff] %v345
                  %v347 = vld [vmem:[%s299 + $0x2e0] sm:$0xff]
                  %348 = vst [vmem:[%s300 + $0xb8] sm:$0xff] %v347
                  %v349 = vld [vmem:[%s299 + $0x300] sm:$0xff]
                  %350 = vst [vmem:[%s300 + $0xc0] sm:$0xff] %v349
                  %v351 = vld [vmem:[%s299 + $0x320] sm:$0xff]
                  %352 = vst [vmem:[%s300 + $0xc8] sm:$0xff] %v351
                  %v353 = vld [vmem:[%s299 + $0x340] sm:$0xff]
                  %354 = vst [vmem:[%s300 + $0xd0] sm:$0xff] %v353
                  %v355 = vld [vmem:[%s299 + $0x360] sm:$0xff]
                  %356 = vst [vmem:[%s300 + $0xd8] sm:$0xff] %v355
                  %v357 = vld [vmem:[%s299 + $0x380] sm:$0xff]
                  %358 = vst [vmem:[%s300 + $0xe0] sm:$0xff] %v357
                  %v359 = vld [vmem:[%s299 + $0x3a0] sm:$0xff]
                  %360 = vst [vmem:[%s300 + $0xe8] sm:$0xff] %v359
                  %v361 = vld [vmem:[%s299 + $0x3c0] sm:$0xff]
                  %362 = vst [vmem:[%s300 + $0xf0] sm:$0xff] %v361
                  %v363 = vld [vmem:[%s299 + $0x3e0] sm:$0xff]
                  %364 = vst [vmem:[%s300 + $0xf8] sm:$0xff] %v363
                $region52: #{_lambda_.74} parent=46 // loop_footer
                  %s298 = sadd.s32 1, %s294
                $region53: #{_lambda_.74} parent=46 // loop_footer_branch
                  %293 = sbr.rel target = $region49
                $region54: #{_lambda_.74} parent=46 // loop_exit
                  _
              $region47: #{_lambda_.74} parent=31 // pred_fallthru
                _
              // Predicated region
              $region55: #{_lambda_.74} parent=31 // pred_check
                _
              $region56: #{_lambda_.74} parent=31 // pred_check_branch
                %366 = sbr.rel target = $region58
              $region57: #{_lambda_.74} parent=31 // pred_region
                _
              $region58: #{_lambda_.74} parent=31 // pred_fallthru
                _
            $region32: #{_lambda_.74} parent=27 // pred_fallthru
              _
            // Predicated region
            $region33: #{_lambda_.74} parent=27 // pred_check
              _
            $region34: #{_lambda_.74} parent=27 // pred_check_branch
              %217 = sbr.rel target = $region36
            $region35: #{_lambda_.74} parent=27 // pred_region
              loop: start=0, step=1, limit=1
              $region37: #{_lambda_.74} parent=35 // loop_pre_header
                _
              $region38: #{_lambda_.74} parent=35 // loop_header
                %s220 = sphi 0, %s224
                %p221 = scmp.ge.s32.totalorder %s220, 1
                %s225 = sphi %s211, %s211
                %s226 = sphi %s205, %s205
              $region39: #{_lambda_.74} parent=35 // loop_header_branch
                %223 = sbr.rel (%p221) target = $region43
              $region40: #{_lambda_.74} parent=35 // loop_body
                %v227 = vld [vmem:[%s225] sm:$0xff]
                %228 = vst [vmem:[%s226] sm:$0xff] %v227
                %v229 = vld [vmem:[%s225 + $0x20] sm:$0xff]
                %230 = vst [vmem:[%s226 + $0x8] sm:$0xff] %v229
                %v231 = vld [vmem:[%s225 + $0x40] sm:$0xff]
                %232 = vst [vmem:[%s226 + $0x10] sm:$0xff] %v231
                %v233 = vld [vmem:[%s225 + $0x60] sm:$0xff]
                %234 = vst [vmem:[%s226 + $0x18] sm:$0xff] %v233
                %v235 = vld [vmem:[%s225 + $0x80] sm:$0xff]
                %236 = vst [vmem:[%s226 + $0x20] sm:$0xff] %v235
                %v237 = vld [vmem:[%s225 + $0xa0] sm:$0xff]
                %238 = vst [vmem:[%s226 + $0x28] sm:$0xff] %v237
                %v239 = vld [vmem:[%s225 + $0xc0] sm:$0xff]
                %240 = vst [vmem:[%s226 + $0x30] sm:$0xff] %v239
                %v241 = vld [vmem:[%s225 + $0xe0] sm:$0xff]
                %242 = vst [vmem:[%s226 + $0x38] sm:$0xff] %v241
                %v243 = vld [vmem:[%s225 + $0x100] sm:$0xff]
                %244 = vst [vmem:[%s226 + $0x40] sm:$0xff] %v243
                %v245 = vld [vmem:[%s225 + $0x120] sm:$0xff]
                %246 = vst [vmem:[%s226 + $0x48] sm:$0xff] %v245
                %v247 = vld [vmem:[%s225 + $0x140] sm:$0xff]
                %248 = vst [vmem:[%s226 + $0x50] sm:$0xff] %v247
                %v249 = vld [vmem:[%s225 + $0x160] sm:$0xff]
                %250 = vst [vmem:[%s226 + $0x58] sm:$0xff] %v249
                %v251 = vld [vmem:[%s225 + $0x180] sm:$0xff]
                %252 = vst [vmem:[%s226 + $0x60] sm:$0xff] %v251
                %v253 = vld [vmem:[%s225 + $0x1a0] sm:$0xff]
                %254 = vst [vmem:[%s226 + $0x68] sm:$0xff] %v253
                %v255 = vld [vmem:[%s225 + $0x1c0] sm:$0xff]
                %256 = vst [vmem:[%s226 + $0x70] sm:$0xff] %v255
                %v257 = vld [vmem:[%s225 + $0x1e0] sm:$0xff]
                %258 = vst [vmem:[%s226 + $0x78] sm:$0xff] %v257
                %v259 = vld [vmem:[%s225 + $0x200] sm:$0xff]
                %260 = vst [vmem:[%s226 + $0x80] sm:$0xff] %v259
                %v261 = vld [vmem:[%s225 + $0x220] sm:$0xff]
                %262 = vst [vmem:[%s226 + $0x88] sm:$0xff] %v261
                %v263 = vld [vmem:[%s225 + $0x240] sm:$0xff]
                %264 = vst [vmem:[%s226 + $0x90] sm:$0xff] %v263
                %v265 = vld [vmem:[%s225 + $0x260] sm:$0xff]
                %266 = vst [vmem:[%s226 + $0x98] sm:$0xff] %v265
                %v267 = vld [vmem:[%s225 + $0x280] sm:$0xff]
                %268 = vst [vmem:[%s226 + $0xa0] sm:$0xff] %v267
                %v269 = vld [vmem:[%s225 + $0x2a0] sm:$0xff]
                %270 = vst [vmem:[%s226 + $0xa8] sm:$0xff] %v269
                %v271 = vld [vmem:[%s225 + $0x2c0] sm:$0xff]
                %272 = vst [vmem:[%s226 + $0xb0] sm:$0xff] %v271
                %v273 = vld [vmem:[%s225 + $0x2e0] sm:$0xff]
                %274 = vst [vmem:[%s226 + $0xb8] sm:$0xff] %v273
                %v275 = vld [vmem:[%s225 + $0x300] sm:$0xff]
                %276 = vst [vmem:[%s226 + $0xc0] sm:$0xff] %v275
                %v277 = vld [vmem:[%s225 + $0x320] sm:$0xff]
                %278 = vst [vmem:[%s226 + $0xc8] sm:$0xff] %v277
                %v279 = vld [vmem:[%s225 + $0x340] sm:$0xff]
                %280 = vst [vmem:[%s226 + $0xd0] sm:$0xff] %v279
                %v281 = vld [vmem:[%s225 + $0x360] sm:$0xff]
                %282 = vst [vmem:[%s226 + $0xd8] sm:$0xff] %v281
                %v283 = vld [vmem:[%s225 + $0x380] sm:$0xff]
                %284 = vst [vmem:[%s226 + $0xe0] sm:$0xff] %v283
                %v285 = vld [vmem:[%s225 + $0x3a0] sm:$0xff]
                %286 = vst [vmem:[%s226 + $0xe8] sm:$0xff] %v285
                %v287 = vld [vmem:[%s225 + $0x3c0] sm:$0xff]
                %288 = vst [vmem:[%s226 + $0xf0] sm:$0xff] %v287
                %v289 = vld [vmem:[%s225 + $0x3e0] sm:$0xff]
                %290 = vst [vmem:[%s226 + $0xf8] sm:$0xff] %v289
              $region41: #{_lambda_.74} parent=35 // loop_footer
                %s224 = sadd.s32 1, %s220
              $region42: #{_lambda_.74} parent=35 // loop_footer_branch
                %219 = sbr.rel target = $region38
              $region43: #{_lambda_.74} parent=35 // loop_exit
                _
            $region36: #{_lambda_.74} parent=27 // pred_fallthru
              _
          $region28: #{_lambda_.74} parent=23 // pred_fallthru
            _
          %367 = vnop
        $region24: #{_lambda_.74} parent=19 // pred_fallthru
          _
        // Predicated region
        $region59: #{_lambda_.74} parent=19 // pred_check
          %p368 = pneg %p105
        $region60: #{_lambda_.74} parent=19 // pred_check_branch
          %370 = sbr.rel (%p368) target = $region62
        $region61: #{_lambda_.74} parent=19 // pred_region
          %s371 = smul.u32 2, %s18
          %p372 = scmp.lt.s32.totalorder %s371, 7
          %s373 = scalar_select %p372, %s371, 7
          %s374 = scalar_lea.vmem %s2, %s373
          %s375 = smul.u32 2, %s18
        $region62: #{_lambda_.74} parent=19 // pred_fallthru
          _
        // Predicated region
        $region63: #{_lambda_.74} parent=19 // pred_check
          %p376 = pneg %p133
        $region64: #{_lambda_.74} parent=19 // pred_check_branch
          %378 = sbr.rel (%p376) target = $region66
        $region65: #{_lambda_.74} parent=19 // pred_region
          %s379 = smul.u32 2, %s18
          %p380 = scmp.lt.s32.totalorder %s17, 0
          %s381 = scalar_select %p380, %s17, 0
          %p382 = scmp.lt.s32.totalorder %s379, 7
          %s383 = scalar_select %p382, %s379, 7
          %s384 = smul.addr %s381, 8
          %s385 = sadd.s32 %s383, %s384
          %s386 = smul.addr %s385, 4
          %s387 = scalar_lea.vmem %s3, %s386
          %s388 = smul.u32 2, %s18
        $region66: #{_lambda_.74} parent=19 // pred_fallthru
          _
      $region20: #{_lambda_.74} parent=5 // pred_fallthru
        _
      %p389 = scmp.le.s32.totalorder 1, %s10
      %p390 = scmp.lt.s32.totalorder %s10, 5
      %p391 = pnand %p389, %p390
      %p392 = pneg %p391
      // Predicated region
      $region67: #{_lambda_.74} parent=5 // pred_check
        _
      $region68: #{_lambda_.74} parent=5 // pred_check_branch
        %394 = sbr.rel (%p391) target = $region70
      $region69: #{_lambda_.74} parent=5 // pred_region
        %s395 = ssub.s32 %s10, 1
        %s396 = sand.u32 %s72, 1
        %s397 = sand.u32 %s72, 1
        %s398 = smul.addr %s397, 256
        %s399 = scalar_lea.vmem [#allocation3], %s398
        // Predicated region
        $region71: #{_lambda_.74} parent=69 // pred_check
          %p400 = pneg %p85
        $region72: #{_lambda_.74} parent=69 // pred_check_branch
          %402 = sbr.rel (%p400) target = $region74
        $region73: #{_lambda_.74} parent=69 // pred_region
          _
        $region74: #{_lambda_.74} parent=69 // pred_fallthru
          _
        %s403 = smul.u32 2, %s22
        %p404 = scmp.lt.s32.totalorder %s20, 0
        %s405 = scalar_select %p404, %s20, 0
        %p406 = scmp.lt.s32.totalorder %s403, 1
        %s407 = scalar_select %p406, %s403, 1
        %s408 = smul.addr %s405, 2
        %s409 = sadd.s32 %s407, %s408
        %s410 = smul.addr %s409, 4
        %s411 = scalar_lea.vmem %s0, %s410
        %p412 = pneg %p57
        %p413 = pneg %p54
        %s414 = sand.u32 %s72, 1
        %s415 = sand.u32 %s72, 1
        %s416 = smul.addr %s415, 256
        %s417 = scalar_lea.vmem [#allocation3], %s416
        %p418 = pneg %p85
        %p419 = pneg %p82
        %s420 = smul.u32 2, %s21
        %p421 = scmp.lt.s32.totalorder %s420, 7
        %s422 = scalar_select %p421, %s420, 7
        %s423 = scalar_lea.vmem %s2, %s422
        %p424 = pneg %p111
        %p425 = pneg %p108
        %s426 = smul.u32 2, %s21
        %p427 = scmp.lt.s32.totalorder %s20, 0
        %s428 = scalar_select %p427, %s20, 0
        %p429 = scmp.lt.s32.totalorder %s426, 7
        %s430 = scalar_select %p429, %s426, 7
        %s431 = smul.addr %s428, 8
        %s432 = sadd.s32 %s430, %s431
        %s433 = smul.addr %s432, 4
        %s434 = scalar_lea.vmem %s3, %s433
        %p435 = pneg %p139
        %p436 = pneg %p136
        %p437 = pneg %p167
        %p438 = pneg %p164
        %s439 = smul.u32 2, %s21
        %p440 = scmp.lt.s32.totalorder %s20, 0
        %s441 = scalar_select %p440, %s20, 0
        %p442 = scmp.lt.s32.totalorder %s439, 7
        %s443 = scalar_select %p442, %s439, 7
        %s444 = smul.addr %s441, 8
        %s445 = sadd.s32 %s443, %s444
        %s446 = smul.addr %s445, 4
        %s447 = scalar_lea.vmem %s4, %s446
        %s448 = smul.u32 2, %s22
        %p449 = scmp.lt.s32.totalorder %s20, 0
        %s450 = scalar_select %p449, %s20, 0
        %p451 = scmp.lt.s32.totalorder %s448, 1
        %s452 = scalar_select %p451, %s448, 1
        %s453 = smul.addr %s450, 2
        %s454 = sadd.s32 %s452, %s453
        %s455 = smul.addr %s454, 4
        %s456 = scalar_lea.vmem %s0, %s455
        %s457 = smul.u32 2, %s22
        %s458 = smul.u32 32, %s22
        %s459 = smul.u32 2, %s21
        %s460 = smul.u32 2, %s21
        %p461 = scmp.lt.s32.totalorder %s460, 7
        %s462 = scalar_select %p461, %s460, 7
        %s463 = scalar_lea.vmem %s2, %s462
        %s464 = smul.u32 2, %s21
        %s465 = smul.u32 2, %s21
        %p466 = scmp.lt.s32.totalorder %s20, 0
        %s467 = scalar_select %p466, %s20, 0
        %p468 = scmp.lt.s32.totalorder %s465, 7
        %s469 = scalar_select %p468, %s465, 7
        %s470 = smul.addr %s467, 8
        %s471 = sadd.s32 %s469, %s470
        %s472 = smul.addr %s471, 4
        %s473 = scalar_lea.vmem %s3, %s472
        %s474 = smul.u32 2, %s21
        %s475 = smul.u32 2, %s21
        %p476 = scmp.lt.s32.totalorder %s20, 0
        %s477 = scalar_select %p476, %s20, 0
        %p478 = scmp.lt.s32.totalorder %s475, 7
        %s479 = scalar_select %p478, %s475, 7
        %s480 = smul.addr %s477, 8
        %s481 = sadd.s32 %s479, %s480
        %s482 = smul.addr %s481, 4
        %s483 = scalar_lea.vmem %s4, %s482
        %s484 = smul.u32 2, %s21
        %p485 = scmp.eq.s32.totalorder %s22, 0
        // Predicated region
        $region75: #{_lambda_.74} parent=69 // pred_check
          %p486 = pneg %p485
        $region76: #{_lambda_.74} parent=69 // pred_check_branch
          %488 = sbr.rel (%p486) target = $region78
        $region77: #{_lambda_.74} parent=69 // pred_region
          %489 = vst [vmem:[#allocation2] sm:$0xff] 0.0
          %490 = vst [vmem:[#allocation2 + $0x8] sm:$0xff] 0.0
        $region78: #{_lambda_.74} parent=69 // pred_fallthru
          _
        %v491 = vld [vmem:[#allocation2] sm:$0xff]
        %v492 = vld [vmem:[#allocation2 + $0x8] sm:$0xff]
        %v493 = vld [vmem:[%s456] sm:$0xff]
        %v494 = vld [vmem:[%s399] sm:$0xff]
        %v495 = vld [vmem:[%s399 + $0x8] sm:$0xff]
        %v496 = vld [vmem:[%s399 + $0x10] sm:$0xff]
        %v497 = vld [vmem:[%s399 + $0x18] sm:$0xff]
        %v498 = vld [vmem:[%s399 + $0x20] sm:$0xff]
        %v499 = vld [vmem:[%s399 + $0x28] sm:$0xff]
        %v500 = vld [vmem:[%s399 + $0x30] sm:$0xff]
        %v501 = vld [vmem:[%s399 + $0x38] sm:$0xff]
        %v502 = vld [vmem:[%s399 + $0x40] sm:$0xff]
        %v503 = vld [vmem:[%s399 + $0x48] sm:$0xff]
        %v504 = vld [vmem:[%s399 + $0x50] sm:$0xff]
        %v505 = vld [vmem:[%s399 + $0x58] sm:$0xff]
        %v506 = vld [vmem:[%s399 + $0x60] sm:$0xff]
        %v507 = vld [vmem:[%s399 + $0x68] sm:$0xff]
        %v508 = vld [vmem:[%s399 + $0x70] sm:$0xff]
        %v509 = vld [vmem:[%s399 + $0x78] sm:$0xff]
        %v510 = vld [vmem:[%s399 + $0x80] sm:$0xff]
        %v511 = vld [vmem:[%s399 + $0x88] sm:$0xff]
        %v512 = vld [vmem:[%s399 + $0x90] sm:$0xff]
        %v513 = vld [vmem:[%s399 + $0x98] sm:$0xff]
        %v514 = vld [vmem:[%s399 + $0xa0] sm:$0xff]
        %v515 = vld [vmem:[%s399 + $0xa8] sm:$0xff]
        %v516 = vld [vmem:[%s399 + $0xb0] sm:$0xff]
        %v517 = vld [vmem:[%s399 + $0xb8] sm:$0xff]
        %v518 = vld [vmem:[%s399 + $0xc0] sm:$0xff]
        %v519 = vld [vmem:[%s399 + $0xc8] sm:$0xff]
        %v520 = vld [vmem:[%s399 + $0xd0] sm:$0xff]
        %v521 = vld [vmem:[%s399 + $0xd8] sm:$0xff]
        %v522 = vld [vmem:[%s399 + $0xe0] sm:$0xff]
        %v523 = vld [vmem:[%s399 + $0xe8] sm:$0xff]
        %v524 = vld [vmem:[%s399 + $0xf0] sm:$0xff]
        %v525 = vld [vmem:[%s399 + $0xf8] sm:$0xff]
        %v527 = vunpack.c.l.b16 %v493
        %v528 = vunpack.c.h.b16 %v493
        %v529 = vpack.c.b16 %v527, %v527
        %v530 = vpack.c.b16 %v528, %v528
        %v565 = vunpack.c.l.b16 %v494
        %v566 = vunpack.c.h.b16 %v494
        %v567 = vunpack.c.l.b16 %v495
        %v568 = vunpack.c.h.b16 %v495
        %v569 = vunpack.c.l.b16 %v496
        %v570 = vunpack.c.h.b16 %v496
        %v571 = vunpack.c.l.b16 %v497
        %v572 = vunpack.c.h.b16 %v497
        %v573 = vunpack.c.l.b16 %v498
        %v574 = vunpack.c.h.b16 %v498
        %v575 = vunpack.c.l.b16 %v499
        %v576 = vunpack.c.h.b16 %v499
        %v577 = vunpack.c.l.b16 %v500
        %v578 = vunpack.c.h.b16 %v500
        %v579 = vunpack.c.l.b16 %v501
        %v580 = vunpack.c.h.b16 %v501
        %v581 = vunpack.c.l.b16 %v502
        %v582 = vunpack.c.h.b16 %v502
        %v583 = vunpack.c.l.b16 %v503
        %v584 = vunpack.c.h.b16 %v503
        %v585 = vunpack.c.l.b16 %v504
        %v586 = vunpack.c.h.b16 %v504
        %v587 = vunpack.c.l.b16 %v505
        %v588 = vunpack.c.h.b16 %v505
        %v589 = vunpack.c.l.b16 %v506
        %v590 = vunpack.c.h.b16 %v506
        %v591 = vunpack.c.l.b16 %v507
        %v592 = vunpack.c.h.b16 %v507
        %v593 = vunpack.c.l.b16 %v508
        %v594 = vunpack.c.h.b16 %v508
        %v595 = vunpack.c.l.b16 %v509
        %v596 = vunpack.c.h.b16 %v509
        %v597 = vunpack.c.l.b16 %v510
        %v598 = vunpack.c.h.b16 %v510
        %v599 = vunpack.c.l.b16 %v511
        %v600 = vunpack.c.h.b16 %v511
        %v601 = vunpack.c.l.b16 %v512
        %v602 = vunpack.c.h.b16 %v512
        %v603 = vunpack.c.l.b16 %v513
        %v604 = vunpack.c.h.b16 %v513
        %v605 = vunpack.c.l.b16 %v514
        %v606 = vunpack.c.h.b16 %v514
        %v607 = vunpack.c.l.b16 %v515
        %v608 = vunpack.c.h.b16 %v515
        %v609 = vunpack.c.l.b16 %v516
        %v610 = vunpack.c.h.b16 %v516
        %v611 = vunpack.c.l.b16 %v517
        %v612 = vunpack.c.h.b16 %v517
        %v613 = vunpack.c.l.b16 %v518
        %v614 = vunpack.c.h.b16 %v518
        %v615 = vunpack.c.l.b16 %v519
        %v616 = vunpack.c.h.b16 %v519
        %v617 = vunpack.c.l.b16 %v520
        %v618 = vunpack.c.h.b16 %v520
        %v619 = vunpack.c.l.b16 %v521
        %v620 = vunpack.c.h.b16 %v521
        %v621 = vunpack.c.l.b16 %v522
        %v622 = vunpack.c.h.b16 %v522
        %v623 = vunpack.c.l.b16 %v523
        %v624 = vunpack.c.h.b16 %v523
        %v625 = vunpack.c.l.b16 %v524
        %v626 = vunpack.c.h.b16 %v524
        %v627 = vunpack.c.l.b16 %v525
        %v628 = vunpack.c.h.b16 %v525
        %v629 = vpack.c.b16 %v567, %v565
        %v630 = vpack.c.b16 %v568, %v566
        %v631 = vpack.c.b16 %v571, %v569
        %v632 = vpack.c.b16 %v572, %v570
        %v633 = vpack.c.b16 %v575, %v573
        %v634 = vpack.c.b16 %v576, %v574
        %v635 = vpack.c.b16 %v579, %v577
        %v636 = vpack.c.b16 %v580, %v578
        %v637 = vpack.c.b16 %v583, %v581
        %v638 = vpack.c.b16 %v584, %v582
        %v639 = vpack.c.b16 %v587, %v585
        %v640 = vpack.c.b16 %v588, %v586
        %v641 = vpack.c.b16 %v591, %v589
        %v642 = vpack.c.b16 %v592, %v590
        %v643 = vpack.c.b16 %v595, %v593
        %v644 = vpack.c.b16 %v596, %v594
        %v645 = vpack.c.b16 %v599, %v597
        %v646 = vpack.c.b16 %v600, %v598
        %v647 = vpack.c.b16 %v603, %v601
        %v648 = vpack.c.b16 %v604, %v602
        %v649 = vpack.c.b16 %v607, %v605
        %v650 = vpack.c.b16 %v608, %v606
        %v651 = vpack.c.b16 %v611, %v609
        %v652 = vpack.c.b16 %v612, %v610
        %v653 = vpack.c.b16 %v615, %v613
        %v654 = vpack.c.b16 %v616, %v614
        %v655 = vpack.c.b16 %v619, %v617
        %v656 = vpack.c.b16 %v620, %v618
        %v657 = vpack.c.b16 %v623, %v621
        %v658 = vpack.c.b16 %v624, %v622
        %v659 = vpack.c.b16 %v627, %v625
        %v660 = vpack.c.b16 %v628, %v626
        %693 = vmatprep.subr.bf16.mxu0 %v630
        %694 = vmatpush1.bf16.msra.mxu0 %v629
        %695 = vmatprep.subr.bf16.mxu0 %v632
        %696 = vmatpush1.bf16.msra.mxu0 %v631
        %697 = vmatprep.subr.bf16.mxu0 %v634
        %698 = vmatpush1.bf16.msra.mxu0 %v633
        %699 = vmatprep.subr.bf16.mxu0 %v636
        %700 = vmatpush1.bf16.msra.mxu0 %v635
        %701 = vmatprep.subr.bf16.mxu0 %v638
        %702 = vmatpush1.bf16.msra.mxu0 %v637
        %703 = vmatprep.subr.bf16.mxu0 %v640
        %704 = vmatpush1.bf16.msra.mxu0 %v639
        %705 = vmatprep.subr.bf16.mxu0 %v642
        %706 = vmatpush1.bf16.msra.mxu0 %v641
        %707 = vmatprep.subr.bf16.mxu0 %v644
        %708 = vmatpush1.bf16.msra.mxu0 %v643
        %709 = vmatprep.subr.bf16.mxu0 %v646
        %710 = vmatpush1.bf16.msra.mxu0 %v645
        %711 = vmatprep.subr.bf16.mxu0 %v648
        %712 = vmatpush1.bf16.msra.mxu0 %v647
        %713 = vmatprep.subr.bf16.mxu0 %v650
        %714 = vmatpush1.bf16.msra.mxu0 %v649
        %715 = vmatprep.subr.bf16.mxu0 %v652
        %716 = vmatpush1.bf16.msra.mxu0 %v651
        %717 = vmatprep.subr.bf16.mxu0 %v654
        %718 = vmatpush1.bf16.msra.mxu0 %v653
        %719 = vmatprep.subr.bf16.mxu0 %v656
        %720 = vmatpush1.bf16.msra.mxu0 %v655
        %721 = vmatprep.subr.bf16.mxu0 %v658
        %722 = vmatpush1.bf16.msra.mxu0 %v657
        %723 = vmatprep.subr.bf16.mxu0 %v660
        %724 = vmatpush1.bf16.msra.mxu0 %v659
        %725 = vmatprep.mubr.bf16.mxu0 %v530
        %726 = vmatmul.mubr.bf16.gmra.mrb[0].mxu0 %v529
        %v727 = vpop.f32.mrb[0].mxu0
        %v728 = vadd.f32 0.0, %v727
        %v729 = vpop.f32.mrb[0].mxu0
        %v730 = vadd.f32 0.0, %v729
        %v731 = vpop.f32.mrb[0].mxu0
        %v732 = vpop.f32.mrb[0].mxu0
        %733 = vdwg.mxu0
        %v734 = vadd.f32 %v491, %v728
        %v735 = vadd.f32 %v492, %v730
        %736 = vst [vmem:[#allocation2] sm:$0xff] %v734
        %737 = vst [vmem:[#allocation2 + $0x8] sm:$0xff] %v735
        // Predicated region
        $region79: #{_lambda_.74} parent=69 // pred_check
          %p738 = pneg %p485
        $region80: #{_lambda_.74} parent=69 // pred_check_branch
          %740 = sbr.rel (%p738) target = $region82
        $region81: #{_lambda_.74} parent=69 // pred_region
          %v741 = vld [vmem:[#allocation2] sm:$0xff]
          %v742 = vld [vmem:[#allocation2 + $0x8] sm:$0xff]
          %v743 = vld [vmem:[%s463] sm:$0x3]
          %v745 = vlaneseq
          %v746 = vshrl.u32 %v745, 7
          %v747 = vsub.s32 0, %v746
          %v748 = vrot.slane %v743, %v747
          %v749 = vlaneseq
          %v750 = vshrl.u32 %v749, 7
          %v751 = vsub.s32 1, %v750
          %v752 = vrot.slane %v743, %v751
          %v755 = vadd.f32 %v741, %v748
          %v756 = vadd.f32 %v742, %v752
          %v757 = vld [vmem:[%s473] sm:$0xff]
          %v758 = vunpack.c.l.bf16 %v757
          %v759 = vunpack.c.h.bf16 %v757
          %v760 = vadd.f32 %v755, %v758
          %v761 = vadd.f32 %v756, %v759
          %v762 = vmax.f32 %v760, 0.0
          %v763 = vmax.f32 %v761, 0.0
          %v764 = vpack.c.bf16 %v762, %v762
          %v765 = vpack.c.bf16 %v763, %v763
          %v768 = vunpack.c.l.b16 %v764
          %v769 = vunpack.c.l.b16 %v765
          %v770 = vpack.c.b16 %v769, %v768
          %772 = vst [vmem:[%s483] sm:$0xff] %v770
        $region82: #{_lambda_.74} parent=69 // pred_fallthru
          _
        %s773 = smul.u32 2, %s21
        %p774 = scmp.lt.s32.totalorder %s20, 0
        %s775 = scalar_select %p774, %s20, 0
        %p776 = scmp.lt.s32.totalorder %s773, 7
        %s777 = scalar_select %p776, %s773, 7
        %s778 = smul.addr %s775, 8
        %s779 = sadd.s32 %s777, %s778
        %s780 = smul.addr %s779, 4
        %s781 = scalar_lea.vmem %s4, %s780
        // Predicated region
        $region83: #{_lambda_.74} parent=69 // pred_check
          %p782 = pneg %p164
        $region84: #{_lambda_.74} parent=69 // pred_check_branch
          %784 = sbr.rel (%p782) target = $region86
        $region85: #{_lambda_.74} parent=69 // pred_region
          %s785 = smul.u32 2, %s21
        $region86: #{_lambda_.74} parent=69 // pred_fallthru
          _
      $region70: #{_lambda_.74} parent=5 // pred_fallthru
        _
      %p786 = scmp.le.s32.totalorder 2, %s10
      // Predicated region
      $region87: #{_lambda_.74} parent=5 // pred_check
        %p787 = pneg %p786
      $region88: #{_lambda_.74} parent=5 // pred_check_branch
        %789 = sbr.rel (%p787) target = $region90
      $region89: #{_lambda_.74} parent=5 // pred_region
        %s790 = ssub.s32 %s10, 2
        // Predicated region
        $region91: #{_lambda_.74} parent=89 // pred_check
          %p791 = pneg %p170
        $region92: #{_lambda_.74} parent=89 // pred_check_branch
          %793 = sbr.rel (%p791) target = $region94
        $region93: #{_lambda_.74} parent=89 // pred_region
          %s794 = smul.u32 2, %s24
          %p795 = scmp.lt.s32.totalorder %s23, 0
          %s796 = scalar_select %p795, %s23, 0
          %p797 = scmp.lt.s32.totalorder %s794, 7
          %s798 = scalar_select %p797, %s794, 7
          %s799 = smul.addr %s796, 8
          %s800 = sadd.s32 %s798, %s799
          %s801 = smul.addr %s800, 4
          %s802 = scalar_lea.vmem %s4, %s801
        $region94: #{_lambda_.74} parent=89 // pred_fallthru
          _
      $region90: #{_lambda_.74} parent=5 // pred_fallthru
        _
    $region6: #{_lambda_.74} parent=1 // loop_footer
      %s14 = sadd.s32 1, %s10
    $region7: #{_lambda_.74} parent=1 // loop_footer_branch
      %9 = sbr.rel target = $region3
    $region8: #{_lambda_.74} parent=1 // loop_exit
      _

// kernel: _lambda_.75
$region0: #{_lambda_.75}
  #allocation0 [shape = 'u32[]', space=smem, size = 0x4, offset = 0x4, fixed_abs, tag = 'smem constant byte address 0x4 - core index']
  #allocation1 [shape = 'u32[144,128]{1,0:T(1,128)}', space=vmem, size = 0x12000, scoped, tag = 'internal scratch']
  #allocation2 [shape = 'f32[8,256]{1,0:T(8,128)}', space=vmem, size = 0x2000, scoped, tag = 'scratch operand']
  %s0 = inlined_call_operand.vmem [shape: bf16[8,1024], index: 0, kind: input, shape index: {}]
  %s1 = inlined_call_operand.vmem [shape: bf16[1024,256], index: 1, kind: input, shape index: {}]
  %s2 = inlined_call_operand.vmem [shape: f32[1,256], index: 2, kind: input, shape index: {}]
  %s3 = inlined_call_operand.vmem [shape: bf16[8,256], index: 3, kind: output, shape index: {}]
  %s4 = sld [smem:[#allocation0]]
  $region53: #{_lambda_.75} parent=0
    _
  %s6 = ssub.s32 1, %s4
  %s7 = scalar_select 0, %s6, %s4
  loop: start=0, step=1, limit=4
  $region2: #{_lambda_.75} parent=0 // loop_pre_header
    _
  $region3: #{_lambda_.75} parent=0 // loop_header
    %s9 = sphi 0, %s13
    %p10 = scmp.ge.s32.totalorder %s9, 4
    %s16 = sphi 0, %s35
    %s17 = sphi 0, %s31
    %s18 = sphi 0, %s27
    %s19 = sphi 0, %s16
    %s20 = sphi 0, %s17
    %s21 = sphi 0, %s18
    %s22 = sphi 0, %s19
    %s23 = sphi 0, %s20
    %s24 = sphi 0, %s21
    %s40 = sphi 0, %s42
    %s43 = sphi 0, %s40
    %s44 = sphi 0, %s43
    %s60 = sphi 0, %s44
    %s68 = sphi 0, %s70
    %s71 = sphi 0, %s68
    %s72 = sphi 0, %s71
    %s88 = sphi 0, %s72
    %s94 = sphi 0, %s96
    %s97 = sphi 0, %s94
    %s98 = sphi 0, %s97
    %s114 = sphi 0, %s98
    %s122 = sphi 0, %s124
    %s125 = sphi 0, %s122
    %s126 = sphi 0, %s125
    %s142 = sphi 0, %s126
  $region4: #{_lambda_.75} parent=0 // loop_header_branch
    %12 = sbr.rel (%p10) target = $region8
  $region5: #{_lambda_.75} parent=0 // loop_body
    %s14 = ssub.s32 %s9, 1
    %s15 = ssub.s32 %s9, 2
    %s25 = sadd.s32 1, %s18
    %p26 = scmp.ge.s32.totalorder %s25, 2
    %s27 = scalar_select %p26, 0, %s25
    %s28 = sadd.s32 1, %s17
    %s29 = scalar_select %p26, %s28, %s17
    %p30 = scmp.ge.s32.totalorder %s29, 1
    %s31 = scalar_select %p30, 0, %s29
    %s32 = sadd.s32 1, %s16
    %s33 = scalar_select %p30, %s32, %s16
    %p34 = scmp.ge.s32.totalorder %s33, 1
    %s35 = scalar_select %p34, 0, %s33
    %s36 = ssub.s32 %s16, %s35
    %s37 = ssub.s32 %s18, %s27
    %s38 = sor.u32 %s36, %s37
    %p39 = scmp.eq.s32.totalorder %s38, 0
    %s41 = sadd.s32 %s40, 1
    %s42 = scalar_select %p39, %s40, %s41
    %p45 = pneg %p39
    %p46 = scmp.eq.s32.totalorder %s9, 1
    %p47 = por %p45, %p46
    %p48 = scmp.ne.s32.totalorder %s40, %s43
    %p49 = scmp.eq.s32.totalorder %s9, 0
    %p50 = por %p48, %p49
    %p51 = scmp.ne.s32.totalorder %s40, %s43
    %p52 = scmp.eq.s32.totalorder %s14, 1
    %p53 = por %p51, %p52
    %p54 = scmp.ne.s32.totalorder %s43, %s44
    %p55 = scmp.eq.s32.totalorder %s14, 0
    %p56 = por %p54, %p55
    %p57 = scmp.ne.s32.totalorder %s43, %s44
    %p58 = scmp.eq.s32.totalorder %s15, 1
    %p59 = por %p57, %p58
    %p61 = scmp.ne.s32.totalorder %s44, %s60
    %p62 = scmp.eq.s32.totalorder %s15, 0
    %p63 = por %p61, %p62
    %s64 = ssub.s32 %s18, %s27
    %s65 = ssub.s32 %s17, %s31
    %s66 = sor.u32 %s64, %s65
    %p67 = scmp.eq.s32.totalorder %s66, 0
    %s69 = sadd.s32 %s68, 1
    %s70 = scalar_select %p67, %s68, %s69
    %p73 = pneg %p67
    %p74 = scmp.eq.s32.totalorder %s9, 1
    %p75 = por %p73, %p74
    %p76 = scmp.ne.s32.totalorder %s68, %s71
    %p77 = scmp.eq.s32.totalorder %s9, 0
    %p78 = por %p76, %p77
    %p79 = scmp.ne.s32.totalorder %s68, %s71
    %p80 = scmp.eq.s32.totalorder %s14, 1
    %p81 = por %p79, %p80
    %p82 = scmp.ne.s32.totalorder %s71, %s72
    %p83 = scmp.eq.s32.totalorder %s14, 0
    %p84 = por %p82, %p83
    %p85 = scmp.ne.s32.totalorder %s71, %s72
    %p86 = scmp.eq.s32.totalorder %s15, 1
    %p87 = por %p85, %p86
    %p89 = scmp.ne.s32.totalorder %s72, %s88
    %p90 = scmp.eq.s32.totalorder %s15, 0
    %p91 = por %p89, %p90
    %s92 = ssub.s32 %s17, %s31
    %p93 = scmp.eq.s32.totalorder %s92, 0
    %s95 = sadd.s32 %s94, 1
    %s96 = scalar_select %p93, %s94, %s95
    %p99 = pneg %p93
    %p100 = scmp.eq.s32.totalorder %s9, 1
    %p101 = por %p99, %p100
    %p102 = scmp.ne.s32.totalorder %s94, %s97
    %p103 = scmp.eq.s32.totalorder %s9, 0
    %p104 = por %p102, %p103
    %p105 = scmp.ne.s32.totalorder %s94, %s97
    %p106 = scmp.eq.s32.totalorder %s14, 1
    %p107 = por %p105, %p106
    %p108 = scmp.ne.s32.totalorder %s97, %s98
    %p109 = scmp.eq.s32.totalorder %s14, 0
    %p110 = por %p108, %p109
    %p111 = scmp.ne.s32.totalorder %s97, %s98
    %p112 = scmp.eq.s32.totalorder %s15, 1
    %p113 = por %p111, %p112
    %p115 = scmp.ne.s32.totalorder %s98, %s114
    %p116 = scmp.eq.s32.totalorder %s15, 0
    %p117 = por %p115, %p116
    %s118 = ssub.s32 %s16, %s35
    %s119 = ssub.s32 %s17, %s31
    %s120 = sor.u32 %s118, %s119
    %p121 = scmp.eq.s32.totalorder %s120, 0
    %s123 = sadd.s32 %s122, 1
    %s124 = scalar_select %p121, %s122, %s123
    %p127 = pneg %p121
    %p128 = scmp.eq.s32.totalorder %s9, 1
    %p129 = por %p127, %p128
    %p130 = scmp.ne.s32.totalorder %s122, %s125
    %p131 = scmp.eq.s32.totalorder %s9, 0
    %p132 = por %p130, %p131
    %p133 = scmp.ne.s32.totalorder %s122, %s125
    %p134 = scmp.eq.s32.totalorder %s14, 1
    %p135 = por %p133, %p134
    %p136 = scmp.ne.s32.totalorder %s125, %s126
    %p137 = scmp.eq.s32.totalorder %s14, 0
    %p138 = por %p136, %p137
    %p139 = scmp.ne.s32.totalorder %s125, %s126
    %p140 = scmp.eq.s32.totalorder %s15, 1
    %p141 = por %p139, %p140
    %p143 = scmp.ne.s32.totalorder %s126, %s142
    %p144 = scmp.eq.s32.totalorder %s15, 0
    %p145 = por %p143, %p144
    %p146 = scmp.le.s32.totalorder 1, %s9
    %p147 = scmp.lt.s32.totalorder %s9, 3
    %p148 = pnand %p146, %p147
    %p149 = pneg %p148
    // Predicated region
    $region9: #{_lambda_.75} parent=5 // pred_check
      _
    $region10: #{_lambda_.75} parent=5 // pred_check_branch
      %151 = sbr.rel (%p148) target = $region12
    $region11: #{_lambda_.75} parent=5 // pred_region
      %s152 = ssub.s32 %s9, 1
      // Predicated region
      $region13: #{_lambda_.75} parent=11 // pred_check
        %p153 = pneg %p110
      $region14: #{_lambda_.75} parent=11 // pred_check_branch
        %155 = sbr.rel (%p153) target = $region16
      $region15: #{_lambda_.75} parent=11 // pred_region
        %s156 = smul.u32 2, %s20
        %p157 = scmp.lt.s32.totalorder %s156, 1
        %s158 = scalar_select %p157, %s156, 1
        %s159 = scalar_lea.vmem %s2, %s158
        %s160 = smul.u32 2, %s20
      $region16: #{_lambda_.75} parent=11 // pred_fallthru
        _
    $region12: #{_lambda_.75} parent=5 // pred_fallthru
      _
    %p161 = scmp.lt.s32.totalorder %s9, 2
    // Predicated region
    $region17: #{_lambda_.75} parent=5 // pred_check
      %p162 = pneg %p161
    $region18: #{_lambda_.75} parent=5 // pred_check_branch
      %164 = sbr.rel (%p162) target = $region20
    $region19: #{_lambda_.75} parent=5 // pred_region
      // Predicated region
      $region21: #{_lambda_.75} parent=19 // pred_check
        %p165 = pneg %p50
      $region22: #{_lambda_.75} parent=19 // pred_check_branch
        %167 = sbr.rel (%p165) target = $region24
      $region23: #{_lambda_.75} parent=19 // pred_region
        %s168 = smul.u32 4, %s18
        %p169 = scmp.lt.s32.totalorder %s16, 0
        %s170 = scalar_select %p169, %s16, 0
        %p171 = scmp.lt.s32.totalorder %s168, 7
        %s172 = scalar_select %p171, %s168, 7
        %s173 = smul.addr %s170, 8
        %s174 = sadd.s32 %s172, %s173
        %s175 = smul.addr %s174, 4
        %s176 = scalar_lea.vmem %s0, %s175
        %s177 = smul.u32 4, %s18
      $region24: #{_lambda_.75} parent=19 // pred_fallthru
        _
      // Predicated region
      $region25: #{_lambda_.75} parent=19 // pred_check
        %p178 = pneg %p78
      $region26: #{_lambda_.75} parent=19 // pred_check_branch
        %180 = sbr.rel (%p178) target = $region28
      $region27: #{_lambda_.75} parent=19 // pred_region
        %s181 = smul.u32 64, %s18
        %s182 = smul.u32 2, %s17
        %p183 = scmp.lt.s32.totalorder %s181, 127
        %s184 = scalar_select %p183, %s181, 127
        %p185 = scmp.lt.s32.totalorder %s182, 1
        %s186 = scalar_select %p185, %s182, 1
        %s187 = smul.addr %s184, 2
        %s188 = sadd.s32 %s186, %s187
        %s189 = smul.addr %s188, 4
        %s190 = scalar_lea.vmem %s1, %s189
        %s191 = smul.u32 64, %s18
        %s192 = smul.u32 2, %s17
      $region28: #{_lambda_.75} parent=19 // pred_fallthru
        _
    $region20: #{_lambda_.75} parent=5 // pred_fallthru
      _
    %p193 = scmp.le.s32.totalorder 1, %s9
    %p194 = scmp.lt.s32.totalorder %s9, 3
    %p195 = pnand %p193, %p194
    %p196 = pneg %p195
    // Predicated region
    $region29: #{_lambda_.75} parent=5 // pred_check
      _
    $region30: #{_lambda_.75} parent=5 // pred_check_branch
      %198 = sbr.rel (%p195) target = $region32
    $region31: #{_lambda_.75} parent=5 // pred_region
      %s199 = ssub.s32 %s9, 1
      %s200 = smul.u32 4, %s21
      %p201 = scmp.lt.s32.totalorder %s19, 0
      %s202 = scalar_select %p201, %s19, 0
      %p203 = scmp.lt.s32.totalorder %s200, 7
      %s204 = scalar_select %p203, %s200, 7
      %s205 = smul.addr %s202, 8
      %s206 = sadd.s32 %s204, %s205
      %s207 = smul.addr %s206, 4
      %s208 = scalar_lea.vmem %s0, %s207
      %p209 = pneg %p56
      %p210 = pneg %p53
      %s211 = smul.u32 64, %s21
      %s212 = smul.u32 2, %s20
      %p213 = scmp.lt.s32.totalorder %s211, 127
      %s214 = scalar_select %p213, %s211, 127
      %p215 = scmp.lt.s32.totalorder %s212, 1
      %s216 = scalar_select %p215, %s212, 1
      %s217 = smul.addr %s214, 2
      %s218 = sadd.s32 %s216, %s217
      %s219 = smul.addr %s218, 4
      %s220 = scalar_lea.vmem %s1, %s219
      %p221 = pneg %p84
      %p222 = pneg %p81
      %s223 = smul.u32 2, %s20
      %p224 = scmp.lt.s32.totalorder %s223, 1
      %s225 = scalar_select %p224, %s223, 1
      %s226 = scalar_lea.vmem %s2, %s225
      %p227 = pneg %p110
      %p228 = pneg %p107
      %p229 = pneg %p138
      %p230 = pneg %p135
      %s231 = smul.u32 2, %s20
      %p232 = scmp.lt.s32.totalorder %s19, 0
      %s233 = scalar_select %p232, %s19, 0
      %p234 = scmp.lt.s32.totalorder %s231, 1
      %s235 = scalar_select %p234, %s231, 1
      %s236 = smul.addr %s233, 2
      %s237 = sadd.s32 %s235, %s236
      %s238 = smul.addr %s237, 4
      %s239 = scalar_lea.vmem %s3, %s238
      %s240 = smul.u32 4, %s21
      %p241 = scmp.lt.s32.totalorder %s19, 0
      %s242 = scalar_select %p241, %s19, 0
      %p243 = scmp.lt.s32.totalorder %s240, 7
      %s244 = scalar_select %p243, %s240, 7
      %s245 = smul.addr %s242, 8
      %s246 = sadd.s32 %s244, %s245
      %s247 = smul.addr %s246, 4
      %s248 = scalar_lea.vmem %s0, %s247
      %s249 = smul.u32 4, %s21
      %s250 = smul.u32 64, %s21
      %s251 = smul.u32 2, %s20
      %p252 = scmp.lt.s32.totalorder %s250, 127
      %s253 = scalar_select %p252, %s250, 127
      %p254 = scmp.lt.s32.totalorder %s251, 1
      %s255 = scalar_select %p254, %s251, 1
      %s256 = smul.addr %s253, 2
      %s257 = sadd.s32 %s255, %s256
      %s258 = smul.addr %s257, 4
      %s259 = scalar_lea.vmem %s1, %s258
      %s260 = smul.u32 64, %s21
      %s261 = smul.u32 2, %s20
      %s262 = smul.u32 2, %s20
      %p263 = scmp.lt.s32.totalorder %s262, 1
      %s264 = scalar_select %p263, %s262, 1
      %s265 = scalar_lea.vmem %s2, %s264
      %s266 = smul.u32 2, %s20
      %s267 = smul.u32 2, %s20
      %p268 = scmp.lt.s32.totalorder %s19, 0
      %s269 = scalar_select %p268, %s19, 0
      %p270 = scmp.lt.s32.totalorder %s267, 1
      %s271 = scalar_select %p270, %s267, 1
      %s272 = smul.addr %s269, 2
      %s273 = sadd.s32 %s271, %s272
      %s274 = smul.addr %s273, 4
      %s275 = scalar_lea.vmem %s3, %s274
      %s276 = smul.u32 2, %s20
      %p277 = scmp.eq.s32.totalorder %s21, 0
      // Predicated region
      $region33: #{_lambda_.75} parent=31 // pred_check
        %p278 = pneg %p277
      $region34: #{_lambda_.75} parent=31 // pred_check_branch
        %280 = sbr.rel (%p278) target = $region36
      $region35: #{_lambda_.75} parent=31 // pred_region
        %281 = vst [vmem:[#allocation2] sm:$0xff] 0.0
        %282 = vst [vmem:[#allocation2 + $0x8] sm:$0xff] 0.0
      $region36: #{_lambda_.75} parent=31 // pred_fallthru
        _
      %v283 = vld [vmem:[#allocation2] sm:$0xff]
      %v284 = vld [vmem:[#allocation2 + $0x8] sm:$0xff]
      %v285 = vld [vmem:[%s248] sm:$0xff]
      %v286 = vld [vmem:[%s248 + $0x8] sm:$0xff]
      %v287 = vld [vmem:[%s259] sm:$0xff]
      %v288 = vld [vmem:[%s259 + $0x8] sm:$0xff]
      %v289 = vld [vmem:[%s259 + $0x10] sm:$0xff]
      %v290 = vld [vmem:[%s259 + $0x18] sm:$0xff]
      %v291 = vld [vmem:[%s259 + $0x20] sm:$0xff]
      %v292 = vld [vmem:[%s259 + $0x28] sm:$0xff]
      %v293 = vld [vmem:[%s259 + $0x30] sm:$0xff]
      %v294 = vld [vmem:[%s259 + $0x38] sm:$0xff]
      %v295 = vld [vmem:[%s259 + $0x40] sm:$0xff]
      %v296 = vld [vmem:[%s259 + $0x48] sm:$0xff]
      %v297 = vld [vmem:[%s259 + $0x50] sm:$0xff]
      %v298 = vld [vmem:[%s259 + $0x58] sm:$0xff]
      %v299 = vld [vmem:[%s259 + $0x60] sm:$0xff]
      %v300 = vld [vmem:[%s259 + $0x68] sm:$0xff]
      %v301 = vld [vmem:[%s259 + $0x70] sm:$0xff]
      %v302 = vld [vmem:[%s259 + $0x78] sm:$0xff]
      %v303 = vld [vmem:[%s259 + $0x80] sm:$0xff]
      %v304 = vld [vmem:[%s259 + $0x88] sm:$0xff]
      %v305 = vld [vmem:[%s259 + $0x90] sm:$0xff]
      %v306 = vld [vmem:[%s259 + $0x98] sm:$0xff]
      %v307 = vld [vmem:[%s259 + $0xa0] sm:$0xff]
      %v308 = vld [vmem:[%s259 + $0xa8] sm:$0xff]
      %v309 = vld [vmem:[%s259 + $0xb0] sm:$0xff]
      %v310 = vld [vmem:[%s259 + $0xb8] sm:$0xff]
      %v311 = vld [vmem:[%s259 + $0xc0] sm:$0xff]
      %v312 = vld [vmem:[%s259 + $0xc8] sm:$0xff]
      %v313 = vld [vmem:[%s259 + $0xd0] sm:$0xff]
      %v314 = vld [vmem:[%s259 + $0xd8] sm:$0xff]
      %v315 = vld [vmem:[%s259 + $0xe0] sm:$0xff]
      %v316 = vld [vmem:[%s259 + $0xe8] sm:$0xff]
      %v317 = vld [vmem:[%s259 + $0xf0] sm:$0xff]
      %v318 = vld [vmem:[%s259 + $0xf8] sm:$0xff]
      %v319 = vld [vmem:[%s259 + $0x100] sm:$0xff]
      %v320 = vld [vmem:[%s259 + $0x108] sm:$0xff]
      %v321 = vld [vmem:[%s259 + $0x110] sm:$0xff]
      %v322 = vld [vmem:[%s259 + $0x118] sm:$0xff]
      %v323 = vld [vmem:[%s259 + $0x120] sm:$0xff]
      %v324 = vld [vmem:[%s259 + $0x128] sm:$0xff]
      %v325 = vld [vmem:[%s259 + $0x130] sm:$0xff]
      %v326 = vld [vmem:[%s259 + $0x138] sm:$0xff]
      %v327 = vld [vmem:[%s259 + $0x140] sm:$0xff]
      %v328 = vld [vmem:[%s259 + $0x148] sm:$0xff]
      %v329 = vld [vmem:[%s259 + $0x150] sm:$0xff]
      %v330 = vld [vmem:[%s259 + $0x158] sm:$0xff]
      %v331 = vld [vmem:[%s259 + $0x160] sm:$0xff]
      %v332 = vld [vmem:[%s259 + $0x168] sm:$0xff]
      %v333 = vld [vmem:[%s259 + $0x170] sm:$0xff]
      %v334 = vld [vmem:[%s259 + $0x178] sm:$0xff]
      %v335 = vld [vmem:[%s259 + $0x180] sm:$0xff]
      %v336 = vld [vmem:[%s259 + $0x188] sm:$0xff]
      %v337 = vld [vmem:[%s259 + $0x190] sm:$0xff]
      %v338 = vld [vmem:[%s259 + $0x198] sm:$0xff]
      %v339 = vld [vmem:[%s259 + $0x1a0] sm:$0xff]
      %v340 = vld [vmem:[%s259 + $0x1a8] sm:$0xff]
      %v341 = vld [vmem:[%s259 + $0x1b0] sm:$0xff]
      %v342 = vld [vmem:[%s259 + $0x1b8] sm:$0xff]
      %v343 = vld [vmem:[%s259 + $0x1c0] sm:$0xff]
      %v344 = vld [vmem:[%s259 + $0x1c8] sm:$0xff]
      %v345 = vld [vmem:[%s259 + $0x1d0] sm:$0xff]
      %v346 = vld [vmem:[%s259 + $0x1d8] sm:$0xff]
      %v347 = vld [vmem:[%s259 + $0x1e0] sm:$0xff]
      %v348 = vld [vmem:[%s259 + $0x1e8] sm:$0xff]
      %v349 = vld [vmem:[%s259 + $0x1f0] sm:$0xff]
      %v350 = vld [vmem:[%s259 + $0x1f8] sm:$0xff]
      %v353 = vunpack.c.l.b16 %v285
      %v354 = vunpack.c.h.b16 %v285
      %v355 = vunpack.c.l.b16 %v286
      %v356 = vunpack.c.h.b16 %v286
      %v357 = vpack.c.b16 %v353, %v353
      %v358 = vpack.c.b16 %v354, %v354
      %v359 = vpack.c.b16 %v355, %v355
      %v360 = vpack.c.b16 %v356, %v356
      %v429 = vunpack.c.l.b16 %v287
      %v430 = vunpack.c.h.b16 %v287
      %v431 = vunpack.c.l.b16 %v288
      %v432 = vunpack.c.h.b16 %v288
      %v433 = vunpack.c.l.b16 %v289
      %v434 = vunpack.c.h.b16 %v289
      %v435 = vunpack.c.l.b16 %v290
      %v436 = vunpack.c.h.b16 %v290
      %v437 = vunpack.c.l.b16 %v291
      %v438 = vunpack.c.h.b16 %v291
      %v439 = vunpack.c.l.b16 %v292
      %v440 = vunpack.c.h.b16 %v292
      %v441 = vunpack.c.l.b16 %v293
      %v442 = vunpack.c.h.b16 %v293
      %v443 = vunpack.c.l.b16 %v294
      %v444 = vunpack.c.h.b16 %v294
      %v445 = vunpack.c.l.b16 %v295
      %v446 = vunpack.c.h.b16 %v295
      %v447 = vunpack.c.l.b16 %v296
      %v448 = vunpack.c.h.b16 %v296
      %v449 = vunpack.c.l.b16 %v297
      %v450 = vunpack.c.h.b16 %v297
      %v451 = vunpack.c.l.b16 %v298
      %v452 = vunpack.c.h.b16 %v298
      %v453 = vunpack.c.l.b16 %v299
      %v454 = vunpack.c.h.b16 %v299
      %v455 = vunpack.c.l.b16 %v300
      %v456 = vunpack.c.h.b16 %v300
      %v457 = vunpack.c.l.b16 %v301
      %v458 = vunpack.c.h.b16 %v301
      %v459 = vunpack.c.l.b16 %v302
      %v460 = vunpack.c.h.b16 %v302
      %v461 = vunpack.c.l.b16 %v303
      %v462 = vunpack.c.h.b16 %v303
      %v463 = vunpack.c.l.b16 %v304
      %v464 = vunpack.c.h.b16 %v304
      %v465 = vunpack.c.l.b16 %v305
      %v466 = vunpack.c.h.b16 %v305
      %v467 = vunpack.c.l.b16 %v306
      %v468 = vunpack.c.h.b16 %v306
      %v469 = vunpack.c.l.b16 %v307
      %v470 = vunpack.c.h.b16 %v307
      %v471 = vunpack.c.l.b16 %v308
      %v472 = vunpack.c.h.b16 %v308
      %v473 = vunpack.c.l.b16 %v309
      %v474 = vunpack.c.h.b16 %v309
      %v475 = vunpack.c.l.b16 %v310
      %v476 = vunpack.c.h.b16 %v310
      %v477 = vunpack.c.l.b16 %v311
      %v478 = vunpack.c.h.b16 %v311
      %v479 = vunpack.c.l.b16 %v312
      %v480 = vunpack.c.h.b16 %v312
      %v481 = vunpack.c.l.b16 %v313
      %v482 = vunpack.c.h.b16 %v313
      %v483 = vunpack.c.l.b16 %v314
      %v484 = vunpack.c.h.b16 %v314
      %v485 = vunpack.c.l.b16 %v315
      %v486 = vunpack.c.h.b16 %v315
      %v487 = vunpack.c.l.b16 %v316
      %v488 = vunpack.c.h.b16 %v316
      %v489 = vunpack.c.l.b16 %v317
      %v490 = vunpack.c.h.b16 %v317
      %v491 = vunpack.c.l.b16 %v318
      %v492 = vunpack.c.h.b16 %v318
      %v493 = vunpack.c.l.b16 %v319
      %v494 = vunpack.c.h.b16 %v319
      %v495 = vunpack.c.l.b16 %v320
      %v496 = vunpack.c.h.b16 %v320
      %v497 = vunpack.c.l.b16 %v321
      %v498 = vunpack.c.h.b16 %v321
      %v499 = vunpack.c.l.b16 %v322
      %v500 = vunpack.c.h.b16 %v322
      %v501 = vunpack.c.l.b16 %v323
      %v502 = vunpack.c.h.b16 %v323
      %v503 = vunpack.c.l.b16 %v324
      %v504 = vunpack.c.h.b16 %v324
      %v505 = vunpack.c.l.b16 %v325
      %v506 = vunpack.c.h.b16 %v325
      %v507 = vunpack.c.l.b16 %v326
      %v508 = vunpack.c.h.b16 %v326
      %v509 = vunpack.c.l.b16 %v327
      %v510 = vunpack.c.h.b16 %v327
      %v511 = vunpack.c.l.b16 %v328
      %v512 = vunpack.c.h.b16 %v328
      %v513 = vunpack.c.l.b16 %v329
      %v514 = vunpack.c.h.b16 %v329
      %v515 = vunpack.c.l.b16 %v330
      %v516 = vunpack.c.h.b16 %v330
      %v517 = vunpack.c.l.b16 %v331
      %v518 = vunpack.c.h.b16 %v331
      %v519 = vunpack.c.l.b16 %v332
      %v520 = vunpack.c.h.b16 %v332
      %v521 = vunpack.c.l.b16 %v333
      %v522 = vunpack.c.h.b16 %v333
      %v523 = vunpack.c.l.b16 %v334
      %v524 = vunpack.c.h.b16 %v334
      %v525 = vunpack.c.l.b16 %v335
      %v526 = vunpack.c.h.b16 %v335
      %v527 = vunpack.c.l.b16 %v336
      %v528 = vunpack.c.h.b16 %v336
      %v529 = vunpack.c.l.b16 %v337
      %v530 = vunpack.c.h.b16 %v337
      %v531 = vunpack.c.l.b16 %v338
      %v532 = vunpack.c.h.b16 %v338
      %v533 = vunpack.c.l.b16 %v339
      %v534 = vunpack.c.h.b16 %v339
      %v535 = vunpack.c.l.b16 %v340
      %v536 = vunpack.c.h.b16 %v340
      %v537 = vunpack.c.l.b16 %v341
      %v538 = vunpack.c.h.b16 %v341
      %v539 = vunpack.c.l.b16 %v342
      %v540 = vunpack.c.h.b16 %v342
      %v541 = vunpack.c.l.b16 %v343
      %v542 = vunpack.c.h.b16 %v343
      %v543 = vunpack.c.l.b16 %v344
      %v544 = vunpack.c.h.b16 %v344
      %v545 = vunpack.c.l.b16 %v345
      %v546 = vunpack.c.h.b16 %v345
      %v547 = vunpack.c.l.b16 %v346
      %v548 = vunpack.c.h.b16 %v346
      %v549 = vunpack.c.l.b16 %v347
      %v550 = vunpack.c.h.b16 %v347
      %v551 = vunpack.c.l.b16 %v348
      %v552 = vunpack.c.h.b16 %v348
      %v553 = vunpack.c.l.b16 %v349
      %v554 = vunpack.c.h.b16 %v349
      %v555 = vunpack.c.l.b16 %v350
      %v556 = vunpack.c.h.b16 %v350
      %v557 = vpack.c.b16 %v431, %v429
      %v558 = vpack.c.b16 %v432, %v430
      %v559 = vpack.c.b16 %v435, %v433
      %v560 = vpack.c.b16 %v436, %v434
      %v561 = vpack.c.b16 %v439, %v437
      %v562 = vpack.c.b16 %v440, %v438
      %v563 = vpack.c.b16 %v443, %v441
      %v564 = vpack.c.b16 %v444, %v442
      %v565 = vpack.c.b16 %v447, %v445
      %v566 = vpack.c.b16 %v448, %v446
      %v567 = vpack.c.b16 %v451, %v449
      %v568 = vpack.c.b16 %v452, %v450
      %v569 = vpack.c.b16 %v455, %v453
      %v570 = vpack.c.b16 %v456, %v454
      %v571 = vpack.c.b16 %v459, %v457
      %v572 = vpack.c.b16 %v460, %v458
      %v573 = vpack.c.b16 %v463, %v461
      %v574 = vpack.c.b16 %v464, %v462
      %v575 = vpack.c.b16 %v467, %v465
      %v576 = vpack.c.b16 %v468, %v466
      %v577 = vpack.c.b16 %v471, %v469
      %v578 = vpack.c.b16 %v472, %v470
      %v579 = vpack.c.b16 %v475, %v473
      %v580 = vpack.c.b16 %v476, %v474
      %v581 = vpack.c.b16 %v479, %v477
      %v582 = vpack.c.b16 %v480, %v478
      %v583 = vpack.c.b16 %v483, %v481
      %v584 = vpack.c.b16 %v484, %v482
      %v585 = vpack.c.b16 %v487, %v485
      %v586 = vpack.c.b16 %v488, %v486
      %v587 = vpack.c.b16 %v491, %v489
      %v588 = vpack.c.b16 %v492, %v490
      %v589 = vpack.c.b16 %v495, %v493
      %v590 = vpack.c.b16 %v496, %v494
      %v591 = vpack.c.b16 %v499, %v497
      %v592 = vpack.c.b16 %v500, %v498
      %v593 = vpack.c.b16 %v503, %v501
      %v594 = vpack.c.b16 %v504, %v502
      %v595 = vpack.c.b16 %v507, %v505
      %v596 = vpack.c.b16 %v508, %v506
      %v597 = vpack.c.b16 %v511, %v509
      %v598 = vpack.c.b16 %v512, %v510
      %v599 = vpack.c.b16 %v515, %v513
      %v600 = vpack.c.b16 %v516, %v514
      %v601 = vpack.c.b16 %v519, %v517
      %v602 = vpack.c.b16 %v520, %v518
      %v603 = vpack.c.b16 %v523, %v521
      %v604 = vpack.c.b16 %v524, %v522
      %v605 = vpack.c.b16 %v527, %v525
      %v606 = vpack.c.b16 %v528, %v526
      %v607 = vpack.c.b16 %v531, %v529
      %v608 = vpack.c.b16 %v532, %v530
      %v609 = vpack.c.b16 %v535, %v533
      %v610 = vpack.c.b16 %v536, %v534
      %v611 = vpack.c.b16 %v539, %v537
      %v612 = vpack.c.b16 %v540, %v538
      %v613 = vpack.c.b16 %v543, %v541
      %v614 = vpack.c.b16 %v544, %v542
      %v615 = vpack.c.b16 %v547, %v545
      %v616 = vpack.c.b16 %v548, %v546
      %v617 = vpack.c.b16 %v551, %v549
      %v618 = vpack.c.b16 %v552, %v550
      %v619 = vpack.c.b16 %v555, %v553
      %v620 = vpack.c.b16 %v556, %v554
      %685 = vmatprep.subr.bf16.mxu0 %v558
      %686 = vmatpush1.bf16.msra.mxu0 %v557
      %687 = vmatprep.subr.bf16.mxu0 %v560
      %688 = vmatpush1.bf16.msra.mxu0 %v559
      %689 = vmatprep.subr.bf16.mxu0 %v562
      %690 = vmatpush1.bf16.msra.mxu0 %v561
      %691 = vmatprep.subr.bf16.mxu0 %v564
      %692 = vmatpush1.bf16.msra.mxu0 %v563
      %693 = vmatprep.subr.bf16.mxu0 %v566
      %694 = vmatpush1.bf16.msra.mxu0 %v565
      %695 = vmatprep.subr.bf16.mxu0 %v568
      %696 = vmatpush1.bf16.msra.mxu0 %v567
      %697 = vmatprep.subr.bf16.mxu0 %v570
      %698 = vmatpush1.bf16.msra.mxu0 %v569
      %699 = vmatprep.subr.bf16.mxu0 %v572
      %700 = vmatpush1.bf16.msra.mxu0 %v571
      %701 = vmatprep.subr.bf16.mxu0 %v574
      %702 = vmatpush1.bf16.msra.mxu0 %v573
      %703 = vmatprep.subr.bf16.mxu0 %v576
      %704 = vmatpush1.bf16.msra.mxu0 %v575
      %705 = vmatprep.subr.bf16.mxu0 %v578
      %706 = vmatpush1.bf16.msra.mxu0 %v577
      %707 = vmatprep.subr.bf16.mxu0 %v580
      %708 = vmatpush1.bf16.msra.mxu0 %v579
      %709 = vmatprep.subr.bf16.mxu0 %v582
      %710 = vmatpush1.bf16.msra.mxu0 %v581
      %711 = vmatprep.subr.bf16.mxu0 %v584
      %712 = vmatpush1.bf16.msra.mxu0 %v583
      %713 = vmatprep.subr.bf16.mxu0 %v586
      %714 = vmatpush1.bf16.msra.mxu0 %v585
      %715 = vmatprep.subr.bf16.mxu0 %v588
      %716 = vmatpush1.bf16.msra.mxu0 %v587
      %717 = vmatprep.mubr.bf16.mxu0 %v358
      %718 = vmatmul.mubr.bf16.gmra.mrb[0].mxu0 %v357
      %v719 = vpop.f32.mrb[0].mxu0
      %v720 = vadd.f32 0.0, %v719
      %v721 = vpop.f32.mrb[0].mxu0
      %v722 = vadd.f32 0.0, %v721
      %v723 = vpop.f32.mrb[0].mxu0
      %v724 = vpop.f32.mrb[0].mxu0
      %725 = vdwg.mxu0
      %726 = vmatprep.subr.bf16.mxu0 %v590
      %727 = vmatpush1.bf16.msra.mxu0 %v589
      %728 = vmatprep.subr.bf16.mxu0 %v592
      %729 = vmatpush1.bf16.msra.mxu0 %v591
      %730 = vmatprep.subr.bf16.mxu0 %v594
      %731 = vmatpush1.bf16.msra.mxu0 %v593
      %732 = vmatprep.subr.bf16.mxu0 %v596
      %733 = vmatpush1.bf16.msra.mxu0 %v595
      %734 = vmatprep.subr.bf16.mxu0 %v598
      %735 = vmatpush1.bf16.msra.mxu0 %v597
      %736 = vmatprep.subr.bf16.mxu0 %v600
      %737 = vmatpush1.bf16.msra.mxu0 %v599
      %738 = vmatprep.subr.bf16.mxu0 %v602
      %739 = vmatpush1.bf16.msra.mxu0 %v601
      %740 = vmatprep.subr.bf16.mxu0 %v604
      %741 = vmatpush1.bf16.msra.mxu0 %v603
      %742 = vmatprep.subr.bf16.mxu0 %v606
      %743 = vmatpush1.bf16.msra.mxu0 %v605
      %744 = vmatprep.subr.bf16.mxu0 %v608
      %745 = vmatpush1.bf16.msra.mxu0 %v607
      %746 = vmatprep.subr.bf16.mxu0 %v610
      %747 = vmatpush1.bf16.msra.mxu0 %v609
      %748 = vmatprep.subr.bf16.mxu0 %v612
      %749 = vmatpush1.bf16.msra.mxu0 %v611
      %750 = vmatprep.subr.bf16.mxu0 %v614
      %751 = vmatpush1.bf16.msra.mxu0 %v613
      %752 = vmatprep.subr.bf16.mxu0 %v616
      %753 = vmatpush1.bf16.msra.mxu0 %v615
      %754 = vmatprep.subr.bf16.mxu0 %v618
      %755 = vmatpush1.bf16.msra.mxu0 %v617
      %756 = vmatprep.subr.bf16.mxu0 %v620
      %757 = vmatpush1.bf16.msra.mxu0 %v619
      %758 = vmatprep.mubr.bf16.mxu0 %v360
      %759 = vmatmul.mubr.bf16.gmra.mrb[0].mxu0 %v359
      %v760 = vpop.f32.mrb[0].mxu0
      %v761 = vadd.f32 %v720, %v760
      %v762 = vpop.f32.mrb[0].mxu0
      %v763 = vadd.f32 %v722, %v762
      %v764 = vpop.f32.mrb[0].mxu0
      %v765 = vpop.f32.mrb[0].mxu0
      %766 = vdwg.mxu0
      %v767 = vadd.f32 %v283, %v761
      %v768 = vadd.f32 %v284, %v763
      %769 = vst [vmem:[#allocation2] sm:$0xff] %v767
      %770 = vst [vmem:[#allocation2 + $0x8] sm:$0xff] %v768
      %p771 = scmp.eq.s32.totalorder %s21, 1
      // Predicated region
      $region37: #{_lambda_.75} parent=31 // pred_check
        %p772 = pneg %p771
      $region38: #{_lambda_.75} parent=31 // pred_check_branch
        %774 = sbr.rel (%p772) target = $region40
      $region39: #{_lambda_.75} parent=31 // pred_region
        %v775 = vld [vmem:[#allocation2] sm:$0xff]
        %v776 = vld [vmem:[#allocation2 + $0x8] sm:$0xff]
        %v777 = vld [vmem:[%s265] sm:$0x3]
        %v779 = vlaneseq
        %v780 = vshrl.u32 %v779, 7
        %v781 = vsub.s32 0, %v780
        %v782 = vrot.slane %v777, %v781
        %v783 = vlaneseq
        %v784 = vshrl.u32 %v783, 7
        %v785 = vsub.s32 1, %v784
        %v786 = vrot.slane %v777, %v785
        %v789 = vadd.f32 %v775, %v782
        %v790 = vadd.f32 %v776, %v786
        %v791 = vmax.f32 %v789, 0.0
        %v792 = vmax.f32 %v790, 0.0
        %v793 = vpack.c.bf16 %v791, %v791
        %v794 = vpack.c.bf16 %v792, %v792
        %v797 = vunpack.c.l.b16 %v793
        %v798 = vunpack.c.l.b16 %v794
        %v799 = vpack.c.b16 %v798, %v797
        %801 = vst [vmem:[%s275] sm:$0xff] %v799
      $region40: #{_lambda_.75} parent=31 // pred_fallthru
        _
      %s802 = smul.u32 2, %s20
      %p803 = scmp.lt.s32.totalorder %s19, 0
      %s804 = scalar_select %p803, %s19, 0
      %p805 = scmp.lt.s32.totalorder %s802, 1
      %s806 = scalar_select %p805, %s802, 1
      %s807 = smul.addr %s804, 2
      %s808 = sadd.s32 %s806, %s807
      %s809 = smul.addr %s808, 4
      %s810 = scalar_lea.vmem %s3, %s809
      // Predicated region
      $region41: #{_lambda_.75} parent=31 // pred_check
        %p811 = pneg %p135
      $region42: #{_lambda_.75} parent=31 // pred_check_branch
        %813 = sbr.rel (%p811) target = $region44
      $region43: #{_lambda_.75} parent=31 // pred_region
        %s814 = smul.u32 2, %s20
      $region44: #{_lambda_.75} parent=31 // pred_fallthru
        _
      // Predicated region
      $region45: #{_lambda_.75} parent=31 // pred_check
        %p815 = pneg %p135
      $region46: #{_lambda_.75} parent=31 // pred_check_branch
        %817 = sbr.rel (%p815) target = $region48
      $region47: #{_lambda_.75} parent=31 // pred_region
        %s818 = smul.u32 2, %s20
        %p819 = scmp.lt.s32.totalorder %s19, 0
        %s820 = scalar_select %p819, %s19, 0
        %p821 = scmp.lt.s32.totalorder %s818, 1
        %s822 = scalar_select %p821, %s818, 1
        %s823 = smul.addr %s820, 2
        %s824 = sadd.s32 %s822, %s823
        %s825 = smul.addr %s824, 4
        %s826 = scalar_lea.vmem %s3, %s825
      $region48: #{_lambda_.75} parent=31 // pred_fallthru
        _
    $region32: #{_lambda_.75} parent=5 // pred_fallthru
      _
    %p827 = scmp.le.s32.totalorder 2, %s9
    // Predicated region
    $region49: #{_lambda_.75} parent=5 // pred_check
      %p828 = pneg %p827
    $region50: #{_lambda_.75} parent=5 // pred_check_branch
      %830 = sbr.rel (%p828) target = $region52
    $region51: #{_lambda_.75} parent=5 // pred_region
      %s831 = ssub.s32 %s9, 2
    $region52: #{_lambda_.75} parent=5 // pred_fallthru
      _
  $region6: #{_lambda_.75} parent=0 // loop_footer
    %s13 = sadd.s32 1, %s9
  $region7: #{_lambda_.75} parent=0 // loop_footer_branch
    %8 = sbr.rel target = $region3
  $region8: #{_lambda_.75} parent=0 // loop_exit
    _

</llo_original>
